<compile_context>
chip_gen: v6e
topology: v6e:2x2x1
jax: 0.10.0
libtpu: 0.0.40
codegen_flags: <defaults>
</compile_context>

<pallas_src>
import functools

import jax
import jax.numpy as jnp
from jax.experimental import pallas as pl
from jax.experimental.pallas import tpu as pltpu


_VMEM_LIMIT = 32 * 1024 * 1024  # explicit scoped-VMEM budget (safe on v5e/v6e/v7x)


def _round_up(x, m):
    return ((x + m - 1) // m) * m


# ----------------------------- Pallas kernels ------------------------------

def _conv_matmul_kernel(x_ref, w_ref, shift_ref, o_ref, *, taylor: bool):
    """One M-tile of (patches @ weight) + shift [+ taylor] on the MXU."""
    y = jnp.dot(x_ref[...], w_ref[...], preferred_element_type=jnp.float32)
    y = y + shift_ref[...]                       # conv bias + folded BatchNorm
    if taylor:
        # Horner form of 0.1992 + 0.5002*y + 0.1997*y**2
        y = 0.1992 + y * (0.5002 + 0.1997 * y)
    o_ref[...] = y.astype(o_ref.dtype)


def conv_matmul(patches, w, shift, *, taylor: bool,
                out_dtype=jnp.bfloat16, tm_cap: int = 2048):
    """im2col conv matmul gridded over the patch-row (M) axis; weight and
    shift stay VMEM-resident (constant index_map)."""
    M, K = patches.shape
    K2, N = w.shape
    assert K == K2 and N % 128 == 0
    # Big tiles (amortize per-step overhead), multiple of 16 rows (bf16
    # sublane packing), but keep >= 2 grid steps where possible (v7x megacore
    # + pipelining).
    tm = max(16, min(tm_cap, _round_up(pl.cdiv(M, 2), 16)))
    grid = (pl.cdiv(M, tm),)
    kernel = functools.partial(_conv_matmul_kernel, taylor=taylor)
    return pl.pallas_call(
        kernel,
        out_shape=jax.ShapeDtypeStruct((M, N), out_dtype),
        grid=grid,
        in_specs=[
            pl.BlockSpec((tm, K), lambda i: (i, 0)),
            pl.BlockSpec((K, N), lambda i: (0, 0)),      # VMEM-resident weight
            pl.BlockSpec((1, N), lambda i: (0, 0)),      # VMEM-resident shift
        ],
        out_specs=pl.BlockSpec((tm, N), lambda i: (i, 0)),
        compiler_params=pltpu.CompilerParams(
            dimension_semantics=("parallel",),
            vmem_limit_bytes=_VMEM_LIMIT),
    )(patches, w, shift)


def _tail_kernel(p_ref, w3_ref, b3_ref, wf1_ref, bf1_ref, wf2_ref, bf2_ref,
                 o_ref):
    """Fused tail: conv3 matmul (AvgPool2d(2) pre-folded into patches/weight)
    + taylor + fc1 + fc2; all intermediates stay on-chip.  Pooled patches are
    group-major (g = ph*2+pw outer, batch inner), so every per-group slice is
    a free leading-axis index -- no in-kernel reshapes or strided slicing."""
    acc = None
    for g in range(4):
        y = jnp.dot(p_ref[g], w3_ref[...], preferred_element_type=jnp.float32)
        y = y + b3_ref[...]                                     # (bt, 256)
        y = 0.1992 + y * (0.5002 + 0.1997 * y)                  # taylor (Horner)
        d = jnp.dot(y.astype(jnp.bfloat16), wf1_ref[g],
                    preferred_element_type=jnp.float32)
        acc = d if acc is None else acc + d
    h = acc + bf1_ref[...]                                      # fc1 -> (bt, 128)
    out = jnp.dot(h.astype(jnp.bfloat16), wf2_ref[...],
                  preferred_element_type=jnp.float32)
    o_ref[...] = out + bf2_ref[...]                             # fc2 (128-lane pad)


def tail_fused(pooled_g, w3, b3, wf1g, bf1, wf2p, bf2p, *, batch: int):
    # Batch tile: whole batch when tiny; otherwise >=2 tiles (v7x megacore),
    # capped at 128 rows so the block set fits v5e's scoped-VMEM default.
    if batch <= 16:
        bt = batch
    else:
        bt = min(128, _round_up(pl.cdiv(batch, 2), 16))
    grid = (pl.cdiv(batch, bt),)
    return pl.pallas_call(
        _tail_kernel,
        out_shape=jax.ShapeDtypeStruct((batch, 128), jnp.float32),
        grid=grid,
        in_specs=[
            pl.BlockSpec((4, bt, 3200), lambda i: (0, i, 0)),
            pl.BlockSpec((3200, 256), lambda i: (0, 0)),
            pl.BlockSpec((1, 256), lambda i: (0, 0)),
            pl.BlockSpec((4, 256, 128), lambda i: (0, 0, 0)),
            pl.BlockSpec((1, 128), lambda i: (0, 0)),
            pl.BlockSpec((128, 128), lambda i: (0, 0)),
            pl.BlockSpec((1, 128), lambda i: (0, 0)),
        ],
        out_specs=pl.BlockSpec((bt, 128), lambda i: (i, 0)),
        compiler_params=pltpu.CompilerParams(
            dimension_semantics=("parallel",),
            vmem_limit_bytes=_VMEM_LIMIT),
    )(pooled_g, w3, b3, wf1g, bf1, wf2p, bf2p)


# ------------------------------- glue (JAX) --------------------------------

def im2col_nhwc(x_nhwc, kh, kw, stride):
    """Extract conv patches from an NHWC tensor.
    Returns ((N*OH*OW, KH*KW*C), OH, OW) with feature order (kh, kw, C)."""
    N, H, W, C = x_nhwc.shape
    oh = (H - kh) // stride + 1
    ow = (W - kw) // stride + 1
    cols = []
    for i in range(kh):
        for j in range(kw):
            cols.append(x_nhwc[:, i:i + stride * oh:stride,
                               j:j + stride * ow:stride, :])   # (N,oh,ow,C)
    patches = jnp.stack(cols, axis=3)                          # (N,oh,ow,kh*kw,C)
    return patches.reshape(N * oh * ow, kh * kw * C), oh, ow


def pooled_conv3_patches(x_nhwc):
    """conv3(k5,s2) im2col patches with AvgPool2d(2) pre-folded, built directly
    (no unpooled (N,16,3200) intermediate).  Values are the 4-way window SUM
    in bf16; the 1/4 scale is folded into w3.  Rows returned group-major:
    (g = ph*2 + pw, n, 3200) with feature order (kh, kw, Cin)."""
    N = x_nhwc.shape[0]
    cols = []
    for ki in range(5):
        for kj in range(5):
            s = x_nhwc[:, ki:ki + 7:2, kj:kj + 7:2, :]         # (N,4,4,128)
            cols.append(s[:, 0::2, 0::2] + s[:, 0::2, 1::2] +
                        s[:, 1::2, 0::2] + s[:, 1::2, 1::2])   # (N,2,2,128)
    p = jnp.stack(cols, axis=3).reshape(N, 2, 2, 3200)
    return p.transpose(1, 2, 0, 3).reshape(4, N, 3200)


def bn_fold(gamma, beta, mean, var, conv_bias, eps=1e-5):
    s = gamma / jnp.sqrt(var + eps)
    return s, beta + s * (conv_bias - mean)


def init_params(key):
    ks = jax.random.split(key, 20)
    rnd = lambda k, shp, sc=0.05: sc * jax.random.normal(k, shp, jnp.float32)
    p = {}
    # Conv2d(3, 64, k=4, s=2) + BatchNorm2d(64)
    p['w1'], p['b1'] = rnd(ks[0], (64, 3, 4, 4)), rnd(ks[1], (64,))
    p['g1'], p['be1'] = 1.0 + rnd(ks[2], (64,), 0.1), rnd(ks[3], (64,))
    p['m1'], p['v1'] = rnd(ks[4], (64,)), 0.5 + jnp.abs(rnd(ks[5], (64,), 0.2))
    # Conv2d(64, 128, k=3) + BatchNorm2d(128)
    p['w2'], p['b2'] = rnd(ks[6], (128, 64, 3, 3)), rnd(ks[7], (128,))
    p['g2'], p['be2'] = 1.0 + rnd(ks[8], (128,), 0.1), rnd(ks[9], (128,))
    p['m2'], p['v2'] = rnd(ks[10], (128,)), 0.5 + jnp.abs(rnd(ks[11], (128,), 0.2))
    # Conv2d(128, 256, k=5, s=2)
    p['w3'], p['b3'] = rnd(ks[12], (256, 128, 5, 5), 0.02), rnd(ks[13], (256,))
    # Linear(1024, 128), Linear(128, 9)
    p['wf1'], p['bf1'] = rnd(ks[14], (128, 1024), 0.02), rnd(ks[15], (128,))
    p['wf2'], p['bf2'] = rnd(ks[16], (9, 128), 0.05), rnd(ks[17], (9,))
    return p


def forward(params, x_nchw):
    N = x_nchw.shape[0]
    x = x_nchw.transpose(0, 2, 3, 1).astype(jnp.bfloat16)        # NHWC once

    # --- Conv1(3->64, k4, s2) + BN + taylor ---
    # Two adjacent patch rows are packed per matmul row against a
    # block-diagonal (96,128) weight so stores are 128-lane dense without
    # padding the 64 channels (which would inflate conv2's im2col bytes) and
    # without any in-kernel relayout.
    s1, sh1 = bn_fold(params['g1'], params['be1'],
                      params['m1'], params['v1'], params['b1'])
    w1 = params['w1'].transpose(2, 3, 1, 0).reshape(48, 64) * s1[None, :]
    w1bd = jnp.zeros((96, 128), jnp.float32)
    w1bd = w1bd.at[:48, :64].set(w1).at[48:, 64:].set(w1).astype(jnp.bfloat16)
    sh1p = jnp.concatenate([sh1, sh1]).reshape(1, 128).astype(jnp.float32)

    patches, oh, ow = im2col_nhwc(x, 4, 4, 2)                    # (N*169, 48)
    M = patches.shape[0]
    m_pad = M + (M % 2)
    if m_pad != M:                                               # odd batch
        patches = jnp.pad(patches, ((0, 1), (0, 0)))
    y = conv_matmul(patches.reshape(m_pad // 2, 96), w1bd, sh1p, taylor=True)
    x = y.reshape(m_pad, 64)[:M].reshape(N, oh, ow, 64)          # (N,13,13,64)

    # --- Conv2(64->128, k3, s1) + BN + taylor ---
    s2, sh2 = bn_fold(params['g2'], params['be2'],
                      params['m2'], params['v2'], params['b2'])
    w2 = params['w2'].transpose(2, 3, 1, 0).reshape(576, 128)
    w2 = (w2 * s2[None, :]).astype(jnp.bfloat16)
    patches, oh, ow = im2col_nhwc(x, 3, 3, 1)                    # (N*121, 576)
    y = conv_matmul(patches, w2, sh2.reshape(1, 128).astype(jnp.float32),
                    taylor=True)
    x = y.reshape(N, oh, ow, 128)                                # (N,11,11,128)

    # --- Fused tail: Conv3(128->256,k5,s2) + AvgPool2d(2) + taylor + fc1 + fc2
    p3g = pooled_conv3_patches(x)                                # (4, N, 3200)

    # AvgPool's 1/4 is folded into w3 (pooled patches stay bf16 sums).
    w3 = (0.25 * params['w3'].transpose(2, 3, 1, 0).reshape(3200, 256)
          ).astype(jnp.bfloat16)
    b3 = params['b3'].reshape(1, 256).astype(jnp.float32)

    # fc1 weight: reorder columns from PyTorch NCHW flatten (c*4+ph*2+pw) to
    # the kernel's grouped layout [g=ph*2+pw, c, o].
    wf1g = params['wf1'].reshape(128, 256, 2, 2).transpose(2, 3, 1, 0)
    wf1g = wf1g.reshape(4, 256, 128).astype(jnp.bfloat16)
    bf1 = params['bf1'].reshape(1, 128).astype(jnp.float32)
    # fc2: pad 9 -> 128 output lanes (lane-dense store), sliced below.
    wf2p = jnp.zeros((128, 128), jnp.float32).at[:, :9].set(params['wf2'].T)
    wf2p = wf2p.astype(jnp.bfloat16)
    bf2p = jnp.zeros((1, 128), jnp.float32).at[0, :9].set(params['bf2'])

    out = tail_fused(p3g, w3, b3, wf1g, bf1, wf2p, bf2p, batch=N)  # (N, 128)
    return out[:, :9]


if __name__ == "__main__":
    key = jax.random.PRNGKey(0)
    k_x, k_p = jax.random.split(key)
    # PathMNIST images: (N, 3, 28, 28).  28x28 is required by Linear(2*2*256, .)
    x = jax.random.normal(k_x, (2, 3, 28, 28), dtype=jnp.float32)
    params = init_params(k_p)

    out = jax.jit(forward)(params, x)
    out = jax.block_until_ready(out)
    assert out.shape == (2, 9) and out.dtype == jnp.float32
    print("KERNEL_OK")
</pallas_src>

<mosaic_0001>
module attributes {stable_mosaic.version = 11 : i64} {
  func.func @_conv_matmul_kernel(%arg0: i32, %arg1: memref<96x96xbf16, #tpu.memory_space<vmem>>, %arg2: memref<96x128xbf16, #tpu.memory_space<vmem>>, %arg3: memref<1x128xf32, #tpu.memory_space<vmem>>, %arg4: memref<96x128xbf16, #tpu.memory_space<vmem>>) attributes {dimension_semantics = [#tpu.dimension_semantics<parallel>], iteration_bounds = array<i64: 2>, scalar_prefetch = 0 : i64, scratch_operands = 0 : i64, tpu.core_type = #tpu.core_type<tc>, window_params = [{transform_indices = @transform_0, window_bounds = array<i64: 96, 96>}, {pipeline_mode = #tpu.pipeline_mode<synchronous>, transform_indices = @transform_1, window_bounds = array<i64: 96, 128>}, {pipeline_mode = #tpu.pipeline_mode<synchronous>, transform_indices = @transform_2, window_bounds = array<i64: 1, 128>}, {transform_indices = @transform_3, window_bounds = array<i64: 96, 128>}]} {
    %c0 = arith.constant 0 : index
    %c0_0 = arith.constant 0 : index
    %0 = vector.load %arg1[%c0, %c0_0] : memref<96x96xbf16, #tpu.memory_space<vmem>>, vector<96x96xbf16>
    %c0_1 = arith.constant 0 : index
    %c0_2 = arith.constant 0 : index
    %1 = vector.load %arg2[%c0_1, %c0_2] : memref<96x128xbf16, #tpu.memory_space<vmem>>, vector<96x128xbf16>
    %cst = arith.constant dense<0.000000e+00> : vector<96x128xf32>
    %2 = tpu.matmul %0, %1, %cst {dimension_numbers = #tpu.dot_dimension_numbers<[1], [0], [0], [1], [0, 0, 1, 1], [], []>} : vector<96x96xbf16>, vector<96x128xbf16>, vector<96x128xf32> -> vector<96x128xf32>
    %c0_3 = arith.constant 0 : index
    %c0_4 = arith.constant 0 : index
    %3 = vector.load %arg3[%c0_3, %c0_4] : memref<1x128xf32, #tpu.memory_space<vmem>>, vector<1x128xf32>
    %4 = vector.broadcast %3 : vector<1x128xf32> to vector<96x128xf32>
    %5 = arith.addf %2, %4 : vector<96x128xf32>
    %cst_5 = arith.constant 1.997000e-01 : f32
    %6 = vector.broadcast %cst_5 : f32 to vector<96x128xf32>
    %7 = arith.mulf %6, %5 : vector<96x128xf32>
    %cst_6 = arith.constant 5.002000e-01 : f32
    %8 = vector.broadcast %cst_6 : f32 to vector<96x128xf32>
    %9 = arith.addf %8, %7 : vector<96x128xf32>
    %10 = arith.mulf %5, %9 : vector<96x128xf32>
    %cst_7 = arith.constant 1.992000e-01 : f32
    %11 = vector.broadcast %cst_7 : f32 to vector<96x128xf32>
    %12 = arith.addf %11, %10 : vector<96x128xf32>
    %13 = arith.truncf %12 : vector<96x128xf32> to vector<96x128xbf16>
    %c0_8 = arith.constant 0 : index
    %c0_9 = arith.constant 0 : index
    %14 = vector.load %arg4[%c0_8, %c0_9] : memref<96x128xbf16, #tpu.memory_space<vmem>>, vector<96x128xbf16>
    tpu.vector_store %arg4[%c0_8, %c0_9], %13 {strides = array<i32>} : memref<96x128xbf16, #tpu.memory_space<vmem>>, vector<96x128xbf16>,
    return
  }
  func.func @transform_0(%arg0: i32) -> (i32, i32) {
    %c0_i32 = arith.constant 0 : i32
    %c0_i32_0 = arith.constant 0 : i32
    return %arg0, %c0_i32 : i32, i32
  }
  func.func @transform_1(%arg0: i32) -> (i32, i32) {
    %c0_i32 = arith.constant 0 : i32
    %c0_i32_0 = arith.constant 0 : i32
    %c0_i32_1 = arith.constant 0 : i32
    return %c0_i32, %c0_i32_0 : i32, i32
  }
  func.func @transform_2(%arg0: i32) -> (i32, i32) {
    %c0_i32 = arith.constant 0 : i32
    %c0_i32_0 = arith.constant 0 : i32
    %c0_i32_1 = arith.constant 0 : i32
    return %c0_i32, %c0_i32_0 : i32, i32
  }
  func.func @transform_3(%arg0: i32) -> (i32, i32) {
    %c0_i32 = arith.constant 0 : i32
    %c0_i32_0 = arith.constant 0 : i32
    return %arg0, %c0_i32 : i32, i32
  }
}

module attributes {stable_mosaic.version = 11 : i64} {
  func.func @_conv_matmul_kernel(%arg0: i32, %arg1: memref<128x576xbf16, #tpu.memory_space<vmem>>, %arg2: memref<576x128xbf16, #tpu.memory_space<vmem>>, %arg3: memref<1x128xf32, #tpu.memory_space<vmem>>, %arg4: memref<128x128xbf16, #tpu.memory_space<vmem>>) attributes {dimension_semantics = [#tpu.dimension_semantics<parallel>], iteration_bounds = array<i64: 2>, scalar_prefetch = 0 : i64, scratch_operands = 0 : i64, tpu.core_type = #tpu.core_type<tc>, window_params = [{transform_indices = @transform_0, window_bounds = array<i64: 128, 576>}, {pipeline_mode = #tpu.pipeline_mode<synchronous>, transform_indices = @transform_1, window_bounds = array<i64: 576, 128>}, {pipeline_mode = #tpu.pipeline_mode<synchronous>, transform_indices = @transform_2, window_bounds = array<i64: 1, 128>}, {transform_indices = @transform_3, window_bounds = array<i64: 128, 128>}]} {
    %c0 = arith.constant 0 : index
    %c0_0 = arith.constant 0 : index
    %0 = vector.load %arg1[%c0, %c0_0] : memref<128x576xbf16, #tpu.memory_space<vmem>>, vector<128x576xbf16>
    %c0_1 = arith.constant 0 : index
    %c0_2 = arith.constant 0 : index
    %1 = vector.load %arg2[%c0_1, %c0_2] : memref<576x128xbf16, #tpu.memory_space<vmem>>, vector<576x128xbf16>
    %cst = arith.constant dense<0.000000e+00> : vector<128x128xf32>
    %2 = tpu.matmul %0, %1, %cst {dimension_numbers = #tpu.dot_dimension_numbers<[1], [0], [0], [1], [0, 0, 1, 1], [], []>} : vector<128x576xbf16>, vector<576x128xbf16>, vector<128x128xf32> -> vector<128x128xf32>
    %c0_3 = arith.constant 0 : index
    %c0_4 = arith.constant 0 : index
    %3 = vector.load %arg3[%c0_3, %c0_4] : memref<1x128xf32, #tpu.memory_space<vmem>>, vector<1x128xf32>
    %4 = vector.broadcast %3 : vector<1x128xf32> to vector<128x128xf32>
    %5 = arith.addf %2, %4 : vector<128x128xf32>
    %cst_5 = arith.constant 1.997000e-01 : f32
    %6 = vector.broadcast %cst_5 : f32 to vector<128x128xf32>
    %7 = arith.mulf %6, %5 : vector<128x128xf32>
    %cst_6 = arith.constant 5.002000e-01 : f32
    %8 = vector.broadcast %cst_6 : f32 to vector<128x128xf32>
    %9 = arith.addf %8, %7 : vector<128x128xf32>
    %10 = arith.mulf %5, %9 : vector<128x128xf32>
    %cst_7 = arith.constant 1.992000e-01 : f32
    %11 = vector.broadcast %cst_7 : f32 to vector<128x128xf32>
    %12 = arith.addf %11, %10 : vector<128x128xf32>
    %13 = arith.truncf %12 : vector<128x128xf32> to vector<128x128xbf16>
    %c0_8 = arith.constant 0 : index
    %c0_9 = arith.constant 0 : index
    %14 = vector.load %arg4[%c0_8, %c0_9] : memref<128x128xbf16, #tpu.memory_space<vmem>>, vector<128x128xbf16>
    tpu.vector_store %arg4[%c0_8, %c0_9], %13 {strides = array<i32>} : memref<128x128xbf16, #tpu.memory_space<vmem>>, vector<128x128xbf16>,
    return
  }
  func.func @transform_0(%arg0: i32) -> (i32, i32) {
    %c0_i32 = arith.constant 0 : i32
    %c0_i32_0 = arith.constant 0 : i32
    return %arg0, %c0_i32 : i32, i32
  }
  func.func @transform_1(%arg0: i32) -> (i32, i32) {
    %c0_i32 = arith.constant 0 : i32
    %c0_i32_0 = arith.constant 0 : i32
    %c0_i32_1 = arith.constant 0 : i32
    return %c0_i32, %c0_i32_0 : i32, i32
  }
  func.func @transform_2(%arg0: i32) -> (i32, i32) {
    %c0_i32 = arith.constant 0 : i32
    %c0_i32_0 = arith.constant 0 : i32
    %c0_i32_1 = arith.constant 0 : i32
    return %c0_i32, %c0_i32_0 : i32, i32
  }
  func.func @transform_3(%arg0: i32) -> (i32, i32) {
    %c0_i32 = arith.constant 0 : i32
    %c0_i32_0 = arith.constant 0 : i32
    return %arg0, %c0_i32 : i32, i32
  }
}

module attributes {stable_mosaic.version = 11 : i64} {
  func.func @_tail_kernel(%arg0: i32, %arg1: memref<4x2x3200xbf16, #tpu.memory_space<vmem>>, %arg2: memref<3200x256xbf16, #tpu.memory_space<vmem>>, %arg3: memref<1x256xf32, #tpu.memory_space<vmem>>, %arg4: memref<4x256x128xbf16, #tpu.memory_space<vmem>>, %arg5: memref<1x128xf32, #tpu.memory_space<vmem>>, %arg6: memref<128x128xbf16, #tpu.memory_space<vmem>>, %arg7: memref<1x128xf32, #tpu.memory_space<vmem>>, %arg8: memref<2x128xf32, #tpu.memory_space<vmem>>) attributes {dimension_semantics = [#tpu.dimension_semantics<parallel>], iteration_bounds = array<i64: 1>, scalar_prefetch = 0 : i64, scratch_operands = 0 : i64, tpu.core_type = #tpu.core_type<tc>, window_params = [{transform_indices = @transform_0, window_bounds = array<i64: 4, 2, 3200>}, {pipeline_mode = #tpu.pipeline_mode<synchronous>, transform_indices = @transform_1, window_bounds = array<i64: 3200, 256>}, {pipeline_mode = #tpu.pipeline_mode<synchronous>, transform_indices = @transform_2, window_bounds = array<i64: 1, 256>}, {pipeline_mode = #tpu.pipeline_mode<synchronous>, transform_indices = @transform_3, window_bounds = array<i64: 4, 256, 128>}, {pipeline_mode = #tpu.pipeline_mode<synchronous>, transform_indices = @transform_4, window_bounds = array<i64: 1, 128>}, {pipeline_mode = #tpu.pipeline_mode<synchronous>, transform_indices = @transform_5, window_bounds = array<i64: 128, 128>}, {pipeline_mode = #tpu.pipeline_mode<synchronous>, transform_indices = @transform_6, window_bounds = array<i64: 1, 128>}, {transform_indices = @transform_7, window_bounds = array<i64: 2, 128>}]} {
    %c0 = arith.constant 0 : index
    %c0_0 = arith.constant 0 : index
    %c0_1 = arith.constant 0 : index
    %0 = vector.load %arg1[%c0, %c0_0, %c0_1] : memref<4x2x3200xbf16, #tpu.memory_space<vmem>>, vector<1x2x3200xbf16>
    %1 = vector.shape_cast %0 : vector<1x2x3200xbf16> to vector<2x3200xbf16>
    %c0_2 = arith.constant 0 : index
    %c0_3 = arith.constant 0 : index
    %2 = vector.load %arg2[%c0_2, %c0_3] : memref<3200x256xbf16, #tpu.memory_space<vmem>>, vector<3200x256xbf16>
    %cst = arith.constant dense<0.000000e+00> : vector<2x256xf32>
    %3 = tpu.matmul %1, %2, %cst {dimension_numbers = #tpu.dot_dimension_numbers<[1], [0], [0], [1], [0, 0, 1, 1], [], []>} : vector<2x3200xbf16>, vector<3200x256xbf16>, vector<2x256xf32> -> vector<2x256xf32>
    %c0_4 = arith.constant 0 : index
    %c0_5 = arith.constant 0 : index
    %4 = vector.load %arg3[%c0_4, %c0_5] : memref<1x256xf32, #tpu.memory_space<vmem>>, vector<1x256xf32>
    %5 = vector.broadcast %4 : vector<1x256xf32> to vector<2x256xf32>
    %6 = arith.addf %3, %5 : vector<2x256xf32>
    %cst_6 = arith.constant 1.997000e-01 : f32
    %7 = vector.broadcast %cst_6 : f32 to vector<2x256xf32>
    %8 = arith.mulf %7, %6 : vector<2x256xf32>
    %cst_7 = arith.constant 5.002000e-01 : f32
    %9 = vector.broadcast %cst_7 : f32 to vector<2x256xf32>
    %10 = arith.addf %9, %8 : vector<2x256xf32>
    %11 = arith.mulf %6, %10 : vector<2x256xf32>
    %cst_8 = arith.constant 1.992000e-01 : f32
    %12 = vector.broadcast %cst_8 : f32 to vector<2x256xf32>
    %13 = arith.addf %12, %11 : vector<2x256xf32>
    %14 = arith.truncf %13 : vector<2x256xf32> to vector<2x256xbf16>
    %c0_9 = arith.constant 0 : index
    %c0_10 = arith.constant 0 : index
    %c0_11 = arith.constant 0 : index
    %15 = vector.load %arg4[%c0_9, %c0_10, %c0_11] : memref<4x256x128xbf16, #tpu.memory_space<vmem>>, vector<1x256x128xbf16>
    %16 = vector.shape_cast %15 : vector<1x256x128xbf16> to vector<256x128xbf16>
    %cst_12 = arith.constant dense<0.000000e+00> : vector<2x128xf32>
    %17 = tpu.matmul %14, %16, %cst_12 {dimension_numbers = #tpu.dot_dimension_numbers<[1], [0], [0], [1], [0, 0, 1, 1], [], []>} : vector<2x256xbf16>, vector<256x128xbf16>, vector<2x128xf32> -> vector<2x128xf32>
    %c1 = arith.constant 1 : index
    %c0_13 = arith.constant 0 : index
    %c0_14 = arith.constant 0 : index
    %18 = vector.load %arg1[%c1, %c0_13, %c0_14] : memref<4x2x3200xbf16, #tpu.memory_space<vmem>>, vector<1x2x3200xbf16>
    %19 = vector.shape_cast %18 : vector<1x2x3200xbf16> to vector<2x3200xbf16>
    %c0_15 = arith.constant 0 : index
    %c0_16 = arith.constant 0 : index
    %20 = vector.load %arg2[%c0_15, %c0_16] : memref<3200x256xbf16, #tpu.memory_space<vmem>>, vector<3200x256xbf16>
    %cst_17 = arith.constant dense<0.000000e+00> : vector<2x256xf32>
    %21 = tpu.matmul %19, %20, %cst_17 {dimension_numbers = #tpu.dot_dimension_numbers<[1], [0], [0], [1], [0, 0, 1, 1], [], []>} : vector<2x3200xbf16>, vector<3200x256xbf16>, vector<2x256xf32> -> vector<2x256xf32>
    %c0_18 = arith.constant 0 : index
    %c0_19 = arith.constant 0 : index
    %22 = vector.load %arg3[%c0_18, %c0_19] : memref<1x256xf32, #tpu.memory_space<vmem>>, vector<1x256xf32>
    %23 = vector.broadcast %22 : vector<1x256xf32> to vector<2x256xf32>
    %24 = arith.addf %21, %23 : vector<2x256xf32>
    %cst_20 = arith.constant 1.997000e-01 : f32
    %25 = vector.broadcast %cst_20 : f32 to vector<2x256xf32>
    %26 = arith.mulf %25, %24 : vector<2x256xf32>
    %cst_21 = arith.constant 5.002000e-01 : f32
    %27 = vector.broadcast %cst_21 : f32 to vector<2x256xf32>
    %28 = arith.addf %27, %26 : vector<2x256xf32>
    %29 = arith.mulf %24, %28 : vector<2x256xf32>
    %cst_22 = arith.constant 1.992000e-01 : f32
    %30 = vector.broadcast %cst_22 : f32 to vector<2x256xf32>
    %31 = arith.addf %30, %29 : vector<2x256xf32>
    %32 = arith.truncf %31 : vector<2x256xf32> to vector<2x256xbf16>
    %c1_23 = arith.constant 1 : index
    %c0_24 = arith.constant 0 : index
    %c0_25 = arith.constant 0 : index
    %33 = vector.load %arg4[%c1_23, %c0_24, %c0_25] : memref<4x256x128xbf16, #tpu.memory_space<vmem>>, vector<1x256x128xbf16>
    %34 = vector.shape_cast %33 : vector<1x256x128xbf16> to vector<256x128xbf16>
    %cst_26 = arith.constant dense<0.000000e+00> : vector<2x128xf32>
    %35 = tpu.matmul %32, %34, %cst_26 {dimension_numbers = #tpu.dot_dimension_numbers<[1], [0], [0], [1], [0, 0, 1, 1], [], []>} : vector<2x256xbf16>, vector<256x128xbf16>, vector<2x128xf32> -> vector<2x128xf32>
    %36 = arith.addf %17, %35 : vector<2x128xf32>
    %c2 = arith.constant 2 : index
    %c0_27 = arith.constant 0 : index
    %c0_28 = arith.constant 0 : index
    %37 = vector.load %arg1[%c2, %c0_27, %c0_28] : memref<4x2x3200xbf16, #tpu.memory_space<vmem>>, vector<1x2x3200xbf16>
    %38 = vector.shape_cast %37 : vector<1x2x3200xbf16> to vector<2x3200xbf16>
    %c0_29 = arith.constant 0 : index
    %c0_30 = arith.constant 0 : index
    %39 = vector.load %arg2[%c0_29, %c0_30] : memref<3200x256xbf16, #tpu.memory_space<vmem>>, vector<3200x256xbf16>
    %cst_31 = arith.constant dense<0.000000e+00> : vector<2x256xf32>
    %40 = tpu.matmul %38, %39, %cst_31 {dimension_numbers = #tpu.dot_dimension_numbers<[1], [0], [0], [1], [0, 0, 1, 1], [], []>} : vector<2x3200xbf16>, vector<3200x256xbf16>, vector<2x256xf32> -> vector<2x256xf32>
    %c0_32 = arith.constant 0 : index
    %c0_33 = arith.constant 0 : index
    %41 = vector.load %arg3[%c0_32, %c0_33] : memref<1x256xf32, #tpu.memory_space<vmem>>, vector<1x256xf32>
    %42 = vector.broadcast %41 : vector<1x256xf32> to vector<2x256xf32>
    %43 = arith.addf %40, %42 : vector<2x256xf32>
    %cst_34 = arith.constant 1.997000e-01 : f32
    %44 = vector.broadcast %cst_34 : f32 to vector<2x256xf32>
    %45 = arith.mulf %44, %43 : vector<2x256xf32>
    %cst_35 = arith.constant 5.002000e-01 : f32
    %46 = vector.broadcast %cst_35 : f32 to vector<2x256xf32>
    %47 = arith.addf %46, %45 : vector<2x256xf32>
    %48 = arith.mulf %43, %47 : vector<2x256xf32>
    %cst_36 = arith.constant 1.992000e-01 : f32
    %49 = vector.broadcast %cst_36 : f32 to vector<2x256xf32>
    %50 = arith.addf %49, %48 : vector<2x256xf32>
    %51 = arith.truncf %50 : vector<2x256xf32> to vector<2x256xbf16>
    %c2_37 = arith.constant 2 : index
    %c0_38 = arith.constant 0 : index
    %c0_39 = arith.constant 0 : index
    %52 = vector.load %arg4[%c2_37, %c0_38, %c0_39] : memref<4x256x128xbf16, #tpu.memory_space<vmem>>, vector<1x256x128xbf16>
    %53 = vector.shape_cast %52 : vector<1x256x128xbf16> to vector<256x128xbf16>
    %cst_40 = arith.constant dense<0.000000e+00> : vector<2x128xf32>
    %54 = tpu.matmul %51, %53, %cst_40 {dimension_numbers = #tpu.dot_dimension_numbers<[1], [0], [0], [1], [0, 0, 1, 1], [], []>} : vector<2x256xbf16>, vector<256x128xbf16>, vector<2x128xf32> -> vector<2x128xf32>
    %55 = arith.addf %36, %54 : vector<2x128xf32>
    %c3 = arith.constant 3 : index
    %c0_41 = arith.constant 0 : index
    %c0_42 = arith.constant 0 : index
    %56 = vector.load %arg1[%c3, %c0_41, %c0_42] : memref<4x2x3200xbf16, #tpu.memory_space<vmem>>, vector<1x2x3200xbf16>
    %57 = vector.shape_cast %56 : vector<1x2x3200xbf16> to vector<2x3200xbf16>
    %c0_43 = arith.constant 0 : index
    %c0_44 = arith.constant 0 : index
    %58 = vector.load %arg2[%c0_43, %c0_44] : memref<3200x256xbf16, #tpu.memory_space<vmem>>, vector<3200x256xbf16>
    %cst_45 = arith.constant dense<0.000000e+00> : vector<2x256xf32>
    %59 = tpu.matmul %57, %58, %cst_45 {dimension_numbers = #tpu.dot_dimension_numbers<[1], [0], [0], [1], [0, 0, 1, 1], [], []>} : vector<2x3200xbf16>, vector<3200x256xbf16>, vector<2x256xf32> -> vector<2x256xf32>
    %c0_46 = arith.constant 0 : index
    %c0_47 = arith.constant 0 : index
    %60 = vector.load %arg3[%c0_46, %c0_47] : memref<1x256xf32, #tpu.memory_space<vmem>>, vector<1x256xf32>
    %61 = vector.broadcast %60 : vector<1x256xf32> to vector<2x256xf32>
    %62 = arith.addf %59, %61 : vector<2x256xf32>
    %cst_48 = arith.constant 1.997000e-01 : f32
    %63 = vector.broadcast %cst_48 : f32 to vector<2x256xf32>
    %64 = arith.mulf %63, %62 : vector<2x256xf32>
    %cst_49 = arith.constant 5.002000e-01 : f32
    %65 = vector.broadcast %cst_49 : f32 to vector<2x256xf32>
    %66 = arith.addf %65, %64 : vector<2x256xf32>
    %67 = arith.mulf %62, %66 : vector<2x256xf32>
    %cst_50 = arith.constant 1.992000e-01 : f32
    %68 = vector.broadcast %cst_50 : f32 to vector<2x256xf32>
    %69 = arith.addf %68, %67 : vector<2x256xf32>
    %70 = arith.truncf %69 : vector<2x256xf32> to vector<2x256xbf16>
    %c3_51 = arith.constant 3 : index
    %c0_52 = arith.constant 0 : index
    %c0_53 = arith.constant 0 : index
    %71 = vector.load %arg4[%c3_51, %c0_52, %c0_53] : memref<4x256x128xbf16, #tpu.memory_space<vmem>>, vector<1x256x128xbf16>
    %72 = vector.shape_cast %71 : vector<1x256x128xbf16> to vector<256x128xbf16>
    %cst_54 = arith.constant dense<0.000000e+00> : vector<2x128xf32>
    %73 = tpu.matmul %70, %72, %cst_54 {dimension_numbers = #tpu.dot_dimension_numbers<[1], [0], [0], [1], [0, 0, 1, 1], [], []>} : vector<2x256xbf16>, vector<256x128xbf16>, vector<2x128xf32> -> vector<2x128xf32>
    %74 = arith.addf %55, %73 : vector<2x128xf32>
    %c0_55 = arith.constant 0 : index
    %c0_56 = arith.constant 0 : index
    %75 = vector.load %arg5[%c0_55, %c0_56] : memref<1x128xf32, #tpu.memory_space<vmem>>, vector<1x128xf32>
    %76 = vector.broadcast %75 : vector<1x128xf32> to vector<2x128xf32>
    %77 = arith.addf %74, %76 : vector<2x128xf32>
    %78 = arith.truncf %77 : vector<2x128xf32> to vector<2x128xbf16>
    %c0_57 = arith.constant 0 : index
    %c0_58 = arith.constant 0 : index
    %79 = vector.load %arg6[%c0_57, %c0_58] : memref<128x128xbf16, #tpu.memory_space<vmem>>, vector<128x128xbf16>
    %cst_59 = arith.constant dense<0.000000e+00> : vector<2x128xf32>
    %80 = tpu.matmul %78, %79, %cst_59 {dimension_numbers = #tpu.dot_dimension_numbers<[1], [0], [0], [1], [0, 0, 1, 1], [], []>} : vector<2x128xbf16>, vector<128x128xbf16>, vector<2x128xf32> -> vector<2x128xf32>
    %c0_60 = arith.constant 0 : index
    %c0_61 = arith.constant 0 : index
    %81 = vector.load %arg7[%c0_60, %c0_61] : memref<1x128xf32, #tpu.memory_space<vmem>>, vector<1x128xf32>
    %82 = vector.broadcast %81 : vector<1x128xf32> to vector<2x128xf32>
    %83 = arith.addf %80, %82 : vector<2x128xf32>
    %c0_62 = arith.constant 0 : index
    %c0_63 = arith.constant 0 : index
    %84 = vector.load %arg8[%c0_62, %c0_63] : memref<2x128xf32, #tpu.memory_space<vmem>>, vector<2x128xf32>
    tpu.vector_store %arg8[%c0_62, %c0_63], %83 {strides = array<i32>} : memref<2x128xf32, #tpu.memory_space<vmem>>, vector<2x128xf32>,
    return
  }
  func.func @transform_0(%arg0: i32) -> (i32, i32, i32) {
    %c0_i32 = arith.constant 0 : i32
    %c0_i32_0 = arith.constant 0 : i32
    %c0_i32_1 = arith.constant 0 : i32
    return %c0_i32, %arg0, %c0_i32_0 : i32, i32, i32
  }
  func.func @transform_1(%arg0: i32) -> (i32, i32) {
    %c0_i32 = arith.constant 0 : i32
    %c0_i32_0 = arith.constant 0 : i32
    %c0_i32_1 = arith.constant 0 : i32
    return %c0_i32, %c0_i32_0 : i32, i32
  }
  func.func @transform_2(%arg0: i32) -> (i32, i32) {
    %c0_i32 = arith.constant 0 : i32
    %c0_i32_0 = arith.constant 0 : i32
    %c0_i32_1 = arith.constant 0 : i32
    return %c0_i32, %c0_i32_0 : i32, i32
  }
  func.func @transform_3(%arg0: i32) -> (i32, i32, i32) {
    %c0_i32 = arith.constant 0 : i32
    %c0_i32_0 = arith.constant 0 : i32
    %c0_i32_1 = arith.constant 0 : i32
    %c0_i32_2 = arith.constant 0 : i32
    return %c0_i32, %c0_i32_0, %c0_i32_1 : i32, i32, i32
  }
  func.func @transform_4(%arg0: i32) -> (i32, i32) {
    %c0_i32 = arith.constant 0 : i32
    %c0_i32_0 = arith.constant 0 : i32
    %c0_i32_1 = arith.constant 0 : i32
    return %c0_i32, %c0_i32_0 : i32, i32
  }
  func.func @transform_5(%arg0: i32) -> (i32, i32) {
    %c0_i32 = arith.constant 0 : i32
    %c0_i32_0 = arith.constant 0 : i32
    %c0_i32_1 = arith.constant 0 : i32
    return %c0_i32, %c0_i32_0 : i32, i32
  }
  func.func @transform_6(%arg0: i32) -> (i32, i32) {
    %c0_i32 = arith.constant 0 : i32
    %c0_i32_0 = arith.constant 0 : i32
    %c0_i32_1 = arith.constant 0 : i32
    return %c0_i32, %c0_i32_0 : i32, i32
  }
  func.func @transform_7(%arg0: i32) -> (i32, i32) {
    %c0_i32 = arith.constant 0 : i32
    %c0_i32_0 = arith.constant 0 : i32
    return %arg0, %c0_i32 : i32, i32
  }
}

</mosaic_0001>

<llo_original>
// kernel: forward.3
$region0: #{forward.3}
  #allocation0 [shape = 'u32[]', space=smem, size = 0x4, offset = 0x4, fixed_abs, tag = 'smem constant byte address 0x4 - core index']
  #allocation1 [shape = 'u32[144,128]{1,0:T(1,128)}', space=vmem, size = 0x12000, scoped, tag = 'internal scratch']
  %s0 = inlined_call_operand.vmem [shape: bf16[169,96], index: 0, kind: input, shape index: {}]
  %s1 = inlined_call_operand.vmem [shape: bf16[96,128], index: 1, kind: input, shape index: {}]
  %s2 = inlined_call_operand.vmem [shape: f32[1,128], index: 2, kind: input, shape index: {}]
  %s3 = inlined_call_operand.vmem [shape: bf16[169,128], index: 3, kind: output, shape index: {}]
  %s4 = sld [smem:[#allocation0]]
  $region89: #{forward.3} parent=0
    _
  %s6 = ssub.s32 1, %s4
  %s7 = scalar_select 0, %s6, %s4
  $region1: #{forward.3} parent=0
    #allocation2 [shape = 'u8[49152]{0}', space=vmem, size = 0xc000, scoped, tag = 'output window, operand 0']
    loop: start=0, step=1, limit=4
    $region2: #{forward.3} parent=1 // loop_pre_header
      _
    $region3: #{forward.3} parent=1 // loop_header
      %s9 = sphi 0, %s13
      %p10 = scmp.ge.s32.totalorder %s9, 4
      %s19 = sphi 0, %s21
      %s22 = sphi 0, %s19
      %s23 = sphi 0, %s22
      %s39 = sphi 0, %s23
      %s43 = sphi 0, %s43
      %s45 = sphi 0, %s43
      %s46 = sphi 0, %s45
      %s60 = sphi 0, %s46
      %s64 = sphi 0, %s64
      %s66 = sphi 0, %s64
      %s67 = sphi 0, %s66
      %s81 = sphi 0, %s67
      %s87 = sphi 0, %s89
      %s90 = sphi 0, %s87
      %s91 = sphi 0, %s90
      %s107 = sphi 0, %s91
    $region4: #{forward.3} parent=1 // loop_header_branch
      %12 = sbr.rel (%p10) target = $region8
    $region5: #{forward.3} parent=1 // loop_body
      %s14 = ssub.s32 %s9, 1
      %s15 = ssub.s32 %s9, 2
      %s16 = sadd.s32 %s9, 1
      %s17 = ssub.s32 %s9, %s16
      %p18 = scmp.eq.s32.totalorder %s17, 0
      %s20 = sadd.s32 %s19, 1
      %s21 = scalar_select %p18, %s19, %s20
      %p24 = pneg %p18
      %p25 = scmp.eq.s32.totalorder %s9, 1
      %p26 = por %p24, %p25
      %p27 = scmp.ne.s32.totalorder %s19, %s22
      %p28 = scmp.eq.s32.totalorder %s9, 0
      %p29 = por %p27, %p28
      %p30 = scmp.ne.s32.totalorder %s19, %s22
      %p31 = scmp.eq.s32.totalorder %s14, 1
      %p32 = por %p30, %p31
      %p33 = scmp.ne.s32.totalorder %s22, %s23
      %p34 = scmp.eq.s32.totalorder %s14, 0
      %p35 = por %p33, %p34
      %p36 = scmp.ne.s32.totalorder %s22, %s23
      %p37 = scmp.eq.s32.totalorder %s15, 1
      %p38 = por %p36, %p37
      %p40 = scmp.ne.s32.totalorder %s23, %s39
      %p41 = scmp.eq.s32.totalorder %s15, 0
      %p42 = por %p40, %p41
      %s44 = sadd.s32 %s43, 1
      %p47 = scmp.eq.s32.totalorder %s9, 1
      %p48 = scmp.ne.s32.totalorder %s43, %s45
      %p49 = scmp.eq.s32.totalorder %s9, 0
      %p50 = por %p48, %p49
      %p51 = scmp.ne.s32.totalorder %s43, %s45
      %p52 = scmp.eq.s32.totalorder %s14, 1
      %p53 = por %p51, %p52
      %p54 = scmp.ne.s32.totalorder %s45, %s46
      %p55 = scmp.eq.s32.totalorder %s14, 0
      %p56 = por %p54, %p55
      %p57 = scmp.ne.s32.totalorder %s45, %s46
      %p58 = scmp.eq.s32.totalorder %s15, 1
      %p59 = por %p57, %p58
      %p61 = scmp.ne.s32.totalorder %s46, %s60
      %p62 = scmp.eq.s32.totalorder %s15, 0
      %p63 = por %p61, %p62
      %s65 = sadd.s32 %s64, 1
      %p68 = scmp.eq.s32.totalorder %s9, 1
      %p69 = scmp.ne.s32.totalorder %s64, %s66
      %p70 = scmp.eq.s32.totalorder %s9, 0
      %p71 = por %p69, %p70
      %p72 = scmp.ne.s32.totalorder %s64, %s66
      %p73 = scmp.eq.s32.totalorder %s14, 1
      %p74 = por %p72, %p73
      %p75 = scmp.ne.s32.totalorder %s66, %s67
      %p76 = scmp.eq.s32.totalorder %s14, 0
      %p77 = por %p75, %p76
      %p78 = scmp.ne.s32.totalorder %s66, %s67
      %p79 = scmp.eq.s32.totalorder %s15, 1
      %p80 = por %p78, %p79
      %p82 = scmp.ne.s32.totalorder %s67, %s81
      %p83 = scmp.eq.s32.totalorder %s15, 0
      %p84 = por %p82, %p83
      %s85 = ssub.s32 %s9, %s16
      %p86 = scmp.eq.s32.totalorder %s85, 0
      %s88 = sadd.s32 %s87, 1
      %s89 = scalar_select %p86, %s87, %s88
      %p92 = pneg %p86
      %p93 = scmp.eq.s32.totalorder %s9, 1
      %p94 = por %p92, %p93
      %p95 = scmp.ne.s32.totalorder %s87, %s90
      %p96 = scmp.eq.s32.totalorder %s9, 0
      %p97 = por %p95, %p96
      %p98 = scmp.ne.s32.totalorder %s87, %s90
      %p99 = scmp.eq.s32.totalorder %s14, 1
      %p100 = por %p98, %p99
      %p101 = scmp.ne.s32.totalorder %s90, %s91
      %p102 = scmp.eq.s32.totalorder %s14, 0
      %p103 = por %p101, %p102
      %p104 = scmp.ne.s32.totalorder %s90, %s91
      %p105 = scmp.eq.s32.totalorder %s15, 1
      %p106 = por %p104, %p105
      %p108 = scmp.ne.s32.totalorder %s91, %s107
      %p109 = scmp.eq.s32.totalorder %s15, 0
      %p110 = por %p108, %p109
      %p111 = scmp.le.s32.totalorder 1, %s9
      %p112 = scmp.lt.s32.totalorder %s9, 3
      %p113 = pnand %p111, %p112
      %p114 = pneg %p113
      // Predicated region
      $region9: #{forward.3} parent=5 // pred_check
        _
      $region10: #{forward.3} parent=5 // pred_check_branch
        %116 = sbr.rel (%p113) target = $region12
      $region11: #{forward.3} parent=5 // pred_region
        %s117 = ssub.s32 %s9, 1
        // Predicated region
        $region13: #{forward.3} parent=11 // pred_check
          %p118 = pneg %p56
        $region14: #{forward.3} parent=11 // pred_check_branch
          %120 = sbr.rel (%p118) target = $region16
        $region15: #{forward.3} parent=11 // pred_region
          _
        $region16: #{forward.3} parent=11 // pred_fallthru
          _
        // Predicated region
        $region17: #{forward.3} parent=11 // pred_check
          %p121 = pneg %p77
        $region18: #{forward.3} parent=11 // pred_check_branch
          %123 = sbr.rel (%p121) target = $region20
        $region19: #{forward.3} parent=11 // pred_region
          _
        $region20: #{forward.3} parent=11 // pred_fallthru
          _
      $region12: #{forward.3} parent=5 // pred_fallthru
        _
      %p124 = scmp.lt.s32.totalorder %s9, 2
      // Predicated region
      $region21: #{forward.3} parent=5 // pred_check
        %p125 = pneg %p124
      $region22: #{forward.3} parent=5 // pred_check_branch
        %127 = sbr.rel (%p125) target = $region24
      $region23: #{forward.3} parent=5 // pred_region
        // Predicated region
        $region25: #{forward.3} parent=23 // pred_check
          %p128 = pneg %p29
        $region26: #{forward.3} parent=23 // pred_check_branch
          %130 = sbr.rel (%p128) target = $region28
        $region27: #{forward.3} parent=23 // pred_region
          %s131 = smul.u32 12, %s9
          %s132 = ssub.s32 22, %s131
          %p133 = scmp.lt.s32.totalorder %s132, 12
          %s134 = scalar_select %p133, %s132, 12
          %s135 = smul.u32 64, %s134
          %p136 = scmp.lt.s32.totalorder %s131, 21
          %s137 = scalar_select %p136, %s131, 21
          %s138 = smul.addr %s137, 4
          %s139 = scalar_lea.vmem %s0, %s138
          %s140 = smul.u32 12, %s9
          %s141 = ssub.s32 22, %s140
          %p142 = scmp.lt.s32.totalorder %s141, 12
          %s143 = scalar_select %p142, %s141, 12
          %s144 = smul.u32 64, %s143
        $region28: #{forward.3} parent=23 // pred_fallthru
          _
      $region24: #{forward.3} parent=5 // pred_fallthru
        _
      %p145 = scmp.le.s32.totalorder 1, %s9
      %p146 = scmp.lt.s32.totalorder %s9, 3
      %p147 = pnand %p145, %p146
      %p148 = pneg %p147
      // Predicated region
      $region29: #{forward.3} parent=5 // pred_check
        _
      $region30: #{forward.3} parent=5 // pred_check_branch
        %150 = sbr.rel (%p147) target = $region32
      $region31: #{forward.3} parent=5 // pred_region
        %s151 = ssub.s32 %s9, 1
        %s152 = smul.u32 12, %s14
        %s153 = ssub.s32 22, %s152
        %p154 = scmp.lt.s32.totalorder %s153, 12
        %s155 = scalar_select %p154, %s153, 12
        %s156 = smul.u32 64, %s155
        %p157 = scmp.lt.s32.totalorder %s152, 21
        %s158 = scalar_select %p157, %s152, 21
        %s159 = smul.addr %s158, 4
        %s160 = scalar_lea.vmem %s0, %s159
        %p161 = pneg %p35
        %p162 = pneg %p32
        %p163 = pneg %p56
        %p164 = pneg %p53
        %p165 = pneg %p77
        %p166 = pneg %p74
        %p167 = pneg %p103
        %p168 = pneg %p100
        %s169 = sand.u32 %s90, 1
        %s170 = sand.u32 %s90, 1
        %s171 = smul.addr %s170, 48
        %s172 = scalar_lea.vmem [#allocation2], %s171
        %s173 = smul.u32 12, %s14
        %s174 = ssub.s32 22, %s173
        %p175 = scmp.lt.s32.totalorder %s174, 12
        %s176 = scalar_select %p175, %s174, 12
        %s177 = smul.u32 64, %s176
        %p178 = scmp.lt.s32.totalorder %s173, 21
        %s179 = scalar_select %p178, %s173, 21
        %s180 = smul.addr %s179, 4
        %s181 = scalar_lea.vmem %s0, %s180
        %s182 = smul.u32 12, %s14
        %s183 = ssub.s32 22, %s182
        %p184 = scmp.lt.s32.totalorder %s183, 12
        %s185 = scalar_select %p184, %s183, 12
        %s186 = smul.u32 64, %s185
        %s187 = smul.u32 12, %s14
        %s188 = ssub.s32 22, %s187
        %p189 = scmp.lt.s32.totalorder %s188, 12
        %s190 = scalar_select %p189, %s188, 12
        %s191 = smul.u32 64, %s190
        %v193 = vld [vmem:[%s181] sm:$0xf]
        %v194 = vld [vmem:[%s181 + $0x4] sm:$0xf]
        %v195 = vld [vmem:[%s181 + $0x8] sm:$0xf]
        %v196 = vld [vmem:[%s181 + $0xc] sm:$0xf]
        %v197 = vld [vmem:[%s181 + $0x10] sm:$0xf]
        %v198 = vld [vmem:[%s181 + $0x14] sm:$0xf]
        %v199 = vld [vmem:[%s181 + $0x18] sm:$0xf]
        %v200 = vld [vmem:[%s181 + $0x1c] sm:$0xf]
        %v201 = vld [vmem:[%s181 + $0x20] sm:$0xf]
        %v202 = vld [vmem:[%s181 + $0x24] sm:$0xf]
        %v203 = vld [vmem:[%s181 + $0x28] sm:$0xf]
        %v204 = vld [vmem:[%s181 + $0x2c] sm:$0xf]
        %v205 = vld [vmem:[%s1] sm:$0xf]
        %v206 = vld [vmem:[%s1 + $0x4] sm:$0xf]
        %v207 = vld [vmem:[%s1 + $0x8] sm:$0xf]
        %v208 = vld [vmem:[%s1 + $0xc] sm:$0xf]
        %v209 = vld [vmem:[%s1 + $0x10] sm:$0xf]
        %v210 = vld [vmem:[%s1 + $0x14] sm:$0xf]
        %v211 = vld [vmem:[%s1 + $0x18] sm:$0xf]
        %v212 = vld [vmem:[%s1 + $0x1c] sm:$0xf]
        %v213 = vld [vmem:[%s1 + $0x20] sm:$0xf]
        %v214 = vld [vmem:[%s1 + $0x24] sm:$0xf]
        %v215 = vld [vmem:[%s1 + $0x28] sm:$0xf]
        %v216 = vld [vmem:[%s1 + $0x2c] sm:$0xf]
        %v217 = vld [vmem:[%s2] sm:$0x1]
        %v219 = vlaneseq
        %v220 = vshrl.u32 %v219, 7
        %v221 = vsub.s32 0, %v220
        %v222 = vrot.slane %v217, %v221
        %v236 = vunpack.c.l.b16 %v193
        %v237 = vunpack.c.l.b16 %v194
        %v238 = vunpack.c.l.b16 %v195
        %v239 = vunpack.c.l.b16 %v196
        %v240 = vunpack.c.l.b16 %v197
        %v241 = vunpack.c.l.b16 %v198
        %v242 = vunpack.c.l.b16 %v199
        %v243 = vunpack.c.l.b16 %v200
        %v244 = vunpack.c.l.b16 %v201
        %v245 = vunpack.c.l.b16 %v202
        %v246 = vunpack.c.l.b16 %v203
        %v247 = vunpack.c.l.b16 %v204
        %v248 = vpack.c.b16 %v237, %v236
        %v249 = vpack.c.b16 %v239, %v238
        %v250 = vpack.c.b16 %v241, %v240
        %v251 = vpack.c.b16 %v243, %v242
        %v252 = vpack.c.b16 %v245, %v244
        %v253 = vpack.c.b16 %v247, %v246
        %v266 = vunpack.c.l.b16 %v205
        %v267 = vunpack.c.l.b16 %v206
        %v268 = vunpack.c.l.b16 %v207
        %v269 = vunpack.c.l.b16 %v208
        %v270 = vunpack.c.l.b16 %v209
        %v271 = vunpack.c.l.b16 %v210
        %v272 = vunpack.c.l.b16 %v211
        %v273 = vunpack.c.l.b16 %v212
        %v274 = vunpack.c.l.b16 %v213
        %v275 = vunpack.c.l.b16 %v214
        %v276 = vunpack.c.l.b16 %v215
        %v277 = vunpack.c.l.b16 %v216
        %v278 = vpack.c.b16 %v267, %v266
        %v279 = vpack.c.b16 %v269, %v268
        %v280 = vpack.c.b16 %v271, %v270
        %v281 = vpack.c.b16 %v273, %v272
        %v282 = vpack.c.b16 %v275, %v274
        %v283 = vpack.c.b16 %v277, %v276
        %vm290 = vcmask 785408
        %v292 = vsel %vm290, %v248, 0
        %v295 = vsel %vm290, %v249, 0
        %v298 = vsel %vm290, %v250, 0
        %v301 = vsel %vm290, %v251, 0
        %v304 = vsel %vm290, %v252, 0
        %v307 = vsel %vm290, %v253, 0
        %309 = vmatprep.subr.bf16.mxu0 0
        %310 = vmatpush1.bf16.msra.mxu0 0
        %311 = vmatprep.subr.bf16.mxu0 0
        %312 = vmatpush1.bf16.msra.mxu0 0
        %313 = vmatprep.subr.bf16.mxu0 0
        %314 = vmatpush1.bf16.msra.mxu0 %v283
        %315 = vmatprep.subr.bf16.mxu0 0
        %316 = vmatpush1.bf16.msra.mxu0 %v282
        %317 = vmatprep.subr.bf16.mxu0 0
        %318 = vmatpush1.bf16.msra.mxu0 %v281
        %319 = vmatprep.subr.bf16.mxu0 0
        %320 = vmatpush1.bf16.msra.mxu0 %v280
        %321 = vmatprep.subr.bf16.mxu0 0
        %322 = vmatpush1.bf16.msra.mxu0 %v279
        %323 = vmatprep.subr.bf16.mxu0 0
        %324 = vmatpush1.bf16.msra.mxu0 %v278
        %325 = vmatprep.subr.bf16.mxu0 0
        %326 = vmatpush2.bf16.msra.mxu0 0
        %327 = vmatprep.subr.bf16.mxu0 0
        %328 = vmatpush2.bf16.msra.mxu0 0
        %329 = vmatprep.subr.bf16.mxu0 0
        %330 = vmatpush2.bf16.msra.mxu0 0
        %331 = vmatprep.subr.bf16.mxu0 0
        %332 = vmatpush2.bf16.msra.mxu0 0
        %333 = vmatprep.subr.bf16.mxu0 0
        %334 = vmatpush2.bf16.msra.mxu0 0
        %335 = vmatprep.subr.bf16.mxu0 0
        %336 = vmatpush2.bf16.msra.mxu0 0
        %337 = vmatprep.subr.bf16.mxu0 0
        %338 = vmatpush2.bf16.msra.mxu0 0
        %339 = vmatprep.subr.bf16.mxu0 0
        %340 = vmatpush2.bf16.msra.mxu0 0
        %341 = vmatprep.mubr.bf16.mxu0 0
        %342 = vmatmul.mubr.bf16.gmra.mxu0 %v292
        %v343 = vpop.f32.mrf.mxu0
        %v344 = vadd.f32 %v222, %v343
        %v345 = vpop.f32.mrf.mxu0
        %v346 = vpop.f32.mrf.mxu0
        %v347 = vadd.f32 %v222, %v346
        %v348 = vpop.f32.mrf.mxu0
        %349 = vmatprep.mubr.bf16.mxu0 0
        %350 = vmatmul.mubr.bf16.gmra.mxu0 %v295
        %v351 = vpop.f32.mrf.mxu0
        %v352 = vadd.f32 %v222, %v351
        %v353 = vpop.f32.mrf.mxu0
        %v354 = vpop.f32.mrf.mxu0
        %v355 = vadd.f32 %v222, %v354
        %v356 = vpop.f32.mrf.mxu0
        %357 = vmatprep.mubr.bf16.mxu0 0
        %358 = vmatmul.mubr.bf16.gmra.mxu0 %v298
        %v359 = vpop.f32.mrf.mxu0
        %v360 = vadd.f32 %v222, %v359
        %v361 = vpop.f32.mrf.mxu0
        %v362 = vpop.f32.mrf.mxu0
        %v363 = vadd.f32 %v222, %v362
        %v364 = vpop.f32.mrf.mxu0
        %365 = vmatprep.mubr.bf16.mxu0 0
        %366 = vmatmul.mubr.bf16.gmra.mxu0 %v301
        %v367 = vpop.f32.mrf.mxu0
        %v368 = vadd.f32 %v222, %v367
        %v369 = vpop.f32.mrf.mxu0
        %v370 = vpop.f32.mrf.mxu0
        %v371 = vadd.f32 %v222, %v370
        %v372 = vpop.f32.mrf.mxu0
        %373 = vmatprep.mubr.bf16.mxu0 0
        %374 = vmatmul.mubr.bf16.gmra.mxu0 %v304
        %v375 = vpop.f32.mrf.mxu0
        %v376 = vadd.f32 %v222, %v375
        %v377 = vpop.f32.mrf.mxu0
        %v378 = vpop.f32.mrf.mxu0
        %v379 = vadd.f32 %v222, %v378
        %v380 = vpop.f32.mrf.mxu0
        %381 = vmatprep.mubr.bf16.mxu0 0
        %382 = vmatmul.mubr.bf16.gmra.mxu0 %v307
        %v383 = vpop.f32.mrf.mxu0
        %v384 = vadd.f32 %v222, %v383
        %v385 = vpop.f32.mrf.mxu0
        %v386 = vpop.f32.mrf.mxu0
        %v387 = vadd.f32 %v222, %v386
        %v388 = vpop.f32.mrf.mxu0
        %389 = vdwg.mxu0
        %v390 = vmul.f32 %v344, 0.1997
        %v391 = vmul.f32 %v347, 0.1997
        %v392 = vmul.f32 %v352, 0.1997
        %v393 = vmul.f32 %v355, 0.1997
        %v394 = vmul.f32 %v360, 0.1997
        %v395 = vmul.f32 %v363, 0.1997
        %v396 = vmul.f32 %v368, 0.1997
        %v397 = vmul.f32 %v371, 0.1997
        %v398 = vmul.f32 %v376, 0.1997
        %v399 = vmul.f32 %v379, 0.1997
        %v400 = vmul.f32 %v384, 0.1997
        %v401 = vmul.f32 %v387, 0.1997
        %v402 = vadd.f32 %v390, 0.5002
        %v403 = vadd.f32 %v391, 0.5002
        %v404 = vadd.f32 %v392, 0.5002
        %v405 = vadd.f32 %v393, 0.5002
        %v406 = vadd.f32 %v394, 0.5002
        %v407 = vadd.f32 %v395, 0.5002
        %v408 = vadd.f32 %v396, 0.5002
        %v409 = vadd.f32 %v397, 0.5002
        %v410 = vadd.f32 %v398, 0.5002
        %v411 = vadd.f32 %v399, 0.5002
        %v412 = vadd.f32 %v400, 0.5002
        %v413 = vadd.f32 %v401, 0.5002
        %v414 = vmul.f32 %v344, %v402
        %v415 = vmul.f32 %v347, %v403
        %v416 = vmul.f32 %v352, %v404
        %v417 = vmul.f32 %v355, %v405
        %v418 = vmul.f32 %v360, %v406
        %v419 = vmul.f32 %v363, %v407
        %v420 = vmul.f32 %v368, %v408
        %v421 = vmul.f32 %v371, %v409
        %v422 = vmul.f32 %v376, %v410
        %v423 = vmul.f32 %v379, %v411
        %v424 = vmul.f32 %v384, %v412
        %v425 = vmul.f32 %v387, %v413
        %v426 = vadd.f32 %v414, 0.1992
        %v427 = vadd.f32 %v415, 0.1992
        %v428 = vadd.f32 %v416, 0.1992
        %v429 = vadd.f32 %v417, 0.1992
        %v430 = vadd.f32 %v418, 0.1992
        %v431 = vadd.f32 %v419, 0.1992
        %v432 = vadd.f32 %v420, 0.1992
        %v433 = vadd.f32 %v421, 0.1992
        %v434 = vadd.f32 %v422, 0.1992
        %v435 = vadd.f32 %v423, 0.1992
        %v436 = vadd.f32 %v424, 0.1992
        %v437 = vadd.f32 %v425, 0.1992
        %v438 = vpack.c.bf16 %v427, %v426
        %v439 = vpack.c.bf16 %v429, %v428
        %v440 = vpack.c.bf16 %v431, %v430
        %v441 = vpack.c.bf16 %v433, %v432
        %v442 = vpack.c.bf16 %v435, %v434
        %v443 = vpack.c.bf16 %v437, %v436
        %v450 = vunpack.c.l.b16 %v438
        %v451 = vunpack.c.h.b16 %v438
        %v452 = vunpack.c.l.b16 %v439
        %v453 = vunpack.c.h.b16 %v439
        %v454 = vunpack.c.l.b16 %v440
        %v455 = vunpack.c.h.b16 %v440
        %v456 = vunpack.c.l.b16 %v441
        %v457 = vunpack.c.h.b16 %v441
        %v458 = vunpack.c.l.b16 %v442
        %v459 = vunpack.c.h.b16 %v442
        %v460 = vunpack.c.l.b16 %v443
        %v461 = vunpack.c.h.b16 %v443
        %v462 = vpack.c.b16 %v450, %v450
        %v463 = vpack.c.b16 %v451, %v451
        %v464 = vpack.c.b16 %v452, %v452
        %v465 = vpack.c.b16 %v453, %v453
        %v466 = vpack.c.b16 %v454, %v454
        %v467 = vpack.c.b16 %v455, %v455
        %v468 = vpack.c.b16 %v456, %v456
        %v469 = vpack.c.b16 %v457, %v457
        %v470 = vpack.c.b16 %v458, %v458
        %v471 = vpack.c.b16 %v459, %v459
        %v472 = vpack.c.b16 %v460, %v460
        %v473 = vpack.c.b16 %v461, %v461
        %486 = vst [vmem:[%s172] sm:$0xf] %v462
        %487 = vst [vmem:[%s172 + $0x4] sm:$0xf] %v463
        %488 = vst [vmem:[%s172 + $0x8] sm:$0xf] %v464
        %489 = vst [vmem:[%s172 + $0xc] sm:$0xf] %v465
        %490 = vst [vmem:[%s172 + $0x10] sm:$0xf] %v466
        %491 = vst [vmem:[%s172 + $0x14] sm:$0xf] %v467
        %492 = vst [vmem:[%s172 + $0x18] sm:$0xf] %v468
        %493 = vst [vmem:[%s172 + $0x1c] sm:$0xf] %v469
        %494 = vst [vmem:[%s172 + $0x20] sm:$0xf] %v470
        %495 = vst [vmem:[%s172 + $0x24] sm:$0xf] %v471
        %496 = vst [vmem:[%s172 + $0x28] sm:$0xf] %v472
        %497 = vst [vmem:[%s172 + $0x2c] sm:$0xf] %v473
        %s498 = sand.u32 %s90, 1
        %s499 = sand.u32 %s90, 1
        %s500 = smul.addr %s499, 48
        %s501 = scalar_lea.vmem [#allocation2], %s500
        // Predicated region
        $region33: #{forward.3} parent=31 // pred_check
          %p502 = pneg %p100
        $region34: #{forward.3} parent=31 // pred_check_branch
          %504 = sbr.rel (%p502) target = $region36
        $region35: #{forward.3} parent=31 // pred_region
          %s505 = smul.u32 12, %s14
          %s506 = ssub.s32 22, %s505
          %p507 = scmp.lt.s32.totalorder %s506, 12
          %s508 = scalar_select %p507, %s506, 12
          %s509 = smul.u32 64, %s508
          %p510 = scmp.ne.s32.totalorder 0, %s509
          %s511 = smul.addr %s505, 4
          %s512 = scalar_lea.vmem %s3, %s511
          // Predicated region
          $region37: #{forward.3} parent=35 // pred_check
            %p513 = pneg %p510
          $region38: #{forward.3} parent=35 // pred_check_branch
            %515 = sbr.rel (%p513) target = $region40
          $region39: #{forward.3} parent=35 // pred_region
            // Predicated region
            $region41: #{forward.3} parent=39 // pred_check
              _
            $region42: #{forward.3} parent=39 // pred_check_branch
              %517 = sbr.rel target = $region44
            $region43: #{forward.3} parent=39 // pred_region
              // Predicated region
              $region63: #{forward.3} parent=43 // pred_check
                _
              $region64: #{forward.3} parent=43 // pred_check_branch
                %590 = sbr.rel (0) target = $region66
              $region65: #{forward.3} parent=43 // pred_region
                %s592 = ssub.s32 16, 1
                %s593 = sdiv.u32.pop %s508, 12
                %s594 = srem.u32.pop %s508, 12
                // While loop
                $region67: #{forward.3} parent=65 // loop_pre_header
                  _
                $region68: #{forward.3} parent=65 // loop_header
                  %s596 = sphi 0, %s598
                  %p597 = scmp.ge.s32.totalorder %s596, %s593
                  %s601 = sphi 0, %s630
                  %s602 = sphi %s501, %s633
                  %s603 = sphi %s512, %s634
                $region69: #{forward.3} parent=65 // loop_header_branch
                  %600 = sbr.rel (%p597) target = $region73
                $region70: #{forward.3} parent=65 // loop_body
                  %v604 = vld [vmem:[%s602] sm:%s592]
                  %605 = vst [vmem:[%s603] sm:%s592] %v604
                  %v606 = vld [vmem:[%s602 + $0x4] sm:%s592]
                  %607 = vst [vmem:[%s603 + $0x4] sm:%s592] %v606
                  %v608 = vld [vmem:[%s602 + $0x8] sm:%s592]
                  %609 = vst [vmem:[%s603 + $0x8] sm:%s592] %v608
                  %v610 = vld [vmem:[%s602 + $0xc] sm:%s592]
                  %611 = vst [vmem:[%s603 + $0xc] sm:%s592] %v610
                  %v612 = vld [vmem:[%s602 + $0x10] sm:%s592]
                  %613 = vst [vmem:[%s603 + $0x10] sm:%s592] %v612
                  %v614 = vld [vmem:[%s602 + $0x14] sm:%s592]
                  %615 = vst [vmem:[%s603 + $0x14] sm:%s592] %v614
                  %v616 = vld [vmem:[%s602 + $0x18] sm:%s592]
                  %617 = vst [vmem:[%s603 + $0x18] sm:%s592] %v616
                  %v618 = vld [vmem:[%s602 + $0x1c] sm:%s592]
                  %619 = vst [vmem:[%s603 + $0x1c] sm:%s592] %v618
                  %v620 = vld [vmem:[%s602 + $0x20] sm:%s592]
                  %621 = vst [vmem:[%s603 + $0x20] sm:%s592] %v620
                  %v622 = vld [vmem:[%s602 + $0x24] sm:%s592]
                  %623 = vst [vmem:[%s603 + $0x24] sm:%s592] %v622
                  %v624 = vld [vmem:[%s602 + $0x28] sm:%s592]
                  %625 = vst [vmem:[%s603 + $0x28] sm:%s592] %v624
                  %v626 = vld [vmem:[%s602 + $0x2c] sm:%s592]
                  %627 = vst [vmem:[%s603 + $0x2c] sm:%s592] %v626
                  %s628 = sadd.s32 1, %s601
                  %p629 = scmp.ge.s32.totalorder %s628, %s593
                  %s630 = scalar_select %p629, 0, %s628
                  %s631 = smul.u32 %s630, 48
                  %s632 = smul.u32 %s630, 48
                  %s633 = scalar_lea.vmem %s501, %s631 [#allocation2]
                  %s634 = scalar_lea.vmem %s512, %s632
                $region71: #{forward.3} parent=65 // loop_footer
                  %s598 = sadd.s32 %s596, 1
                $region72: #{forward.3} parent=65 // loop_footer_branch
                  %595 = sbr.rel target = $region68
                $region73: #{forward.3} parent=65 // loop_exit
                  _
                %s635 = sdiv.u32.pop %s508, 12
                %s636 = srem.u32.pop %s508, 12
                %s637 = smul.u32 %s635, 12
                %s638 = smul.u32 4, %s637
                %s639 = scalar_lea.vmem %s501, %s638 [#allocation2]
                %s640 = smul.u32 4, %s637
                %s641 = scalar_lea.vmem %s512, %s640
                // While loop
                $region74: #{forward.3} parent=65 // loop_pre_header
                  _
                $region75: #{forward.3} parent=65 // loop_header
                  %s643 = sphi 0, %s645
                  %p644 = scmp.ge.s32.totalorder %s643, %s636
                  %s648 = sphi 0, %s655
                  %s649 = sphi %s639, %s658
                  %s650 = sphi %s641, %s659
                $region76: #{forward.3} parent=65 // loop_header_branch
                  %647 = sbr.rel (%p644) target = $region80
                $region77: #{forward.3} parent=65 // loop_body
                  %v651 = vld [vmem:[%s649] sm:%s592]
                  %652 = vst [vmem:[%s650] sm:%s592] %v651
                  %s653 = sadd.s32 1, %s648
                  %p654 = scmp.ge.s32.totalorder %s653, %s636
                  %s655 = scalar_select %p654, 0, %s653
                  %s656 = smul.u32 %s655, 4
                  %s657 = smul.u32 %s655, 4
                  %s658 = scalar_lea.vmem %s639, %s656 [#allocation2]
                  %s659 = scalar_lea.vmem %s641, %s657
                $region78: #{forward.3} parent=65 // loop_footer
                  %s645 = sadd.s32 %s643, 1
                $region79: #{forward.3} parent=65 // loop_footer_branch
                  %642 = sbr.rel target = $region75
                $region80: #{forward.3} parent=65 // loop_exit
                  _
              $region66: #{forward.3} parent=43 // pred_fallthru
                _
            $region44: #{forward.3} parent=39 // pred_fallthru
              _
            // Predicated region
            $region45: #{forward.3} parent=39 // pred_check
              _
            $region46: #{forward.3} parent=39 // pred_check_branch
              %519 = sbr.rel (0) target = $region48
            $region47: #{forward.3} parent=39 // pred_region
              %s521 = ssub.s32 16, 1
              %s522 = sdiv.u32.pop %s508, 12
              %s523 = srem.u32.pop %s508, 12
              // While loop
              $region49: #{forward.3} parent=47 // loop_pre_header
                _
              $region50: #{forward.3} parent=47 // loop_header
                %s525 = sphi 0, %s527
                %p526 = scmp.ge.s32.totalorder %s525, %s522
                %s530 = sphi 0, %s559
                %s531 = sphi %s501, %s562
                %s532 = sphi %s512, %s563
              $region51: #{forward.3} parent=47 // loop_header_branch
                %529 = sbr.rel (%p526) target = $region55
              $region52: #{forward.3} parent=47 // loop_body
                %v533 = vld [vmem:[%s531] sm:%s521]
                %534 = vst [vmem:[%s532] sm:%s521] %v533
                %v535 = vld [vmem:[%s531 + $0x4] sm:%s521]
                %536 = vst [vmem:[%s532 + $0x4] sm:%s521] %v535
                %v537 = vld [vmem:[%s531 + $0x8] sm:%s521]
                %538 = vst [vmem:[%s532 + $0x8] sm:%s521] %v537
                %v539 = vld [vmem:[%s531 + $0xc] sm:%s521]
                %540 = vst [vmem:[%s532 + $0xc] sm:%s521] %v539
                %v541 = vld [vmem:[%s531 + $0x10] sm:%s521]
                %542 = vst [vmem:[%s532 + $0x10] sm:%s521] %v541
                %v543 = vld [vmem:[%s531 + $0x14] sm:%s521]
                %544 = vst [vmem:[%s532 + $0x14] sm:%s521] %v543
                %v545 = vld [vmem:[%s531 + $0x18] sm:%s521]
                %546 = vst [vmem:[%s532 + $0x18] sm:%s521] %v545
                %v547 = vld [vmem:[%s531 + $0x1c] sm:%s521]
                %548 = vst [vmem:[%s532 + $0x1c] sm:%s521] %v547
                %v549 = vld [vmem:[%s531 + $0x20] sm:%s521]
                %550 = vst [vmem:[%s532 + $0x20] sm:%s521] %v549
                %v551 = vld [vmem:[%s531 + $0x24] sm:%s521]
                %552 = vst [vmem:[%s532 + $0x24] sm:%s521] %v551
                %v553 = vld [vmem:[%s531 + $0x28] sm:%s521]
                %554 = vst [vmem:[%s532 + $0x28] sm:%s521] %v553
                %v555 = vld [vmem:[%s531 + $0x2c] sm:%s521]
                %556 = vst [vmem:[%s532 + $0x2c] sm:%s521] %v555
                %s557 = sadd.s32 1, %s530
                %p558 = scmp.ge.s32.totalorder %s557, %s522
                %s559 = scalar_select %p558, 0, %s557
                %s560 = smul.u32 %s559, 48
                %s561 = smul.u32 %s559, 48
                %s562 = scalar_lea.vmem %s501, %s560 [#allocation2]
                %s563 = scalar_lea.vmem %s512, %s561
              $region53: #{forward.3} parent=47 // loop_footer
                %s527 = sadd.s32 %s525, 1
              $region54: #{forward.3} parent=47 // loop_footer_branch
                %524 = sbr.rel target = $region50
              $region55: #{forward.3} parent=47 // loop_exit
                _
              %s564 = sdiv.u32.pop %s508, 12
              %s565 = srem.u32.pop %s508, 12
              %s566 = smul.u32 %s564, 12
              %s567 = smul.u32 4, %s566
              %s568 = scalar_lea.vmem %s501, %s567 [#allocation2]
              %s569 = smul.u32 4, %s566
              %s570 = scalar_lea.vmem %s512, %s569
              // While loop
              $region56: #{forward.3} parent=47 // loop_pre_header
                _
              $region57: #{forward.3} parent=47 // loop_header
                %s572 = sphi 0, %s574
                %p573 = scmp.ge.s32.totalorder %s572, %s565
                %s577 = sphi 0, %s584
                %s578 = sphi %s568, %s587
                %s579 = sphi %s570, %s588
              $region58: #{forward.3} parent=47 // loop_header_branch
                %576 = sbr.rel (%p573) target = $region62
              $region59: #{forward.3} parent=47 // loop_body
                %v580 = vld [vmem:[%s578] sm:%s521]
                %581 = vst [vmem:[%s579] sm:%s521] %v580
                %s582 = sadd.s32 1, %s577
                %p583 = scmp.ge.s32.totalorder %s582, %s565
                %s584 = scalar_select %p583, 0, %s582
                %s585 = smul.u32 %s584, 4
                %s586 = smul.u32 %s584, 4
                %s587 = scalar_lea.vmem %s568, %s585 [#allocation2]
                %s588 = scalar_lea.vmem %s570, %s586
              $region60: #{forward.3} parent=47 // loop_footer
                %s574 = sadd.s32 %s572, 1
              $region61: #{forward.3} parent=47 // loop_footer_branch
                %571 = sbr.rel target = $region57
              $region62: #{forward.3} parent=47 // loop_exit
                _
            $region48: #{forward.3} parent=39 // pred_fallthru
              _
          $region40: #{forward.3} parent=35 // pred_fallthru
            _
          %660 = vnop
        $region36: #{forward.3} parent=31 // pred_fallthru
          _
      $region32: #{forward.3} parent=5 // pred_fallthru
        _
      %p661 = scmp.le.s32.totalorder 2, %s9
      // Predicated region
      $region81: #{forward.3} parent=5 // pred_check
        %p662 = pneg %p661
      $region82: #{forward.3} parent=5 // pred_check_branch
        %664 = sbr.rel (%p662) target = $region84
      $region83: #{forward.3} parent=5 // pred_region
        %s665 = ssub.s32 %s9, 2
        // Predicated region
        $region85: #{forward.3} parent=83 // pred_check
          %p666 = pneg %p106
        $region86: #{forward.3} parent=83 // pred_check_branch
          %668 = sbr.rel (%p666) target = $region88
        $region87: #{forward.3} parent=83 // pred_region
          %s669 = sand.u32 %s91, 1
          %s670 = sand.u32 %s91, 1
          %s671 = smul.addr %s670, 48
          %s672 = scalar_lea.vmem [#allocation2], %s671
        $region88: #{forward.3} parent=83 // pred_fallthru
          _
      $region84: #{forward.3} parent=5 // pred_fallthru
        _
    $region6: #{forward.3} parent=1 // loop_footer
      %s13 = sadd.s32 1, %s9
    $region7: #{forward.3} parent=1 // loop_footer_branch
      %8 = sbr.rel target = $region3
    $region8: #{forward.3} parent=1 // loop_exit
      _

// kernel: forward.4
$region0: #{forward.4}
  #allocation0 [shape = 'u32[]', space=smem, size = 0x4, offset = 0x4, fixed_abs, tag = 'smem constant byte address 0x4 - core index']
  #allocation1 [shape = 'u32[144,128]{1,0:T(1,128)}', space=vmem, size = 0x12000, scoped, tag = 'internal scratch']
  %s0 = inlined_call_operand.vmem [shape: bf16[242,576], index: 0, kind: input, shape index: {}]
  %s1 = inlined_call_operand.vmem [shape: bf16[576,128], index: 1, kind: input, shape index: {}]
  %s2 = inlined_call_operand.vmem [shape: f32[1,128], index: 2, kind: input, shape index: {}]
  %s3 = inlined_call_operand.vmem [shape: bf16[242,128], index: 3, kind: output, shape index: {}]
  %s4 = sld [smem:[#allocation0]]
  $region89: #{forward.4} parent=0
    _
  %s6 = ssub.s32 1, %s4
  %s7 = scalar_select 0, %s6, %s4
  $region1: #{forward.4} parent=0
    #allocation2 [shape = 'u8[65536]{0}', space=vmem, size = 0x10000, scoped, tag = 'output window, operand 0']
    loop: start=0, step=1, limit=4
    $region2: #{forward.4} parent=1 // loop_pre_header
      _
    $region3: #{forward.4} parent=1 // loop_header
      %s9 = sphi 0, %s13
      %p10 = scmp.ge.s32.totalorder %s9, 4
      %s19 = sphi 0, %s21
      %s22 = sphi 0, %s19
      %s23 = sphi 0, %s22
      %s39 = sphi 0, %s23
      %s43 = sphi 0, %s43
      %s45 = sphi 0, %s43
      %s46 = sphi 0, %s45
      %s60 = sphi 0, %s46
      %s64 = sphi 0, %s64
      %s66 = sphi 0, %s64
      %s67 = sphi 0, %s66
      %s81 = sphi 0, %s67
      %s87 = sphi 0, %s89
      %s90 = sphi 0, %s87
      %s91 = sphi 0, %s90
      %s107 = sphi 0, %s91
    $region4: #{forward.4} parent=1 // loop_header_branch
      %12 = sbr.rel (%p10) target = $region8
    $region5: #{forward.4} parent=1 // loop_body
      %s14 = ssub.s32 %s9, 1
      %s15 = ssub.s32 %s9, 2
      %s16 = sadd.s32 %s9, 1
      %s17 = ssub.s32 %s9, %s16
      %p18 = scmp.eq.s32.totalorder %s17, 0
      %s20 = sadd.s32 %s19, 1
      %s21 = scalar_select %p18, %s19, %s20
      %p24 = pneg %p18
      %p25 = scmp.eq.s32.totalorder %s9, 1
      %p26 = por %p24, %p25
      %p27 = scmp.ne.s32.totalorder %s19, %s22
      %p28 = scmp.eq.s32.totalorder %s9, 0
      %p29 = por %p27, %p28
      %p30 = scmp.ne.s32.totalorder %s19, %s22
      %p31 = scmp.eq.s32.totalorder %s14, 1
      %p32 = por %p30, %p31
      %p33 = scmp.ne.s32.totalorder %s22, %s23
      %p34 = scmp.eq.s32.totalorder %s14, 0
      %p35 = por %p33, %p34
      %p36 = scmp.ne.s32.totalorder %s22, %s23
      %p37 = scmp.eq.s32.totalorder %s15, 1
      %p38 = por %p36, %p37
      %p40 = scmp.ne.s32.totalorder %s23, %s39
      %p41 = scmp.eq.s32.totalorder %s15, 0
      %p42 = por %p40, %p41
      %s44 = sadd.s32 %s43, 1
      %p47 = scmp.eq.s32.totalorder %s9, 1
      %p48 = scmp.ne.s32.totalorder %s43, %s45
      %p49 = scmp.eq.s32.totalorder %s9, 0
      %p50 = por %p48, %p49
      %p51 = scmp.ne.s32.totalorder %s43, %s45
      %p52 = scmp.eq.s32.totalorder %s14, 1
      %p53 = por %p51, %p52
      %p54 = scmp.ne.s32.totalorder %s45, %s46
      %p55 = scmp.eq.s32.totalorder %s14, 0
      %p56 = por %p54, %p55
      %p57 = scmp.ne.s32.totalorder %s45, %s46
      %p58 = scmp.eq.s32.totalorder %s15, 1
      %p59 = por %p57, %p58
      %p61 = scmp.ne.s32.totalorder %s46, %s60
      %p62 = scmp.eq.s32.totalorder %s15, 0
      %p63 = por %p61, %p62
      %s65 = sadd.s32 %s64, 1
      %p68 = scmp.eq.s32.totalorder %s9, 1
      %p69 = scmp.ne.s32.totalorder %s64, %s66
      %p70 = scmp.eq.s32.totalorder %s9, 0
      %p71 = por %p69, %p70
      %p72 = scmp.ne.s32.totalorder %s64, %s66
      %p73 = scmp.eq.s32.totalorder %s14, 1
      %p74 = por %p72, %p73
      %p75 = scmp.ne.s32.totalorder %s66, %s67
      %p76 = scmp.eq.s32.totalorder %s14, 0
      %p77 = por %p75, %p76
      %p78 = scmp.ne.s32.totalorder %s66, %s67
      %p79 = scmp.eq.s32.totalorder %s15, 1
      %p80 = por %p78, %p79
      %p82 = scmp.ne.s32.totalorder %s67, %s81
      %p83 = scmp.eq.s32.totalorder %s15, 0
      %p84 = por %p82, %p83
      %s85 = ssub.s32 %s9, %s16
      %p86 = scmp.eq.s32.totalorder %s85, 0
      %s88 = sadd.s32 %s87, 1
      %s89 = scalar_select %p86, %s87, %s88
      %p92 = pneg %p86
      %p93 = scmp.eq.s32.totalorder %s9, 1
      %p94 = por %p92, %p93
      %p95 = scmp.ne.s32.totalorder %s87, %s90
      %p96 = scmp.eq.s32.totalorder %s9, 0
      %p97 = por %p95, %p96
      %p98 = scmp.ne.s32.totalorder %s87, %s90
      %p99 = scmp.eq.s32.totalorder %s14, 1
      %p100 = por %p98, %p99
      %p101 = scmp.ne.s32.totalorder %s90, %s91
      %p102 = scmp.eq.s32.totalorder %s14, 0
      %p103 = por %p101, %p102
      %p104 = scmp.ne.s32.totalorder %s90, %s91
      %p105 = scmp.eq.s32.totalorder %s15, 1
      %p106 = por %p104, %p105
      %p108 = scmp.ne.s32.totalorder %s91, %s107
      %p109 = scmp.eq.s32.totalorder %s15, 0
      %p110 = por %p108, %p109
      %p111 = scmp.le.s32.totalorder 1, %s9
      %p112 = scmp.lt.s32.totalorder %s9, 3
      %p113 = pnand %p111, %p112
      %p114 = pneg %p113
      // Predicated region
      $region9: #{forward.4} parent=5 // pred_check
        _
      $region10: #{forward.4} parent=5 // pred_check_branch
        %116 = sbr.rel (%p113) target = $region12
      $region11: #{forward.4} parent=5 // pred_region
        %s117 = ssub.s32 %s9, 1
        // Predicated region
        $region13: #{forward.4} parent=11 // pred_check
          %p118 = pneg %p56
        $region14: #{forward.4} parent=11 // pred_check_branch
          %120 = sbr.rel (%p118) target = $region16
        $region15: #{forward.4} parent=11 // pred_region
          _
        $region16: #{forward.4} parent=11 // pred_fallthru
          _
        // Predicated region
        $region17: #{forward.4} parent=11 // pred_check
          %p121 = pneg %p77
        $region18: #{forward.4} parent=11 // pred_check_branch
          %123 = sbr.rel (%p121) target = $region20
        $region19: #{forward.4} parent=11 // pred_region
          _
        $region20: #{forward.4} parent=11 // pred_fallthru
          _
      $region12: #{forward.4} parent=5 // pred_fallthru
        _
      %p124 = scmp.lt.s32.totalorder %s9, 2
      // Predicated region
      $region21: #{forward.4} parent=5 // pred_check
        %p125 = pneg %p124
      $region22: #{forward.4} parent=5 // pred_check_branch
        %127 = sbr.rel (%p125) target = $region24
      $region23: #{forward.4} parent=5 // pred_region
        // Predicated region
        $region25: #{forward.4} parent=23 // pred_check
          %p128 = pneg %p29
        $region26: #{forward.4} parent=23 // pred_check_branch
          %130 = sbr.rel (%p128) target = $region28
        $region27: #{forward.4} parent=23 // pred_region
          %s131 = smul.u32 16, %s9
          %s132 = ssub.s32 31, %s131
          %p133 = scmp.lt.s32.totalorder %s132, 16
          %s134 = scalar_select %p133, %s132, 16
          %s135 = smul.u32 64, %s134
          %s136 = smul.u32 %s135, 5
          %p137 = scmp.lt.s32.totalorder %s131, 30
          %s138 = scalar_select %p137, %s131, 30
          %s139 = smul.addr %s138, 5
          %s140 = smul.addr %s139, 4
          %s141 = scalar_lea.vmem %s0, %s140
          %s142 = smul.u32 16, %s9
          %s143 = ssub.s32 31, %s142
          %p144 = scmp.lt.s32.totalorder %s143, 16
          %s145 = scalar_select %p144, %s143, 16
          %s146 = smul.u32 64, %s145
          %s147 = smul.u32 %s146, 5
        $region28: #{forward.4} parent=23 // pred_fallthru
          _
      $region24: #{forward.4} parent=5 // pred_fallthru
        _
      %p148 = scmp.le.s32.totalorder 1, %s9
      %p149 = scmp.lt.s32.totalorder %s9, 3
      %p150 = pnand %p148, %p149
      %p151 = pneg %p150
      // Predicated region
      $region29: #{forward.4} parent=5 // pred_check
        _
      $region30: #{forward.4} parent=5 // pred_check_branch
        %153 = sbr.rel (%p150) target = $region32
      $region31: #{forward.4} parent=5 // pred_region
        %s154 = ssub.s32 %s9, 1
        %s155 = smul.u32 16, %s14
        %s156 = ssub.s32 31, %s155
        %p157 = scmp.lt.s32.totalorder %s156, 16
        %s158 = scalar_select %p157, %s156, 16
        %s159 = smul.u32 64, %s158
        %s160 = smul.u32 %s159, 5
        %p161 = scmp.lt.s32.totalorder %s155, 30
        %s162 = scalar_select %p161, %s155, 30
        %s163 = smul.addr %s162, 5
        %s164 = smul.addr %s163, 4
        %s165 = scalar_lea.vmem %s0, %s164
        %p166 = pneg %p35
        %p167 = pneg %p32
        %p168 = pneg %p56
        %p169 = pneg %p53
        %p170 = pneg %p77
        %p171 = pneg %p74
        %p172 = pneg %p103
        %p173 = pneg %p100
        %s174 = sand.u32 %s90, 1
        %s175 = sand.u32 %s90, 1
        %s176 = smul.addr %s175, 64
        %s177 = scalar_lea.vmem [#allocation2], %s176
        %s178 = smul.u32 16, %s14
        %s179 = ssub.s32 31, %s178
        %p180 = scmp.lt.s32.totalorder %s179, 16
        %s181 = scalar_select %p180, %s179, 16
        %s182 = smul.u32 64, %s181
        %s183 = smul.u32 %s182, 5
        %p184 = scmp.lt.s32.totalorder %s178, 30
        %s185 = scalar_select %p184, %s178, 30
        %s186 = smul.addr %s185, 5
        %s187 = smul.addr %s186, 4
        %s188 = scalar_lea.vmem %s0, %s187
        %s189 = smul.u32 16, %s14
        %s190 = ssub.s32 31, %s189
        %p191 = scmp.lt.s32.totalorder %s190, 16
        %s192 = scalar_select %p191, %s190, 16
        %s193 = smul.u32 64, %s192
        %s194 = smul.u32 %s193, 5
        %s195 = smul.u32 16, %s14
        %s196 = ssub.s32 31, %s195
        %p197 = scmp.lt.s32.totalorder %s196, 16
        %s198 = scalar_select %p197, %s196, 16
        %s199 = smul.u32 64, %s198
        %v201 = vld [vmem:[%s188] sm:$0xff]
        %v202 = vld [vmem:[%s188 + $0x8] sm:$0xff]
        %v203 = vld [vmem:[%s188 + $0x10] sm:$0xf]
        %v204 = vld [vmem:[%s188 + $0x14] sm:$0xff]
        %v205 = vld [vmem:[%s188 + $0x1c] sm:$0xff]
        %v206 = vld [vmem:[%s188 + $0x24] sm:$0xf]
        %v207 = vld [vmem:[%s188 + $0x28] sm:$0xff]
        %v208 = vld [vmem:[%s188 + $0x30] sm:$0xff]
        %v209 = vld [vmem:[%s188 + $0x38] sm:$0xf]
        %v210 = vld [vmem:[%s188 + $0x3c] sm:$0xff]
        %v211 = vld [vmem:[%s188 + $0x44] sm:$0xff]
        %v212 = vld [vmem:[%s188 + $0x4c] sm:$0xf]
        %v213 = vld [vmem:[%s188 + $0x50] sm:$0xff]
        %v214 = vld [vmem:[%s188 + $0x58] sm:$0xff]
        %v215 = vld [vmem:[%s188 + $0x60] sm:$0xf]
        %v216 = vld [vmem:[%s188 + $0x64] sm:$0xff]
        %v217 = vld [vmem:[%s188 + $0x6c] sm:$0xff]
        %v218 = vld [vmem:[%s188 + $0x74] sm:$0xf]
        %v219 = vld [vmem:[%s188 + $0x78] sm:$0xff]
        %v220 = vld [vmem:[%s188 + $0x80] sm:$0xff]
        %v221 = vld [vmem:[%s188 + $0x88] sm:$0xf]
        %v222 = vld [vmem:[%s188 + $0x8c] sm:$0xff]
        %v223 = vld [vmem:[%s188 + $0x94] sm:$0xff]
        %v224 = vld [vmem:[%s188 + $0x9c] sm:$0xf]
        %v225 = vld [vmem:[%s188 + $0xa0] sm:$0xff]
        %v226 = vld [vmem:[%s188 + $0xa8] sm:$0xff]
        %v227 = vld [vmem:[%s188 + $0xb0] sm:$0xf]
        %v228 = vld [vmem:[%s188 + $0xb4] sm:$0xff]
        %v229 = vld [vmem:[%s188 + $0xbc] sm:$0xff]
        %v230 = vld [vmem:[%s188 + $0xc4] sm:$0xf]
        %v231 = vld [vmem:[%s188 + $0xc8] sm:$0xff]
        %v232 = vld [vmem:[%s188 + $0xd0] sm:$0xff]
        %v233 = vld [vmem:[%s188 + $0xd8] sm:$0xf]
        %v234 = vld [vmem:[%s188 + $0xdc] sm:$0xff]
        %v235 = vld [vmem:[%s188 + $0xe4] sm:$0xff]
        %v236 = vld [vmem:[%s188 + $0xec] sm:$0xf]
        %v237 = vld [vmem:[%s188 + $0xf0] sm:$0xff]
        %v238 = vld [vmem:[%s188 + $0xf8] sm:$0xff]
        %v239 = vld [vmem:[%s188 + $0x100] sm:$0xf]
        %v240 = vld [vmem:[%s188 + $0x104] sm:$0xff]
        %v241 = vld [vmem:[%s188 + $0x10c] sm:$0xff]
        %v242 = vld [vmem:[%s188 + $0x114] sm:$0xf]
        %v243 = vld [vmem:[%s188 + $0x118] sm:$0xff]
        %v244 = vld [vmem:[%s188 + $0x120] sm:$0xff]
        %v245 = vld [vmem:[%s188 + $0x128] sm:$0xf]
        %v246 = vld [vmem:[%s188 + $0x12c] sm:$0xff]
        %v247 = vld [vmem:[%s188 + $0x134] sm:$0xff]
        %v248 = vld [vmem:[%s188 + $0x13c] sm:$0xf]
        %v249 = vld [vmem:[%s1] sm:$0xf]
        %v250 = vld [vmem:[%s1 + $0x4] sm:$0xf]
        %v251 = vld [vmem:[%s1 + $0x8] sm:$0xf]
        %v252 = vld [vmem:[%s1 + $0xc] sm:$0xf]
        %v253 = vld [vmem:[%s1 + $0x10] sm:$0xf]
        %v254 = vld [vmem:[%s1 + $0x14] sm:$0xf]
        %v255 = vld [vmem:[%s1 + $0x18] sm:$0xf]
        %v256 = vld [vmem:[%s1 + $0x1c] sm:$0xf]
        %v257 = vld [vmem:[%s1 + $0x20] sm:$0xf]
        %v258 = vld [vmem:[%s1 + $0x24] sm:$0xf]
        %v259 = vld [vmem:[%s1 + $0x28] sm:$0xf]
        %v260 = vld [vmem:[%s1 + $0x2c] sm:$0xf]
        %v261 = vld [vmem:[%s1 + $0x30] sm:$0xf]
        %v262 = vld [vmem:[%s1 + $0x34] sm:$0xf]
        %v263 = vld [vmem:[%s1 + $0x38] sm:$0xf]
        %v264 = vld [vmem:[%s1 + $0x3c] sm:$0xf]
        %v265 = vld [vmem:[%s1 + $0x40] sm:$0xf]
        %v266 = vld [vmem:[%s1 + $0x44] sm:$0xf]
        %v267 = vld [vmem:[%s1 + $0x48] sm:$0xf]
        %v268 = vld [vmem:[%s1 + $0x4c] sm:$0xf]
        %v269 = vld [vmem:[%s1 + $0x50] sm:$0xf]
        %v270 = vld [vmem:[%s1 + $0x54] sm:$0xf]
        %v271 = vld [vmem:[%s1 + $0x58] sm:$0xf]
        %v272 = vld [vmem:[%s1 + $0x5c] sm:$0xf]
        %v273 = vld [vmem:[%s1 + $0x60] sm:$0xf]
        %v274 = vld [vmem:[%s1 + $0x64] sm:$0xf]
        %v275 = vld [vmem:[%s1 + $0x68] sm:$0xf]
        %v276 = vld [vmem:[%s1 + $0x6c] sm:$0xf]
        %v277 = vld [vmem:[%s1 + $0x70] sm:$0xf]
        %v278 = vld [vmem:[%s1 + $0x74] sm:$0xf]
        %v279 = vld [vmem:[%s1 + $0x78] sm:$0xf]
        %v280 = vld [vmem:[%s1 + $0x7c] sm:$0xf]
        %v281 = vld [vmem:[%s1 + $0x80] sm:$0xf]
        %v282 = vld [vmem:[%s1 + $0x84] sm:$0xf]
        %v283 = vld [vmem:[%s1 + $0x88] sm:$0xf]
        %v284 = vld [vmem:[%s1 + $0x8c] sm:$0xf]
        %v285 = vld [vmem:[%s1 + $0x90] sm:$0xf]
        %v286 = vld [vmem:[%s1 + $0x94] sm:$0xf]
        %v287 = vld [vmem:[%s1 + $0x98] sm:$0xf]
        %v288 = vld [vmem:[%s1 + $0x9c] sm:$0xf]
        %v289 = vld [vmem:[%s1 + $0xa0] sm:$0xf]
        %v290 = vld [vmem:[%s1 + $0xa4] sm:$0xf]
        %v291 = vld [vmem:[%s1 + $0xa8] sm:$0xf]
        %v292 = vld [vmem:[%s1 + $0xac] sm:$0xf]
        %v293 = vld [vmem:[%s1 + $0xb0] sm:$0xf]
        %v294 = vld [vmem:[%s1 + $0xb4] sm:$0xf]
        %v295 = vld [vmem:[%s1 + $0xb8] sm:$0xf]
        %v296 = vld [vmem:[%s1 + $0xbc] sm:$0xf]
        %v297 = vld [vmem:[%s1 + $0xc0] sm:$0xf]
        %v298 = vld [vmem:[%s1 + $0xc4] sm:$0xf]
        %v299 = vld [vmem:[%s1 + $0xc8] sm:$0xf]
        %v300 = vld [vmem:[%s1 + $0xcc] sm:$0xf]
        %v301 = vld [vmem:[%s1 + $0xd0] sm:$0xf]
        %v302 = vld [vmem:[%s1 + $0xd4] sm:$0xf]
        %v303 = vld [vmem:[%s1 + $0xd8] sm:$0xf]
        %v304 = vld [vmem:[%s1 + $0xdc] sm:$0xf]
        %v305 = vld [vmem:[%s1 + $0xe0] sm:$0xf]
        %v306 = vld [vmem:[%s1 + $0xe4] sm:$0xf]
        %v307 = vld [vmem:[%s1 + $0xe8] sm:$0xf]
        %v308 = vld [vmem:[%s1 + $0xec] sm:$0xf]
        %v309 = vld [vmem:[%s1 + $0xf0] sm:$0xf]
        %v310 = vld [vmem:[%s1 + $0xf4] sm:$0xf]
        %v311 = vld [vmem:[%s1 + $0xf8] sm:$0xf]
        %v312 = vld [vmem:[%s1 + $0xfc] sm:$0xf]
        %v313 = vld [vmem:[%s1 + $0x100] sm:$0xf]
        %v314 = vld [vmem:[%s1 + $0x104] sm:$0xf]
        %v315 = vld [vmem:[%s1 + $0x108] sm:$0xf]
        %v316 = vld [vmem:[%s1 + $0x10c] sm:$0xf]
        %v317 = vld [vmem:[%s1 + $0x110] sm:$0xf]
        %v318 = vld [vmem:[%s1 + $0x114] sm:$0xf]
        %v319 = vld [vmem:[%s1 + $0x118] sm:$0xf]
        %v320 = vld [vmem:[%s1 + $0x11c] sm:$0xf]
        %v321 = vld [vmem:[%s2] sm:$0x1]
        %v323 = vlaneseq
        %v324 = vshrl.u32 %v323, 7
        %v325 = vsub.s32 0, %v324
        %v326 = vrot.slane %v321, %v325
        %v376 = vunpack.c.l.b16 %v201
        %v377 = vunpack.c.h.b16 %v201
        %v378 = vunpack.c.l.b16 %v202
        %v379 = vunpack.c.h.b16 %v202
        %v380 = vunpack.c.l.b16 %v203
        %v381 = vunpack.c.l.b16 %v204
        %v382 = vunpack.c.h.b16 %v204
        %v383 = vunpack.c.l.b16 %v205
        %v384 = vunpack.c.h.b16 %v205
        %v385 = vunpack.c.l.b16 %v206
        %v386 = vunpack.c.l.b16 %v207
        %v387 = vunpack.c.h.b16 %v207
        %v388 = vunpack.c.l.b16 %v208
        %v389 = vunpack.c.h.b16 %v208
        %v390 = vunpack.c.l.b16 %v209
        %v391 = vunpack.c.l.b16 %v210
        %v392 = vunpack.c.h.b16 %v210
        %v393 = vunpack.c.l.b16 %v211
        %v394 = vunpack.c.h.b16 %v211
        %v395 = vunpack.c.l.b16 %v212
        %v396 = vunpack.c.l.b16 %v213
        %v397 = vunpack.c.h.b16 %v213
        %v398 = vunpack.c.l.b16 %v214
        %v399 = vunpack.c.h.b16 %v214
        %v400 = vunpack.c.l.b16 %v215
        %v401 = vunpack.c.l.b16 %v216
        %v402 = vunpack.c.h.b16 %v216
        %v403 = vunpack.c.l.b16 %v217
        %v404 = vunpack.c.h.b16 %v217
        %v405 = vunpack.c.l.b16 %v218
        %v406 = vunpack.c.l.b16 %v219
        %v407 = vunpack.c.h.b16 %v219
        %v408 = vunpack.c.l.b16 %v220
        %v409 = vunpack.c.h.b16 %v220
        %v410 = vunpack.c.l.b16 %v221
        %v411 = vunpack.c.l.b16 %v222
        %v412 = vunpack.c.h.b16 %v222
        %v413 = vunpack.c.l.b16 %v223
        %v414 = vunpack.c.h.b16 %v223
        %v415 = vunpack.c.l.b16 %v224
        %v416 = vunpack.c.l.b16 %v225
        %v417 = vunpack.c.h.b16 %v225
        %v418 = vunpack.c.l.b16 %v226
        %v419 = vunpack.c.h.b16 %v226
        %v420 = vunpack.c.l.b16 %v227
        %v421 = vunpack.c.l.b16 %v228
        %v422 = vunpack.c.h.b16 %v228
        %v423 = vunpack.c.l.b16 %v229
        %v424 = vunpack.c.h.b16 %v229
        %v425 = vunpack.c.l.b16 %v230
        %v426 = vunpack.c.l.b16 %v231
        %v427 = vunpack.c.h.b16 %v231
        %v428 = vunpack.c.l.b16 %v232
        %v429 = vunpack.c.h.b16 %v232
        %v430 = vunpack.c.l.b16 %v233
        %v431 = vunpack.c.l.b16 %v234
        %v432 = vunpack.c.h.b16 %v234
        %v433 = vunpack.c.l.b16 %v235
        %v434 = vunpack.c.h.b16 %v235
        %v435 = vunpack.c.l.b16 %v236
        %v436 = vunpack.c.l.b16 %v237
        %v437 = vunpack.c.h.b16 %v237
        %v438 = vunpack.c.l.b16 %v238
        %v439 = vunpack.c.h.b16 %v238
        %v440 = vunpack.c.l.b16 %v239
        %v441 = vunpack.c.l.b16 %v240
        %v442 = vunpack.c.h.b16 %v240
        %v443 = vunpack.c.l.b16 %v241
        %v444 = vunpack.c.h.b16 %v241
        %v445 = vunpack.c.l.b16 %v242
        %v446 = vunpack.c.l.b16 %v243
        %v447 = vunpack.c.h.b16 %v243
        %v448 = vunpack.c.l.b16 %v244
        %v449 = vunpack.c.h.b16 %v244
        %v450 = vunpack.c.l.b16 %v245
        %v451 = vunpack.c.l.b16 %v246
        %v452 = vunpack.c.h.b16 %v246
        %v453 = vunpack.c.l.b16 %v247
        %v454 = vunpack.c.h.b16 %v247
        %v455 = vunpack.c.l.b16 %v248
        %v456 = vpack.c.b16 %v381, %v376
        %v457 = vpack.c.b16 %v382, %v377
        %v458 = vpack.c.b16 %v383, %v378
        %v459 = vpack.c.b16 %v384, %v379
        %v460 = vpack.c.b16 %v385, %v380
        %v461 = vpack.c.b16 %v391, %v386
        %v462 = vpack.c.b16 %v392, %v387
        %v463 = vpack.c.b16 %v393, %v388
        %v464 = vpack.c.b16 %v394, %v389
        %v465 = vpack.c.b16 %v395, %v390
        %v466 = vpack.c.b16 %v401, %v396
        %v467 = vpack.c.b16 %v402, %v397
        %v468 = vpack.c.b16 %v403, %v398
        %v469 = vpack.c.b16 %v404, %v399
        %v470 = vpack.c.b16 %v405, %v400
        %v471 = vpack.c.b16 %v411, %v406
        %v472 = vpack.c.b16 %v412, %v407
        %v473 = vpack.c.b16 %v413, %v408
        %v474 = vpack.c.b16 %v414, %v409
        %v475 = vpack.c.b16 %v415, %v410
        %v476 = vpack.c.b16 %v421, %v416
        %v477 = vpack.c.b16 %v422, %v417
        %v478 = vpack.c.b16 %v423, %v418
        %v479 = vpack.c.b16 %v424, %v419
        %v480 = vpack.c.b16 %v425, %v420
        %v481 = vpack.c.b16 %v431, %v426
        %v482 = vpack.c.b16 %v432, %v427
        %v483 = vpack.c.b16 %v433, %v428
        %v484 = vpack.c.b16 %v434, %v429
        %v485 = vpack.c.b16 %v435, %v430
        %v486 = vpack.c.b16 %v441, %v436
        %v487 = vpack.c.b16 %v442, %v437
        %v488 = vpack.c.b16 %v443, %v438
        %v489 = vpack.c.b16 %v444, %v439
        %v490 = vpack.c.b16 %v445, %v440
        %v491 = vpack.c.b16 %v451, %v446
        %v492 = vpack.c.b16 %v452, %v447
        %v493 = vpack.c.b16 %v453, %v448
        %v494 = vpack.c.b16 %v454, %v449
        %v495 = vpack.c.b16 %v455, %v450
        %v600 = vunpack.c.l.b16 %v249
        %v601 = vunpack.c.l.b16 %v250
        %v602 = vunpack.c.l.b16 %v251
        %v603 = vunpack.c.l.b16 %v252
        %v604 = vunpack.c.l.b16 %v253
        %v605 = vunpack.c.l.b16 %v254
        %v606 = vunpack.c.l.b16 %v255
        %v607 = vunpack.c.l.b16 %v256
        %v608 = vunpack.c.l.b16 %v257
        %v609 = vunpack.c.l.b16 %v258
        %v610 = vunpack.c.l.b16 %v259
        %v611 = vunpack.c.l.b16 %v260
        %v612 = vunpack.c.l.b16 %v261
        %v613 = vunpack.c.l.b16 %v262
        %v614 = vunpack.c.l.b16 %v263
        %v615 = vunpack.c.l.b16 %v264
        %v616 = vunpack.c.l.b16 %v265
        %v617 = vunpack.c.l.b16 %v266
        %v618 = vunpack.c.l.b16 %v267
        %v619 = vunpack.c.l.b16 %v268
        %v620 = vunpack.c.l.b16 %v269
        %v621 = vunpack.c.l.b16 %v270
        %v622 = vunpack.c.l.b16 %v271
        %v623 = vunpack.c.l.b16 %v272
        %v624 = vunpack.c.l.b16 %v273
        %v625 = vunpack.c.l.b16 %v274
        %v626 = vunpack.c.l.b16 %v275
        %v627 = vunpack.c.l.b16 %v276
        %v628 = vunpack.c.l.b16 %v277
        %v629 = vunpack.c.l.b16 %v278
        %v630 = vunpack.c.l.b16 %v279
        %v631 = vunpack.c.l.b16 %v280
        %v632 = vunpack.c.l.b16 %v281
        %v633 = vunpack.c.l.b16 %v282
        %v634 = vunpack.c.l.b16 %v283
        %v635 = vunpack.c.l.b16 %v284
        %v636 = vunpack.c.l.b16 %v285
        %v637 = vunpack.c.l.b16 %v286
        %v638 = vunpack.c.l.b16 %v287
        %v639 = vunpack.c.l.b16 %v288
        %v640 = vunpack.c.l.b16 %v289
        %v641 = vunpack.c.l.b16 %v290
        %v642 = vunpack.c.l.b16 %v291
        %v643 = vunpack.c.l.b16 %v292
        %v644 = vunpack.c.l.b16 %v293
        %v645 = vunpack.c.l.b16 %v294
        %v646 = vunpack.c.l.b16 %v295
        %v647 = vunpack.c.l.b16 %v296
        %v648 = vunpack.c.l.b16 %v297
        %v649 = vunpack.c.l.b16 %v298
        %v650 = vunpack.c.l.b16 %v299
        %v651 = vunpack.c.l.b16 %v300
        %v652 = vunpack.c.l.b16 %v301
        %v653 = vunpack.c.l.b16 %v302
        %v654 = vunpack.c.l.b16 %v303
        %v655 = vunpack.c.l.b16 %v304
        %v656 = vunpack.c.l.b16 %v305
        %v657 = vunpack.c.l.b16 %v306
        %v658 = vunpack.c.l.b16 %v307
        %v659 = vunpack.c.l.b16 %v308
        %v660 = vunpack.c.l.b16 %v309
        %v661 = vunpack.c.l.b16 %v310
        %v662 = vunpack.c.l.b16 %v311
        %v663 = vunpack.c.l.b16 %v312
        %v664 = vunpack.c.l.b16 %v313
        %v665 = vunpack.c.l.b16 %v314
        %v666 = vunpack.c.l.b16 %v315
        %v667 = vunpack.c.l.b16 %v316
        %v668 = vunpack.c.l.b16 %v317
        %v669 = vunpack.c.l.b16 %v318
        %v670 = vunpack.c.l.b16 %v319
        %v671 = vunpack.c.l.b16 %v320
        %v672 = vpack.c.b16 %v601, %v600
        %v673 = vpack.c.b16 %v603, %v602
        %v674 = vpack.c.b16 %v605, %v604
        %v675 = vpack.c.b16 %v607, %v606
        %v676 = vpack.c.b16 %v609, %v608
        %v677 = vpack.c.b16 %v611, %v610
        %v678 = vpack.c.b16 %v613, %v612
        %v679 = vpack.c.b16 %v615, %v614
        %v680 = vpack.c.b16 %v617, %v616
        %v681 = vpack.c.b16 %v619, %v618
        %v682 = vpack.c.b16 %v621, %v620
        %v683 = vpack.c.b16 %v623, %v622
        %v684 = vpack.c.b16 %v625, %v624
        %v685 = vpack.c.b16 %v627, %v626
        %v686 = vpack.c.b16 %v629, %v628
        %v687 = vpack.c.b16 %v631, %v630
        %v688 = vpack.c.b16 %v633, %v632
        %v689 = vpack.c.b16 %v635, %v634
        %v690 = vpack.c.b16 %v637, %v636
        %v691 = vpack.c.b16 %v639, %v638
        %v692 = vpack.c.b16 %v641, %v640
        %v693 = vpack.c.b16 %v643, %v642
        %v694 = vpack.c.b16 %v645, %v644
        %v695 = vpack.c.b16 %v647, %v646
        %v696 = vpack.c.b16 %v649, %v648
        %v697 = vpack.c.b16 %v651, %v650
        %v698 = vpack.c.b16 %v653, %v652
        %v699 = vpack.c.b16 %v655, %v654
        %v700 = vpack.c.b16 %v657, %v656
        %v701 = vpack.c.b16 %v659, %v658
        %v702 = vpack.c.b16 %v661, %v660
        %v703 = vpack.c.b16 %v663, %v662
        %v704 = vpack.c.b16 %v665, %v664
        %v705 = vpack.c.b16 %v667, %v666
        %v706 = vpack.c.b16 %v669, %v668
        %v707 = vpack.c.b16 %v671, %v670
        %vm744 = vcmask 523264
        %v746 = vsel %vm744, %v460, 0
        %v749 = vsel %vm744, %v465, 0
        %v752 = vsel %vm744, %v470, 0
        %v755 = vsel %vm744, %v475, 0
        %v758 = vsel %vm744, %v480, 0
        %v761 = vsel %vm744, %v485, 0
        %v764 = vsel %vm744, %v490, 0
        %v767 = vsel %vm744, %v495, 0
        %769 = vmatprep.subr.bf16.mxu0 0
        %770 = vmatpush1.bf16.msra.mxu0 %v679
        %771 = vmatprep.subr.bf16.mxu0 0
        %772 = vmatpush1.bf16.msra.mxu0 %v678
        %773 = vmatprep.subr.bf16.mxu0 0
        %774 = vmatpush1.bf16.msra.mxu0 %v677
        %775 = vmatprep.subr.bf16.mxu0 0
        %776 = vmatpush1.bf16.msra.mxu0 %v676
        %777 = vmatprep.subr.bf16.mxu0 0
        %778 = vmatpush1.bf16.msra.mxu0 %v675
        %779 = vmatprep.subr.bf16.mxu0 0
        %780 = vmatpush1.bf16.msra.mxu0 %v674
        %781 = vmatprep.subr.bf16.mxu0 0
        %782 = vmatpush1.bf16.msra.mxu0 %v673
        %783 = vmatprep.subr.bf16.mxu0 0
        %784 = vmatpush1.bf16.msra.mxu0 %v672
        %785 = vmatprep.subr.bf16.mxu0 0
        %786 = vmatpush2.bf16.msra.mxu0 %v687
        %787 = vmatprep.subr.bf16.mxu0 0
        %788 = vmatpush2.bf16.msra.mxu0 %v686
        %789 = vmatprep.subr.bf16.mxu0 0
        %790 = vmatpush2.bf16.msra.mxu0 %v685
        %791 = vmatprep.subr.bf16.mxu0 0
        %792 = vmatpush2.bf16.msra.mxu0 %v684
        %793 = vmatprep.subr.bf16.mxu0 0
        %794 = vmatpush2.bf16.msra.mxu0 %v683
        %795 = vmatprep.subr.bf16.mxu0 0
        %796 = vmatpush2.bf16.msra.mxu0 %v682
        %797 = vmatprep.subr.bf16.mxu0 0
        %798 = vmatpush2.bf16.msra.mxu0 %v681
        %799 = vmatprep.subr.bf16.mxu0 0
        %800 = vmatpush2.bf16.msra.mxu0 %v680
        %801 = vmatprep.mubr.bf16.mxu0 %v457
        %802 = vmatmul.mubr.bf16.gmra.mxu0 %v456
        %v803 = vpop.f32.mrf.mxu0
        %v804 = vadd.f32 %v326, %v803
        %v805 = vpop.f32.mrf.mxu0
        %v806 = vpop.f32.mrf.mxu0
        %v807 = vadd.f32 %v326, %v806
        %v808 = vpop.f32.mrf.mxu0
        %809 = vmatprep.mubr.bf16.mxu0 %v462
        %810 = vmatmul.mubr.bf16.gmra.mxu0 %v461
        %v811 = vpop.f32.mrf.mxu0
        %v812 = vadd.f32 %v326, %v811
        %v813 = vpop.f32.mrf.mxu0
        %v814 = vpop.f32.mrf.mxu0
        %v815 = vadd.f32 %v326, %v814
        %v816 = vpop.f32.mrf.mxu0
        %817 = vmatprep.mubr.bf16.mxu0 %v467
        %818 = vmatmul.mubr.bf16.gmra.mxu0 %v466
        %v819 = vpop.f32.mrf.mxu0
        %v820 = vadd.f32 %v326, %v819
        %v821 = vpop.f32.mrf.mxu0
        %v822 = vpop.f32.mrf.mxu0
        %v823 = vadd.f32 %v326, %v822
        %v824 = vpop.f32.mrf.mxu0
        %825 = vmatprep.mubr.bf16.mxu0 %v472
        %826 = vmatmul.mubr.bf16.gmra.mxu0 %v471
        %v827 = vpop.f32.mrf.mxu0
        %v828 = vadd.f32 %v326, %v827
        %v829 = vpop.f32.mrf.mxu0
        %v830 = vpop.f32.mrf.mxu0
        %v831 = vadd.f32 %v326, %v830
        %v832 = vpop.f32.mrf.mxu0
        %833 = vmatprep.mubr.bf16.mxu0 %v477
        %834 = vmatmul.mubr.bf16.gmra.mxu0 %v476
        %v835 = vpop.f32.mrf.mxu0
        %v836 = vadd.f32 %v326, %v835
        %v837 = vpop.f32.mrf.mxu0
        %v838 = vpop.f32.mrf.mxu0
        %v839 = vadd.f32 %v326, %v838
        %v840 = vpop.f32.mrf.mxu0
        %841 = vmatprep.mubr.bf16.mxu0 %v482
        %842 = vmatmul.mubr.bf16.gmra.mxu0 %v481
        %v843 = vpop.f32.mrf.mxu0
        %v844 = vadd.f32 %v326, %v843
        %v845 = vpop.f32.mrf.mxu0
        %v846 = vpop.f32.mrf.mxu0
        %v847 = vadd.f32 %v326, %v846
        %v848 = vpop.f32.mrf.mxu0
        %849 = vmatprep.mubr.bf16.mxu0 %v487
        %850 = vmatmul.mubr.bf16.gmra.mxu0 %v486
        %v851 = vpop.f32.mrf.mxu0
        %v852 = vadd.f32 %v326, %v851
        %v853 = vpop.f32.mrf.mxu0
        %v854 = vpop.f32.mrf.mxu0
        %v855 = vadd.f32 %v326, %v854
        %v856 = vpop.f32.mrf.mxu0
        %857 = vmatprep.mubr.bf16.mxu0 %v492
        %858 = vmatmul.mubr.bf16.gmra.mxu0 %v491
        %v859 = vpop.f32.mrf.mxu0
        %v860 = vadd.f32 %v326, %v859
        %v861 = vpop.f32.mrf.mxu0
        %v862 = vpop.f32.mrf.mxu0
        %v863 = vadd.f32 %v326, %v862
        %v864 = vpop.f32.mrf.mxu0
        %865 = vdwg.mxu0
        %866 = vmatprep.subr.bf16.mxu0 0
        %867 = vmatpush1.bf16.msra.mxu0 %v695
        %868 = vmatprep.subr.bf16.mxu0 0
        %869 = vmatpush1.bf16.msra.mxu0 %v694
        %870 = vmatprep.subr.bf16.mxu0 0
        %871 = vmatpush1.bf16.msra.mxu0 %v693
        %872 = vmatprep.subr.bf16.mxu0 0
        %873 = vmatpush1.bf16.msra.mxu0 %v692
        %874 = vmatprep.subr.bf16.mxu0 0
        %875 = vmatpush1.bf16.msra.mxu0 %v691
        %876 = vmatprep.subr.bf16.mxu0 0
        %877 = vmatpush1.bf16.msra.mxu0 %v690
        %878 = vmatprep.subr.bf16.mxu0 0
        %879 = vmatpush1.bf16.msra.mxu0 %v689
        %880 = vmatprep.subr.bf16.mxu0 0
        %881 = vmatpush1.bf16.msra.mxu0 %v688
        %882 = vmatprep.subr.bf16.mxu0 0
        %883 = vmatpush2.bf16.msra.mxu0 %v703
        %884 = vmatprep.subr.bf16.mxu0 0
        %885 = vmatpush2.bf16.msra.mxu0 %v702
        %886 = vmatprep.subr.bf16.mxu0 0
        %887 = vmatpush2.bf16.msra.mxu0 %v701
        %888 = vmatprep.subr.bf16.mxu0 0
        %889 = vmatpush2.bf16.msra.mxu0 %v700
        %890 = vmatprep.subr.bf16.mxu0 0
        %891 = vmatpush2.bf16.msra.mxu0 %v699
        %892 = vmatprep.subr.bf16.mxu0 0
        %893 = vmatpush2.bf16.msra.mxu0 %v698
        %894 = vmatprep.subr.bf16.mxu0 0
        %895 = vmatpush2.bf16.msra.mxu0 %v697
        %896 = vmatprep.subr.bf16.mxu0 0
        %897 = vmatpush2.bf16.msra.mxu0 %v696
        %898 = vmatprep.mubr.bf16.mxu0 %v459
        %899 = vmatmul.mubr.bf16.gmra.mxu0 %v458
        %v900 = vpop.f32.mrf.mxu0
        %v901 = vadd.f32 %v804, %v900
        %v902 = vpop.f32.mrf.mxu0
        %v903 = vpop.f32.mrf.mxu0
        %v904 = vadd.f32 %v807, %v903
        %v905 = vpop.f32.mrf.mxu0
        %906 = vmatprep.mubr.bf16.mxu0 %v464
        %907 = vmatmul.mubr.bf16.gmra.mxu0 %v463
        %v908 = vpop.f32.mrf.mxu0
        %v909 = vadd.f32 %v812, %v908
        %v910 = vpop.f32.mrf.mxu0
        %v911 = vpop.f32.mrf.mxu0
        %v912 = vadd.f32 %v815, %v911
        %v913 = vpop.f32.mrf.mxu0
        %914 = vmatprep.mubr.bf16.mxu0 %v469
        %915 = vmatmul.mubr.bf16.gmra.mxu0 %v468
        %v916 = vpop.f32.mrf.mxu0
        %v917 = vadd.f32 %v820, %v916
        %v918 = vpop.f32.mrf.mxu0
        %v919 = vpop.f32.mrf.mxu0
        %v920 = vadd.f32 %v823, %v919
        %v921 = vpop.f32.mrf.mxu0
        %922 = vmatprep.mubr.bf16.mxu0 %v474
        %923 = vmatmul.mubr.bf16.gmra.mxu0 %v473
        %v924 = vpop.f32.mrf.mxu0
        %v925 = vadd.f32 %v828, %v924
        %v926 = vpop.f32.mrf.mxu0
        %v927 = vpop.f32.mrf.mxu0
        %v928 = vadd.f32 %v831, %v927
        %v929 = vpop.f32.mrf.mxu0
        %930 = vmatprep.mubr.bf16.mxu0 %v479
        %931 = vmatmul.mubr.bf16.gmra.mxu0 %v478
        %v932 = vpop.f32.mrf.mxu0
        %v933 = vadd.f32 %v836, %v932
        %v934 = vpop.f32.mrf.mxu0
        %v935 = vpop.f32.mrf.mxu0
        %v936 = vadd.f32 %v839, %v935
        %v937 = vpop.f32.mrf.mxu0
        %938 = vmatprep.mubr.bf16.mxu0 %v484
        %939 = vmatmul.mubr.bf16.gmra.mxu0 %v483
        %v940 = vpop.f32.mrf.mxu0
        %v941 = vadd.f32 %v844, %v940
        %v942 = vpop.f32.mrf.mxu0
        %v943 = vpop.f32.mrf.mxu0
        %v944 = vadd.f32 %v847, %v943
        %v945 = vpop.f32.mrf.mxu0
        %946 = vmatprep.mubr.bf16.mxu0 %v489
        %947 = vmatmul.mubr.bf16.gmra.mxu0 %v488
        %v948 = vpop.f32.mrf.mxu0
        %v949 = vadd.f32 %v852, %v948
        %v950 = vpop.f32.mrf.mxu0
        %v951 = vpop.f32.mrf.mxu0
        %v952 = vadd.f32 %v855, %v951
        %v953 = vpop.f32.mrf.mxu0
        %954 = vmatprep.mubr.bf16.mxu0 %v494
        %955 = vmatmul.mubr.bf16.gmra.mxu0 %v493
        %v956 = vpop.f32.mrf.mxu0
        %v957 = vadd.f32 %v860, %v956
        %v958 = vpop.f32.mrf.mxu0
        %v959 = vpop.f32.mrf.mxu0
        %v960 = vadd.f32 %v863, %v959
        %v961 = vpop.f32.mrf.mxu0
        %962 = vdwg.mxu0
        %963 = vmatprep.subr.bf16.mxu0 0
        %964 = vmatpush1.bf16.msra.mxu0 0
        %965 = vmatprep.subr.bf16.mxu0 0
        %966 = vmatpush1.bf16.msra.mxu0 0
        %967 = vmatprep.subr.bf16.mxu0 0
        %968 = vmatpush1.bf16.msra.mxu0 0
        %969 = vmatprep.subr.bf16.mxu0 0
        %970 = vmatpush1.bf16.msra.mxu0 0
        %971 = vmatprep.subr.bf16.mxu0 0
        %972 = vmatpush1.bf16.msra.mxu0 %v707
        %973 = vmatprep.subr.bf16.mxu0 0
        %974 = vmatpush1.bf16.msra.mxu0 %v706
        %975 = vmatprep.subr.bf16.mxu0 0
        %976 = vmatpush1.bf16.msra.mxu0 %v705
        %977 = vmatprep.subr.bf16.mxu0 0
        %978 = vmatpush1.bf16.msra.mxu0 %v704
        %979 = vmatprep.subr.bf16.mxu0 0
        %980 = vmatpush2.bf16.msra.mxu0 0
        %981 = vmatprep.subr.bf16.mxu0 0
        %982 = vmatpush2.bf16.msra.mxu0 0
        %983 = vmatprep.subr.bf16.mxu0 0
        %984 = vmatpush2.bf16.msra.mxu0 0
        %985 = vmatprep.subr.bf16.mxu0 0
        %986 = vmatpush2.bf16.msra.mxu0 0
        %987 = vmatprep.subr.bf16.mxu0 0
        %988 = vmatpush2.bf16.msra.mxu0 0
        %989 = vmatprep.subr.bf16.mxu0 0
        %990 = vmatpush2.bf16.msra.mxu0 0
        %991 = vmatprep.subr.bf16.mxu0 0
        %992 = vmatpush2.bf16.msra.mxu0 0
        %993 = vmatprep.subr.bf16.mxu0 0
        %994 = vmatpush2.bf16.msra.mxu0 0
        %995 = vmatprep.mubr.bf16.mxu0 0
        %996 = vmatmul.mubr.bf16.gmra.mxu0 %v746
        %v997 = vpop.f32.mrf.mxu0
        %v998 = vadd.f32 %v901, %v997
        %v999 = vpop.f32.mrf.mxu0
        %v1000 = vpop.f32.mrf.mxu0
        %v1001 = vadd.f32 %v904, %v1000
        %v1002 = vpop.f32.mrf.mxu0
        %1003 = vmatprep.mubr.bf16.mxu0 0
        %1004 = vmatmul.mubr.bf16.gmra.mxu0 %v749
        %v1005 = vpop.f32.mrf.mxu0
        %v1006 = vadd.f32 %v909, %v1005
        %v1007 = vpop.f32.mrf.mxu0
        %v1008 = vpop.f32.mrf.mxu0
        %v1009 = vadd.f32 %v912, %v1008
        %v1010 = vpop.f32.mrf.mxu0
        %1011 = vmatprep.mubr.bf16.mxu0 0
        %1012 = vmatmul.mubr.bf16.gmra.mxu0 %v752
        %v1013 = vpop.f32.mrf.mxu0
        %v1014 = vadd.f32 %v917, %v1013
        %v1015 = vpop.f32.mrf.mxu0
        %v1016 = vpop.f32.mrf.mxu0
        %v1017 = vadd.f32 %v920, %v1016
        %v1018 = vpop.f32.mrf.mxu0
        %1019 = vmatprep.mubr.bf16.mxu0 0
        %1020 = vmatmul.mubr.bf16.gmra.mxu0 %v755
        %v1021 = vpop.f32.mrf.mxu0
        %v1022 = vadd.f32 %v925, %v1021
        %v1023 = vpop.f32.mrf.mxu0
        %v1024 = vpop.f32.mrf.mxu0
        %v1025 = vadd.f32 %v928, %v1024
        %v1026 = vpop.f32.mrf.mxu0
        %1027 = vmatprep.mubr.bf16.mxu0 0
        %1028 = vmatmul.mubr.bf16.gmra.mxu0 %v758
        %v1029 = vpop.f32.mrf.mxu0
        %v1030 = vadd.f32 %v933, %v1029
        %v1031 = vpop.f32.mrf.mxu0
        %v1032 = vpop.f32.mrf.mxu0
        %v1033 = vadd.f32 %v936, %v1032
        %v1034 = vpop.f32.mrf.mxu0
        %1035 = vmatprep.mubr.bf16.mxu0 0
        %1036 = vmatmul.mubr.bf16.gmra.mxu0 %v761
        %v1037 = vpop.f32.mrf.mxu0
        %v1038 = vadd.f32 %v941, %v1037
        %v1039 = vpop.f32.mrf.mxu0
        %v1040 = vpop.f32.mrf.mxu0
        %v1041 = vadd.f32 %v944, %v1040
        %v1042 = vpop.f32.mrf.mxu0
        %1043 = vmatprep.mubr.bf16.mxu0 0
        %1044 = vmatmul.mubr.bf16.gmra.mxu0 %v764
        %v1045 = vpop.f32.mrf.mxu0
        %v1046 = vadd.f32 %v949, %v1045
        %v1047 = vpop.f32.mrf.mxu0
        %v1048 = vpop.f32.mrf.mxu0
        %v1049 = vadd.f32 %v952, %v1048
        %v1050 = vpop.f32.mrf.mxu0
        %1051 = vmatprep.mubr.bf16.mxu0 0
        %1052 = vmatmul.mubr.bf16.gmra.mxu0 %v767
        %v1053 = vpop.f32.mrf.mxu0
        %v1054 = vadd.f32 %v957, %v1053
        %v1055 = vpop.f32.mrf.mxu0
        %v1056 = vpop.f32.mrf.mxu0
        %v1057 = vadd.f32 %v960, %v1056
        %v1058 = vpop.f32.mrf.mxu0
        %1059 = vdwg.mxu0
        %v1060 = vmul.f32 %v998, 0.1997
        %v1061 = vmul.f32 %v1001, 0.1997
        %v1062 = vmul.f32 %v1006, 0.1997
        %v1063 = vmul.f32 %v1009, 0.1997
        %v1064 = vmul.f32 %v1014, 0.1997
        %v1065 = vmul.f32 %v1017, 0.1997
        %v1066 = vmul.f32 %v1022, 0.1997
        %v1067 = vmul.f32 %v1025, 0.1997
        %v1068 = vmul.f32 %v1030, 0.1997
        %v1069 = vmul.f32 %v1033, 0.1997
        %v1070 = vmul.f32 %v1038, 0.1997
        %v1071 = vmul.f32 %v1041, 0.1997
        %v1072 = vmul.f32 %v1046, 0.1997
        %v1073 = vmul.f32 %v1049, 0.1997
        %v1074 = vmul.f32 %v1054, 0.1997
        %v1075 = vmul.f32 %v1057, 0.1997
        %v1076 = vadd.f32 %v1060, 0.5002
        %v1077 = vadd.f32 %v1061, 0.5002
        %v1078 = vadd.f32 %v1062, 0.5002
        %v1079 = vadd.f32 %v1063, 0.5002
        %v1080 = vadd.f32 %v1064, 0.5002
        %v1081 = vadd.f32 %v1065, 0.5002
        %v1082 = vadd.f32 %v1066, 0.5002
        %v1083 = vadd.f32 %v1067, 0.5002
        %v1084 = vadd.f32 %v1068, 0.5002
        %v1085 = vadd.f32 %v1069, 0.5002
        %v1086 = vadd.f32 %v1070, 0.5002
        %v1087 = vadd.f32 %v1071, 0.5002
        %v1088 = vadd.f32 %v1072, 0.5002
        %v1089 = vadd.f32 %v1073, 0.5002
        %v1090 = vadd.f32 %v1074, 0.5002
        %v1091 = vadd.f32 %v1075, 0.5002
        %v1092 = vmul.f32 %v998, %v1076
        %v1093 = vmul.f32 %v1001, %v1077
        %v1094 = vmul.f32 %v1006, %v1078
        %v1095 = vmul.f32 %v1009, %v1079
        %v1096 = vmul.f32 %v1014, %v1080
        %v1097 = vmul.f32 %v1017, %v1081
        %v1098 = vmul.f32 %v1022, %v1082
        %v1099 = vmul.f32 %v1025, %v1083
        %v1100 = vmul.f32 %v1030, %v1084
        %v1101 = vmul.f32 %v1033, %v1085
        %v1102 = vmul.f32 %v1038, %v1086
        %v1103 = vmul.f32 %v1041, %v1087
        %v1104 = vmul.f32 %v1046, %v1088
        %v1105 = vmul.f32 %v1049, %v1089
        %v1106 = vmul.f32 %v1054, %v1090
        %v1107 = vmul.f32 %v1057, %v1091
        %v1108 = vadd.f32 %v1092, 0.1992
        %v1109 = vadd.f32 %v1093, 0.1992
        %v1110 = vadd.f32 %v1094, 0.1992
        %v1111 = vadd.f32 %v1095, 0.1992
        %v1112 = vadd.f32 %v1096, 0.1992
        %v1113 = vadd.f32 %v1097, 0.1992
        %v1114 = vadd.f32 %v1098, 0.1992
        %v1115 = vadd.f32 %v1099, 0.1992
        %v1116 = vadd.f32 %v1100, 0.1992
        %v1117 = vadd.f32 %v1101, 0.1992
        %v1118 = vadd.f32 %v1102, 0.1992
        %v1119 = vadd.f32 %v1103, 0.1992
        %v1120 = vadd.f32 %v1104, 0.1992
        %v1121 = vadd.f32 %v1105, 0.1992
        %v1122 = vadd.f32 %v1106, 0.1992
        %v1123 = vadd.f32 %v1107, 0.1992
        %v1124 = vpack.c.bf16 %v1109, %v1108
        %v1125 = vpack.c.bf16 %v1111, %v1110
        %v1126 = vpack.c.bf16 %v1113, %v1112
        %v1127 = vpack.c.bf16 %v1115, %v1114
        %v1128 = vpack.c.bf16 %v1117, %v1116
        %v1129 = vpack.c.bf16 %v1119, %v1118
        %v1130 = vpack.c.bf16 %v1121, %v1120
        %v1131 = vpack.c.bf16 %v1123, %v1122
        %v1140 = vunpack.c.l.b16 %v1124
        %v1141 = vunpack.c.h.b16 %v1124
        %v1142 = vunpack.c.l.b16 %v1125
        %v1143 = vunpack.c.h.b16 %v1125
        %v1144 = vunpack.c.l.b16 %v1126
        %v1145 = vunpack.c.h.b16 %v1126
        %v1146 = vunpack.c.l.b16 %v1127
        %v1147 = vunpack.c.h.b16 %v1127
        %v1148 = vunpack.c.l.b16 %v1128
        %v1149 = vunpack.c.h.b16 %v1128
        %v1150 = vunpack.c.l.b16 %v1129
        %v1151 = vunpack.c.h.b16 %v1129
        %v1152 = vunpack.c.l.b16 %v1130
        %v1153 = vunpack.c.h.b16 %v1130
        %v1154 = vunpack.c.l.b16 %v1131
        %v1155 = vunpack.c.h.b16 %v1131
        %v1156 = vpack.c.b16 %v1140, %v1140
        %v1157 = vpack.c.b16 %v1141, %v1141
        %v1158 = vpack.c.b16 %v1142, %v1142
        %v1159 = vpack.c.b16 %v1143, %v1143
        %v1160 = vpack.c.b16 %v1144, %v1144
        %v1161 = vpack.c.b16 %v1145, %v1145
        %v1162 = vpack.c.b16 %v1146, %v1146
        %v1163 = vpack.c.b16 %v1147, %v1147
        %v1164 = vpack.c.b16 %v1148, %v1148
        %v1165 = vpack.c.b16 %v1149, %v1149
        %v1166 = vpack.c.b16 %v1150, %v1150
        %v1167 = vpack.c.b16 %v1151, %v1151
        %v1168 = vpack.c.b16 %v1152, %v1152
        %v1169 = vpack.c.b16 %v1153, %v1153
        %v1170 = vpack.c.b16 %v1154, %v1154
        %v1171 = vpack.c.b16 %v1155, %v1155
        %1188 = vst [vmem:[%s177] sm:$0xf] %v1156
        %1189 = vst [vmem:[%s177 + $0x4] sm:$0xf] %v1157
        %1190 = vst [vmem:[%s177 + $0x8] sm:$0xf] %v1158
        %1191 = vst [vmem:[%s177 + $0xc] sm:$0xf] %v1159
        %1192 = vst [vmem:[%s177 + $0x10] sm:$0xf] %v1160
        %1193 = vst [vmem:[%s177 + $0x14] sm:$0xf] %v1161
        %1194 = vst [vmem:[%s177 + $0x18] sm:$0xf] %v1162
        %1195 = vst [vmem:[%s177 + $0x1c] sm:$0xf] %v1163
        %1196 = vst [vmem:[%s177 + $0x20] sm:$0xf] %v1164
        %1197 = vst [vmem:[%s177 + $0x24] sm:$0xf] %v1165
        %1198 = vst [vmem:[%s177 + $0x28] sm:$0xf] %v1166
        %1199 = vst [vmem:[%s177 + $0x2c] sm:$0xf] %v1167
        %1200 = vst [vmem:[%s177 + $0x30] sm:$0xf] %v1168
        %1201 = vst [vmem:[%s177 + $0x34] sm:$0xf] %v1169
        %1202 = vst [vmem:[%s177 + $0x38] sm:$0xf] %v1170
        %1203 = vst [vmem:[%s177 + $0x3c] sm:$0xf] %v1171
        %s1204 = sand.u32 %s90, 1
        %s1205 = sand.u32 %s90, 1
        %s1206 = smul.addr %s1205, 64
        %s1207 = scalar_lea.vmem [#allocation2], %s1206
        // Predicated region
        $region33: #{forward.4} parent=31 // pred_check
          %p1208 = pneg %p100
        $region34: #{forward.4} parent=31 // pred_check_branch
          %1210 = sbr.rel (%p1208) target = $region36
        $region35: #{forward.4} parent=31 // pred_region
          %s1211 = smul.u32 16, %s14
          %s1212 = ssub.s32 31, %s1211
          %p1213 = scmp.lt.s32.totalorder %s1212, 16
          %s1214 = scalar_select %p1213, %s1212, 16
          %s1215 = smul.u32 64, %s1214
          %p1216 = scmp.ne.s32.totalorder 0, %s1215
          %s1217 = smul.addr %s1211, 4
          %s1218 = scalar_lea.vmem %s3, %s1217
          // Predicated region
          $region37: #{forward.4} parent=35 // pred_check
            %p1219 = pneg %p1216
          $region38: #{forward.4} parent=35 // pred_check_branch
            %1221 = sbr.rel (%p1219) target = $region40
          $region39: #{forward.4} parent=35 // pred_region
            // Predicated region
            $region41: #{forward.4} parent=39 // pred_check
              _
            $region42: #{forward.4} parent=39 // pred_check_branch
              %1223 = sbr.rel target = $region44
            $region43: #{forward.4} parent=39 // pred_region
              // Predicated region
              $region63: #{forward.4} parent=43 // pred_check
                _
              $region64: #{forward.4} parent=43 // pred_check_branch
                %1303 = sbr.rel (0) target = $region66
              $region65: #{forward.4} parent=43 // pred_region
                %s1305 = ssub.s32 16, 1
                %s1306 = sshrl.u32 %s1214, 4
                // While loop
                $region67: #{forward.4} parent=65 // loop_pre_header
                  _
                $region68: #{forward.4} parent=65 // loop_header
                  %s1308 = sphi 0, %s1310
                  %p1309 = scmp.ge.s32.totalorder %s1308, %s1306
                  %s1313 = sphi 0, %s1350
                  %s1314 = sphi %s1207, %s1353
                  %s1315 = sphi %s1218, %s1354
                $region69: #{forward.4} parent=65 // loop_header_branch
                  %1312 = sbr.rel (%p1309) target = $region73
                $region70: #{forward.4} parent=65 // loop_body
                  %v1316 = vld [vmem:[%s1314] sm:%s1305]
                  %1317 = vst [vmem:[%s1315] sm:%s1305] %v1316
                  %v1318 = vld [vmem:[%s1314 + $0x4] sm:%s1305]
                  %1319 = vst [vmem:[%s1315 + $0x4] sm:%s1305] %v1318
                  %v1320 = vld [vmem:[%s1314 + $0x8] sm:%s1305]
                  %1321 = vst [vmem:[%s1315 + $0x8] sm:%s1305] %v1320
                  %v1322 = vld [vmem:[%s1314 + $0xc] sm:%s1305]
                  %1323 = vst [vmem:[%s1315 + $0xc] sm:%s1305] %v1322
                  %v1324 = vld [vmem:[%s1314 + $0x10] sm:%s1305]
                  %1325 = vst [vmem:[%s1315 + $0x10] sm:%s1305] %v1324
                  %v1326 = vld [vmem:[%s1314 + $0x14] sm:%s1305]
                  %1327 = vst [vmem:[%s1315 + $0x14] sm:%s1305] %v1326
                  %v1328 = vld [vmem:[%s1314 + $0x18] sm:%s1305]
                  %1329 = vst [vmem:[%s1315 + $0x18] sm:%s1305] %v1328
                  %v1330 = vld [vmem:[%s1314 + $0x1c] sm:%s1305]
                  %1331 = vst [vmem:[%s1315 + $0x1c] sm:%s1305] %v1330
                  %v1332 = vld [vmem:[%s1314 + $0x20] sm:%s1305]
                  %1333 = vst [vmem:[%s1315 + $0x20] sm:%s1305] %v1332
                  %v1334 = vld [vmem:[%s1314 + $0x24] sm:%s1305]
                  %1335 = vst [vmem:[%s1315 + $0x24] sm:%s1305] %v1334
                  %v1336 = vld [vmem:[%s1314 + $0x28] sm:%s1305]
                  %1337 = vst [vmem:[%s1315 + $0x28] sm:%s1305] %v1336
                  %v1338 = vld [vmem:[%s1314 + $0x2c] sm:%s1305]
                  %1339 = vst [vmem:[%s1315 + $0x2c] sm:%s1305] %v1338
                  %v1340 = vld [vmem:[%s1314 + $0x30] sm:%s1305]
                  %1341 = vst [vmem:[%s1315 + $0x30] sm:%s1305] %v1340
                  %v1342 = vld [vmem:[%s1314 + $0x34] sm:%s1305]
                  %1343 = vst [vmem:[%s1315 + $0x34] sm:%s1305] %v1342
                  %v1344 = vld [vmem:[%s1314 + $0x38] sm:%s1305]
                  %1345 = vst [vmem:[%s1315 + $0x38] sm:%s1305] %v1344
                  %v1346 = vld [vmem:[%s1314 + $0x3c] sm:%s1305]
                  %1347 = vst [vmem:[%s1315 + $0x3c] sm:%s1305] %v1346
                  %s1348 = sadd.s32 1, %s1313
                  %p1349 = scmp.ge.s32.totalorder %s1348, %s1306
                  %s1350 = scalar_select %p1349, 0, %s1348
                  %s1351 = smul.u32 %s1350, 64
                  %s1352 = smul.u32 %s1350, 64
                  %s1353 = scalar_lea.vmem %s1207, %s1351 [#allocation2]
                  %s1354 = scalar_lea.vmem %s1218, %s1352
                $region71: #{forward.4} parent=65 // loop_footer
                  %s1310 = sadd.s32 %s1308, 1
                $region72: #{forward.4} parent=65 // loop_footer_branch
                  %1307 = sbr.rel target = $region68
                $region73: #{forward.4} parent=65 // loop_exit
                  _
                %s1355 = sshrl.u32 %s1214, 4
                %s1356 = sand.u32 %s1214, 15
                %s1357 = smul.u32 %s1355, 16
                %s1358 = smul.u32 4, %s1357
                %s1359 = scalar_lea.vmem %s1207, %s1358 [#allocation2]
                %s1360 = smul.u32 4, %s1357
                %s1361 = scalar_lea.vmem %s1218, %s1360
                // While loop
                $region74: #{forward.4} parent=65 // loop_pre_header
                  _
                $region75: #{forward.4} parent=65 // loop_header
                  %s1363 = sphi 0, %s1365
                  %p1364 = scmp.ge.s32.totalorder %s1363, %s1356
                  %s1368 = sphi 0, %s1375
                  %s1369 = sphi %s1359, %s1378
                  %s1370 = sphi %s1361, %s1379
                $region76: #{forward.4} parent=65 // loop_header_branch
                  %1367 = sbr.rel (%p1364) target = $region80
                $region77: #{forward.4} parent=65 // loop_body
                  %v1371 = vld [vmem:[%s1369] sm:%s1305]
                  %1372 = vst [vmem:[%s1370] sm:%s1305] %v1371
                  %s1373 = sadd.s32 1, %s1368
                  %p1374 = scmp.ge.s32.totalorder %s1373, %s1356
                  %s1375 = scalar_select %p1374, 0, %s1373
                  %s1376 = smul.u32 %s1375, 4
                  %s1377 = smul.u32 %s1375, 4
                  %s1378 = scalar_lea.vmem %s1359, %s1376 [#allocation2]
                  %s1379 = scalar_lea.vmem %s1361, %s1377
                $region78: #{forward.4} parent=65 // loop_footer
                  %s1365 = sadd.s32 %s1363, 1
                $region79: #{forward.4} parent=65 // loop_footer_branch
                  %1362 = sbr.rel target = $region75
                $region80: #{forward.4} parent=65 // loop_exit
                  _
              $region66: #{forward.4} parent=43 // pred_fallthru
                _
            $region44: #{forward.4} parent=39 // pred_fallthru
              _
            // Predicated region
            $region45: #{forward.4} parent=39 // pred_check
              _
            $region46: #{forward.4} parent=39 // pred_check_branch
              %1225 = sbr.rel (0) target = $region48
            $region47: #{forward.4} parent=39 // pred_region
              %s1227 = ssub.s32 16, 1
              %s1228 = sshrl.u32 %s1214, 4
              // While loop
              $region49: #{forward.4} parent=47 // loop_pre_header
                _
              $region50: #{forward.4} parent=47 // loop_header
                %s1230 = sphi 0, %s1232
                %p1231 = scmp.ge.s32.totalorder %s1230, %s1228
                %s1235 = sphi 0, %s1272
                %s1236 = sphi %s1207, %s1275
                %s1237 = sphi %s1218, %s1276
              $region51: #{forward.4} parent=47 // loop_header_branch
                %1234 = sbr.rel (%p1231) target = $region55
              $region52: #{forward.4} parent=47 // loop_body
                %v1238 = vld [vmem:[%s1236] sm:%s1227]
                %1239 = vst [vmem:[%s1237] sm:%s1227] %v1238
                %v1240 = vld [vmem:[%s1236 + $0x4] sm:%s1227]
                %1241 = vst [vmem:[%s1237 + $0x4] sm:%s1227] %v1240
                %v1242 = vld [vmem:[%s1236 + $0x8] sm:%s1227]
                %1243 = vst [vmem:[%s1237 + $0x8] sm:%s1227] %v1242
                %v1244 = vld [vmem:[%s1236 + $0xc] sm:%s1227]
                %1245 = vst [vmem:[%s1237 + $0xc] sm:%s1227] %v1244
                %v1246 = vld [vmem:[%s1236 + $0x10] sm:%s1227]
                %1247 = vst [vmem:[%s1237 + $0x10] sm:%s1227] %v1246
                %v1248 = vld [vmem:[%s1236 + $0x14] sm:%s1227]
                %1249 = vst [vmem:[%s1237 + $0x14] sm:%s1227] %v1248
                %v1250 = vld [vmem:[%s1236 + $0x18] sm:%s1227]
                %1251 = vst [vmem:[%s1237 + $0x18] sm:%s1227] %v1250
                %v1252 = vld [vmem:[%s1236 + $0x1c] sm:%s1227]
                %1253 = vst [vmem:[%s1237 + $0x1c] sm:%s1227] %v1252
                %v1254 = vld [vmem:[%s1236 + $0x20] sm:%s1227]
                %1255 = vst [vmem:[%s1237 + $0x20] sm:%s1227] %v1254
                %v1256 = vld [vmem:[%s1236 + $0x24] sm:%s1227]
                %1257 = vst [vmem:[%s1237 + $0x24] sm:%s1227] %v1256
                %v1258 = vld [vmem:[%s1236 + $0x28] sm:%s1227]
                %1259 = vst [vmem:[%s1237 + $0x28] sm:%s1227] %v1258
                %v1260 = vld [vmem:[%s1236 + $0x2c] sm:%s1227]
                %1261 = vst [vmem:[%s1237 + $0x2c] sm:%s1227] %v1260
                %v1262 = vld [vmem:[%s1236 + $0x30] sm:%s1227]
                %1263 = vst [vmem:[%s1237 + $0x30] sm:%s1227] %v1262
                %v1264 = vld [vmem:[%s1236 + $0x34] sm:%s1227]
                %1265 = vst [vmem:[%s1237 + $0x34] sm:%s1227] %v1264
                %v1266 = vld [vmem:[%s1236 + $0x38] sm:%s1227]
                %1267 = vst [vmem:[%s1237 + $0x38] sm:%s1227] %v1266
                %v1268 = vld [vmem:[%s1236 + $0x3c] sm:%s1227]
                %1269 = vst [vmem:[%s1237 + $0x3c] sm:%s1227] %v1268
                %s1270 = sadd.s32 1, %s1235
                %p1271 = scmp.ge.s32.totalorder %s1270, %s1228
                %s1272 = scalar_select %p1271, 0, %s1270
                %s1273 = smul.u32 %s1272, 64
                %s1274 = smul.u32 %s1272, 64
                %s1275 = scalar_lea.vmem %s1207, %s1273 [#allocation2]
                %s1276 = scalar_lea.vmem %s1218, %s1274
              $region53: #{forward.4} parent=47 // loop_footer
                %s1232 = sadd.s32 %s1230, 1
              $region54: #{forward.4} parent=47 // loop_footer_branch
                %1229 = sbr.rel target = $region50
              $region55: #{forward.4} parent=47 // loop_exit
                _
              %s1277 = sshrl.u32 %s1214, 4
              %s1278 = sand.u32 %s1214, 15
              %s1279 = smul.u32 %s1277, 16
              %s1280 = smul.u32 4, %s1279
              %s1281 = scalar_lea.vmem %s1207, %s1280 [#allocation2]
              %s1282 = smul.u32 4, %s1279
              %s1283 = scalar_lea.vmem %s1218, %s1282
              // While loop
              $region56: #{forward.4} parent=47 // loop_pre_header
                _
              $region57: #{forward.4} parent=47 // loop_header
                %s1285 = sphi 0, %s1287
                %p1286 = scmp.ge.s32.totalorder %s1285, %s1278
                %s1290 = sphi 0, %s1297
                %s1291 = sphi %s1281, %s1300
                %s1292 = sphi %s1283, %s1301
              $region58: #{forward.4} parent=47 // loop_header_branch
                %1289 = sbr.rel (%p1286) target = $region62
              $region59: #{forward.4} parent=47 // loop_body
                %v1293 = vld [vmem:[%s1291] sm:%s1227]
                %1294 = vst [vmem:[%s1292] sm:%s1227] %v1293
                %s1295 = sadd.s32 1, %s1290
                %p1296 = scmp.ge.s32.totalorder %s1295, %s1278
                %s1297 = scalar_select %p1296, 0, %s1295
                %s1298 = smul.u32 %s1297, 4
                %s1299 = smul.u32 %s1297, 4
                %s1300 = scalar_lea.vmem %s1281, %s1298 [#allocation2]
                %s1301 = scalar_lea.vmem %s1283, %s1299
              $region60: #{forward.4} parent=47 // loop_footer
                %s1287 = sadd.s32 %s1285, 1
              $region61: #{forward.4} parent=47 // loop_footer_branch
                %1284 = sbr.rel target = $region57
              $region62: #{forward.4} parent=47 // loop_exit
                _
            $region48: #{forward.4} parent=39 // pred_fallthru
              _
          $region40: #{forward.4} parent=35 // pred_fallthru
            _
          %1380 = vnop
        $region36: #{forward.4} parent=31 // pred_fallthru
          _
      $region32: #{forward.4} parent=5 // pred_fallthru
        _
      %p1381 = scmp.le.s32.totalorder 2, %s9
      // Predicated region
      $region81: #{forward.4} parent=5 // pred_check
        %p1382 = pneg %p1381
      $region82: #{forward.4} parent=5 // pred_check_branch
        %1384 = sbr.rel (%p1382) target = $region84
      $region83: #{forward.4} parent=5 // pred_region
        %s1385 = ssub.s32 %s9, 2
        // Predicated region
        $region85: #{forward.4} parent=83 // pred_check
          %p1386 = pneg %p106
        $region86: #{forward.4} parent=83 // pred_check_branch
          %1388 = sbr.rel (%p1386) target = $region88
        $region87: #{forward.4} parent=83 // pred_region
          %s1389 = sand.u32 %s91, 1
          %s1390 = sand.u32 %s91, 1
          %s1391 = smul.addr %s1390, 64
          %s1392 = scalar_lea.vmem [#allocation2], %s1391
        $region88: #{forward.4} parent=83 // pred_fallthru
          _
      $region84: #{forward.4} parent=5 // pred_fallthru
        _
    $region6: #{forward.4} parent=1 // loop_footer
      %s13 = sadd.s32 1, %s9
    $region7: #{forward.4} parent=1 // loop_footer_branch
      %8 = sbr.rel target = $region3
    $region8: #{forward.4} parent=1 // loop_exit
      _

// kernel: forward.5
$region0: #{forward.5}
  #allocation0 [shape = 'u32[]', space=smem, size = 0x4, offset = 0x4, fixed_abs, tag = 'smem constant byte address 0x4 - core index']
  #allocation1 [shape = 'u32[144,128]{1,0:T(1,128)}', space=vmem, size = 0x12000, scoped, tag = 'internal scratch']
  %s0 = inlined_call_operand.vmem [shape: bf16[4,2,3200], index: 0, kind: input, shape index: {}]
  %s1 = inlined_call_operand.vmem [shape: bf16[3200,256], index: 1, kind: input, shape index: {}]
  %s2 = inlined_call_operand.vmem [shape: f32[1,256], index: 2, kind: input, shape index: {}]
  %s3 = inlined_call_operand.vmem [shape: bf16[4,256,128], index: 3, kind: input, shape index: {}]
  %s4 = inlined_call_operand.vmem [shape: f32[1,128], index: 4, kind: input, shape index: {}]
  %s5 = inlined_call_operand.vmem [shape: bf16[128,128], index: 5, kind: input, shape index: {}]
  %s6 = inlined_call_operand.vmem [shape: f32[1,128], index: 6, kind: input, shape index: {}]
  %s7 = inlined_call_operand.hbm [shape: f32[2,128], index: 7, kind: output, shape index: {}]
  %s8 = sld [smem:[#allocation0]]
  $region38: #{forward.5} parent=0
    _
  %s10 = ssub.s32 1, %s8
  %s11 = scalar_select 0, %s10, %s8
  $region1: #{forward.5} parent=0
    #allocation2 [shape = 'u8[1024]{0}', space=vmem, size = 0x400, scoped, tag = 'output window, operand 0, single buffered']
    #allocation3 [shape = 's32[1]{0}', space=sflag, size = 0x4, scoped, tag = 'scoped memory for forward.5']
    %12 = vsyncpa [#allocation3], 0
    // Predicated region
    $region2: #{forward.5} parent=1 // pred_check
      _
    $region3: #{forward.5} parent=1 // pred_check_branch
      %14 = sbr.rel (0) target = $region5
    $region4: #{forward.5} parent=1 // pred_region
      _
    $region5: #{forward.5} parent=1 // pred_fallthru
      _
    // Predicated region
    $region6: #{forward.5} parent=1 // pred_check
      _
    $region7: #{forward.5} parent=1 // pred_check_branch
      %16 = sbr.rel (0) target = $region9
    $region8: #{forward.5} parent=1 // pred_region
      _
    $region9: #{forward.5} parent=1 // pred_fallthru
      _
    // Predicated region
    $region10: #{forward.5} parent=1 // pred_check
      _
    $region11: #{forward.5} parent=1 // pred_check_branch
      %18 = sbr.rel (0) target = $region13
    $region12: #{forward.5} parent=1 // pred_region
      _
    $region13: #{forward.5} parent=1 // pred_fallthru
      _
    // Predicated region
    $region14: #{forward.5} parent=1 // pred_check
      _
    $region15: #{forward.5} parent=1 // pred_check_branch
      %20 = sbr.rel (0) target = $region17
    $region16: #{forward.5} parent=1 // pred_region
      _
    $region17: #{forward.5} parent=1 // pred_fallthru
      _
    // Predicated region
    $region18: #{forward.5} parent=1 // pred_check
      _
    $region19: #{forward.5} parent=1 // pred_check_branch
      %22 = sbr.rel (0) target = $region21
    $region20: #{forward.5} parent=1 // pred_region
      _
    $region21: #{forward.5} parent=1 // pred_fallthru
      _
    // Predicated region
    $region22: #{forward.5} parent=1 // pred_check
      _
    $region23: #{forward.5} parent=1 // pred_check_branch
      %24 = sbr.rel (0) target = $region25
    $region24: #{forward.5} parent=1 // pred_region
      _
    $region25: #{forward.5} parent=1 // pred_fallthru
      _
    // Predicated region
    $region26: #{forward.5} parent=1 // pred_check
      _
    $region27: #{forward.5} parent=1 // pred_check_branch
      %26 = sbr.rel (0) target = $region29
    $region28: #{forward.5} parent=1 // pred_region
      _
    $region29: #{forward.5} parent=1 // pred_fallthru
      _
    %v28 = vld [vmem:[%s0] sm:$0xff]
    %v29 = vld [vmem:[%s0 + $0x8] sm:$0xff]
    %v30 = vld [vmem:[%s0 + $0x10] sm:$0xff]
    %v31 = vld [vmem:[%s0 + $0x18] sm:$0x1]
    %v32 = vld [vmem:[%s1] sm:$0xff]
    %v33 = vld [vmem:[%s1 + $0x8] sm:$0xff]
    %v34 = vld [vmem:[%s1 + $0x10] sm:$0xff]
    %v35 = vld [vmem:[%s1 + $0x18] sm:$0xff]
    %v36 = vld [vmem:[%s1 + $0x20] sm:$0xff]
    %v37 = vld [vmem:[%s1 + $0x28] sm:$0xff]
    %v38 = vld [vmem:[%s1 + $0x30] sm:$0xff]
    %v39 = vld [vmem:[%s1 + $0x38] sm:$0xff]
    %v40 = vld [vmem:[%s1 + $0x40] sm:$0xff]
    %v41 = vld [vmem:[%s1 + $0x48] sm:$0xff]
    %v42 = vld [vmem:[%s1 + $0x50] sm:$0xff]
    %v43 = vld [vmem:[%s1 + $0x58] sm:$0xff]
    %v44 = vld [vmem:[%s1 + $0x60] sm:$0xff]
    %v45 = vld [vmem:[%s1 + $0x68] sm:$0xff]
    %v46 = vld [vmem:[%s1 + $0x70] sm:$0xff]
    %v47 = vld [vmem:[%s1 + $0x78] sm:$0xff]
    %v48 = vld [vmem:[%s1 + $0x80] sm:$0xff]
    %v49 = vld [vmem:[%s1 + $0x88] sm:$0xff]
    %v50 = vld [vmem:[%s1 + $0x90] sm:$0xff]
    %v51 = vld [vmem:[%s1 + $0x98] sm:$0xff]
    %v52 = vld [vmem:[%s1 + $0xa0] sm:$0xff]
    %v53 = vld [vmem:[%s1 + $0xa8] sm:$0xff]
    %v54 = vld [vmem:[%s1 + $0xb0] sm:$0xff]
    %v55 = vld [vmem:[%s1 + $0xb8] sm:$0xff]
    %v56 = vld [vmem:[%s1 + $0xc0] sm:$0xff]
    %v57 = vld [vmem:[%s1 + $0xc8] sm:$0xff]
    %v58 = vld [vmem:[%s1 + $0xd0] sm:$0xff]
    %v59 = vld [vmem:[%s1 + $0xd8] sm:$0xff]
    %v60 = vld [vmem:[%s1 + $0xe0] sm:$0xff]
    %v61 = vld [vmem:[%s1 + $0xe8] sm:$0xff]
    %v62 = vld [vmem:[%s1 + $0xf0] sm:$0xff]
    %v63 = vld [vmem:[%s1 + $0xf8] sm:$0xff]
    %v64 = vld [vmem:[%s1 + $0x100] sm:$0xff]
    %v65 = vld [vmem:[%s1 + $0x108] sm:$0xff]
    %v66 = vld [vmem:[%s1 + $0x110] sm:$0xff]
    %v67 = vld [vmem:[%s1 + $0x118] sm:$0xff]
    %v68 = vld [vmem:[%s1 + $0x120] sm:$0xff]
    %v69 = vld [vmem:[%s1 + $0x128] sm:$0xff]
    %v70 = vld [vmem:[%s1 + $0x130] sm:$0xff]
    %v71 = vld [vmem:[%s1 + $0x138] sm:$0xff]
    %v72 = vld [vmem:[%s1 + $0x140] sm:$0xff]
    %v73 = vld [vmem:[%s1 + $0x148] sm:$0xff]
    %v74 = vld [vmem:[%s1 + $0x150] sm:$0xff]
    %v75 = vld [vmem:[%s1 + $0x158] sm:$0xff]
    %v76 = vld [vmem:[%s1 + $0x160] sm:$0xff]
    %v77 = vld [vmem:[%s1 + $0x168] sm:$0xff]
    %v78 = vld [vmem:[%s1 + $0x170] sm:$0xff]
    %v79 = vld [vmem:[%s1 + $0x178] sm:$0xff]
    %v80 = vld [vmem:[%s1 + $0x180] sm:$0xff]
    %v81 = vld [vmem:[%s1 + $0x188] sm:$0xff]
    %v82 = vld [vmem:[%s1 + $0x190] sm:$0xff]
    %v83 = vld [vmem:[%s1 + $0x198] sm:$0xff]
    %v84 = vld [vmem:[%s1 + $0x1a0] sm:$0xff]
    %v85 = vld [vmem:[%s1 + $0x1a8] sm:$0xff]
    %v86 = vld [vmem:[%s1 + $0x1b0] sm:$0xff]
    %v87 = vld [vmem:[%s1 + $0x1b8] sm:$0xff]
    %v88 = vld [vmem:[%s1 + $0x1c0] sm:$0xff]
    %v89 = vld [vmem:[%s1 + $0x1c8] sm:$0xff]
    %v90 = vld [vmem:[%s1 + $0x1d0] sm:$0xff]
    %v91 = vld [vmem:[%s1 + $0x1d8] sm:$0xff]
    %v92 = vld [vmem:[%s1 + $0x1e0] sm:$0xff]
    %v93 = vld [vmem:[%s1 + $0x1e8] sm:$0xff]
    %v94 = vld [vmem:[%s1 + $0x1f0] sm:$0xff]
    %v95 = vld [vmem:[%s1 + $0x1f8] sm:$0xff]
    %v96 = vld [vmem:[%s1 + $0x200] sm:$0xff]
    %v97 = vld [vmem:[%s1 + $0x208] sm:$0xff]
    %v98 = vld [vmem:[%s1 + $0x210] sm:$0xff]
    %v99 = vld [vmem:[%s1 + $0x218] sm:$0xff]
    %v100 = vld [vmem:[%s1 + $0x220] sm:$0xff]
    %v101 = vld [vmem:[%s1 + $0x228] sm:$0xff]
    %v102 = vld [vmem:[%s1 + $0x230] sm:$0xff]
    %v103 = vld [vmem:[%s1 + $0x238] sm:$0xff]
    %v104 = vld [vmem:[%s1 + $0x240] sm:$0xff]
    %v105 = vld [vmem:[%s1 + $0x248] sm:$0xff]
    %v106 = vld [vmem:[%s1 + $0x250] sm:$0xff]
    %v107 = vld [vmem:[%s1 + $0x258] sm:$0xff]
    %v108 = vld [vmem:[%s1 + $0x260] sm:$0xff]
    %v109 = vld [vmem:[%s1 + $0x268] sm:$0xff]
    %v110 = vld [vmem:[%s1 + $0x270] sm:$0xff]
    %v111 = vld [vmem:[%s1 + $0x278] sm:$0xff]
    %v112 = vld [vmem:[%s1 + $0x280] sm:$0xff]
    %v113 = vld [vmem:[%s1 + $0x288] sm:$0xff]
    %v114 = vld [vmem:[%s1 + $0x290] sm:$0xff]
    %v115 = vld [vmem:[%s1 + $0x298] sm:$0xff]
    %v116 = vld [vmem:[%s1 + $0x2a0] sm:$0xff]
    %v117 = vld [vmem:[%s1 + $0x2a8] sm:$0xff]
    %v118 = vld [vmem:[%s1 + $0x2b0] sm:$0xff]
    %v119 = vld [vmem:[%s1 + $0x2b8] sm:$0xff]
    %v120 = vld [vmem:[%s1 + $0x2c0] sm:$0xff]
    %v121 = vld [vmem:[%s1 + $0x2c8] sm:$0xff]
    %v122 = vld [vmem:[%s1 + $0x2d0] sm:$0xff]
    %v123 = vld [vmem:[%s1 + $0x2d8] sm:$0xff]
    %v124 = vld [vmem:[%s1 + $0x2e0] sm:$0xff]
    %v125 = vld [vmem:[%s1 + $0x2e8] sm:$0xff]
    %v126 = vld [vmem:[%s1 + $0x2f0] sm:$0xff]
    %v127 = vld [vmem:[%s1 + $0x2f8] sm:$0xff]
    %v128 = vld [vmem:[%s1 + $0x300] sm:$0xff]
    %v129 = vld [vmem:[%s1 + $0x308] sm:$0xff]
    %v130 = vld [vmem:[%s1 + $0x310] sm:$0xff]
    %v131 = vld [vmem:[%s1 + $0x318] sm:$0xff]
    %v132 = vld [vmem:[%s1 + $0x320] sm:$0xff]
    %v133 = vld [vmem:[%s1 + $0x328] sm:$0xff]
    %v134 = vld [vmem:[%s1 + $0x330] sm:$0xff]
    %v135 = vld [vmem:[%s1 + $0x338] sm:$0xff]
    %v136 = vld [vmem:[%s1 + $0x340] sm:$0xff]
    %v137 = vld [vmem:[%s1 + $0x348] sm:$0xff]
    %v138 = vld [vmem:[%s1 + $0x350] sm:$0xff]
    %v139 = vld [vmem:[%s1 + $0x358] sm:$0xff]
    %v140 = vld [vmem:[%s1 + $0x360] sm:$0xff]
    %v141 = vld [vmem:[%s1 + $0x368] sm:$0xff]
    %v142 = vld [vmem:[%s1 + $0x370] sm:$0xff]
    %v143 = vld [vmem:[%s1 + $0x378] sm:$0xff]
    %v144 = vld [vmem:[%s1 + $0x380] sm:$0xff]
    %v145 = vld [vmem:[%s1 + $0x388] sm:$0xff]
    %v146 = vld [vmem:[%s1 + $0x390] sm:$0xff]
    %v147 = vld [vmem:[%s1 + $0x398] sm:$0xff]
    %v148 = vld [vmem:[%s1 + $0x3a0] sm:$0xff]
    %v149 = vld [vmem:[%s1 + $0x3a8] sm:$0xff]
    %v150 = vld [vmem:[%s1 + $0x3b0] sm:$0xff]
    %v151 = vld [vmem:[%s1 + $0x3b8] sm:$0xff]
    %v152 = vld [vmem:[%s1 + $0x3c0] sm:$0xff]
    %v153 = vld [vmem:[%s1 + $0x3c8] sm:$0xff]
    %v154 = vld [vmem:[%s1 + $0x3d0] sm:$0xff]
    %v155 = vld [vmem:[%s1 + $0x3d8] sm:$0xff]
    %v156 = vld [vmem:[%s1 + $0x3e0] sm:$0xff]
    %v157 = vld [vmem:[%s1 + $0x3e8] sm:$0xff]
    %v158 = vld [vmem:[%s1 + $0x3f0] sm:$0xff]
    %v159 = vld [vmem:[%s1 + $0x3f8] sm:$0xff]
    %v160 = vld [vmem:[%s1 + $0x400] sm:$0xff]
    %v161 = vld [vmem:[%s1 + $0x408] sm:$0xff]
    %v162 = vld [vmem:[%s1 + $0x410] sm:$0xff]
    %v163 = vld [vmem:[%s1 + $0x418] sm:$0xff]
    %v164 = vld [vmem:[%s1 + $0x420] sm:$0xff]
    %v165 = vld [vmem:[%s1 + $0x428] sm:$0xff]
    %v166 = vld [vmem:[%s1 + $0x430] sm:$0xff]
    %v167 = vld [vmem:[%s1 + $0x438] sm:$0xff]
    %v168 = vld [vmem:[%s1 + $0x440] sm:$0xff]
    %v169 = vld [vmem:[%s1 + $0x448] sm:$0xff]
    %v170 = vld [vmem:[%s1 + $0x450] sm:$0xff]
    %v171 = vld [vmem:[%s1 + $0x458] sm:$0xff]
    %v172 = vld [vmem:[%s1 + $0x460] sm:$0xff]
    %v173 = vld [vmem:[%s1 + $0x468] sm:$0xff]
    %v174 = vld [vmem:[%s1 + $0x470] sm:$0xff]
    %v175 = vld [vmem:[%s1 + $0x478] sm:$0xff]
    %v176 = vld [vmem:[%s1 + $0x480] sm:$0xff]
    %v177 = vld [vmem:[%s1 + $0x488] sm:$0xff]
    %v178 = vld [vmem:[%s1 + $0x490] sm:$0xff]
    %v179 = vld [vmem:[%s1 + $0x498] sm:$0xff]
    %v180 = vld [vmem:[%s1 + $0x4a0] sm:$0xff]
    %v181 = vld [vmem:[%s1 + $0x4a8] sm:$0xff]
    %v182 = vld [vmem:[%s1 + $0x4b0] sm:$0xff]
    %v183 = vld [vmem:[%s1 + $0x4b8] sm:$0xff]
    %v184 = vld [vmem:[%s1 + $0x4c0] sm:$0xff]
    %v185 = vld [vmem:[%s1 + $0x4c8] sm:$0xff]
    %v186 = vld [vmem:[%s1 + $0x4d0] sm:$0xff]
    %v187 = vld [vmem:[%s1 + $0x4d8] sm:$0xff]
    %v188 = vld [vmem:[%s1 + $0x4e0] sm:$0xff]
    %v189 = vld [vmem:[%s1 + $0x4e8] sm:$0xff]
    %v190 = vld [vmem:[%s1 + $0x4f0] sm:$0xff]
    %v191 = vld [vmem:[%s1 + $0x4f8] sm:$0xff]
    %v192 = vld [vmem:[%s1 + $0x500] sm:$0xff]
    %v193 = vld [vmem:[%s1 + $0x508] sm:$0xff]
    %v194 = vld [vmem:[%s1 + $0x510] sm:$0xff]
    %v195 = vld [vmem:[%s1 + $0x518] sm:$0xff]
    %v196 = vld [vmem:[%s1 + $0x520] sm:$0xff]
    %v197 = vld [vmem:[%s1 + $0x528] sm:$0xff]
    %v198 = vld [vmem:[%s1 + $0x530] sm:$0xff]
    %v199 = vld [vmem:[%s1 + $0x538] sm:$0xff]
    %v200 = vld [vmem:[%s1 + $0x540] sm:$0xff]
    %v201 = vld [vmem:[%s1 + $0x548] sm:$0xff]
    %v202 = vld [vmem:[%s1 + $0x550] sm:$0xff]
    %v203 = vld [vmem:[%s1 + $0x558] sm:$0xff]
    %v204 = vld [vmem:[%s1 + $0x560] sm:$0xff]
    %v205 = vld [vmem:[%s1 + $0x568] sm:$0xff]
    %v206 = vld [vmem:[%s1 + $0x570] sm:$0xff]
    %v207 = vld [vmem:[%s1 + $0x578] sm:$0xff]
    %v208 = vld [vmem:[%s1 + $0x580] sm:$0xff]
    %v209 = vld [vmem:[%s1 + $0x588] sm:$0xff]
    %v210 = vld [vmem:[%s1 + $0x590] sm:$0xff]
    %v211 = vld [vmem:[%s1 + $0x598] sm:$0xff]
    %v212 = vld [vmem:[%s1 + $0x5a0] sm:$0xff]
    %v213 = vld [vmem:[%s1 + $0x5a8] sm:$0xff]
    %v214 = vld [vmem:[%s1 + $0x5b0] sm:$0xff]
    %v215 = vld [vmem:[%s1 + $0x5b8] sm:$0xff]
    %v216 = vld [vmem:[%s1 + $0x5c0] sm:$0xff]
    %v217 = vld [vmem:[%s1 + $0x5c8] sm:$0xff]
    %v218 = vld [vmem:[%s1 + $0x5d0] sm:$0xff]
    %v219 = vld [vmem:[%s1 + $0x5d8] sm:$0xff]
    %v220 = vld [vmem:[%s1 + $0x5e0] sm:$0xff]
    %v221 = vld [vmem:[%s1 + $0x5e8] sm:$0xff]
    %v222 = vld [vmem:[%s1 + $0x5f0] sm:$0xff]
    %v223 = vld [vmem:[%s1 + $0x5f8] sm:$0xff]
    %v224 = vld [vmem:[%s1 + $0x600] sm:$0xff]
    %v225 = vld [vmem:[%s1 + $0x608] sm:$0xff]
    %v226 = vld [vmem:[%s1 + $0x610] sm:$0xff]
    %v227 = vld [vmem:[%s1 + $0x618] sm:$0xff]
    %v228 = vld [vmem:[%s1 + $0x620] sm:$0xff]
    %v229 = vld [vmem:[%s1 + $0x628] sm:$0xff]
    %v230 = vld [vmem:[%s1 + $0x630] sm:$0xff]
    %v231 = vld [vmem:[%s1 + $0x638] sm:$0xff]
    %v232 = vld [vmem:[%s1 + $0x640] sm:$0xff]
    %v233 = vld [vmem:[%s1 + $0x648] sm:$0xff]
    %v234 = vld [vmem:[%s1 + $0x650] sm:$0xff]
    %v235 = vld [vmem:[%s1 + $0x658] sm:$0xff]
    %v236 = vld [vmem:[%s1 + $0x660] sm:$0xff]
    %v237 = vld [vmem:[%s1 + $0x668] sm:$0xff]
    %v238 = vld [vmem:[%s1 + $0x670] sm:$0xff]
    %v239 = vld [vmem:[%s1 + $0x678] sm:$0xff]
    %v240 = vld [vmem:[%s1 + $0x680] sm:$0xff]
    %v241 = vld [vmem:[%s1 + $0x688] sm:$0xff]
    %v242 = vld [vmem:[%s1 + $0x690] sm:$0xff]
    %v243 = vld [vmem:[%s1 + $0x698] sm:$0xff]
    %v244 = vld [vmem:[%s1 + $0x6a0] sm:$0xff]
    %v245 = vld [vmem:[%s1 + $0x6a8] sm:$0xff]
    %v246 = vld [vmem:[%s1 + $0x6b0] sm:$0xff]
    %v247 = vld [vmem:[%s1 + $0x6b8] sm:$0xff]
    %v248 = vld [vmem:[%s1 + $0x6c0] sm:$0xff]
    %v249 = vld [vmem:[%s1 + $0x6c8] sm:$0xff]
    %v250 = vld [vmem:[%s1 + $0x6d0] sm:$0xff]
    %v251 = vld [vmem:[%s1 + $0x6d8] sm:$0xff]
    %v252 = vld [vmem:[%s1 + $0x6e0] sm:$0xff]
    %v253 = vld [vmem:[%s1 + $0x6e8] sm:$0xff]
    %v254 = vld [vmem:[%s1 + $0x6f0] sm:$0xff]
    %v255 = vld [vmem:[%s1 + $0x6f8] sm:$0xff]
    %v256 = vld [vmem:[%s1 + $0x700] sm:$0xff]
    %v257 = vld [vmem:[%s1 + $0x708] sm:$0xff]
    %v258 = vld [vmem:[%s1 + $0x710] sm:$0xff]
    %v259 = vld [vmem:[%s1 + $0x718] sm:$0xff]
    %v260 = vld [vmem:[%s1 + $0x720] sm:$0xff]
    %v261 = vld [vmem:[%s1 + $0x728] sm:$0xff]
    %v262 = vld [vmem:[%s1 + $0x730] sm:$0xff]
    %v263 = vld [vmem:[%s1 + $0x738] sm:$0xff]
    %v264 = vld [vmem:[%s1 + $0x740] sm:$0xff]
    %v265 = vld [vmem:[%s1 + $0x748] sm:$0xff]
    %v266 = vld [vmem:[%s1 + $0x750] sm:$0xff]
    %v267 = vld [vmem:[%s1 + $0x758] sm:$0xff]
    %v268 = vld [vmem:[%s1 + $0x760] sm:$0xff]
    %v269 = vld [vmem:[%s1 + $0x768] sm:$0xff]
    %v270 = vld [vmem:[%s1 + $0x770] sm:$0xff]
    %v271 = vld [vmem:[%s1 + $0x778] sm:$0xff]
    %v272 = vld [vmem:[%s1 + $0x780] sm:$0xff]
    %v273 = vld [vmem:[%s1 + $0x788] sm:$0xff]
    %v274 = vld [vmem:[%s1 + $0x790] sm:$0xff]
    %v275 = vld [vmem:[%s1 + $0x798] sm:$0xff]
    %v276 = vld [vmem:[%s1 + $0x7a0] sm:$0xff]
    %v277 = vld [vmem:[%s1 + $0x7a8] sm:$0xff]
    %v278 = vld [vmem:[%s1 + $0x7b0] sm:$0xff]
    %v279 = vld [vmem:[%s1 + $0x7b8] sm:$0xff]
    %v280 = vld [vmem:[%s1 + $0x7c0] sm:$0xff]
    %v281 = vld [vmem:[%s1 + $0x7c8] sm:$0xff]
    %v282 = vld [vmem:[%s1 + $0x7d0] sm:$0xff]
    %v283 = vld [vmem:[%s1 + $0x7d8] sm:$0xff]
    %v284 = vld [vmem:[%s1 + $0x7e0] sm:$0xff]
    %v285 = vld [vmem:[%s1 + $0x7e8] sm:$0xff]
    %v286 = vld [vmem:[%s1 + $0x7f0] sm:$0xff]
    %v287 = vld [vmem:[%s1 + $0x7f8] sm:$0xff]
    %v288 = vld [vmem:[%s1 + $0x800] sm:$0xff]
    %v289 = vld [vmem:[%s1 + $0x808] sm:$0xff]
    %v290 = vld [vmem:[%s1 + $0x810] sm:$0xff]
    %v291 = vld [vmem:[%s1 + $0x818] sm:$0xff]
    %v292 = vld [vmem:[%s1 + $0x820] sm:$0xff]
    %v293 = vld [vmem:[%s1 + $0x828] sm:$0xff]
    %v294 = vld [vmem:[%s1 + $0x830] sm:$0xff]
    %v295 = vld [vmem:[%s1 + $0x838] sm:$0xff]
    %v296 = vld [vmem:[%s1 + $0x840] sm:$0xff]
    %v297 = vld [vmem:[%s1 + $0x848] sm:$0xff]
    %v298 = vld [vmem:[%s1 + $0x850] sm:$0xff]
    %v299 = vld [vmem:[%s1 + $0x858] sm:$0xff]
    %v300 = vld [vmem:[%s1 + $0x860] sm:$0xff]
    %v301 = vld [vmem:[%s1 + $0x868] sm:$0xff]
    %v302 = vld [vmem:[%s1 + $0x870] sm:$0xff]
    %v303 = vld [vmem:[%s1 + $0x878] sm:$0xff]
    %v304 = vld [vmem:[%s1 + $0x880] sm:$0xff]
    %v305 = vld [vmem:[%s1 + $0x888] sm:$0xff]
    %v306 = vld [vmem:[%s1 + $0x890] sm:$0xff]
    %v307 = vld [vmem:[%s1 + $0x898] sm:$0xff]
    %v308 = vld [vmem:[%s1 + $0x8a0] sm:$0xff]
    %v309 = vld [vmem:[%s1 + $0x8a8] sm:$0xff]
    %v310 = vld [vmem:[%s1 + $0x8b0] sm:$0xff]
    %v311 = vld [vmem:[%s1 + $0x8b8] sm:$0xff]
    %v312 = vld [vmem:[%s1 + $0x8c0] sm:$0xff]
    %v313 = vld [vmem:[%s1 + $0x8c8] sm:$0xff]
    %v314 = vld [vmem:[%s1 + $0x8d0] sm:$0xff]
    %v315 = vld [vmem:[%s1 + $0x8d8] sm:$0xff]
    %v316 = vld [vmem:[%s1 + $0x8e0] sm:$0xff]
    %v317 = vld [vmem:[%s1 + $0x8e8] sm:$0xff]
    %v318 = vld [vmem:[%s1 + $0x8f0] sm:$0xff]
    %v319 = vld [vmem:[%s1 + $0x8f8] sm:$0xff]
    %v320 = vld [vmem:[%s1 + $0x900] sm:$0xff]
    %v321 = vld [vmem:[%s1 + $0x908] sm:$0xff]
    %v322 = vld [vmem:[%s1 + $0x910] sm:$0xff]
    %v323 = vld [vmem:[%s1 + $0x918] sm:$0xff]
    %v324 = vld [vmem:[%s1 + $0x920] sm:$0xff]
    %v325 = vld [vmem:[%s1 + $0x928] sm:$0xff]
    %v326 = vld [vmem:[%s1 + $0x930] sm:$0xff]
    %v327 = vld [vmem:[%s1 + $0x938] sm:$0xff]
    %v328 = vld [vmem:[%s1 + $0x940] sm:$0xff]
    %v329 = vld [vmem:[%s1 + $0x948] sm:$0xff]
    %v330 = vld [vmem:[%s1 + $0x950] sm:$0xff]
    %v331 = vld [vmem:[%s1 + $0x958] sm:$0xff]
    %v332 = vld [vmem:[%s1 + $0x960] sm:$0xff]
    %v333 = vld [vmem:[%s1 + $0x968] sm:$0xff]
    %v334 = vld [vmem:[%s1 + $0x970] sm:$0xff]
    %v335 = vld [vmem:[%s1 + $0x978] sm:$0xff]
    %v336 = vld [vmem:[%s1 + $0x980] sm:$0xff]
    %v337 = vld [vmem:[%s1 + $0x988] sm:$0xff]
    %v338 = vld [vmem:[%s1 + $0x990] sm:$0xff]
    %v339 = vld [vmem:[%s1 + $0x998] sm:$0xff]
    %v340 = vld [vmem:[%s1 + $0x9a0] sm:$0xff]
    %v341 = vld [vmem:[%s1 + $0x9a8] sm:$0xff]
    %v342 = vld [vmem:[%s1 + $0x9b0] sm:$0xff]
    %v343 = vld [vmem:[%s1 + $0x9b8] sm:$0xff]
    %v344 = vld [vmem:[%s1 + $0x9c0] sm:$0xff]
    %v345 = vld [vmem:[%s1 + $0x9c8] sm:$0xff]
    %v346 = vld [vmem:[%s1 + $0x9d0] sm:$0xff]
    %v347 = vld [vmem:[%s1 + $0x9d8] sm:$0xff]
    %v348 = vld [vmem:[%s1 + $0x9e0] sm:$0xff]
    %v349 = vld [vmem:[%s1 + $0x9e8] sm:$0xff]
    %v350 = vld [vmem:[%s1 + $0x9f0] sm:$0xff]
    %v351 = vld [vmem:[%s1 + $0x9f8] sm:$0xff]
    %v352 = vld [vmem:[%s1 + $0xa00] sm:$0xff]
    %v353 = vld [vmem:[%s1 + $0xa08] sm:$0xff]
    %v354 = vld [vmem:[%s1 + $0xa10] sm:$0xff]
    %v355 = vld [vmem:[%s1 + $0xa18] sm:$0xff]
    %v356 = vld [vmem:[%s1 + $0xa20] sm:$0xff]
    %v357 = vld [vmem:[%s1 + $0xa28] sm:$0xff]
    %v358 = vld [vmem:[%s1 + $0xa30] sm:$0xff]
    %v359 = vld [vmem:[%s1 + $0xa38] sm:$0xff]
    %v360 = vld [vmem:[%s1 + $0xa40] sm:$0xff]
    %v361 = vld [vmem:[%s1 + $0xa48] sm:$0xff]
    %v362 = vld [vmem:[%s1 + $0xa50] sm:$0xff]
    %v363 = vld [vmem:[%s1 + $0xa58] sm:$0xff]
    %v364 = vld [vmem:[%s1 + $0xa60] sm:$0xff]
    %v365 = vld [vmem:[%s1 + $0xa68] sm:$0xff]
    %v366 = vld [vmem:[%s1 + $0xa70] sm:$0xff]
    %v367 = vld [vmem:[%s1 + $0xa78] sm:$0xff]
    %v368 = vld [vmem:[%s1 + $0xa80] sm:$0xff]
    %v369 = vld [vmem:[%s1 + $0xa88] sm:$0xff]
    %v370 = vld [vmem:[%s1 + $0xa90] sm:$0xff]
    %v371 = vld [vmem:[%s1 + $0xa98] sm:$0xff]
    %v372 = vld [vmem:[%s1 + $0xaa0] sm:$0xff]
    %v373 = vld [vmem:[%s1 + $0xaa8] sm:$0xff]
    %v374 = vld [vmem:[%s1 + $0xab0] sm:$0xff]
    %v375 = vld [vmem:[%s1 + $0xab8] sm:$0xff]
    %v376 = vld [vmem:[%s1 + $0xac0] sm:$0xff]
    %v377 = vld [vmem:[%s1 + $0xac8] sm:$0xff]
    %v378 = vld [vmem:[%s1 + $0xad0] sm:$0xff]
    %v379 = vld [vmem:[%s1 + $0xad8] sm:$0xff]
    %v380 = vld [vmem:[%s1 + $0xae0] sm:$0xff]
    %v381 = vld [vmem:[%s1 + $0xae8] sm:$0xff]
    %v382 = vld [vmem:[%s1 + $0xaf0] sm:$0xff]
    %v383 = vld [vmem:[%s1 + $0xaf8] sm:$0xff]
    %v384 = vld [vmem:[%s1 + $0xb00] sm:$0xff]
    %v385 = vld [vmem:[%s1 + $0xb08] sm:$0xff]
    %v386 = vld [vmem:[%s1 + $0xb10] sm:$0xff]
    %v387 = vld [vmem:[%s1 + $0xb18] sm:$0xff]
    %v388 = vld [vmem:[%s1 + $0xb20] sm:$0xff]
    %v389 = vld [vmem:[%s1 + $0xb28] sm:$0xff]
    %v390 = vld [vmem:[%s1 + $0xb30] sm:$0xff]
    %v391 = vld [vmem:[%s1 + $0xb38] sm:$0xff]
    %v392 = vld [vmem:[%s1 + $0xb40] sm:$0xff]
    %v393 = vld [vmem:[%s1 + $0xb48] sm:$0xff]
    %v394 = vld [vmem:[%s1 + $0xb50] sm:$0xff]
    %v395 = vld [vmem:[%s1 + $0xb58] sm:$0xff]
    %v396 = vld [vmem:[%s1 + $0xb60] sm:$0xff]
    %v397 = vld [vmem:[%s1 + $0xb68] sm:$0xff]
    %v398 = vld [vmem:[%s1 + $0xb70] sm:$0xff]
    %v399 = vld [vmem:[%s1 + $0xb78] sm:$0xff]
    %v400 = vld [vmem:[%s1 + $0xb80] sm:$0xff]
    %v401 = vld [vmem:[%s1 + $0xb88] sm:$0xff]
    %v402 = vld [vmem:[%s1 + $0xb90] sm:$0xff]
    %v403 = vld [vmem:[%s1 + $0xb98] sm:$0xff]
    %v404 = vld [vmem:[%s1 + $0xba0] sm:$0xff]
    %v405 = vld [vmem:[%s1 + $0xba8] sm:$0xff]
    %v406 = vld [vmem:[%s1 + $0xbb0] sm:$0xff]
    %v407 = vld [vmem:[%s1 + $0xbb8] sm:$0xff]
    %v408 = vld [vmem:[%s1 + $0xbc0] sm:$0xff]
    %v409 = vld [vmem:[%s1 + $0xbc8] sm:$0xff]
    %v410 = vld [vmem:[%s1 + $0xbd0] sm:$0xff]
    %v411 = vld [vmem:[%s1 + $0xbd8] sm:$0xff]
    %v412 = vld [vmem:[%s1 + $0xbe0] sm:$0xff]
    %v413 = vld [vmem:[%s1 + $0xbe8] sm:$0xff]
    %v414 = vld [vmem:[%s1 + $0xbf0] sm:$0xff]
    %v415 = vld [vmem:[%s1 + $0xbf8] sm:$0xff]
    %v416 = vld [vmem:[%s1 + $0xc00] sm:$0xff]
    %v417 = vld [vmem:[%s1 + $0xc08] sm:$0xff]
    %v418 = vld [vmem:[%s1 + $0xc10] sm:$0xff]
    %v419 = vld [vmem:[%s1 + $0xc18] sm:$0xff]
    %v420 = vld [vmem:[%s1 + $0xc20] sm:$0xff]
    %v421 = vld [vmem:[%s1 + $0xc28] sm:$0xff]
    %v422 = vld [vmem:[%s1 + $0xc30] sm:$0xff]
    %v423 = vld [vmem:[%s1 + $0xc38] sm:$0xff]
    %v424 = vld [vmem:[%s1 + $0xc40] sm:$0xff]
    %v425 = vld [vmem:[%s1 + $0xc48] sm:$0xff]
    %v426 = vld [vmem:[%s1 + $0xc50] sm:$0xff]
    %v427 = vld [vmem:[%s1 + $0xc58] sm:$0xff]
    %v428 = vld [vmem:[%s1 + $0xc60] sm:$0xff]
    %v429 = vld [vmem:[%s1 + $0xc68] sm:$0xff]
    %v430 = vld [vmem:[%s1 + $0xc70] sm:$0xff]
    %v431 = vld [vmem:[%s1 + $0xc78] sm:$0xff]
    %v432 = vld [vmem:[%s2] sm:$0x3]
    %v434 = vlaneseq
    %v435 = vshrl.u32 %v434, 7
    %v436 = vsub.s32 0, %v435
    %v437 = vrot.slane %v432, %v436
    %v438 = vlaneseq
    %v439 = vshrl.u32 %v438, 7
    %v440 = vsub.s32 1, %v439
    %v441 = vrot.slane %v432, %v440
    %v448 = vcombine.high %v28, %v28
    %v450 = vunpack.c.l.s4 1966171168
    %v451 = vunpack.c.0.s8 %v450
    %v452 = vlaneseq
    %v453 = vshrl.u32 %v452, 7
    %v454 = vsub.s32 %v451, %v453
    %v455 = vrot.slane %v28, %v454
    %v457 = vunpack.c.l.s4 1966171168
    %v458 = vunpack.c.0.s8 %v457
    %v459 = vlaneseq
    %v460 = vshrl.u32 %v459, 7
    %v461 = vsub.s32 %v458, %v460
    %v462 = vrot.slane %v448, %v461
    %v463 = vcombine.high %v455, %v455
    %v464 = vcombine.high %v462, %v462
    %v466 = vunpack.c.l.s4 1966171168
    %v467 = vunpack.c.0.s8 %v466
    %v468 = vlaneseq
    %v469 = vshrl.u32 %v468, 7
    %v470 = vsub.s32 %v467, %v469
    %v471 = vrot.slane %v455, %v470
    %v473 = vunpack.c.l.s4 1966171168
    %v474 = vunpack.c.0.s8 %v473
    %v475 = vlaneseq
    %v476 = vshrl.u32 %v475, 7
    %v477 = vsub.s32 %v474, %v476
    %v478 = vrot.slane %v462, %v477
    %v480 = vunpack.c.l.s4 1966171168
    %v481 = vunpack.c.0.s8 %v480
    %v482 = vlaneseq
    %v483 = vshrl.u32 %v482, 7
    %v484 = vsub.s32 %v481, %v483
    %v485 = vrot.slane %v463, %v484
    %v487 = vunpack.c.l.s4 1966171168
    %v488 = vunpack.c.0.s8 %v487
    %v489 = vlaneseq
    %v490 = vshrl.u32 %v489, 7
    %v491 = vsub.s32 %v488, %v490
    %v492 = vrot.slane %v464, %v491
    %v493 = vcombine.high %v471, %v471
    %v494 = vcombine.high %v478, %v478
    %v495 = vcombine.high %v485, %v485
    %v496 = vcombine.high %v492, %v492
    %v497 = vcombine.high %v29, %v29
    %v499 = vunpack.c.l.s4 1966171168
    %v500 = vunpack.c.0.s8 %v499
    %v501 = vlaneseq
    %v502 = vshrl.u32 %v501, 7
    %v503 = vsub.s32 %v500, %v502
    %v504 = vrot.slane %v29, %v503
    %v506 = vunpack.c.l.s4 1966171168
    %v507 = vunpack.c.0.s8 %v506
    %v508 = vlaneseq
    %v509 = vshrl.u32 %v508, 7
    %v510 = vsub.s32 %v507, %v509
    %v511 = vrot.slane %v497, %v510
    %v512 = vcombine.high %v504, %v504
    %v513 = vcombine.high %v511, %v511
    %v515 = vunpack.c.l.s4 1966171168
    %v516 = vunpack.c.0.s8 %v515
    %v517 = vlaneseq
    %v518 = vshrl.u32 %v517, 7
    %v519 = vsub.s32 %v516, %v518
    %v520 = vrot.slane %v504, %v519
    %v522 = vunpack.c.l.s4 1966171168
    %v523 = vunpack.c.0.s8 %v522
    %v524 = vlaneseq
    %v525 = vshrl.u32 %v524, 7
    %v526 = vsub.s32 %v523, %v525
    %v527 = vrot.slane %v511, %v526
    %v529 = vunpack.c.l.s4 1966171168
    %v530 = vunpack.c.0.s8 %v529
    %v531 = vlaneseq
    %v532 = vshrl.u32 %v531, 7
    %v533 = vsub.s32 %v530, %v532
    %v534 = vrot.slane %v512, %v533
    %v536 = vunpack.c.l.s4 1966171168
    %v537 = vunpack.c.0.s8 %v536
    %v538 = vlaneseq
    %v539 = vshrl.u32 %v538, 7
    %v540 = vsub.s32 %v537, %v539
    %v541 = vrot.slane %v513, %v540
    %v542 = vcombine.high %v520, %v520
    %v543 = vcombine.high %v527, %v527
    %v544 = vcombine.high %v534, %v534
    %v545 = vcombine.high %v541, %v541
    %v546 = vcombine.high %v30, %v30
    %v548 = vunpack.c.l.s4 1966171168
    %v549 = vunpack.c.0.s8 %v548
    %v550 = vlaneseq
    %v551 = vshrl.u32 %v550, 7
    %v552 = vsub.s32 %v549, %v551
    %v553 = vrot.slane %v30, %v552
    %v555 = vunpack.c.l.s4 1966171168
    %v556 = vunpack.c.0.s8 %v555
    %v557 = vlaneseq
    %v558 = vshrl.u32 %v557, 7
    %v559 = vsub.s32 %v556, %v558
    %v560 = vrot.slane %v546, %v559
    %v561 = vcombine.high %v553, %v553
    %v562 = vcombine.high %v560, %v560
    %v564 = vunpack.c.l.s4 1966171168
    %v565 = vunpack.c.0.s8 %v564
    %v566 = vlaneseq
    %v567 = vshrl.u32 %v566, 7
    %v568 = vsub.s32 %v565, %v567
    %v569 = vrot.slane %v553, %v568
    %v571 = vunpack.c.l.s4 1966171168
    %v572 = vunpack.c.0.s8 %v571
    %v573 = vlaneseq
    %v574 = vshrl.u32 %v573, 7
    %v575 = vsub.s32 %v572, %v574
    %v576 = vrot.slane %v560, %v575
    %v578 = vunpack.c.l.s4 1966171168
    %v579 = vunpack.c.0.s8 %v578
    %v580 = vlaneseq
    %v581 = vshrl.u32 %v580, 7
    %v582 = vsub.s32 %v579, %v581
    %v583 = vrot.slane %v561, %v582
    %v585 = vunpack.c.l.s4 1966171168
    %v586 = vunpack.c.0.s8 %v585
    %v587 = vlaneseq
    %v588 = vshrl.u32 %v587, 7
    %v589 = vsub.s32 %v586, %v588
    %v590 = vrot.slane %v562, %v589
    %v591 = vcombine.high %v569, %v569
    %v592 = vcombine.high %v576, %v576
    %v593 = vcombine.high %v583, %v583
    %v594 = vcombine.high %v590, %v590
    %v596 = vunpack.c.l.s4 1966171168
    %v597 = vunpack.c.0.s8 %v596
    %v598 = vlaneseq
    %v599 = vshrl.u32 %v598, 7
    %v600 = vsub.s32 %v597, %v599
    %v601 = vrot.slane %v31, %v600
    %v603 = vunpack.c.l.s4 1966171168
    %v604 = vunpack.c.0.s8 %v603
    %v605 = vlaneseq
    %v606 = vshrl.u32 %v605, 7
    %v607 = vsub.s32 %v604, %v606
    %v608 = vrot.slane %v601, %v607
    %v1034 = vunpack.c.l.b16 %v32
    %v1035 = vunpack.c.h.b16 %v32
    %v1036 = vunpack.c.l.b16 %v33
    %v1037 = vunpack.c.h.b16 %v33
    %v1038 = vunpack.c.l.b16 %v34
    %v1039 = vunpack.c.h.b16 %v34
    %v1040 = vunpack.c.l.b16 %v35
    %v1041 = vunpack.c.h.b16 %v35
    %v1042 = vunpack.c.l.b16 %v36
    %v1043 = vunpack.c.h.b16 %v36
    %v1044 = vunpack.c.l.b16 %v37
    %v1045 = vunpack.c.h.b16 %v37
    %v1046 = vunpack.c.l.b16 %v38
    %v1047 = vunpack.c.h.b16 %v38
    %v1048 = vunpack.c.l.b16 %v39
    %v1049 = vunpack.c.h.b16 %v39
    %v1050 = vunpack.c.l.b16 %v40
    %v1051 = vunpack.c.h.b16 %v40
    %v1052 = vunpack.c.l.b16 %v41
    %v1053 = vunpack.c.h.b16 %v41
    %v1054 = vunpack.c.l.b16 %v42
    %v1055 = vunpack.c.h.b16 %v42
    %v1056 = vunpack.c.l.b16 %v43
    %v1057 = vunpack.c.h.b16 %v43
    %v1058 = vunpack.c.l.b16 %v44
    %v1059 = vunpack.c.h.b16 %v44
    %v1060 = vunpack.c.l.b16 %v45
    %v1061 = vunpack.c.h.b16 %v45
    %v1062 = vunpack.c.l.b16 %v46
    %v1063 = vunpack.c.h.b16 %v46
    %v1064 = vunpack.c.l.b16 %v47
    %v1065 = vunpack.c.h.b16 %v47
    %v1066 = vunpack.c.l.b16 %v48
    %v1067 = vunpack.c.h.b16 %v48
    %v1068 = vunpack.c.l.b16 %v49
    %v1069 = vunpack.c.h.b16 %v49
    %v1070 = vunpack.c.l.b16 %v50
    %v1071 = vunpack.c.h.b16 %v50
    %v1072 = vunpack.c.l.b16 %v51
    %v1073 = vunpack.c.h.b16 %v51
    %v1074 = vunpack.c.l.b16 %v52
    %v1075 = vunpack.c.h.b16 %v52
    %v1076 = vunpack.c.l.b16 %v53
    %v1077 = vunpack.c.h.b16 %v53
    %v1078 = vunpack.c.l.b16 %v54
    %v1079 = vunpack.c.h.b16 %v54
    %v1080 = vunpack.c.l.b16 %v55
    %v1081 = vunpack.c.h.b16 %v55
    %v1082 = vunpack.c.l.b16 %v56
    %v1083 = vunpack.c.h.b16 %v56
    %v1084 = vunpack.c.l.b16 %v57
    %v1085 = vunpack.c.h.b16 %v57
    %v1086 = vunpack.c.l.b16 %v58
    %v1087 = vunpack.c.h.b16 %v58
    %v1088 = vunpack.c.l.b16 %v59
    %v1089 = vunpack.c.h.b16 %v59
    %v1090 = vunpack.c.l.b16 %v60
    %v1091 = vunpack.c.h.b16 %v60
    %v1092 = vunpack.c.l.b16 %v61
    %v1093 = vunpack.c.h.b16 %v61
    %v1094 = vunpack.c.l.b16 %v62
    %v1095 = vunpack.c.h.b16 %v62
    %v1096 = vunpack.c.l.b16 %v63
    %v1097 = vunpack.c.h.b16 %v63
    %v1098 = vunpack.c.l.b16 %v64
    %v1099 = vunpack.c.h.b16 %v64
    %v1100 = vunpack.c.l.b16 %v65
    %v1101 = vunpack.c.h.b16 %v65
    %v1102 = vunpack.c.l.b16 %v66
    %v1103 = vunpack.c.h.b16 %v66
    %v1104 = vunpack.c.l.b16 %v67
    %v1105 = vunpack.c.h.b16 %v67
    %v1106 = vunpack.c.l.b16 %v68
    %v1107 = vunpack.c.h.b16 %v68
    %v1108 = vunpack.c.l.b16 %v69
    %v1109 = vunpack.c.h.b16 %v69
    %v1110 = vunpack.c.l.b16 %v70
    %v1111 = vunpack.c.h.b16 %v70
    %v1112 = vunpack.c.l.b16 %v71
    %v1113 = vunpack.c.h.b16 %v71
    %v1114 = vunpack.c.l.b16 %v72
    %v1115 = vunpack.c.h.b16 %v72
    %v1116 = vunpack.c.l.b16 %v73
    %v1117 = vunpack.c.h.b16 %v73
    %v1118 = vunpack.c.l.b16 %v74
    %v1119 = vunpack.c.h.b16 %v74
    %v1120 = vunpack.c.l.b16 %v75
    %v1121 = vunpack.c.h.b16 %v75
    %v1122 = vunpack.c.l.b16 %v76
    %v1123 = vunpack.c.h.b16 %v76
    %v1124 = vunpack.c.l.b16 %v77
    %v1125 = vunpack.c.h.b16 %v77
    %v1126 = vunpack.c.l.b16 %v78
    %v1127 = vunpack.c.h.b16 %v78
    %v1128 = vunpack.c.l.b16 %v79
    %v1129 = vunpack.c.h.b16 %v79
    %v1130 = vunpack.c.l.b16 %v80
    %v1131 = vunpack.c.h.b16 %v80
    %v1132 = vunpack.c.l.b16 %v81
    %v1133 = vunpack.c.h.b16 %v81
    %v1134 = vunpack.c.l.b16 %v82
    %v1135 = vunpack.c.h.b16 %v82
    %v1136 = vunpack.c.l.b16 %v83
    %v1137 = vunpack.c.h.b16 %v83
    %v1138 = vunpack.c.l.b16 %v84
    %v1139 = vunpack.c.h.b16 %v84
    %v1140 = vunpack.c.l.b16 %v85
    %v1141 = vunpack.c.h.b16 %v85
    %v1142 = vunpack.c.l.b16 %v86
    %v1143 = vunpack.c.h.b16 %v86
    %v1144 = vunpack.c.l.b16 %v87
    %v1145 = vunpack.c.h.b16 %v87
    %v1146 = vunpack.c.l.b16 %v88
    %v1147 = vunpack.c.h.b16 %v88
    %v1148 = vunpack.c.l.b16 %v89
    %v1149 = vunpack.c.h.b16 %v89
    %v1150 = vunpack.c.l.b16 %v90
    %v1151 = vunpack.c.h.b16 %v90
    %v1152 = vunpack.c.l.b16 %v91
    %v1153 = vunpack.c.h.b16 %v91
    %v1154 = vunpack.c.l.b16 %v92
    %v1155 = vunpack.c.h.b16 %v92
    %v1156 = vunpack.c.l.b16 %v93
    %v1157 = vunpack.c.h.b16 %v93
    %v1158 = vunpack.c.l.b16 %v94
    %v1159 = vunpack.c.h.b16 %v94
    %v1160 = vunpack.c.l.b16 %v95
    %v1161 = vunpack.c.h.b16 %v95
    %v1162 = vunpack.c.l.b16 %v96
    %v1163 = vunpack.c.h.b16 %v96
    %v1164 = vunpack.c.l.b16 %v97
    %v1165 = vunpack.c.h.b16 %v97
    %v1166 = vunpack.c.l.b16 %v98
    %v1167 = vunpack.c.h.b16 %v98
    %v1168 = vunpack.c.l.b16 %v99
    %v1169 = vunpack.c.h.b16 %v99
    %v1170 = vunpack.c.l.b16 %v100
    %v1171 = vunpack.c.h.b16 %v100
    %v1172 = vunpack.c.l.b16 %v101
    %v1173 = vunpack.c.h.b16 %v101
    %v1174 = vunpack.c.l.b16 %v102
    %v1175 = vunpack.c.h.b16 %v102
    %v1176 = vunpack.c.l.b16 %v103
    %v1177 = vunpack.c.h.b16 %v103
    %v1178 = vunpack.c.l.b16 %v104
    %v1179 = vunpack.c.h.b16 %v104
    %v1180 = vunpack.c.l.b16 %v105
    %v1181 = vunpack.c.h.b16 %v105
    %v1182 = vunpack.c.l.b16 %v106
    %v1183 = vunpack.c.h.b16 %v106
    %v1184 = vunpack.c.l.b16 %v107
    %v1185 = vunpack.c.h.b16 %v107
    %v1186 = vunpack.c.l.b16 %v108
    %v1187 = vunpack.c.h.b16 %v108
    %v1188 = vunpack.c.l.b16 %v109
    %v1189 = vunpack.c.h.b16 %v109
    %v1190 = vunpack.c.l.b16 %v110
    %v1191 = vunpack.c.h.b16 %v110
    %v1192 = vunpack.c.l.b16 %v111
    %v1193 = vunpack.c.h.b16 %v111
    %v1194 = vunpack.c.l.b16 %v112
    %v1195 = vunpack.c.h.b16 %v112
    %v1196 = vunpack.c.l.b16 %v113
    %v1197 = vunpack.c.h.b16 %v113
    %v1198 = vunpack.c.l.b16 %v114
    %v1199 = vunpack.c.h.b16 %v114
    %v1200 = vunpack.c.l.b16 %v115
    %v1201 = vunpack.c.h.b16 %v115
    %v1202 = vunpack.c.l.b16 %v116
    %v1203 = vunpack.c.h.b16 %v116
    %v1204 = vunpack.c.l.b16 %v117
    %v1205 = vunpack.c.h.b16 %v117
    %v1206 = vunpack.c.l.b16 %v118
    %v1207 = vunpack.c.h.b16 %v118
    %v1208 = vunpack.c.l.b16 %v119
    %v1209 = vunpack.c.h.b16 %v119
    %v1210 = vunpack.c.l.b16 %v120
    %v1211 = vunpack.c.h.b16 %v120
    %v1212 = vunpack.c.l.b16 %v121
    %v1213 = vunpack.c.h.b16 %v121
    %v1214 = vunpack.c.l.b16 %v122
    %v1215 = vunpack.c.h.b16 %v122
    %v1216 = vunpack.c.l.b16 %v123
    %v1217 = vunpack.c.h.b16 %v123
    %v1218 = vunpack.c.l.b16 %v124
    %v1219 = vunpack.c.h.b16 %v124
    %v1220 = vunpack.c.l.b16 %v125
    %v1221 = vunpack.c.h.b16 %v125
    %v1222 = vunpack.c.l.b16 %v126
    %v1223 = vunpack.c.h.b16 %v126
    %v1224 = vunpack.c.l.b16 %v127
    %v1225 = vunpack.c.h.b16 %v127
    %v1226 = vunpack.c.l.b16 %v128
    %v1227 = vunpack.c.h.b16 %v128
    %v1228 = vunpack.c.l.b16 %v129
    %v1229 = vunpack.c.h.b16 %v129
    %v1230 = vunpack.c.l.b16 %v130
    %v1231 = vunpack.c.h.b16 %v130
    %v1232 = vunpack.c.l.b16 %v131
    %v1233 = vunpack.c.h.b16 %v131
    %v1234 = vunpack.c.l.b16 %v132
    %v1235 = vunpack.c.h.b16 %v132
    %v1236 = vunpack.c.l.b16 %v133
    %v1237 = vunpack.c.h.b16 %v133
    %v1238 = vunpack.c.l.b16 %v134
    %v1239 = vunpack.c.h.b16 %v134
    %v1240 = vunpack.c.l.b16 %v135
    %v1241 = vunpack.c.h.b16 %v135
    %v1242 = vunpack.c.l.b16 %v136
    %v1243 = vunpack.c.h.b16 %v136
    %v1244 = vunpack.c.l.b16 %v137
    %v1245 = vunpack.c.h.b16 %v137
    %v1246 = vunpack.c.l.b16 %v138
    %v1247 = vunpack.c.h.b16 %v138
    %v1248 = vunpack.c.l.b16 %v139
    %v1249 = vunpack.c.h.b16 %v139
    %v1250 = vunpack.c.l.b16 %v140
    %v1251 = vunpack.c.h.b16 %v140
    %v1252 = vunpack.c.l.b16 %v141
    %v1253 = vunpack.c.h.b16 %v141
    %v1254 = vunpack.c.l.b16 %v142
    %v1255 = vunpack.c.h.b16 %v142
    %v1256 = vunpack.c.l.b16 %v143
    %v1257 = vunpack.c.h.b16 %v143
    %v1258 = vunpack.c.l.b16 %v144
    %v1259 = vunpack.c.h.b16 %v144
    %v1260 = vunpack.c.l.b16 %v145
    %v1261 = vunpack.c.h.b16 %v145
    %v1262 = vunpack.c.l.b16 %v146
    %v1263 = vunpack.c.h.b16 %v146
    %v1264 = vunpack.c.l.b16 %v147
    %v1265 = vunpack.c.h.b16 %v147
    %v1266 = vunpack.c.l.b16 %v148
    %v1267 = vunpack.c.h.b16 %v148
    %v1268 = vunpack.c.l.b16 %v149
    %v1269 = vunpack.c.h.b16 %v149
    %v1270 = vunpack.c.l.b16 %v150
    %v1271 = vunpack.c.h.b16 %v150
    %v1272 = vunpack.c.l.b16 %v151
    %v1273 = vunpack.c.h.b16 %v151
    %v1274 = vunpack.c.l.b16 %v152
    %v1275 = vunpack.c.h.b16 %v152
    %v1276 = vunpack.c.l.b16 %v153
    %v1277 = vunpack.c.h.b16 %v153
    %v1278 = vunpack.c.l.b16 %v154
    %v1279 = vunpack.c.h.b16 %v154
    %v1280 = vunpack.c.l.b16 %v155
    %v1281 = vunpack.c.h.b16 %v155
    %v1282 = vunpack.c.l.b16 %v156
    %v1283 = vunpack.c.h.b16 %v156
    %v1284 = vunpack.c.l.b16 %v157
    %v1285 = vunpack.c.h.b16 %v157
    %v1286 = vunpack.c.l.b16 %v158
    %v1287 = vunpack.c.h.b16 %v158
    %v1288 = vunpack.c.l.b16 %v159
    %v1289 = vunpack.c.h.b16 %v159
    %v1290 = vunpack.c.l.b16 %v160
    %v1291 = vunpack.c.h.b16 %v160
    %v1292 = vunpack.c.l.b16 %v161
    %v1293 = vunpack.c.h.b16 %v161
    %v1294 = vunpack.c.l.b16 %v162
    %v1295 = vunpack.c.h.b16 %v162
    %v1296 = vunpack.c.l.b16 %v163
    %v1297 = vunpack.c.h.b16 %v163
    %v1298 = vunpack.c.l.b16 %v164
    %v1299 = vunpack.c.h.b16 %v164
    %v1300 = vunpack.c.l.b16 %v165
    %v1301 = vunpack.c.h.b16 %v165
    %v1302 = vunpack.c.l.b16 %v166
    %v1303 = vunpack.c.h.b16 %v166
    %v1304 = vunpack.c.l.b16 %v167
    %v1305 = vunpack.c.h.b16 %v167
    %v1306 = vunpack.c.l.b16 %v168
    %v1307 = vunpack.c.h.b16 %v168
    %v1308 = vunpack.c.l.b16 %v169
    %v1309 = vunpack.c.h.b16 %v169
    %v1310 = vunpack.c.l.b16 %v170
    %v1311 = vunpack.c.h.b16 %v170
    %v1312 = vunpack.c.l.b16 %v171
    %v1313 = vunpack.c.h.b16 %v171
    %v1314 = vunpack.c.l.b16 %v172
    %v1315 = vunpack.c.h.b16 %v172
    %v1316 = vunpack.c.l.b16 %v173
    %v1317 = vunpack.c.h.b16 %v173
    %v1318 = vunpack.c.l.b16 %v174
    %v1319 = vunpack.c.h.b16 %v174
    %v1320 = vunpack.c.l.b16 %v175
    %v1321 = vunpack.c.h.b16 %v175
    %v1322 = vunpack.c.l.b16 %v176
    %v1323 = vunpack.c.h.b16 %v176
    %v1324 = vunpack.c.l.b16 %v177
    %v1325 = vunpack.c.h.b16 %v177
    %v1326 = vunpack.c.l.b16 %v178
    %v1327 = vunpack.c.h.b16 %v178
    %v1328 = vunpack.c.l.b16 %v179
    %v1329 = vunpack.c.h.b16 %v179
    %v1330 = vunpack.c.l.b16 %v180
    %v1331 = vunpack.c.h.b16 %v180
    %v1332 = vunpack.c.l.b16 %v181
    %v1333 = vunpack.c.h.b16 %v181
    %v1334 = vunpack.c.l.b16 %v182
    %v1335 = vunpack.c.h.b16 %v182
    %v1336 = vunpack.c.l.b16 %v183
    %v1337 = vunpack.c.h.b16 %v183
    %v1338 = vunpack.c.l.b16 %v184
    %v1339 = vunpack.c.h.b16 %v184
    %v1340 = vunpack.c.l.b16 %v185
    %v1341 = vunpack.c.h.b16 %v185
    %v1342 = vunpack.c.l.b16 %v186
    %v1343 = vunpack.c.h.b16 %v186
    %v1344 = vunpack.c.l.b16 %v187
    %v1345 = vunpack.c.h.b16 %v187
    %v1346 = vunpack.c.l.b16 %v188
    %v1347 = vunpack.c.h.b16 %v188
    %v1348 = vunpack.c.l.b16 %v189
    %v1349 = vunpack.c.h.b16 %v189
    %v1350 = vunpack.c.l.b16 %v190
    %v1351 = vunpack.c.h.b16 %v190
    %v1352 = vunpack.c.l.b16 %v191
    %v1353 = vunpack.c.h.b16 %v191
    %v1354 = vunpack.c.l.b16 %v192
    %v1355 = vunpack.c.h.b16 %v192
    %v1356 = vunpack.c.l.b16 %v193
    %v1357 = vunpack.c.h.b16 %v193
    %v1358 = vunpack.c.l.b16 %v194
    %v1359 = vunpack.c.h.b16 %v194
    %v1360 = vunpack.c.l.b16 %v195
    %v1361 = vunpack.c.h.b16 %v195
    %v1362 = vunpack.c.l.b16 %v196
    %v1363 = vunpack.c.h.b16 %v196
    %v1364 = vunpack.c.l.b16 %v197
    %v1365 = vunpack.c.h.b16 %v197
    %v1366 = vunpack.c.l.b16 %v198
    %v1367 = vunpack.c.h.b16 %v198
    %v1368 = vunpack.c.l.b16 %v199
    %v1369 = vunpack.c.h.b16 %v199
    %v1370 = vunpack.c.l.b16 %v200
    %v1371 = vunpack.c.h.b16 %v200
    %v1372 = vunpack.c.l.b16 %v201
    %v1373 = vunpack.c.h.b16 %v201
    %v1374 = vunpack.c.l.b16 %v202
    %v1375 = vunpack.c.h.b16 %v202
    %v1376 = vunpack.c.l.b16 %v203
    %v1377 = vunpack.c.h.b16 %v203
    %v1378 = vunpack.c.l.b16 %v204
    %v1379 = vunpack.c.h.b16 %v204
    %v1380 = vunpack.c.l.b16 %v205
    %v1381 = vunpack.c.h.b16 %v205
    %v1382 = vunpack.c.l.b16 %v206
    %v1383 = vunpack.c.h.b16 %v206
    %v1384 = vunpack.c.l.b16 %v207
    %v1385 = vunpack.c.h.b16 %v207
    %v1386 = vunpack.c.l.b16 %v208
    %v1387 = vunpack.c.h.b16 %v208
    %v1388 = vunpack.c.l.b16 %v209
    %v1389 = vunpack.c.h.b16 %v209
    %v1390 = vunpack.c.l.b16 %v210
    %v1391 = vunpack.c.h.b16 %v210
    %v1392 = vunpack.c.l.b16 %v211
    %v1393 = vunpack.c.h.b16 %v211
    %v1394 = vunpack.c.l.b16 %v212
    %v1395 = vunpack.c.h.b16 %v212
    %v1396 = vunpack.c.l.b16 %v213
    %v1397 = vunpack.c.h.b16 %v213
    %v1398 = vunpack.c.l.b16 %v214
    %v1399 = vunpack.c.h.b16 %v214
    %v1400 = vunpack.c.l.b16 %v215
    %v1401 = vunpack.c.h.b16 %v215
    %v1402 = vunpack.c.l.b16 %v216
    %v1403 = vunpack.c.h.b16 %v216
    %v1404 = vunpack.c.l.b16 %v217
    %v1405 = vunpack.c.h.b16 %v217
    %v1406 = vunpack.c.l.b16 %v218
    %v1407 = vunpack.c.h.b16 %v218
    %v1408 = vunpack.c.l.b16 %v219
    %v1409 = vunpack.c.h.b16 %v219
    %v1410 = vunpack.c.l.b16 %v220
    %v1411 = vunpack.c.h.b16 %v220
    %v1412 = vunpack.c.l.b16 %v221
    %v1413 = vunpack.c.h.b16 %v221
    %v1414 = vunpack.c.l.b16 %v222
    %v1415 = vunpack.c.h.b16 %v222
    %v1416 = vunpack.c.l.b16 %v223
    %v1417 = vunpack.c.h.b16 %v223
    %v1418 = vunpack.c.l.b16 %v224
    %v1419 = vunpack.c.h.b16 %v224
    %v1420 = vunpack.c.l.b16 %v225
    %v1421 = vunpack.c.h.b16 %v225
    %v1422 = vunpack.c.l.b16 %v226
    %v1423 = vunpack.c.h.b16 %v226
    %v1424 = vunpack.c.l.b16 %v227
    %v1425 = vunpack.c.h.b16 %v227
    %v1426 = vunpack.c.l.b16 %v228
    %v1427 = vunpack.c.h.b16 %v228
    %v1428 = vunpack.c.l.b16 %v229
    %v1429 = vunpack.c.h.b16 %v229
    %v1430 = vunpack.c.l.b16 %v230
    %v1431 = vunpack.c.h.b16 %v230
    %v1432 = vunpack.c.l.b16 %v231
    %v1433 = vunpack.c.h.b16 %v231
    %v1434 = vunpack.c.l.b16 %v232
    %v1435 = vunpack.c.h.b16 %v232
    %v1436 = vunpack.c.l.b16 %v233
    %v1437 = vunpack.c.h.b16 %v233
    %v1438 = vunpack.c.l.b16 %v234
    %v1439 = vunpack.c.h.b16 %v234
    %v1440 = vunpack.c.l.b16 %v235
    %v1441 = vunpack.c.h.b16 %v235
    %v1442 = vunpack.c.l.b16 %v236
    %v1443 = vunpack.c.h.b16 %v236
    %v1444 = vunpack.c.l.b16 %v237
    %v1445 = vunpack.c.h.b16 %v237
    %v1446 = vunpack.c.l.b16 %v238
    %v1447 = vunpack.c.h.b16 %v238
    %v1448 = vunpack.c.l.b16 %v239
    %v1449 = vunpack.c.h.b16 %v239
    %v1450 = vunpack.c.l.b16 %v240
    %v1451 = vunpack.c.h.b16 %v240
    %v1452 = vunpack.c.l.b16 %v241
    %v1453 = vunpack.c.h.b16 %v241
    %v1454 = vunpack.c.l.b16 %v242
    %v1455 = vunpack.c.h.b16 %v242
    %v1456 = vunpack.c.l.b16 %v243
    %v1457 = vunpack.c.h.b16 %v243
    %v1458 = vunpack.c.l.b16 %v244
    %v1459 = vunpack.c.h.b16 %v244
    %v1460 = vunpack.c.l.b16 %v245
    %v1461 = vunpack.c.h.b16 %v245
    %v1462 = vunpack.c.l.b16 %v246
    %v1463 = vunpack.c.h.b16 %v246
    %v1464 = vunpack.c.l.b16 %v247
    %v1465 = vunpack.c.h.b16 %v247
    %v1466 = vunpack.c.l.b16 %v248
    %v1467 = vunpack.c.h.b16 %v248
    %v1468 = vunpack.c.l.b16 %v249
    %v1469 = vunpack.c.h.b16 %v249
    %v1470 = vunpack.c.l.b16 %v250
    %v1471 = vunpack.c.h.b16 %v250
    %v1472 = vunpack.c.l.b16 %v251
    %v1473 = vunpack.c.h.b16 %v251
    %v1474 = vunpack.c.l.b16 %v252
    %v1475 = vunpack.c.h.b16 %v252
    %v1476 = vunpack.c.l.b16 %v253
    %v1477 = vunpack.c.h.b16 %v253
    %v1478 = vunpack.c.l.b16 %v254
    %v1479 = vunpack.c.h.b16 %v254
    %v1480 = vunpack.c.l.b16 %v255
    %v1481 = vunpack.c.h.b16 %v255
    %v1482 = vunpack.c.l.b16 %v256
    %v1483 = vunpack.c.h.b16 %v256
    %v1484 = vunpack.c.l.b16 %v257
    %v1485 = vunpack.c.h.b16 %v257
    %v1486 = vunpack.c.l.b16 %v258
    %v1487 = vunpack.c.h.b16 %v258
    %v1488 = vunpack.c.l.b16 %v259
    %v1489 = vunpack.c.h.b16 %v259
    %v1490 = vunpack.c.l.b16 %v260
    %v1491 = vunpack.c.h.b16 %v260
    %v1492 = vunpack.c.l.b16 %v261
    %v1493 = vunpack.c.h.b16 %v261
    %v1494 = vunpack.c.l.b16 %v262
    %v1495 = vunpack.c.h.b16 %v262
    %v1496 = vunpack.c.l.b16 %v263
    %v1497 = vunpack.c.h.b16 %v263
    %v1498 = vunpack.c.l.b16 %v264
    %v1499 = vunpack.c.h.b16 %v264
    %v1500 = vunpack.c.l.b16 %v265
    %v1501 = vunpack.c.h.b16 %v265
    %v1502 = vunpack.c.l.b16 %v266
    %v1503 = vunpack.c.h.b16 %v266
    %v1504 = vunpack.c.l.b16 %v267
    %v1505 = vunpack.c.h.b16 %v267
    %v1506 = vunpack.c.l.b16 %v268
    %v1507 = vunpack.c.h.b16 %v268
    %v1508 = vunpack.c.l.b16 %v269
    %v1509 = vunpack.c.h.b16 %v269
    %v1510 = vunpack.c.l.b16 %v270
    %v1511 = vunpack.c.h.b16 %v270
    %v1512 = vunpack.c.l.b16 %v271
    %v1513 = vunpack.c.h.b16 %v271
    %v1514 = vunpack.c.l.b16 %v272
    %v1515 = vunpack.c.h.b16 %v272
    %v1516 = vunpack.c.l.b16 %v273
    %v1517 = vunpack.c.h.b16 %v273
    %v1518 = vunpack.c.l.b16 %v274
    %v1519 = vunpack.c.h.b16 %v274
    %v1520 = vunpack.c.l.b16 %v275
    %v1521 = vunpack.c.h.b16 %v275
    %v1522 = vunpack.c.l.b16 %v276
    %v1523 = vunpack.c.h.b16 %v276
    %v1524 = vunpack.c.l.b16 %v277
    %v1525 = vunpack.c.h.b16 %v277
    %v1526 = vunpack.c.l.b16 %v278
    %v1527 = vunpack.c.h.b16 %v278
    %v1528 = vunpack.c.l.b16 %v279
    %v1529 = vunpack.c.h.b16 %v279
    %v1530 = vunpack.c.l.b16 %v280
    %v1531 = vunpack.c.h.b16 %v280
    %v1532 = vunpack.c.l.b16 %v281
    %v1533 = vunpack.c.h.b16 %v281
    %v1534 = vunpack.c.l.b16 %v282
    %v1535 = vunpack.c.h.b16 %v282
    %v1536 = vunpack.c.l.b16 %v283
    %v1537 = vunpack.c.h.b16 %v283
    %v1538 = vunpack.c.l.b16 %v284
    %v1539 = vunpack.c.h.b16 %v284
    %v1540 = vunpack.c.l.b16 %v285
    %v1541 = vunpack.c.h.b16 %v285
    %v1542 = vunpack.c.l.b16 %v286
    %v1543 = vunpack.c.h.b16 %v286
    %v1544 = vunpack.c.l.b16 %v287
    %v1545 = vunpack.c.h.b16 %v287
    %v1546 = vunpack.c.l.b16 %v288
    %v1547 = vunpack.c.h.b16 %v288
    %v1548 = vunpack.c.l.b16 %v289
    %v1549 = vunpack.c.h.b16 %v289
    %v1550 = vunpack.c.l.b16 %v290
    %v1551 = vunpack.c.h.b16 %v290
    %v1552 = vunpack.c.l.b16 %v291
    %v1553 = vunpack.c.h.b16 %v291
    %v1554 = vunpack.c.l.b16 %v292
    %v1555 = vunpack.c.h.b16 %v292
    %v1556 = vunpack.c.l.b16 %v293
    %v1557 = vunpack.c.h.b16 %v293
    %v1558 = vunpack.c.l.b16 %v294
    %v1559 = vunpack.c.h.b16 %v294
    %v1560 = vunpack.c.l.b16 %v295
    %v1561 = vunpack.c.h.b16 %v295
    %v1562 = vunpack.c.l.b16 %v296
    %v1563 = vunpack.c.h.b16 %v296
    %v1564 = vunpack.c.l.b16 %v297
    %v1565 = vunpack.c.h.b16 %v297
    %v1566 = vunpack.c.l.b16 %v298
    %v1567 = vunpack.c.h.b16 %v298
    %v1568 = vunpack.c.l.b16 %v299
    %v1569 = vunpack.c.h.b16 %v299
    %v1570 = vunpack.c.l.b16 %v300
    %v1571 = vunpack.c.h.b16 %v300
    %v1572 = vunpack.c.l.b16 %v301
    %v1573 = vunpack.c.h.b16 %v301
    %v1574 = vunpack.c.l.b16 %v302
    %v1575 = vunpack.c.h.b16 %v302
    %v1576 = vunpack.c.l.b16 %v303
    %v1577 = vunpack.c.h.b16 %v303
    %v1578 = vunpack.c.l.b16 %v304
    %v1579 = vunpack.c.h.b16 %v304
    %v1580 = vunpack.c.l.b16 %v305
    %v1581 = vunpack.c.h.b16 %v305
    %v1582 = vunpack.c.l.b16 %v306
    %v1583 = vunpack.c.h.b16 %v306
    %v1584 = vunpack.c.l.b16 %v307
    %v1585 = vunpack.c.h.b16 %v307
    %v1586 = vunpack.c.l.b16 %v308
    %v1587 = vunpack.c.h.b16 %v308
    %v1588 = vunpack.c.l.b16 %v309
    %v1589 = vunpack.c.h.b16 %v309
    %v1590 = vunpack.c.l.b16 %v310
    %v1591 = vunpack.c.h.b16 %v310
    %v1592 = vunpack.c.l.b16 %v311
    %v1593 = vunpack.c.h.b16 %v311
    %v1594 = vunpack.c.l.b16 %v312
    %v1595 = vunpack.c.h.b16 %v312
    %v1596 = vunpack.c.l.b16 %v313
    %v1597 = vunpack.c.h.b16 %v313
    %v1598 = vunpack.c.l.b16 %v314
    %v1599 = vunpack.c.h.b16 %v314
    %v1600 = vunpack.c.l.b16 %v315
    %v1601 = vunpack.c.h.b16 %v315
    %v1602 = vunpack.c.l.b16 %v316
    %v1603 = vunpack.c.h.b16 %v316
    %v1604 = vunpack.c.l.b16 %v317
    %v1605 = vunpack.c.h.b16 %v317
    %v1606 = vunpack.c.l.b16 %v318
    %v1607 = vunpack.c.h.b16 %v318
    %v1608 = vunpack.c.l.b16 %v319
    %v1609 = vunpack.c.h.b16 %v319
    %v1610 = vunpack.c.l.b16 %v320
    %v1611 = vunpack.c.h.b16 %v320
    %v1612 = vunpack.c.l.b16 %v321
    %v1613 = vunpack.c.h.b16 %v321
    %v1614 = vunpack.c.l.b16 %v322
    %v1615 = vunpack.c.h.b16 %v322
    %v1616 = vunpack.c.l.b16 %v323
    %v1617 = vunpack.c.h.b16 %v323
    %v1618 = vunpack.c.l.b16 %v324
    %v1619 = vunpack.c.h.b16 %v324
    %v1620 = vunpack.c.l.b16 %v325
    %v1621 = vunpack.c.h.b16 %v325
    %v1622 = vunpack.c.l.b16 %v326
    %v1623 = vunpack.c.h.b16 %v326
    %v1624 = vunpack.c.l.b16 %v327
    %v1625 = vunpack.c.h.b16 %v327
    %v1626 = vunpack.c.l.b16 %v328
    %v1627 = vunpack.c.h.b16 %v328
    %v1628 = vunpack.c.l.b16 %v329
    %v1629 = vunpack.c.h.b16 %v329
    %v1630 = vunpack.c.l.b16 %v330
    %v1631 = vunpack.c.h.b16 %v330
    %v1632 = vunpack.c.l.b16 %v331
    %v1633 = vunpack.c.h.b16 %v331
    %v1634 = vunpack.c.l.b16 %v332
    %v1635 = vunpack.c.h.b16 %v332
    %v1636 = vunpack.c.l.b16 %v333
    %v1637 = vunpack.c.h.b16 %v333
    %v1638 = vunpack.c.l.b16 %v334
    %v1639 = vunpack.c.h.b16 %v334
    %v1640 = vunpack.c.l.b16 %v335
    %v1641 = vunpack.c.h.b16 %v335
    %v1642 = vunpack.c.l.b16 %v336
    %v1643 = vunpack.c.h.b16 %v336
    %v1644 = vunpack.c.l.b16 %v337
    %v1645 = vunpack.c.h.b16 %v337
    %v1646 = vunpack.c.l.b16 %v338
    %v1647 = vunpack.c.h.b16 %v338
    %v1648 = vunpack.c.l.b16 %v339
    %v1649 = vunpack.c.h.b16 %v339
    %v1650 = vunpack.c.l.b16 %v340
    %v1651 = vunpack.c.h.b16 %v340
    %v1652 = vunpack.c.l.b16 %v341
    %v1653 = vunpack.c.h.b16 %v341
    %v1654 = vunpack.c.l.b16 %v342
    %v1655 = vunpack.c.h.b16 %v342
    %v1656 = vunpack.c.l.b16 %v343
    %v1657 = vunpack.c.h.b16 %v343
    %v1658 = vunpack.c.l.b16 %v344
    %v1659 = vunpack.c.h.b16 %v344
    %v1660 = vunpack.c.l.b16 %v345
    %v1661 = vunpack.c.h.b16 %v345
    %v1662 = vunpack.c.l.b16 %v346
    %v1663 = vunpack.c.h.b16 %v346
    %v1664 = vunpack.c.l.b16 %v347
    %v1665 = vunpack.c.h.b16 %v347
    %v1666 = vunpack.c.l.b16 %v348
    %v1667 = vunpack.c.h.b16 %v348
    %v1668 = vunpack.c.l.b16 %v349
    %v1669 = vunpack.c.h.b16 %v349
    %v1670 = vunpack.c.l.b16 %v350
    %v1671 = vunpack.c.h.b16 %v350
    %v1672 = vunpack.c.l.b16 %v351
    %v1673 = vunpack.c.h.b16 %v351
    %v1674 = vunpack.c.l.b16 %v352
    %v1675 = vunpack.c.h.b16 %v352
    %v1676 = vunpack.c.l.b16 %v353
    %v1677 = vunpack.c.h.b16 %v353
    %v1678 = vunpack.c.l.b16 %v354
    %v1679 = vunpack.c.h.b16 %v354
    %v1680 = vunpack.c.l.b16 %v355
    %v1681 = vunpack.c.h.b16 %v355
    %v1682 = vunpack.c.l.b16 %v356
    %v1683 = vunpack.c.h.b16 %v356
    %v1684 = vunpack.c.l.b16 %v357
    %v1685 = vunpack.c.h.b16 %v357
    %v1686 = vunpack.c.l.b16 %v358
    %v1687 = vunpack.c.h.b16 %v358
    %v1688 = vunpack.c.l.b16 %v359
    %v1689 = vunpack.c.h.b16 %v359
    %v1690 = vunpack.c.l.b16 %v360
    %v1691 = vunpack.c.h.b16 %v360
    %v1692 = vunpack.c.l.b16 %v361
    %v1693 = vunpack.c.h.b16 %v361
    %v1694 = vunpack.c.l.b16 %v362
    %v1695 = vunpack.c.h.b16 %v362
    %v1696 = vunpack.c.l.b16 %v363
    %v1697 = vunpack.c.h.b16 %v363
    %v1698 = vunpack.c.l.b16 %v364
    %v1699 = vunpack.c.h.b16 %v364
    %v1700 = vunpack.c.l.b16 %v365
    %v1701 = vunpack.c.h.b16 %v365
    %v1702 = vunpack.c.l.b16 %v366
    %v1703 = vunpack.c.h.b16 %v366
    %v1704 = vunpack.c.l.b16 %v367
    %v1705 = vunpack.c.h.b16 %v367
    %v1706 = vunpack.c.l.b16 %v368
    %v1707 = vunpack.c.h.b16 %v368
    %v1708 = vunpack.c.l.b16 %v369
    %v1709 = vunpack.c.h.b16 %v369
    %v1710 = vunpack.c.l.b16 %v370
    %v1711 = vunpack.c.h.b16 %v370
    %v1712 = vunpack.c.l.b16 %v371
    %v1713 = vunpack.c.h.b16 %v371
    %v1714 = vunpack.c.l.b16 %v372
    %v1715 = vunpack.c.h.b16 %v372
    %v1716 = vunpack.c.l.b16 %v373
    %v1717 = vunpack.c.h.b16 %v373
    %v1718 = vunpack.c.l.b16 %v374
    %v1719 = vunpack.c.h.b16 %v374
    %v1720 = vunpack.c.l.b16 %v375
    %v1721 = vunpack.c.h.b16 %v375
    %v1722 = vunpack.c.l.b16 %v376
    %v1723 = vunpack.c.h.b16 %v376
    %v1724 = vunpack.c.l.b16 %v377
    %v1725 = vunpack.c.h.b16 %v377
    %v1726 = vunpack.c.l.b16 %v378
    %v1727 = vunpack.c.h.b16 %v378
    %v1728 = vunpack.c.l.b16 %v379
    %v1729 = vunpack.c.h.b16 %v379
    %v1730 = vunpack.c.l.b16 %v380
    %v1731 = vunpack.c.h.b16 %v380
    %v1732 = vunpack.c.l.b16 %v381
    %v1733 = vunpack.c.h.b16 %v381
    %v1734 = vunpack.c.l.b16 %v382
    %v1735 = vunpack.c.h.b16 %v382
    %v1736 = vunpack.c.l.b16 %v383
    %v1737 = vunpack.c.h.b16 %v383
    %v1738 = vunpack.c.l.b16 %v384
    %v1739 = vunpack.c.h.b16 %v384
    %v1740 = vunpack.c.l.b16 %v385
    %v1741 = vunpack.c.h.b16 %v385
    %v1742 = vunpack.c.l.b16 %v386
    %v1743 = vunpack.c.h.b16 %v386
    %v1744 = vunpack.c.l.b16 %v387
    %v1745 = vunpack.c.h.b16 %v387
    %v1746 = vunpack.c.l.b16 %v388
    %v1747 = vunpack.c.h.b16 %v388
    %v1748 = vunpack.c.l.b16 %v389
    %v1749 = vunpack.c.h.b16 %v389
    %v1750 = vunpack.c.l.b16 %v390
    %v1751 = vunpack.c.h.b16 %v390
    %v1752 = vunpack.c.l.b16 %v391
    %v1753 = vunpack.c.h.b16 %v391
    %v1754 = vunpack.c.l.b16 %v392
    %v1755 = vunpack.c.h.b16 %v392
    %v1756 = vunpack.c.l.b16 %v393
    %v1757 = vunpack.c.h.b16 %v393
    %v1758 = vunpack.c.l.b16 %v394
    %v1759 = vunpack.c.h.b16 %v394
    %v1760 = vunpack.c.l.b16 %v395
    %v1761 = vunpack.c.h.b16 %v395
    %v1762 = vunpack.c.l.b16 %v396
    %v1763 = vunpack.c.h.b16 %v396
    %v1764 = vunpack.c.l.b16 %v397
    %v1765 = vunpack.c.h.b16 %v397
    %v1766 = vunpack.c.l.b16 %v398
    %v1767 = vunpack.c.h.b16 %v398
    %v1768 = vunpack.c.l.b16 %v399
    %v1769 = vunpack.c.h.b16 %v399
    %v1770 = vunpack.c.l.b16 %v400
    %v1771 = vunpack.c.h.b16 %v400
    %v1772 = vunpack.c.l.b16 %v401
    %v1773 = vunpack.c.h.b16 %v401
    %v1774 = vunpack.c.l.b16 %v402
    %v1775 = vunpack.c.h.b16 %v402
    %v1776 = vunpack.c.l.b16 %v403
    %v1777 = vunpack.c.h.b16 %v403
    %v1778 = vunpack.c.l.b16 %v404
    %v1779 = vunpack.c.h.b16 %v404
    %v1780 = vunpack.c.l.b16 %v405
    %v1781 = vunpack.c.h.b16 %v405
    %v1782 = vunpack.c.l.b16 %v406
    %v1783 = vunpack.c.h.b16 %v406
    %v1784 = vunpack.c.l.b16 %v407
    %v1785 = vunpack.c.h.b16 %v407
    %v1786 = vunpack.c.l.b16 %v408
    %v1787 = vunpack.c.h.b16 %v408
    %v1788 = vunpack.c.l.b16 %v409
    %v1789 = vunpack.c.h.b16 %v409
    %v1790 = vunpack.c.l.b16 %v410
    %v1791 = vunpack.c.h.b16 %v410
    %v1792 = vunpack.c.l.b16 %v411
    %v1793 = vunpack.c.h.b16 %v411
    %v1794 = vunpack.c.l.b16 %v412
    %v1795 = vunpack.c.h.b16 %v412
    %v1796 = vunpack.c.l.b16 %v413
    %v1797 = vunpack.c.h.b16 %v413
    %v1798 = vunpack.c.l.b16 %v414
    %v1799 = vunpack.c.h.b16 %v414
    %v1800 = vunpack.c.l.b16 %v415
    %v1801 = vunpack.c.h.b16 %v415
    %v1802 = vunpack.c.l.b16 %v416
    %v1803 = vunpack.c.h.b16 %v416
    %v1804 = vunpack.c.l.b16 %v417
    %v1805 = vunpack.c.h.b16 %v417
    %v1806 = vunpack.c.l.b16 %v418
    %v1807 = vunpack.c.h.b16 %v418
    %v1808 = vunpack.c.l.b16 %v419
    %v1809 = vunpack.c.h.b16 %v419
    %v1810 = vunpack.c.l.b16 %v420
    %v1811 = vunpack.c.h.b16 %v420
    %v1812 = vunpack.c.l.b16 %v421
    %v1813 = vunpack.c.h.b16 %v421
    %v1814 = vunpack.c.l.b16 %v422
    %v1815 = vunpack.c.h.b16 %v422
    %v1816 = vunpack.c.l.b16 %v423
    %v1817 = vunpack.c.h.b16 %v423
    %v1818 = vunpack.c.l.b16 %v424
    %v1819 = vunpack.c.h.b16 %v424
    %v1820 = vunpack.c.l.b16 %v425
    %v1821 = vunpack.c.h.b16 %v425
    %v1822 = vunpack.c.l.b16 %v426
    %v1823 = vunpack.c.h.b16 %v426
    %v1824 = vunpack.c.l.b16 %v427
    %v1825 = vunpack.c.h.b16 %v427
    %v1826 = vunpack.c.l.b16 %v428
    %v1827 = vunpack.c.h.b16 %v428
    %v1828 = vunpack.c.l.b16 %v429
    %v1829 = vunpack.c.h.b16 %v429
    %v1830 = vunpack.c.l.b16 %v430
    %v1831 = vunpack.c.h.b16 %v430
    %v1832 = vunpack.c.l.b16 %v431
    %v1833 = vunpack.c.h.b16 %v431
    %v1834 = vpack.c.b16 %v1036, %v1034
    %v1835 = vpack.c.b16 %v1037, %v1035
    %v1836 = vpack.c.b16 %v1040, %v1038
    %v1837 = vpack.c.b16 %v1041, %v1039
    %v1838 = vpack.c.b16 %v1044, %v1042
    %v1839 = vpack.c.b16 %v1045, %v1043
    %v1840 = vpack.c.b16 %v1048, %v1046
    %v1841 = vpack.c.b16 %v1049, %v1047
    %v1842 = vpack.c.b16 %v1052, %v1050
    %v1843 = vpack.c.b16 %v1053, %v1051
    %v1844 = vpack.c.b16 %v1056, %v1054
    %v1845 = vpack.c.b16 %v1057, %v1055
    %v1846 = vpack.c.b16 %v1060, %v1058
    %v1847 = vpack.c.b16 %v1061, %v1059
    %v1848 = vpack.c.b16 %v1064, %v1062
    %v1849 = vpack.c.b16 %v1065, %v1063
    %v1850 = vpack.c.b16 %v1068, %v1066
    %v1851 = vpack.c.b16 %v1069, %v1067
    %v1852 = vpack.c.b16 %v1072, %v1070
    %v1853 = vpack.c.b16 %v1073, %v1071
    %v1854 = vpack.c.b16 %v1076, %v1074
    %v1855 = vpack.c.b16 %v1077, %v1075
    %v1856 = vpack.c.b16 %v1080, %v1078
    %v1857 = vpack.c.b16 %v1081, %v1079
    %v1858 = vpack.c.b16 %v1084, %v1082
    %v1859 = vpack.c.b16 %v1085, %v1083
    %v1860 = vpack.c.b16 %v1088, %v1086
    %v1861 = vpack.c.b16 %v1089, %v1087
    %v1862 = vpack.c.b16 %v1092, %v1090
    %v1863 = vpack.c.b16 %v1093, %v1091
    %v1864 = vpack.c.b16 %v1096, %v1094
    %v1865 = vpack.c.b16 %v1097, %v1095
    %v1866 = vpack.c.b16 %v1100, %v1098
    %v1867 = vpack.c.b16 %v1101, %v1099
    %v1868 = vpack.c.b16 %v1104, %v1102
    %v1869 = vpack.c.b16 %v1105, %v1103
    %v1870 = vpack.c.b16 %v1108, %v1106
    %v1871 = vpack.c.b16 %v1109, %v1107
    %v1872 = vpack.c.b16 %v1112, %v1110
    %v1873 = vpack.c.b16 %v1113, %v1111
    %v1874 = vpack.c.b16 %v1116, %v1114
    %v1875 = vpack.c.b16 %v1117, %v1115
    %v1876 = vpack.c.b16 %v1120, %v1118
    %v1877 = vpack.c.b16 %v1121, %v1119
    %v1878 = vpack.c.b16 %v1124, %v1122
    %v1879 = vpack.c.b16 %v1125, %v1123
    %v1880 = vpack.c.b16 %v1128, %v1126
    %v1881 = vpack.c.b16 %v1129, %v1127
    %v1882 = vpack.c.b16 %v1132, %v1130
    %v1883 = vpack.c.b16 %v1133, %v1131
    %v1884 = vpack.c.b16 %v1136, %v1134
    %v1885 = vpack.c.b16 %v1137, %v1135
    %v1886 = vpack.c.b16 %v1140, %v1138
    %v1887 = vpack.c.b16 %v1141, %v1139
    %v1888 = vpack.c.b16 %v1144, %v1142
    %v1889 = vpack.c.b16 %v1145, %v1143
    %v1890 = vpack.c.b16 %v1148, %v1146
    %v1891 = vpack.c.b16 %v1149, %v1147
    %v1892 = vpack.c.b16 %v1152, %v1150
    %v1893 = vpack.c.b16 %v1153, %v1151
    %v1894 = vpack.c.b16 %v1156, %v1154
    %v1895 = vpack.c.b16 %v1157, %v1155
    %v1896 = vpack.c.b16 %v1160, %v1158
    %v1897 = vpack.c.b16 %v1161, %v1159
    %v1898 = vpack.c.b16 %v1164, %v1162
    %v1899 = vpack.c.b16 %v1165, %v1163
    %v1900 = vpack.c.b16 %v1168, %v1166
    %v1901 = vpack.c.b16 %v1169, %v1167
    %v1902 = vpack.c.b16 %v1172, %v1170
    %v1903 = vpack.c.b16 %v1173, %v1171
    %v1904 = vpack.c.b16 %v1176, %v1174
    %v1905 = vpack.c.b16 %v1177, %v1175
    %v1906 = vpack.c.b16 %v1180, %v1178
    %v1907 = vpack.c.b16 %v1181, %v1179
    %v1908 = vpack.c.b16 %v1184, %v1182
    %v1909 = vpack.c.b16 %v1185, %v1183
    %v1910 = vpack.c.b16 %v1188, %v1186
    %v1911 = vpack.c.b16 %v1189, %v1187
    %v1912 = vpack.c.b16 %v1192, %v1190
    %v1913 = vpack.c.b16 %v1193, %v1191
    %v1914 = vpack.c.b16 %v1196, %v1194
    %v1915 = vpack.c.b16 %v1197, %v1195
    %v1916 = vpack.c.b16 %v1200, %v1198
    %v1917 = vpack.c.b16 %v1201, %v1199
    %v1918 = vpack.c.b16 %v1204, %v1202
    %v1919 = vpack.c.b16 %v1205, %v1203
    %v1920 = vpack.c.b16 %v1208, %v1206
    %v1921 = vpack.c.b16 %v1209, %v1207
    %v1922 = vpack.c.b16 %v1212, %v1210
    %v1923 = vpack.c.b16 %v1213, %v1211
    %v1924 = vpack.c.b16 %v1216, %v1214
    %v1925 = vpack.c.b16 %v1217, %v1215
    %v1926 = vpack.c.b16 %v1220, %v1218
    %v1927 = vpack.c.b16 %v1221, %v1219
    %v1928 = vpack.c.b16 %v1224, %v1222
    %v1929 = vpack.c.b16 %v1225, %v1223
    %v1930 = vpack.c.b16 %v1228, %v1226
    %v1931 = vpack.c.b16 %v1229, %v1227
    %v1932 = vpack.c.b16 %v1232, %v1230
    %v1933 = vpack.c.b16 %v1233, %v1231
    %v1934 = vpack.c.b16 %v1236, %v1234
    %v1935 = vpack.c.b16 %v1237, %v1235
    %v1936 = vpack.c.b16 %v1240, %v1238
    %v1937 = vpack.c.b16 %v1241, %v1239
    %v1938 = vpack.c.b16 %v1244, %v1242
    %v1939 = vpack.c.b16 %v1245, %v1243
    %v1940 = vpack.c.b16 %v1248, %v1246
    %v1941 = vpack.c.b16 %v1249, %v1247
    %v1942 = vpack.c.b16 %v1252, %v1250
    %v1943 = vpack.c.b16 %v1253, %v1251
    %v1944 = vpack.c.b16 %v1256, %v1254
    %v1945 = vpack.c.b16 %v1257, %v1255
    %v1946 = vpack.c.b16 %v1260, %v1258
    %v1947 = vpack.c.b16 %v1261, %v1259
    %v1948 = vpack.c.b16 %v1264, %v1262
    %v1949 = vpack.c.b16 %v1265, %v1263
    %v1950 = vpack.c.b16 %v1268, %v1266
    %v1951 = vpack.c.b16 %v1269, %v1267
    %v1952 = vpack.c.b16 %v1272, %v1270
    %v1953 = vpack.c.b16 %v1273, %v1271
    %v1954 = vpack.c.b16 %v1276, %v1274
    %v1955 = vpack.c.b16 %v1277, %v1275
    %v1956 = vpack.c.b16 %v1280, %v1278
    %v1957 = vpack.c.b16 %v1281, %v1279
    %v1958 = vpack.c.b16 %v1284, %v1282
    %v1959 = vpack.c.b16 %v1285, %v1283
    %v1960 = vpack.c.b16 %v1288, %v1286
    %v1961 = vpack.c.b16 %v1289, %v1287
    %v1962 = vpack.c.b16 %v1292, %v1290
    %v1963 = vpack.c.b16 %v1293, %v1291
    %v1964 = vpack.c.b16 %v1296, %v1294
    %v1965 = vpack.c.b16 %v1297, %v1295
    %v1966 = vpack.c.b16 %v1300, %v1298
    %v1967 = vpack.c.b16 %v1301, %v1299
    %v1968 = vpack.c.b16 %v1304, %v1302
    %v1969 = vpack.c.b16 %v1305, %v1303
    %v1970 = vpack.c.b16 %v1308, %v1306
    %v1971 = vpack.c.b16 %v1309, %v1307
    %v1972 = vpack.c.b16 %v1312, %v1310
    %v1973 = vpack.c.b16 %v1313, %v1311
    %v1974 = vpack.c.b16 %v1316, %v1314
    %v1975 = vpack.c.b16 %v1317, %v1315
    %v1976 = vpack.c.b16 %v1320, %v1318
    %v1977 = vpack.c.b16 %v1321, %v1319
    %v1978 = vpack.c.b16 %v1324, %v1322
    %v1979 = vpack.c.b16 %v1325, %v1323
    %v1980 = vpack.c.b16 %v1328, %v1326
    %v1981 = vpack.c.b16 %v1329, %v1327
    %v1982 = vpack.c.b16 %v1332, %v1330
    %v1983 = vpack.c.b16 %v1333, %v1331
    %v1984 = vpack.c.b16 %v1336, %v1334
    %v1985 = vpack.c.b16 %v1337, %v1335
    %v1986 = vpack.c.b16 %v1340, %v1338
    %v1987 = vpack.c.b16 %v1341, %v1339
    %v1988 = vpack.c.b16 %v1344, %v1342
    %v1989 = vpack.c.b16 %v1345, %v1343
    %v1990 = vpack.c.b16 %v1348, %v1346
    %v1991 = vpack.c.b16 %v1349, %v1347
    %v1992 = vpack.c.b16 %v1352, %v1350
    %v1993 = vpack.c.b16 %v1353, %v1351
    %v1994 = vpack.c.b16 %v1356, %v1354
    %v1995 = vpack.c.b16 %v1357, %v1355
    %v1996 = vpack.c.b16 %v1360, %v1358
    %v1997 = vpack.c.b16 %v1361, %v1359
    %v1998 = vpack.c.b16 %v1364, %v1362
    %v1999 = vpack.c.b16 %v1365, %v1363
    %v2000 = vpack.c.b16 %v1368, %v1366
    %v2001 = vpack.c.b16 %v1369, %v1367
    %v2002 = vpack.c.b16 %v1372, %v1370
    %v2003 = vpack.c.b16 %v1373, %v1371
    %v2004 = vpack.c.b16 %v1376, %v1374
    %v2005 = vpack.c.b16 %v1377, %v1375
    %v2006 = vpack.c.b16 %v1380, %v1378
    %v2007 = vpack.c.b16 %v1381, %v1379
    %v2008 = vpack.c.b16 %v1384, %v1382
    %v2009 = vpack.c.b16 %v1385, %v1383
    %v2010 = vpack.c.b16 %v1388, %v1386
    %v2011 = vpack.c.b16 %v1389, %v1387
    %v2012 = vpack.c.b16 %v1392, %v1390
    %v2013 = vpack.c.b16 %v1393, %v1391
    %v2014 = vpack.c.b16 %v1396, %v1394
    %v2015 = vpack.c.b16 %v1397, %v1395
    %v2016 = vpack.c.b16 %v1400, %v1398
    %v2017 = vpack.c.b16 %v1401, %v1399
    %v2018 = vpack.c.b16 %v1404, %v1402
    %v2019 = vpack.c.b16 %v1405, %v1403
    %v2020 = vpack.c.b16 %v1408, %v1406
    %v2021 = vpack.c.b16 %v1409, %v1407
    %v2022 = vpack.c.b16 %v1412, %v1410
    %v2023 = vpack.c.b16 %v1413, %v1411
    %v2024 = vpack.c.b16 %v1416, %v1414
    %v2025 = vpack.c.b16 %v1417, %v1415
    %v2026 = vpack.c.b16 %v1420, %v1418
    %v2027 = vpack.c.b16 %v1421, %v1419
    %v2028 = vpack.c.b16 %v1424, %v1422
    %v2029 = vpack.c.b16 %v1425, %v1423
    %v2030 = vpack.c.b16 %v1428, %v1426
    %v2031 = vpack.c.b16 %v1429, %v1427
    %v2032 = vpack.c.b16 %v1432, %v1430
    %v2033 = vpack.c.b16 %v1433, %v1431
    %v2034 = vpack.c.b16 %v1436, %v1434
    %v2035 = vpack.c.b16 %v1437, %v1435
    %v2036 = vpack.c.b16 %v1440, %v1438
    %v2037 = vpack.c.b16 %v1441, %v1439
    %v2038 = vpack.c.b16 %v1444, %v1442
    %v2039 = vpack.c.b16 %v1445, %v1443
    %v2040 = vpack.c.b16 %v1448, %v1446
    %v2041 = vpack.c.b16 %v1449, %v1447
    %v2042 = vpack.c.b16 %v1452, %v1450
    %v2043 = vpack.c.b16 %v1453, %v1451
    %v2044 = vpack.c.b16 %v1456, %v1454
    %v2045 = vpack.c.b16 %v1457, %v1455
    %v2046 = vpack.c.b16 %v1460, %v1458
    %v2047 = vpack.c.b16 %v1461, %v1459
    %v2048 = vpack.c.b16 %v1464, %v1462
    %v2049 = vpack.c.b16 %v1465, %v1463
    %v2050 = vpack.c.b16 %v1468, %v1466
    %v2051 = vpack.c.b16 %v1469, %v1467
    %v2052 = vpack.c.b16 %v1472, %v1470
    %v2053 = vpack.c.b16 %v1473, %v1471
    %v2054 = vpack.c.b16 %v1476, %v1474
    %v2055 = vpack.c.b16 %v1477, %v1475
    %v2056 = vpack.c.b16 %v1480, %v1478
    %v2057 = vpack.c.b16 %v1481, %v1479
    %v2058 = vpack.c.b16 %v1484, %v1482
    %v2059 = vpack.c.b16 %v1485, %v1483
    %v2060 = vpack.c.b16 %v1488, %v1486
    %v2061 = vpack.c.b16 %v1489, %v1487
    %v2062 = vpack.c.b16 %v1492, %v1490
    %v2063 = vpack.c.b16 %v1493, %v1491
    %v2064 = vpack.c.b16 %v1496, %v1494
    %v2065 = vpack.c.b16 %v1497, %v1495
    %v2066 = vpack.c.b16 %v1500, %v1498
    %v2067 = vpack.c.b16 %v1501, %v1499
    %v2068 = vpack.c.b16 %v1504, %v1502
    %v2069 = vpack.c.b16 %v1505, %v1503
    %v2070 = vpack.c.b16 %v1508, %v1506
    %v2071 = vpack.c.b16 %v1509, %v1507
    %v2072 = vpack.c.b16 %v1512, %v1510
    %v2073 = vpack.c.b16 %v1513, %v1511
    %v2074 = vpack.c.b16 %v1516, %v1514
    %v2075 = vpack.c.b16 %v1517, %v1515
    %v2076 = vpack.c.b16 %v1520, %v1518
    %v2077 = vpack.c.b16 %v1521, %v1519
    %v2078 = vpack.c.b16 %v1524, %v1522
    %v2079 = vpack.c.b16 %v1525, %v1523
    %v2080 = vpack.c.b16 %v1528, %v1526
    %v2081 = vpack.c.b16 %v1529, %v1527
    %v2082 = vpack.c.b16 %v1532, %v1530
    %v2083 = vpack.c.b16 %v1533, %v1531
    %v2084 = vpack.c.b16 %v1536, %v1534
    %v2085 = vpack.c.b16 %v1537, %v1535
    %v2086 = vpack.c.b16 %v1540, %v1538
    %v2087 = vpack.c.b16 %v1541, %v1539
    %v2088 = vpack.c.b16 %v1544, %v1542
    %v2089 = vpack.c.b16 %v1545, %v1543
    %v2090 = vpack.c.b16 %v1548, %v1546
    %v2091 = vpack.c.b16 %v1549, %v1547
    %v2092 = vpack.c.b16 %v1552, %v1550
    %v2093 = vpack.c.b16 %v1553, %v1551
    %v2094 = vpack.c.b16 %v1556, %v1554
    %v2095 = vpack.c.b16 %v1557, %v1555
    %v2096 = vpack.c.b16 %v1560, %v1558
    %v2097 = vpack.c.b16 %v1561, %v1559
    %v2098 = vpack.c.b16 %v1564, %v1562
    %v2099 = vpack.c.b16 %v1565, %v1563
    %v2100 = vpack.c.b16 %v1568, %v1566
    %v2101 = vpack.c.b16 %v1569, %v1567
    %v2102 = vpack.c.b16 %v1572, %v1570
    %v2103 = vpack.c.b16 %v1573, %v1571
    %v2104 = vpack.c.b16 %v1576, %v1574
    %v2105 = vpack.c.b16 %v1577, %v1575
    %v2106 = vpack.c.b16 %v1580, %v1578
    %v2107 = vpack.c.b16 %v1581, %v1579
    %v2108 = vpack.c.b16 %v1584, %v1582
    %v2109 = vpack.c.b16 %v1585, %v1583
    %v2110 = vpack.c.b16 %v1588, %v1586
    %v2111 = vpack.c.b16 %v1589, %v1587
    %v2112 = vpack.c.b16 %v1592, %v1590
    %v2113 = vpack.c.b16 %v1593, %v1591
    %v2114 = vpack.c.b16 %v1596, %v1594
    %v2115 = vpack.c.b16 %v1597, %v1595
    %v2116 = vpack.c.b16 %v1600, %v1598
    %v2117 = vpack.c.b16 %v1601, %v1599
    %v2118 = vpack.c.b16 %v1604, %v1602
    %v2119 = vpack.c.b16 %v1605, %v1603
    %v2120 = vpack.c.b16 %v1608, %v1606
    %v2121 = vpack.c.b16 %v1609, %v1607
    %v2122 = vpack.c.b16 %v1612, %v1610
    %v2123 = vpack.c.b16 %v1613, %v1611
    %v2124 = vpack.c.b16 %v1616, %v1614
    %v2125 = vpack.c.b16 %v1617, %v1615
    %v2126 = vpack.c.b16 %v1620, %v1618
    %v2127 = vpack.c.b16 %v1621, %v1619
    %v2128 = vpack.c.b16 %v1624, %v1622
    %v2129 = vpack.c.b16 %v1625, %v1623
    %v2130 = vpack.c.b16 %v1628, %v1626
    %v2131 = vpack.c.b16 %v1629, %v1627
    %v2132 = vpack.c.b16 %v1632, %v1630
    %v2133 = vpack.c.b16 %v1633, %v1631
    %v2134 = vpack.c.b16 %v1636, %v1634
    %v2135 = vpack.c.b16 %v1637, %v1635
    %v2136 = vpack.c.b16 %v1640, %v1638
    %v2137 = vpack.c.b16 %v1641, %v1639
    %v2138 = vpack.c.b16 %v1644, %v1642
    %v2139 = vpack.c.b16 %v1645, %v1643
    %v2140 = vpack.c.b16 %v1648, %v1646
    %v2141 = vpack.c.b16 %v1649, %v1647
    %v2142 = vpack.c.b16 %v1652, %v1650
    %v2143 = vpack.c.b16 %v1653, %v1651
    %v2144 = vpack.c.b16 %v1656, %v1654
    %v2145 = vpack.c.b16 %v1657, %v1655
    %v2146 = vpack.c.b16 %v1660, %v1658
    %v2147 = vpack.c.b16 %v1661, %v1659
    %v2148 = vpack.c.b16 %v1664, %v1662
    %v2149 = vpack.c.b16 %v1665, %v1663
    %v2150 = vpack.c.b16 %v1668, %v1666
    %v2151 = vpack.c.b16 %v1669, %v1667
    %v2152 = vpack.c.b16 %v1672, %v1670
    %v2153 = vpack.c.b16 %v1673, %v1671
    %v2154 = vpack.c.b16 %v1676, %v1674
    %v2155 = vpack.c.b16 %v1677, %v1675
    %v2156 = vpack.c.b16 %v1680, %v1678
    %v2157 = vpack.c.b16 %v1681, %v1679
    %v2158 = vpack.c.b16 %v1684, %v1682
    %v2159 = vpack.c.b16 %v1685, %v1683
    %v2160 = vpack.c.b16 %v1688, %v1686
    %v2161 = vpack.c.b16 %v1689, %v1687
    %v2162 = vpack.c.b16 %v1692, %v1690
    %v2163 = vpack.c.b16 %v1693, %v1691
    %v2164 = vpack.c.b16 %v1696, %v1694
    %v2165 = vpack.c.b16 %v1697, %v1695
    %v2166 = vpack.c.b16 %v1700, %v1698
    %v2167 = vpack.c.b16 %v1701, %v1699
    %v2168 = vpack.c.b16 %v1704, %v1702
    %v2169 = vpack.c.b16 %v1705, %v1703
    %v2170 = vpack.c.b16 %v1708, %v1706
    %v2171 = vpack.c.b16 %v1709, %v1707
    %v2172 = vpack.c.b16 %v1712, %v1710
    %v2173 = vpack.c.b16 %v1713, %v1711
    %v2174 = vpack.c.b16 %v1716, %v1714
    %v2175 = vpack.c.b16 %v1717, %v1715
    %v2176 = vpack.c.b16 %v1720, %v1718
    %v2177 = vpack.c.b16 %v1721, %v1719
    %v2178 = vpack.c.b16 %v1724, %v1722
    %v2179 = vpack.c.b16 %v1725, %v1723
    %v2180 = vpack.c.b16 %v1728, %v1726
    %v2181 = vpack.c.b16 %v1729, %v1727
    %v2182 = vpack.c.b16 %v1732, %v1730
    %v2183 = vpack.c.b16 %v1733, %v1731
    %v2184 = vpack.c.b16 %v1736, %v1734
    %v2185 = vpack.c.b16 %v1737, %v1735
    %v2186 = vpack.c.b16 %v1740, %v1738
    %v2187 = vpack.c.b16 %v1741, %v1739
    %v2188 = vpack.c.b16 %v1744, %v1742
    %v2189 = vpack.c.b16 %v1745, %v1743
    %v2190 = vpack.c.b16 %v1748, %v1746
    %v2191 = vpack.c.b16 %v1749, %v1747
    %v2192 = vpack.c.b16 %v1752, %v1750
    %v2193 = vpack.c.b16 %v1753, %v1751
    %v2194 = vpack.c.b16 %v1756, %v1754
    %v2195 = vpack.c.b16 %v1757, %v1755
    %v2196 = vpack.c.b16 %v1760, %v1758
    %v2197 = vpack.c.b16 %v1761, %v1759
    %v2198 = vpack.c.b16 %v1764, %v1762
    %v2199 = vpack.c.b16 %v1765, %v1763
    %v2200 = vpack.c.b16 %v1768, %v1766
    %v2201 = vpack.c.b16 %v1769, %v1767
    %v2202 = vpack.c.b16 %v1772, %v1770
    %v2203 = vpack.c.b16 %v1773, %v1771
    %v2204 = vpack.c.b16 %v1776, %v1774
    %v2205 = vpack.c.b16 %v1777, %v1775
    %v2206 = vpack.c.b16 %v1780, %v1778
    %v2207 = vpack.c.b16 %v1781, %v1779
    %v2208 = vpack.c.b16 %v1784, %v1782
    %v2209 = vpack.c.b16 %v1785, %v1783
    %v2210 = vpack.c.b16 %v1788, %v1786
    %v2211 = vpack.c.b16 %v1789, %v1787
    %v2212 = vpack.c.b16 %v1792, %v1790
    %v2213 = vpack.c.b16 %v1793, %v1791
    %v2214 = vpack.c.b16 %v1796, %v1794
    %v2215 = vpack.c.b16 %v1797, %v1795
    %v2216 = vpack.c.b16 %v1800, %v1798
    %v2217 = vpack.c.b16 %v1801, %v1799
    %v2218 = vpack.c.b16 %v1804, %v1802
    %v2219 = vpack.c.b16 %v1805, %v1803
    %v2220 = vpack.c.b16 %v1808, %v1806
    %v2221 = vpack.c.b16 %v1809, %v1807
    %v2222 = vpack.c.b16 %v1812, %v1810
    %v2223 = vpack.c.b16 %v1813, %v1811
    %v2224 = vpack.c.b16 %v1816, %v1814
    %v2225 = vpack.c.b16 %v1817, %v1815
    %v2226 = vpack.c.b16 %v1820, %v1818
    %v2227 = vpack.c.b16 %v1821, %v1819
    %v2228 = vpack.c.b16 %v1824, %v1822
    %v2229 = vpack.c.b16 %v1825, %v1823
    %v2230 = vpack.c.b16 %v1828, %v1826
    %v2231 = vpack.c.b16 %v1829, %v1827
    %v2232 = vpack.c.b16 %v1832, %v1830
    %v2233 = vpack.c.b16 %v1833, %v1831
    %2634 = vmatprep.subr.bf16.mxu0 %v1849
    %2635 = vmatpush1.bf16.msra.mxu0 %v1848
    %2636 = vmatprep.subr.bf16.mxu0 %v1847
    %2637 = vmatpush1.bf16.msra.mxu0 %v1846
    %2638 = vmatprep.subr.bf16.mxu0 %v1845
    %2639 = vmatpush1.bf16.msra.mxu0 %v1844
    %2640 = vmatprep.subr.bf16.mxu0 %v1843
    %2641 = vmatpush1.bf16.msra.mxu0 %v1842
    %2642 = vmatprep.subr.bf16.mxu0 %v1841
    %2643 = vmatpush1.bf16.msra.mxu0 %v1840
    %2644 = vmatprep.subr.bf16.mxu0 %v1839
    %2645 = vmatpush1.bf16.msra.mxu0 %v1838
    %2646 = vmatprep.subr.bf16.mxu0 %v1837
    %2647 = vmatpush1.bf16.msra.mxu0 %v1836
    %2648 = vmatprep.subr.bf16.mxu0 %v1835
    %2649 = vmatpush1.bf16.msra.mxu0 %v1834
    %2650 = vmatprep.subr.bf16.mxu0 %v1865
    %2651 = vmatpush2.bf16.msra.mxu0 %v1864
    %2652 = vmatprep.subr.bf16.mxu0 %v1863
    %2653 = vmatpush2.bf16.msra.mxu0 %v1862
    %2654 = vmatprep.subr.bf16.mxu0 %v1861
    %2655 = vmatpush2.bf16.msra.mxu0 %v1860
    %2656 = vmatprep.subr.bf16.mxu0 %v1859
    %2657 = vmatpush2.bf16.msra.mxu0 %v1858
    %2658 = vmatprep.subr.bf16.mxu0 %v1857
    %2659 = vmatpush2.bf16.msra.mxu0 %v1856
    %2660 = vmatprep.subr.bf16.mxu0 %v1855
    %2661 = vmatpush2.bf16.msra.mxu0 %v1854
    %2662 = vmatprep.subr.bf16.mxu0 %v1853
    %2663 = vmatpush2.bf16.msra.mxu0 %v1852
    %2664 = vmatprep.subr.bf16.mxu0 %v1851
    %2665 = vmatpush2.bf16.msra.mxu0 %v1850
    %2666 = vmatprep.mubr.bf16.mxu0 %v485
    %2667 = vmatmul.mubr.bf16.gmra.mxu0 %v471
    %v2668 = vpop.f32.mrf.mxu0
    %v2669 = vadd.f32 %v437, %v2668
    %v2670 = vpop.f32.mrf.mxu0
    %v2671 = vadd.f32 %v441, %v2670
    %v2672 = vpop.f32.mrf.mxu0
    %v2673 = vpop.f32.mrf.mxu0
    %2674 = vdwg.mxu0
    %2675 = vmatprep.subr.bf16.mxu0 %v1881
    %2676 = vmatpush1.bf16.msra.mxu0 %v1880
    %2677 = vmatprep.subr.bf16.mxu0 %v1879
    %2678 = vmatpush1.bf16.msra.mxu0 %v1878
    %2679 = vmatprep.subr.bf16.mxu0 %v1877
    %2680 = vmatpush1.bf16.msra.mxu0 %v1876
    %2681 = vmatprep.subr.bf16.mxu0 %v1875
    %2682 = vmatpush1.bf16.msra.mxu0 %v1874
    %2683 = vmatprep.subr.bf16.mxu0 %v1873
    %2684 = vmatpush1.bf16.msra.mxu0 %v1872
    %2685 = vmatprep.subr.bf16.mxu0 %v1871
    %2686 = vmatpush1.bf16.msra.mxu0 %v1870
    %2687 = vmatprep.subr.bf16.mxu0 %v1869
    %2688 = vmatpush1.bf16.msra.mxu0 %v1868
    %2689 = vmatprep.subr.bf16.mxu0 %v1867
    %2690 = vmatpush1.bf16.msra.mxu0 %v1866
    %2691 = vmatprep.subr.bf16.mxu0 %v1897
    %2692 = vmatpush2.bf16.msra.mxu0 %v1896
    %2693 = vmatprep.subr.bf16.mxu0 %v1895
    %2694 = vmatpush2.bf16.msra.mxu0 %v1894
    %2695 = vmatprep.subr.bf16.mxu0 %v1893
    %2696 = vmatpush2.bf16.msra.mxu0 %v1892
    %2697 = vmatprep.subr.bf16.mxu0 %v1891
    %2698 = vmatpush2.bf16.msra.mxu0 %v1890
    %2699 = vmatprep.subr.bf16.mxu0 %v1889
    %2700 = vmatpush2.bf16.msra.mxu0 %v1888
    %2701 = vmatprep.subr.bf16.mxu0 %v1887
    %2702 = vmatpush2.bf16.msra.mxu0 %v1886
    %2703 = vmatprep.subr.bf16.mxu0 %v1885
    %2704 = vmatpush2.bf16.msra.mxu0 %v1884
    %2705 = vmatprep.subr.bf16.mxu0 %v1883
    %2706 = vmatpush2.bf16.msra.mxu0 %v1882
    %2707 = vmatprep.mubr.bf16.mxu0 %v495
    %2708 = vmatmul.mubr.bf16.gmra.mxu0 %v493
    %v2709 = vpop.f32.mrf.mxu0
    %v2710 = vadd.f32 %v2669, %v2709
    %v2711 = vpop.f32.mrf.mxu0
    %v2712 = vadd.f32 %v2671, %v2711
    %v2713 = vpop.f32.mrf.mxu0
    %v2714 = vpop.f32.mrf.mxu0
    %2715 = vdwg.mxu0
    %2716 = vmatprep.subr.bf16.mxu0 %v1913
    %2717 = vmatpush1.bf16.msra.mxu0 %v1912
    %2718 = vmatprep.subr.bf16.mxu0 %v1911
    %2719 = vmatpush1.bf16.msra.mxu0 %v1910
    %2720 = vmatprep.subr.bf16.mxu0 %v1909
    %2721 = vmatpush1.bf16.msra.mxu0 %v1908
    %2722 = vmatprep.subr.bf16.mxu0 %v1907
    %2723 = vmatpush1.bf16.msra.mxu0 %v1906
    %2724 = vmatprep.subr.bf16.mxu0 %v1905
    %2725 = vmatpush1.bf16.msra.mxu0 %v1904
    %2726 = vmatprep.subr.bf16.mxu0 %v1903
    %2727 = vmatpush1.bf16.msra.mxu0 %v1902
    %2728 = vmatprep.subr.bf16.mxu0 %v1901
    %2729 = vmatpush1.bf16.msra.mxu0 %v1900
    %2730 = vmatprep.subr.bf16.mxu0 %v1899
    %2731 = vmatpush1.bf16.msra.mxu0 %v1898
    %2732 = vmatprep.subr.bf16.mxu0 %v1929
    %2733 = vmatpush2.bf16.msra.mxu0 %v1928
    %2734 = vmatprep.subr.bf16.mxu0 %v1927
    %2735 = vmatpush2.bf16.msra.mxu0 %v1926
    %2736 = vmatprep.subr.bf16.mxu0 %v1925
    %2737 = vmatpush2.bf16.msra.mxu0 %v1924
    %2738 = vmatprep.subr.bf16.mxu0 %v1923
    %2739 = vmatpush2.bf16.msra.mxu0 %v1922
    %2740 = vmatprep.subr.bf16.mxu0 %v1921
    %2741 = vmatpush2.bf16.msra.mxu0 %v1920
    %2742 = vmatprep.subr.bf16.mxu0 %v1919
    %2743 = vmatpush2.bf16.msra.mxu0 %v1918
    %2744 = vmatprep.subr.bf16.mxu0 %v1917
    %2745 = vmatpush2.bf16.msra.mxu0 %v1916
    %2746 = vmatprep.subr.bf16.mxu0 %v1915
    %2747 = vmatpush2.bf16.msra.mxu0 %v1914
    %2748 = vmatprep.mubr.bf16.mxu0 %v492
    %2749 = vmatmul.mubr.bf16.gmra.mxu0 %v478
    %v2750 = vpop.f32.mrf.mxu0
    %v2751 = vadd.f32 %v2710, %v2750
    %v2752 = vpop.f32.mrf.mxu0
    %v2753 = vadd.f32 %v2712, %v2752
    %v2754 = vpop.f32.mrf.mxu0
    %v2755 = vpop.f32.mrf.mxu0
    %2756 = vdwg.mxu0
    %2757 = vmatprep.subr.bf16.mxu0 %v1945
    %2758 = vmatpush1.bf16.msra.mxu0 %v1944
    %2759 = vmatprep.subr.bf16.mxu0 %v1943
    %2760 = vmatpush1.bf16.msra.mxu0 %v1942
    %2761 = vmatprep.subr.bf16.mxu0 %v1941
    %2762 = vmatpush1.bf16.msra.mxu0 %v1940
    %2763 = vmatprep.subr.bf16.mxu0 %v1939
    %2764 = vmatpush1.bf16.msra.mxu0 %v1938
    %2765 = vmatprep.subr.bf16.mxu0 %v1937
    %2766 = vmatpush1.bf16.msra.mxu0 %v1936
    %2767 = vmatprep.subr.bf16.mxu0 %v1935
    %2768 = vmatpush1.bf16.msra.mxu0 %v1934
    %2769 = vmatprep.subr.bf16.mxu0 %v1933
    %2770 = vmatpush1.bf16.msra.mxu0 %v1932
    %2771 = vmatprep.subr.bf16.mxu0 %v1931
    %2772 = vmatpush1.bf16.msra.mxu0 %v1930
    %2773 = vmatprep.subr.bf16.mxu0 %v1961
    %2774 = vmatpush2.bf16.msra.mxu0 %v1960
    %2775 = vmatprep.subr.bf16.mxu0 %v1959
    %2776 = vmatpush2.bf16.msra.mxu0 %v1958
    %2777 = vmatprep.subr.bf16.mxu0 %v1957
    %2778 = vmatpush2.bf16.msra.mxu0 %v1956
    %2779 = vmatprep.subr.bf16.mxu0 %v1955
    %2780 = vmatpush2.bf16.msra.mxu0 %v1954
    %2781 = vmatprep.subr.bf16.mxu0 %v1953
    %2782 = vmatpush2.bf16.msra.mxu0 %v1952
    %2783 = vmatprep.subr.bf16.mxu0 %v1951
    %2784 = vmatpush2.bf16.msra.mxu0 %v1950
    %2785 = vmatprep.subr.bf16.mxu0 %v1949
    %2786 = vmatpush2.bf16.msra.mxu0 %v1948
    %2787 = vmatprep.subr.bf16.mxu0 %v1947
    %2788 = vmatpush2.bf16.msra.mxu0 %v1946
    %2789 = vmatprep.mubr.bf16.mxu0 %v496
    %2790 = vmatmul.mubr.bf16.gmra.mxu0 %v494
    %v2791 = vpop.f32.mrf.mxu0
    %v2792 = vadd.f32 %v2751, %v2791
    %v2793 = vpop.f32.mrf.mxu0
    %v2794 = vadd.f32 %v2753, %v2793
    %v2795 = vpop.f32.mrf.mxu0
    %v2796 = vpop.f32.mrf.mxu0
    %2797 = vdwg.mxu0
    %2798 = vmatprep.subr.bf16.mxu0 %v1977
    %2799 = vmatpush1.bf16.msra.mxu0 %v1976
    %2800 = vmatprep.subr.bf16.mxu0 %v1975
    %2801 = vmatpush1.bf16.msra.mxu0 %v1974
    %2802 = vmatprep.subr.bf16.mxu0 %v1973
    %2803 = vmatpush1.bf16.msra.mxu0 %v1972
    %2804 = vmatprep.subr.bf16.mxu0 %v1971
    %2805 = vmatpush1.bf16.msra.mxu0 %v1970
    %2806 = vmatprep.subr.bf16.mxu0 %v1969
    %2807 = vmatpush1.bf16.msra.mxu0 %v1968
    %2808 = vmatprep.subr.bf16.mxu0 %v1967
    %2809 = vmatpush1.bf16.msra.mxu0 %v1966
    %2810 = vmatprep.subr.bf16.mxu0 %v1965
    %2811 = vmatpush1.bf16.msra.mxu0 %v1964
    %2812 = vmatprep.subr.bf16.mxu0 %v1963
    %2813 = vmatpush1.bf16.msra.mxu0 %v1962
    %2814 = vmatprep.subr.bf16.mxu0 %v1993
    %2815 = vmatpush2.bf16.msra.mxu0 %v1992
    %2816 = vmatprep.subr.bf16.mxu0 %v1991
    %2817 = vmatpush2.bf16.msra.mxu0 %v1990
    %2818 = vmatprep.subr.bf16.mxu0 %v1989
    %2819 = vmatpush2.bf16.msra.mxu0 %v1988
    %2820 = vmatprep.subr.bf16.mxu0 %v1987
    %2821 = vmatpush2.bf16.msra.mxu0 %v1986
    %2822 = vmatprep.subr.bf16.mxu0 %v1985
    %2823 = vmatpush2.bf16.msra.mxu0 %v1984
    %2824 = vmatprep.subr.bf16.mxu0 %v1983
    %2825 = vmatpush2.bf16.msra.mxu0 %v1982
    %2826 = vmatprep.subr.bf16.mxu0 %v1981
    %2827 = vmatpush2.bf16.msra.mxu0 %v1980
    %2828 = vmatprep.subr.bf16.mxu0 %v1979
    %2829 = vmatpush2.bf16.msra.mxu0 %v1978
    %2830 = vmatprep.mubr.bf16.mxu0 %v534
    %2831 = vmatmul.mubr.bf16.gmra.mxu0 %v520
    %v2832 = vpop.f32.mrf.mxu0
    %v2833 = vadd.f32 %v2792, %v2832
    %v2834 = vpop.f32.mrf.mxu0
    %v2835 = vadd.f32 %v2794, %v2834
    %v2836 = vpop.f32.mrf.mxu0
    %v2837 = vpop.f32.mrf.mxu0
    %2838 = vdwg.mxu0
    %2839 = vmatprep.subr.bf16.mxu0 %v2009
    %2840 = vmatpush1.bf16.msra.mxu0 %v2008
    %2841 = vmatprep.subr.bf16.mxu0 %v2007
    %2842 = vmatpush1.bf16.msra.mxu0 %v2006
    %2843 = vmatprep.subr.bf16.mxu0 %v2005
    %2844 = vmatpush1.bf16.msra.mxu0 %v2004
    %2845 = vmatprep.subr.bf16.mxu0 %v2003
    %2846 = vmatpush1.bf16.msra.mxu0 %v2002
    %2847 = vmatprep.subr.bf16.mxu0 %v2001
    %2848 = vmatpush1.bf16.msra.mxu0 %v2000
    %2849 = vmatprep.subr.bf16.mxu0 %v1999
    %2850 = vmatpush1.bf16.msra.mxu0 %v1998
    %2851 = vmatprep.subr.bf16.mxu0 %v1997
    %2852 = vmatpush1.bf16.msra.mxu0 %v1996
    %2853 = vmatprep.subr.bf16.mxu0 %v1995
    %2854 = vmatpush1.bf16.msra.mxu0 %v1994
    %2855 = vmatprep.subr.bf16.mxu0 %v2025
    %2856 = vmatpush2.bf16.msra.mxu0 %v2024
    %2857 = vmatprep.subr.bf16.mxu0 %v2023
    %2858 = vmatpush2.bf16.msra.mxu0 %v2022
    %2859 = vmatprep.subr.bf16.mxu0 %v2021
    %2860 = vmatpush2.bf16.msra.mxu0 %v2020
    %2861 = vmatprep.subr.bf16.mxu0 %v2019
    %2862 = vmatpush2.bf16.msra.mxu0 %v2018
    %2863 = vmatprep.subr.bf16.mxu0 %v2017
    %2864 = vmatpush2.bf16.msra.mxu0 %v2016
    %2865 = vmatprep.subr.bf16.mxu0 %v2015
    %2866 = vmatpush2.bf16.msra.mxu0 %v2014
    %2867 = vmatprep.subr.bf16.mxu0 %v2013
    %2868 = vmatpush2.bf16.msra.mxu0 %v2012
    %2869 = vmatprep.subr.bf16.mxu0 %v2011
    %2870 = vmatpush2.bf16.msra.mxu0 %v2010
    %2871 = vmatprep.mubr.bf16.mxu0 %v544
    %2872 = vmatmul.mubr.bf16.gmra.mxu0 %v542
    %v2873 = vpop.f32.mrf.mxu0
    %v2874 = vadd.f32 %v2833, %v2873
    %v2875 = vpop.f32.mrf.mxu0
    %v2876 = vadd.f32 %v2835, %v2875
    %v2877 = vpop.f32.mrf.mxu0
    %v2878 = vpop.f32.mrf.mxu0
    %2879 = vdwg.mxu0
    %2880 = vmatprep.subr.bf16.mxu0 %v2041
    %2881 = vmatpush1.bf16.msra.mxu0 %v2040
    %2882 = vmatprep.subr.bf16.mxu0 %v2039
    %2883 = vmatpush1.bf16.msra.mxu0 %v2038
    %2884 = vmatprep.subr.bf16.mxu0 %v2037
    %2885 = vmatpush1.bf16.msra.mxu0 %v2036
    %2886 = vmatprep.subr.bf16.mxu0 %v2035
    %2887 = vmatpush1.bf16.msra.mxu0 %v2034
    %2888 = vmatprep.subr.bf16.mxu0 %v2033
    %2889 = vmatpush1.bf16.msra.mxu0 %v2032
    %2890 = vmatprep.subr.bf16.mxu0 %v2031
    %2891 = vmatpush1.bf16.msra.mxu0 %v2030
    %2892 = vmatprep.subr.bf16.mxu0 %v2029
    %2893 = vmatpush1.bf16.msra.mxu0 %v2028
    %2894 = vmatprep.subr.bf16.mxu0 %v2027
    %2895 = vmatpush1.bf16.msra.mxu0 %v2026
    %2896 = vmatprep.subr.bf16.mxu0 %v2057
    %2897 = vmatpush2.bf16.msra.mxu0 %v2056
    %2898 = vmatprep.subr.bf16.mxu0 %v2055
    %2899 = vmatpush2.bf16.msra.mxu0 %v2054
    %2900 = vmatprep.subr.bf16.mxu0 %v2053
    %2901 = vmatpush2.bf16.msra.mxu0 %v2052
    %2902 = vmatprep.subr.bf16.mxu0 %v2051
    %2903 = vmatpush2.bf16.msra.mxu0 %v2050
    %2904 = vmatprep.subr.bf16.mxu0 %v2049
    %2905 = vmatpush2.bf16.msra.mxu0 %v2048
    %2906 = vmatprep.subr.bf16.mxu0 %v2047
    %2907 = vmatpush2.bf16.msra.mxu0 %v2046
    %2908 = vmatprep.subr.bf16.mxu0 %v2045
    %2909 = vmatpush2.bf16.msra.mxu0 %v2044
    %2910 = vmatprep.subr.bf16.mxu0 %v2043
    %2911 = vmatpush2.bf16.msra.mxu0 %v2042
    %2912 = vmatprep.mubr.bf16.mxu0 %v541
    %2913 = vmatmul.mubr.bf16.gmra.mxu0 %v527
    %v2914 = vpop.f32.mrf.mxu0
    %v2915 = vadd.f32 %v2874, %v2914
    %v2916 = vpop.f32.mrf.mxu0
    %v2917 = vadd.f32 %v2876, %v2916
    %v2918 = vpop.f32.mrf.mxu0
    %v2919 = vpop.f32.mrf.mxu0
    %2920 = vdwg.mxu0
    %2921 = vmatprep.subr.bf16.mxu0 %v2073
    %2922 = vmatpush1.bf16.msra.mxu0 %v2072
    %2923 = vmatprep.subr.bf16.mxu0 %v2071
    %2924 = vmatpush1.bf16.msra.mxu0 %v2070
    %2925 = vmatprep.subr.bf16.mxu0 %v2069
    %2926 = vmatpush1.bf16.msra.mxu0 %v2068
    %2927 = vmatprep.subr.bf16.mxu0 %v2067
    %2928 = vmatpush1.bf16.msra.mxu0 %v2066
    %2929 = vmatprep.subr.bf16.mxu0 %v2065
    %2930 = vmatpush1.bf16.msra.mxu0 %v2064
    %2931 = vmatprep.subr.bf16.mxu0 %v2063
    %2932 = vmatpush1.bf16.msra.mxu0 %v2062
    %2933 = vmatprep.subr.bf16.mxu0 %v2061
    %2934 = vmatpush1.bf16.msra.mxu0 %v2060
    %2935 = vmatprep.subr.bf16.mxu0 %v2059
    %2936 = vmatpush1.bf16.msra.mxu0 %v2058
    %2937 = vmatprep.subr.bf16.mxu0 %v2089
    %2938 = vmatpush2.bf16.msra.mxu0 %v2088
    %2939 = vmatprep.subr.bf16.mxu0 %v2087
    %2940 = vmatpush2.bf16.msra.mxu0 %v2086
    %2941 = vmatprep.subr.bf16.mxu0 %v2085
    %2942 = vmatpush2.bf16.msra.mxu0 %v2084
    %2943 = vmatprep.subr.bf16.mxu0 %v2083
    %2944 = vmatpush2.bf16.msra.mxu0 %v2082
    %2945 = vmatprep.subr.bf16.mxu0 %v2081
    %2946 = vmatpush2.bf16.msra.mxu0 %v2080
    %2947 = vmatprep.subr.bf16.mxu0 %v2079
    %2948 = vmatpush2.bf16.msra.mxu0 %v2078
    %2949 = vmatprep.subr.bf16.mxu0 %v2077
    %2950 = vmatpush2.bf16.msra.mxu0 %v2076
    %2951 = vmatprep.subr.bf16.mxu0 %v2075
    %2952 = vmatpush2.bf16.msra.mxu0 %v2074
    %2953 = vmatprep.mubr.bf16.mxu0 %v545
    %2954 = vmatmul.mubr.bf16.gmra.mxu0 %v543
    %v2955 = vpop.f32.mrf.mxu0
    %v2956 = vadd.f32 %v2915, %v2955
    %v2957 = vpop.f32.mrf.mxu0
    %v2958 = vadd.f32 %v2917, %v2957
    %v2959 = vpop.f32.mrf.mxu0
    %v2960 = vpop.f32.mrf.mxu0
    %2961 = vdwg.mxu0
    %2962 = vmatprep.subr.bf16.mxu0 %v2105
    %2963 = vmatpush1.bf16.msra.mxu0 %v2104
    %2964 = vmatprep.subr.bf16.mxu0 %v2103
    %2965 = vmatpush1.bf16.msra.mxu0 %v2102
    %2966 = vmatprep.subr.bf16.mxu0 %v2101
    %2967 = vmatpush1.bf16.msra.mxu0 %v2100
    %2968 = vmatprep.subr.bf16.mxu0 %v2099
    %2969 = vmatpush1.bf16.msra.mxu0 %v2098
    %2970 = vmatprep.subr.bf16.mxu0 %v2097
    %2971 = vmatpush1.bf16.msra.mxu0 %v2096
    %2972 = vmatprep.subr.bf16.mxu0 %v2095
    %2973 = vmatpush1.bf16.msra.mxu0 %v2094
    %2974 = vmatprep.subr.bf16.mxu0 %v2093
    %2975 = vmatpush1.bf16.msra.mxu0 %v2092
    %2976 = vmatprep.subr.bf16.mxu0 %v2091
    %2977 = vmatpush1.bf16.msra.mxu0 %v2090
    %2978 = vmatprep.subr.bf16.mxu0 %v2121
    %2979 = vmatpush2.bf16.msra.mxu0 %v2120
    %2980 = vmatprep.subr.bf16.mxu0 %v2119
    %2981 = vmatpush2.bf16.msra.mxu0 %v2118
    %2982 = vmatprep.subr.bf16.mxu0 %v2117
    %2983 = vmatpush2.bf16.msra.mxu0 %v2116
    %2984 = vmatprep.subr.bf16.mxu0 %v2115
    %2985 = vmatpush2.bf16.msra.mxu0 %v2114
    %2986 = vmatprep.subr.bf16.mxu0 %v2113
    %2987 = vmatpush2.bf16.msra.mxu0 %v2112
    %2988 = vmatprep.subr.bf16.mxu0 %v2111
    %2989 = vmatpush2.bf16.msra.mxu0 %v2110
    %2990 = vmatprep.subr.bf16.mxu0 %v2109
    %2991 = vmatpush2.bf16.msra.mxu0 %v2108
    %2992 = vmatprep.subr.bf16.mxu0 %v2107
    %2993 = vmatpush2.bf16.msra.mxu0 %v2106
    %2994 = vmatprep.mubr.bf16.mxu0 %v583
    %2995 = vmatmul.mubr.bf16.gmra.mxu0 %v569
    %v2996 = vpop.f32.mrf.mxu0
    %v2997 = vadd.f32 %v2956, %v2996
    %v2998 = vpop.f32.mrf.mxu0
    %v2999 = vadd.f32 %v2958, %v2998
    %v3000 = vpop.f32.mrf.mxu0
    %v3001 = vpop.f32.mrf.mxu0
    %3002 = vdwg.mxu0
    %3003 = vmatprep.subr.bf16.mxu0 %v2137
    %3004 = vmatpush1.bf16.msra.mxu0 %v2136
    %3005 = vmatprep.subr.bf16.mxu0 %v2135
    %3006 = vmatpush1.bf16.msra.mxu0 %v2134
    %3007 = vmatprep.subr.bf16.mxu0 %v2133
    %3008 = vmatpush1.bf16.msra.mxu0 %v2132
    %3009 = vmatprep.subr.bf16.mxu0 %v2131
    %3010 = vmatpush1.bf16.msra.mxu0 %v2130
    %3011 = vmatprep.subr.bf16.mxu0 %v2129
    %3012 = vmatpush1.bf16.msra.mxu0 %v2128
    %3013 = vmatprep.subr.bf16.mxu0 %v2127
    %3014 = vmatpush1.bf16.msra.mxu0 %v2126
    %3015 = vmatprep.subr.bf16.mxu0 %v2125
    %3016 = vmatpush1.bf16.msra.mxu0 %v2124
    %3017 = vmatprep.subr.bf16.mxu0 %v2123
    %3018 = vmatpush1.bf16.msra.mxu0 %v2122
    %3019 = vmatprep.subr.bf16.mxu0 %v2153
    %3020 = vmatpush2.bf16.msra.mxu0 %v2152
    %3021 = vmatprep.subr.bf16.mxu0 %v2151
    %3022 = vmatpush2.bf16.msra.mxu0 %v2150
    %3023 = vmatprep.subr.bf16.mxu0 %v2149
    %3024 = vmatpush2.bf16.msra.mxu0 %v2148
    %3025 = vmatprep.subr.bf16.mxu0 %v2147
    %3026 = vmatpush2.bf16.msra.mxu0 %v2146
    %3027 = vmatprep.subr.bf16.mxu0 %v2145
    %3028 = vmatpush2.bf16.msra.mxu0 %v2144
    %3029 = vmatprep.subr.bf16.mxu0 %v2143
    %3030 = vmatpush2.bf16.msra.mxu0 %v2142
    %3031 = vmatprep.subr.bf16.mxu0 %v2141
    %3032 = vmatpush2.bf16.msra.mxu0 %v2140
    %3033 = vmatprep.subr.bf16.mxu0 %v2139
    %3034 = vmatpush2.bf16.msra.mxu0 %v2138
    %3035 = vmatprep.mubr.bf16.mxu0 %v593
    %3036 = vmatmul.mubr.bf16.gmra.mxu0 %v591
    %v3037 = vpop.f32.mrf.mxu0
    %v3038 = vadd.f32 %v2997, %v3037
    %v3039 = vpop.f32.mrf.mxu0
    %v3040 = vadd.f32 %v2999, %v3039
    %v3041 = vpop.f32.mrf.mxu0
    %v3042 = vpop.f32.mrf.mxu0
    %3043 = vdwg.mxu0
    %3044 = vmatprep.subr.bf16.mxu0 %v2169
    %3045 = vmatpush1.bf16.msra.mxu0 %v2168
    %3046 = vmatprep.subr.bf16.mxu0 %v2167
    %3047 = vmatpush1.bf16.msra.mxu0 %v2166
    %3048 = vmatprep.subr.bf16.mxu0 %v2165
    %3049 = vmatpush1.bf16.msra.mxu0 %v2164
    %3050 = vmatprep.subr.bf16.mxu0 %v2163
    %3051 = vmatpush1.bf16.msra.mxu0 %v2162
    %3052 = vmatprep.subr.bf16.mxu0 %v2161
    %3053 = vmatpush1.bf16.msra.mxu0 %v2160
    %3054 = vmatprep.subr.bf16.mxu0 %v2159
    %3055 = vmatpush1.bf16.msra.mxu0 %v2158
    %3056 = vmatprep.subr.bf16.mxu0 %v2157
    %3057 = vmatpush1.bf16.msra.mxu0 %v2156
    %3058 = vmatprep.subr.bf16.mxu0 %v2155
    %3059 = vmatpush1.bf16.msra.mxu0 %v2154
    %3060 = vmatprep.subr.bf16.mxu0 %v2185
    %3061 = vmatpush2.bf16.msra.mxu0 %v2184
    %3062 = vmatprep.subr.bf16.mxu0 %v2183
    %3063 = vmatpush2.bf16.msra.mxu0 %v2182
    %3064 = vmatprep.subr.bf16.mxu0 %v2181
    %3065 = vmatpush2.bf16.msra.mxu0 %v2180
    %3066 = vmatprep.subr.bf16.mxu0 %v2179
    %3067 = vmatpush2.bf16.msra.mxu0 %v2178
    %3068 = vmatprep.subr.bf16.mxu0 %v2177
    %3069 = vmatpush2.bf16.msra.mxu0 %v2176
    %3070 = vmatprep.subr.bf16.mxu0 %v2175
    %3071 = vmatpush2.bf16.msra.mxu0 %v2174
    %3072 = vmatprep.subr.bf16.mxu0 %v2173
    %3073 = vmatpush2.bf16.msra.mxu0 %v2172
    %3074 = vmatprep.subr.bf16.mxu0 %v2171
    %3075 = vmatpush2.bf16.msra.mxu0 %v2170
    %3076 = vmatprep.mubr.bf16.mxu0 %v590
    %3077 = vmatmul.mubr.bf16.gmra.mxu0 %v576
    %v3078 = vpop.f32.mrf.mxu0
    %v3079 = vadd.f32 %v3038, %v3078
    %v3080 = vpop.f32.mrf.mxu0
    %v3081 = vadd.f32 %v3040, %v3080
    %v3082 = vpop.f32.mrf.mxu0
    %v3083 = vpop.f32.mrf.mxu0
    %3084 = vdwg.mxu0
    %3085 = vmatprep.subr.bf16.mxu0 %v2201
    %3086 = vmatpush1.bf16.msra.mxu0 %v2200
    %3087 = vmatprep.subr.bf16.mxu0 %v2199
    %3088 = vmatpush1.bf16.msra.mxu0 %v2198
    %3089 = vmatprep.subr.bf16.mxu0 %v2197
    %3090 = vmatpush1.bf16.msra.mxu0 %v2196
    %3091 = vmatprep.subr.bf16.mxu0 %v2195
    %3092 = vmatpush1.bf16.msra.mxu0 %v2194
    %3093 = vmatprep.subr.bf16.mxu0 %v2193
    %3094 = vmatpush1.bf16.msra.mxu0 %v2192
    %3095 = vmatprep.subr.bf16.mxu0 %v2191
    %3096 = vmatpush1.bf16.msra.mxu0 %v2190
    %3097 = vmatprep.subr.bf16.mxu0 %v2189
    %3098 = vmatpush1.bf16.msra.mxu0 %v2188
    %3099 = vmatprep.subr.bf16.mxu0 %v2187
    %3100 = vmatpush1.bf16.msra.mxu0 %v2186
    %3101 = vmatprep.subr.bf16.mxu0 %v2217
    %3102 = vmatpush2.bf16.msra.mxu0 %v2216
    %3103 = vmatprep.subr.bf16.mxu0 %v2215
    %3104 = vmatpush2.bf16.msra.mxu0 %v2214
    %3105 = vmatprep.subr.bf16.mxu0 %v2213
    %3106 = vmatpush2.bf16.msra.mxu0 %v2212
    %3107 = vmatprep.subr.bf16.mxu0 %v2211
    %3108 = vmatpush2.bf16.msra.mxu0 %v2210
    %3109 = vmatprep.subr.bf16.mxu0 %v2209
    %3110 = vmatpush2.bf16.msra.mxu0 %v2208
    %3111 = vmatprep.subr.bf16.mxu0 %v2207
    %3112 = vmatpush2.bf16.msra.mxu0 %v2206
    %3113 = vmatprep.subr.bf16.mxu0 %v2205
    %3114 = vmatpush2.bf16.msra.mxu0 %v2204
    %3115 = vmatprep.subr.bf16.mxu0 %v2203
    %3116 = vmatpush2.bf16.msra.mxu0 %v2202
    %3117 = vmatprep.mubr.bf16.mxu0 %v594
    %3118 = vmatmul.mubr.bf16.gmra.mxu0 %v592
    %v3119 = vpop.f32.mrf.mxu0
    %v3120 = vadd.f32 %v3079, %v3119
    %v3121 = vpop.f32.mrf.mxu0
    %v3122 = vadd.f32 %v3081, %v3121
    %v3123 = vpop.f32.mrf.mxu0
    %v3124 = vpop.f32.mrf.mxu0
    %3125 = vdwg.mxu0
    %3126 = vmatprep.subr.bf16.mxu0 %v2233
    %3127 = vmatpush1.bf16.msra.mxu0 %v2232
    %3128 = vmatprep.subr.bf16.mxu0 %v2231
    %3129 = vmatpush1.bf16.msra.mxu0 %v2230
    %3130 = vmatprep.subr.bf16.mxu0 %v2229
    %3131 = vmatpush1.bf16.msra.mxu0 %v2228
    %3132 = vmatprep.subr.bf16.mxu0 %v2227
    %3133 = vmatpush1.bf16.msra.mxu0 %v2226
    %3134 = vmatprep.subr.bf16.mxu0 %v2225
    %3135 = vmatpush1.bf16.msra.mxu0 %v2224
    %3136 = vmatprep.subr.bf16.mxu0 %v2223
    %3137 = vmatpush1.bf16.msra.mxu0 %v2222
    %3138 = vmatprep.subr.bf16.mxu0 %v2221
    %3139 = vmatpush1.bf16.msra.mxu0 %v2220
    %3140 = vmatprep.subr.bf16.mxu0 %v2219
    %3141 = vmatpush1.bf16.msra.mxu0 %v2218
    %3142 = vmatprep.subr.bf16.mxu0 0
    %3143 = vmatpush2.bf16.msra.mxu0 0
    %3144 = vmatprep.subr.bf16.mxu0 0
    %3145 = vmatpush2.bf16.msra.mxu0 0
    %3146 = vmatprep.subr.bf16.mxu0 0
    %3147 = vmatpush2.bf16.msra.mxu0 0
    %3148 = vmatprep.subr.bf16.mxu0 0
    %3149 = vmatpush2.bf16.msra.mxu0 0
    %3150 = vmatprep.subr.bf16.mxu0 0
    %3151 = vmatpush2.bf16.msra.mxu0 0
    %3152 = vmatprep.subr.bf16.mxu0 0
    %3153 = vmatpush2.bf16.msra.mxu0 0
    %3154 = vmatprep.subr.bf16.mxu0 0
    %3155 = vmatpush2.bf16.msra.mxu0 0
    %3156 = vmatprep.subr.bf16.mxu0 0
    %3157 = vmatpush2.bf16.msra.mxu0 0
    %3158 = vmatprep.mubr.bf16.mxu0 0
    %3159 = vmatmul.mubr.bf16.gmra.mxu0 %v608
    %v3160 = vpop.f32.mrf.mxu0
    %v3161 = vadd.f32 %v3120, %v3160
    %v3162 = vpop.f32.mrf.mxu0
    %v3163 = vadd.f32 %v3122, %v3162
    %v3164 = vpop.f32.mrf.mxu0
    %v3165 = vpop.f32.mrf.mxu0
    %3166 = vdwg.mxu0
    %v3167 = vmul.f32 %v3161, 0.1997
    %v3168 = vmul.f32 %v3163, 0.1997
    %v3169 = vadd.f32 %v3167, 0.5002
    %v3170 = vadd.f32 %v3168, 0.5002
    %v3171 = vmul.f32 %v3161, %v3169
    %v3172 = vmul.f32 %v3163, %v3170
    %v3173 = vadd.f32 %v3171, 0.1992
    %v3174 = vadd.f32 %v3172, 0.1992
    %v3175 = vpack.c.bf16 %v3173, %v3173
    %v3176 = vpack.c.bf16 %v3174, %v3174
    %v3177 = vld [vmem:[%s3] sm:$0xf]
    %v3178 = vld [vmem:[%s3 + $0x4] sm:$0xf]
    %v3179 = vld [vmem:[%s3 + $0x8] sm:$0xf]
    %v3180 = vld [vmem:[%s3 + $0xc] sm:$0xf]
    %v3181 = vld [vmem:[%s3 + $0x10] sm:$0xf]
    %v3182 = vld [vmem:[%s3 + $0x14] sm:$0xf]
    %v3183 = vld [vmem:[%s3 + $0x18] sm:$0xf]
    %v3184 = vld [vmem:[%s3 + $0x1c] sm:$0xf]
    %v3185 = vld [vmem:[%s3 + $0x20] sm:$0xf]
    %v3186 = vld [vmem:[%s3 + $0x24] sm:$0xf]
    %v3187 = vld [vmem:[%s3 + $0x28] sm:$0xf]
    %v3188 = vld [vmem:[%s3 + $0x2c] sm:$0xf]
    %v3189 = vld [vmem:[%s3 + $0x30] sm:$0xf]
    %v3190 = vld [vmem:[%s3 + $0x34] sm:$0xf]
    %v3191 = vld [vmem:[%s3 + $0x38] sm:$0xf]
    %v3192 = vld [vmem:[%s3 + $0x3c] sm:$0xf]
    %v3193 = vld [vmem:[%s3 + $0x40] sm:$0xf]
    %v3194 = vld [vmem:[%s3 + $0x44] sm:$0xf]
    %v3195 = vld [vmem:[%s3 + $0x48] sm:$0xf]
    %v3196 = vld [vmem:[%s3 + $0x4c] sm:$0xf]
    %v3197 = vld [vmem:[%s3 + $0x50] sm:$0xf]
    %v3198 = vld [vmem:[%s3 + $0x54] sm:$0xf]
    %v3199 = vld [vmem:[%s3 + $0x58] sm:$0xf]
    %v3200 = vld [vmem:[%s3 + $0x5c] sm:$0xf]
    %v3201 = vld [vmem:[%s3 + $0x60] sm:$0xf]
    %v3202 = vld [vmem:[%s3 + $0x64] sm:$0xf]
    %v3203 = vld [vmem:[%s3 + $0x68] sm:$0xf]
    %v3204 = vld [vmem:[%s3 + $0x6c] sm:$0xf]
    %v3205 = vld [vmem:[%s3 + $0x70] sm:$0xf]
    %v3206 = vld [vmem:[%s3 + $0x74] sm:$0xf]
    %v3207 = vld [vmem:[%s3 + $0x78] sm:$0xf]
    %v3208 = vld [vmem:[%s3 + $0x7c] sm:$0xf]
    %s3209 = scalar_lea.vmem %s0, 25
    %v3210 = vld [vmem:[%s3209] sm:$0xff]
    %v3211 = vld [vmem:[%s3209 + $0x8] sm:$0xff]
    %v3212 = vld [vmem:[%s3209 + $0x10] sm:$0xff]
    %v3213 = vld [vmem:[%s3209 + $0x18] sm:$0x1]
    %v3218 = vcombine.high %v3210, %v3210
    %v3220 = vunpack.c.l.s4 1966171168
    %v3221 = vunpack.c.0.s8 %v3220
    %v3222 = vlaneseq
    %v3223 = vshrl.u32 %v3222, 7
    %v3224 = vsub.s32 %v3221, %v3223
    %v3225 = vrot.slane %v3210, %v3224
    %v3227 = vunpack.c.l.s4 1966171168
    %v3228 = vunpack.c.0.s8 %v3227
    %v3229 = vlaneseq
    %v3230 = vshrl.u32 %v3229, 7
    %v3231 = vsub.s32 %v3228, %v3230
    %v3232 = vrot.slane %v3218, %v3231
    %v3233 = vcombine.high %v3225, %v3225
    %v3234 = vcombine.high %v3232, %v3232
    %v3236 = vunpack.c.l.s4 1966171168
    %v3237 = vunpack.c.0.s8 %v3236
    %v3238 = vlaneseq
    %v3239 = vshrl.u32 %v3238, 7
    %v3240 = vsub.s32 %v3237, %v3239
    %v3241 = vrot.slane %v3225, %v3240
    %v3243 = vunpack.c.l.s4 1966171168
    %v3244 = vunpack.c.0.s8 %v3243
    %v3245 = vlaneseq
    %v3246 = vshrl.u32 %v3245, 7
    %v3247 = vsub.s32 %v3244, %v3246
    %v3248 = vrot.slane %v3232, %v3247
    %v3250 = vunpack.c.l.s4 1966171168
    %v3251 = vunpack.c.0.s8 %v3250
    %v3252 = vlaneseq
    %v3253 = vshrl.u32 %v3252, 7
    %v3254 = vsub.s32 %v3251, %v3253
    %v3255 = vrot.slane %v3233, %v3254
    %v3257 = vunpack.c.l.s4 1966171168
    %v3258 = vunpack.c.0.s8 %v3257
    %v3259 = vlaneseq
    %v3260 = vshrl.u32 %v3259, 7
    %v3261 = vsub.s32 %v3258, %v3260
    %v3262 = vrot.slane %v3234, %v3261
    %v3263 = vcombine.high %v3241, %v3241
    %v3264 = vcombine.high %v3248, %v3248
    %v3265 = vcombine.high %v3255, %v3255
    %v3266 = vcombine.high %v3262, %v3262
    %v3267 = vcombine.high %v3211, %v3211
    %v3269 = vunpack.c.l.s4 1966171168
    %v3270 = vunpack.c.0.s8 %v3269
    %v3271 = vlaneseq
    %v3272 = vshrl.u32 %v3271, 7
    %v3273 = vsub.s32 %v3270, %v3272
    %v3274 = vrot.slane %v3211, %v3273
    %v3276 = vunpack.c.l.s4 1966171168
    %v3277 = vunpack.c.0.s8 %v3276
    %v3278 = vlaneseq
    %v3279 = vshrl.u32 %v3278, 7
    %v3280 = vsub.s32 %v3277, %v3279
    %v3281 = vrot.slane %v3267, %v3280
    %v3282 = vcombine.high %v3274, %v3274
    %v3283 = vcombine.high %v3281, %v3281
    %v3285 = vunpack.c.l.s4 1966171168
    %v3286 = vunpack.c.0.s8 %v3285
    %v3287 = vlaneseq
    %v3288 = vshrl.u32 %v3287, 7
    %v3289 = vsub.s32 %v3286, %v3288
    %v3290 = vrot.slane %v3274, %v3289
    %v3292 = vunpack.c.l.s4 1966171168
    %v3293 = vunpack.c.0.s8 %v3292
    %v3294 = vlaneseq
    %v3295 = vshrl.u32 %v3294, 7
    %v3296 = vsub.s32 %v3293, %v3295
    %v3297 = vrot.slane %v3281, %v3296
    %v3299 = vunpack.c.l.s4 1966171168
    %v3300 = vunpack.c.0.s8 %v3299
    %v3301 = vlaneseq
    %v3302 = vshrl.u32 %v3301, 7
    %v3303 = vsub.s32 %v3300, %v3302
    %v3304 = vrot.slane %v3282, %v3303
    %v3306 = vunpack.c.l.s4 1966171168
    %v3307 = vunpack.c.0.s8 %v3306
    %v3308 = vlaneseq
    %v3309 = vshrl.u32 %v3308, 7
    %v3310 = vsub.s32 %v3307, %v3309
    %v3311 = vrot.slane %v3283, %v3310
    %v3312 = vcombine.high %v3290, %v3290
    %v3313 = vcombine.high %v3297, %v3297
    %v3314 = vcombine.high %v3304, %v3304
    %v3315 = vcombine.high %v3311, %v3311
    %v3316 = vcombine.high %v3212, %v3212
    %v3318 = vunpack.c.l.s4 1966171168
    %v3319 = vunpack.c.0.s8 %v3318
    %v3320 = vlaneseq
    %v3321 = vshrl.u32 %v3320, 7
    %v3322 = vsub.s32 %v3319, %v3321
    %v3323 = vrot.slane %v3212, %v3322
    %v3325 = vunpack.c.l.s4 1966171168
    %v3326 = vunpack.c.0.s8 %v3325
    %v3327 = vlaneseq
    %v3328 = vshrl.u32 %v3327, 7
    %v3329 = vsub.s32 %v3326, %v3328
    %v3330 = vrot.slane %v3316, %v3329
    %v3331 = vcombine.high %v3323, %v3323
    %v3332 = vcombine.high %v3330, %v3330
    %v3334 = vunpack.c.l.s4 1966171168
    %v3335 = vunpack.c.0.s8 %v3334
    %v3336 = vlaneseq
    %v3337 = vshrl.u32 %v3336, 7
    %v3338 = vsub.s32 %v3335, %v3337
    %v3339 = vrot.slane %v3323, %v3338
    %v3341 = vunpack.c.l.s4 1966171168
    %v3342 = vunpack.c.0.s8 %v3341
    %v3343 = vlaneseq
    %v3344 = vshrl.u32 %v3343, 7
    %v3345 = vsub.s32 %v3342, %v3344
    %v3346 = vrot.slane %v3330, %v3345
    %v3348 = vunpack.c.l.s4 1966171168
    %v3349 = vunpack.c.0.s8 %v3348
    %v3350 = vlaneseq
    %v3351 = vshrl.u32 %v3350, 7
    %v3352 = vsub.s32 %v3349, %v3351
    %v3353 = vrot.slane %v3331, %v3352
    %v3355 = vunpack.c.l.s4 1966171168
    %v3356 = vunpack.c.0.s8 %v3355
    %v3357 = vlaneseq
    %v3358 = vshrl.u32 %v3357, 7
    %v3359 = vsub.s32 %v3356, %v3358
    %v3360 = vrot.slane %v3332, %v3359
    %v3361 = vcombine.high %v3339, %v3339
    %v3362 = vcombine.high %v3346, %v3346
    %v3363 = vcombine.high %v3353, %v3353
    %v3364 = vcombine.high %v3360, %v3360
    %v3366 = vunpack.c.l.s4 1966171168
    %v3367 = vunpack.c.0.s8 %v3366
    %v3368 = vlaneseq
    %v3369 = vshrl.u32 %v3368, 7
    %v3370 = vsub.s32 %v3367, %v3369
    %v3371 = vrot.slane %v3213, %v3370
    %v3373 = vunpack.c.l.s4 1966171168
    %v3374 = vunpack.c.0.s8 %v3373
    %v3375 = vlaneseq
    %v3376 = vshrl.u32 %v3375, 7
    %v3377 = vsub.s32 %v3374, %v3376
    %v3378 = vrot.slane %v3371, %v3377
    %3404 = vmatprep.subr.bf16.mxu0 %v1849
    %3405 = vmatpush1.bf16.msra.mxu0 %v1848
    %3406 = vmatprep.subr.bf16.mxu0 %v1847
    %3407 = vmatpush1.bf16.msra.mxu0 %v1846
    %3408 = vmatprep.subr.bf16.mxu0 %v1845
    %3409 = vmatpush1.bf16.msra.mxu0 %v1844
    %3410 = vmatprep.subr.bf16.mxu0 %v1843
    %3411 = vmatpush1.bf16.msra.mxu0 %v1842
    %3412 = vmatprep.subr.bf16.mxu0 %v1841
    %3413 = vmatpush1.bf16.msra.mxu0 %v1840
    %3414 = vmatprep.subr.bf16.mxu0 %v1839
    %3415 = vmatpush1.bf16.msra.mxu0 %v1838
    %3416 = vmatprep.subr.bf16.mxu0 %v1837
    %3417 = vmatpush1.bf16.msra.mxu0 %v1836
    %3418 = vmatprep.subr.bf16.mxu0 %v1835
    %3419 = vmatpush1.bf16.msra.mxu0 %v1834
    %3420 = vmatprep.subr.bf16.mxu0 %v1865
    %3421 = vmatpush2.bf16.msra.mxu0 %v1864
    %3422 = vmatprep.subr.bf16.mxu0 %v1863
    %3423 = vmatpush2.bf16.msra.mxu0 %v1862
    %3424 = vmatprep.subr.bf16.mxu0 %v1861
    %3425 = vmatpush2.bf16.msra.mxu0 %v1860
    %3426 = vmatprep.subr.bf16.mxu0 %v1859
    %3427 = vmatpush2.bf16.msra.mxu0 %v1858
    %3428 = vmatprep.subr.bf16.mxu0 %v1857
    %3429 = vmatpush2.bf16.msra.mxu0 %v1856
    %3430 = vmatprep.subr.bf16.mxu0 %v1855
    %3431 = vmatpush2.bf16.msra.mxu0 %v1854
    %3432 = vmatprep.subr.bf16.mxu0 %v1853
    %3433 = vmatpush2.bf16.msra.mxu0 %v1852
    %3434 = vmatprep.subr.bf16.mxu0 %v1851
    %3435 = vmatpush2.bf16.msra.mxu0 %v1850
    %3436 = vmatprep.mubr.bf16.mxu0 %v3255
    %3437 = vmatmul.mubr.bf16.gmra.mxu0 %v3241
    %v3438 = vpop.f32.mrf.mxu0
    %v3439 = vadd.f32 %v437, %v3438
    %v3440 = vpop.f32.mrf.mxu0
    %v3441 = vadd.f32 %v441, %v3440
    %v3442 = vpop.f32.mrf.mxu0
    %v3443 = vpop.f32.mrf.mxu0
    %3444 = vdwg.mxu0
    %3445 = vmatprep.subr.bf16.mxu0 %v1881
    %3446 = vmatpush1.bf16.msra.mxu0 %v1880
    %3447 = vmatprep.subr.bf16.mxu0 %v1879
    %3448 = vmatpush1.bf16.msra.mxu0 %v1878
    %3449 = vmatprep.subr.bf16.mxu0 %v1877
    %3450 = vmatpush1.bf16.msra.mxu0 %v1876
    %3451 = vmatprep.subr.bf16.mxu0 %v1875
    %3452 = vmatpush1.bf16.msra.mxu0 %v1874
    %3453 = vmatprep.subr.bf16.mxu0 %v1873
    %3454 = vmatpush1.bf16.msra.mxu0 %v1872
    %3455 = vmatprep.subr.bf16.mxu0 %v1871
    %3456 = vmatpush1.bf16.msra.mxu0 %v1870
    %3457 = vmatprep.subr.bf16.mxu0 %v1869
    %3458 = vmatpush1.bf16.msra.mxu0 %v1868
    %3459 = vmatprep.subr.bf16.mxu0 %v1867
    %3460 = vmatpush1.bf16.msra.mxu0 %v1866
    %3461 = vmatprep.subr.bf16.mxu0 %v1897
    %3462 = vmatpush2.bf16.msra.mxu0 %v1896
    %3463 = vmatprep.subr.bf16.mxu0 %v1895
    %3464 = vmatpush2.bf16.msra.mxu0 %v1894
    %3465 = vmatprep.subr.bf16.mxu0 %v1893
    %3466 = vmatpush2.bf16.msra.mxu0 %v1892
    %3467 = vmatprep.subr.bf16.mxu0 %v1891
    %3468 = vmatpush2.bf16.msra.mxu0 %v1890
    %3469 = vmatprep.subr.bf16.mxu0 %v1889
    %3470 = vmatpush2.bf16.msra.mxu0 %v1888
    %3471 = vmatprep.subr.bf16.mxu0 %v1887
    %3472 = vmatpush2.bf16.msra.mxu0 %v1886
    %3473 = vmatprep.subr.bf16.mxu0 %v1885
    %3474 = vmatpush2.bf16.msra.mxu0 %v1884
    %3475 = vmatprep.subr.bf16.mxu0 %v1883
    %3476 = vmatpush2.bf16.msra.mxu0 %v1882
    %3477 = vmatprep.mubr.bf16.mxu0 %v3265
    %3478 = vmatmul.mubr.bf16.gmra.mxu0 %v3263
    %v3479 = vpop.f32.mrf.mxu0
    %v3480 = vadd.f32 %v3439, %v3479
    %v3481 = vpop.f32.mrf.mxu0
    %v3482 = vadd.f32 %v3441, %v3481
    %v3483 = vpop.f32.mrf.mxu0
    %v3484 = vpop.f32.mrf.mxu0
    %3485 = vdwg.mxu0
    %3486 = vmatprep.subr.bf16.mxu0 %v1913
    %3487 = vmatpush1.bf16.msra.mxu0 %v1912
    %3488 = vmatprep.subr.bf16.mxu0 %v1911
    %3489 = vmatpush1.bf16.msra.mxu0 %v1910
    %3490 = vmatprep.subr.bf16.mxu0 %v1909
    %3491 = vmatpush1.bf16.msra.mxu0 %v1908
    %3492 = vmatprep.subr.bf16.mxu0 %v1907
    %3493 = vmatpush1.bf16.msra.mxu0 %v1906
    %3494 = vmatprep.subr.bf16.mxu0 %v1905
    %3495 = vmatpush1.bf16.msra.mxu0 %v1904
    %3496 = vmatprep.subr.bf16.mxu0 %v1903
    %3497 = vmatpush1.bf16.msra.mxu0 %v1902
    %3498 = vmatprep.subr.bf16.mxu0 %v1901
    %3499 = vmatpush1.bf16.msra.mxu0 %v1900
    %3500 = vmatprep.subr.bf16.mxu0 %v1899
    %3501 = vmatpush1.bf16.msra.mxu0 %v1898
    %3502 = vmatprep.subr.bf16.mxu0 %v1929
    %3503 = vmatpush2.bf16.msra.mxu0 %v1928
    %3504 = vmatprep.subr.bf16.mxu0 %v1927
    %3505 = vmatpush2.bf16.msra.mxu0 %v1926
    %3506 = vmatprep.subr.bf16.mxu0 %v1925
    %3507 = vmatpush2.bf16.msra.mxu0 %v1924
    %3508 = vmatprep.subr.bf16.mxu0 %v1923
    %3509 = vmatpush2.bf16.msra.mxu0 %v1922
    %3510 = vmatprep.subr.bf16.mxu0 %v1921
    %3511 = vmatpush2.bf16.msra.mxu0 %v1920
    %3512 = vmatprep.subr.bf16.mxu0 %v1919
    %3513 = vmatpush2.bf16.msra.mxu0 %v1918
    %3514 = vmatprep.subr.bf16.mxu0 %v1917
    %3515 = vmatpush2.bf16.msra.mxu0 %v1916
    %3516 = vmatprep.subr.bf16.mxu0 %v1915
    %3517 = vmatpush2.bf16.msra.mxu0 %v1914
    %3518 = vmatprep.mubr.bf16.mxu0 %v3262
    %3519 = vmatmul.mubr.bf16.gmra.mxu0 %v3248
    %v3520 = vpop.f32.mrf.mxu0
    %v3521 = vadd.f32 %v3480, %v3520
    %v3522 = vpop.f32.mrf.mxu0
    %v3523 = vadd.f32 %v3482, %v3522
    %v3524 = vpop.f32.mrf.mxu0
    %v3525 = vpop.f32.mrf.mxu0
    %3526 = vdwg.mxu0
    %3527 = vmatprep.subr.bf16.mxu0 %v1945
    %3528 = vmatpush1.bf16.msra.mxu0 %v1944
    %3529 = vmatprep.subr.bf16.mxu0 %v1943
    %3530 = vmatpush1.bf16.msra.mxu0 %v1942
    %3531 = vmatprep.subr.bf16.mxu0 %v1941
    %3532 = vmatpush1.bf16.msra.mxu0 %v1940
    %3533 = vmatprep.subr.bf16.mxu0 %v1939
    %3534 = vmatpush1.bf16.msra.mxu0 %v1938
    %3535 = vmatprep.subr.bf16.mxu0 %v1937
    %3536 = vmatpush1.bf16.msra.mxu0 %v1936
    %3537 = vmatprep.subr.bf16.mxu0 %v1935
    %3538 = vmatpush1.bf16.msra.mxu0 %v1934
    %3539 = vmatprep.subr.bf16.mxu0 %v1933
    %3540 = vmatpush1.bf16.msra.mxu0 %v1932
    %3541 = vmatprep.subr.bf16.mxu0 %v1931
    %3542 = vmatpush1.bf16.msra.mxu0 %v1930
    %3543 = vmatprep.subr.bf16.mxu0 %v1961
    %3544 = vmatpush2.bf16.msra.mxu0 %v1960
    %3545 = vmatprep.subr.bf16.mxu0 %v1959
    %3546 = vmatpush2.bf16.msra.mxu0 %v1958
    %3547 = vmatprep.subr.bf16.mxu0 %v1957
    %3548 = vmatpush2.bf16.msra.mxu0 %v1956
    %3549 = vmatprep.subr.bf16.mxu0 %v1955
    %3550 = vmatpush2.bf16.msra.mxu0 %v1954
    %3551 = vmatprep.subr.bf16.mxu0 %v1953
    %3552 = vmatpush2.bf16.msra.mxu0 %v1952
    %3553 = vmatprep.subr.bf16.mxu0 %v1951
    %3554 = vmatpush2.bf16.msra.mxu0 %v1950
    %3555 = vmatprep.subr.bf16.mxu0 %v1949
    %3556 = vmatpush2.bf16.msra.mxu0 %v1948
    %3557 = vmatprep.subr.bf16.mxu0 %v1947
    %3558 = vmatpush2.bf16.msra.mxu0 %v1946
    %3559 = vmatprep.mubr.bf16.mxu0 %v3266
    %3560 = vmatmul.mubr.bf16.gmra.mxu0 %v3264
    %v3561 = vpop.f32.mrf.mxu0
    %v3562 = vadd.f32 %v3521, %v3561
    %v3563 = vpop.f32.mrf.mxu0
    %v3564 = vadd.f32 %v3523, %v3563
    %v3565 = vpop.f32.mrf.mxu0
    %v3566 = vpop.f32.mrf.mxu0
    %3567 = vdwg.mxu0
    %3568 = vmatprep.subr.bf16.mxu0 %v1977
    %3569 = vmatpush1.bf16.msra.mxu0 %v1976
    %3570 = vmatprep.subr.bf16.mxu0 %v1975
    %3571 = vmatpush1.bf16.msra.mxu0 %v1974
    %3572 = vmatprep.subr.bf16.mxu0 %v1973
    %3573 = vmatpush1.bf16.msra.mxu0 %v1972
    %3574 = vmatprep.subr.bf16.mxu0 %v1971
    %3575 = vmatpush1.bf16.msra.mxu0 %v1970
    %3576 = vmatprep.subr.bf16.mxu0 %v1969
    %3577 = vmatpush1.bf16.msra.mxu0 %v1968
    %3578 = vmatprep.subr.bf16.mxu0 %v1967
    %3579 = vmatpush1.bf16.msra.mxu0 %v1966
    %3580 = vmatprep.subr.bf16.mxu0 %v1965
    %3581 = vmatpush1.bf16.msra.mxu0 %v1964
    %3582 = vmatprep.subr.bf16.mxu0 %v1963
    %3583 = vmatpush1.bf16.msra.mxu0 %v1962
    %3584 = vmatprep.subr.bf16.mxu0 %v1993
    %3585 = vmatpush2.bf16.msra.mxu0 %v1992
    %3586 = vmatprep.subr.bf16.mxu0 %v1991
    %3587 = vmatpush2.bf16.msra.mxu0 %v1990
    %3588 = vmatprep.subr.bf16.mxu0 %v1989
    %3589 = vmatpush2.bf16.msra.mxu0 %v1988
    %3590 = vmatprep.subr.bf16.mxu0 %v1987
    %3591 = vmatpush2.bf16.msra.mxu0 %v1986
    %3592 = vmatprep.subr.bf16.mxu0 %v1985
    %3593 = vmatpush2.bf16.msra.mxu0 %v1984
    %3594 = vmatprep.subr.bf16.mxu0 %v1983
    %3595 = vmatpush2.bf16.msra.mxu0 %v1982
    %3596 = vmatprep.subr.bf16.mxu0 %v1981
    %3597 = vmatpush2.bf16.msra.mxu0 %v1980
    %3598 = vmatprep.subr.bf16.mxu0 %v1979
    %3599 = vmatpush2.bf16.msra.mxu0 %v1978
    %3600 = vmatprep.mubr.bf16.mxu0 %v3304
    %3601 = vmatmul.mubr.bf16.gmra.mxu0 %v3290
    %v3602 = vpop.f32.mrf.mxu0
    %v3603 = vadd.f32 %v3562, %v3602
    %v3604 = vpop.f32.mrf.mxu0
    %v3605 = vadd.f32 %v3564, %v3604
    %v3606 = vpop.f32.mrf.mxu0
    %v3607 = vpop.f32.mrf.mxu0
    %3608 = vdwg.mxu0
    %3609 = vmatprep.subr.bf16.mxu0 %v2009
    %3610 = vmatpush1.bf16.msra.mxu0 %v2008
    %3611 = vmatprep.subr.bf16.mxu0 %v2007
    %3612 = vmatpush1.bf16.msra.mxu0 %v2006
    %3613 = vmatprep.subr.bf16.mxu0 %v2005
    %3614 = vmatpush1.bf16.msra.mxu0 %v2004
    %3615 = vmatprep.subr.bf16.mxu0 %v2003
    %3616 = vmatpush1.bf16.msra.mxu0 %v2002
    %3617 = vmatprep.subr.bf16.mxu0 %v2001
    %3618 = vmatpush1.bf16.msra.mxu0 %v2000
    %3619 = vmatprep.subr.bf16.mxu0 %v1999
    %3620 = vmatpush1.bf16.msra.mxu0 %v1998
    %3621 = vmatprep.subr.bf16.mxu0 %v1997
    %3622 = vmatpush1.bf16.msra.mxu0 %v1996
    %3623 = vmatprep.subr.bf16.mxu0 %v1995
    %3624 = vmatpush1.bf16.msra.mxu0 %v1994
    %3625 = vmatprep.subr.bf16.mxu0 %v2025
    %3626 = vmatpush2.bf16.msra.mxu0 %v2024
    %3627 = vmatprep.subr.bf16.mxu0 %v2023
    %3628 = vmatpush2.bf16.msra.mxu0 %v2022
    %3629 = vmatprep.subr.bf16.mxu0 %v2021
    %3630 = vmatpush2.bf16.msra.mxu0 %v2020
    %3631 = vmatprep.subr.bf16.mxu0 %v2019
    %3632 = vmatpush2.bf16.msra.mxu0 %v2018
    %3633 = vmatprep.subr.bf16.mxu0 %v2017
    %3634 = vmatpush2.bf16.msra.mxu0 %v2016
    %3635 = vmatprep.subr.bf16.mxu0 %v2015
    %3636 = vmatpush2.bf16.msra.mxu0 %v2014
    %3637 = vmatprep.subr.bf16.mxu0 %v2013
    %3638 = vmatpush2.bf16.msra.mxu0 %v2012
    %3639 = vmatprep.subr.bf16.mxu0 %v2011
    %3640 = vmatpush2.bf16.msra.mxu0 %v2010
    %3641 = vmatprep.mubr.bf16.mxu0 %v3314
    %3642 = vmatmul.mubr.bf16.gmra.mxu0 %v3312
    %v3643 = vpop.f32.mrf.mxu0
    %v3644 = vadd.f32 %v3603, %v3643
    %v3645 = vpop.f32.mrf.mxu0
    %v3646 = vadd.f32 %v3605, %v3645
    %v3647 = vpop.f32.mrf.mxu0
    %v3648 = vpop.f32.mrf.mxu0
    %3649 = vdwg.mxu0
    %3650 = vmatprep.subr.bf16.mxu0 %v2041
    %3651 = vmatpush1.bf16.msra.mxu0 %v2040
    %3652 = vmatprep.subr.bf16.mxu0 %v2039
    %3653 = vmatpush1.bf16.msra.mxu0 %v2038
    %3654 = vmatprep.subr.bf16.mxu0 %v2037
    %3655 = vmatpush1.bf16.msra.mxu0 %v2036
    %3656 = vmatprep.subr.bf16.mxu0 %v2035
    %3657 = vmatpush1.bf16.msra.mxu0 %v2034
    %3658 = vmatprep.subr.bf16.mxu0 %v2033
    %3659 = vmatpush1.bf16.msra.mxu0 %v2032
    %3660 = vmatprep.subr.bf16.mxu0 %v2031
    %3661 = vmatpush1.bf16.msra.mxu0 %v2030
    %3662 = vmatprep.subr.bf16.mxu0 %v2029
    %3663 = vmatpush1.bf16.msra.mxu0 %v2028
    %3664 = vmatprep.subr.bf16.mxu0 %v2027
    %3665 = vmatpush1.bf16.msra.mxu0 %v2026
    %3666 = vmatprep.subr.bf16.mxu0 %v2057
    %3667 = vmatpush2.bf16.msra.mxu0 %v2056
    %3668 = vmatprep.subr.bf16.mxu0 %v2055
    %3669 = vmatpush2.bf16.msra.mxu0 %v2054
    %3670 = vmatprep.subr.bf16.mxu0 %v2053
    %3671 = vmatpush2.bf16.msra.mxu0 %v2052
    %3672 = vmatprep.subr.bf16.mxu0 %v2051
    %3673 = vmatpush2.bf16.msra.mxu0 %v2050
    %3674 = vmatprep.subr.bf16.mxu0 %v2049
    %3675 = vmatpush2.bf16.msra.mxu0 %v2048
    %3676 = vmatprep.subr.bf16.mxu0 %v2047
    %3677 = vmatpush2.bf16.msra.mxu0 %v2046
    %3678 = vmatprep.subr.bf16.mxu0 %v2045
    %3679 = vmatpush2.bf16.msra.mxu0 %v2044
    %3680 = vmatprep.subr.bf16.mxu0 %v2043
    %3681 = vmatpush2.bf16.msra.mxu0 %v2042
    %3682 = vmatprep.mubr.bf16.mxu0 %v3311
    %3683 = vmatmul.mubr.bf16.gmra.mxu0 %v3297
    %v3684 = vpop.f32.mrf.mxu0
    %v3685 = vadd.f32 %v3644, %v3684
    %v3686 = vpop.f32.mrf.mxu0
    %v3687 = vadd.f32 %v3646, %v3686
    %v3688 = vpop.f32.mrf.mxu0
    %v3689 = vpop.f32.mrf.mxu0
    %3690 = vdwg.mxu0
    %3691 = vmatprep.subr.bf16.mxu0 %v2073
    %3692 = vmatpush1.bf16.msra.mxu0 %v2072
    %3693 = vmatprep.subr.bf16.mxu0 %v2071
    %3694 = vmatpush1.bf16.msra.mxu0 %v2070
    %3695 = vmatprep.subr.bf16.mxu0 %v2069
    %3696 = vmatpush1.bf16.msra.mxu0 %v2068
    %3697 = vmatprep.subr.bf16.mxu0 %v2067
    %3698 = vmatpush1.bf16.msra.mxu0 %v2066
    %3699 = vmatprep.subr.bf16.mxu0 %v2065
    %3700 = vmatpush1.bf16.msra.mxu0 %v2064
    %3701 = vmatprep.subr.bf16.mxu0 %v2063
    %3702 = vmatpush1.bf16.msra.mxu0 %v2062
    %3703 = vmatprep.subr.bf16.mxu0 %v2061
    %3704 = vmatpush1.bf16.msra.mxu0 %v2060
    %3705 = vmatprep.subr.bf16.mxu0 %v2059
    %3706 = vmatpush1.bf16.msra.mxu0 %v2058
    %3707 = vmatprep.subr.bf16.mxu0 %v2089
    %3708 = vmatpush2.bf16.msra.mxu0 %v2088
    %3709 = vmatprep.subr.bf16.mxu0 %v2087
    %3710 = vmatpush2.bf16.msra.mxu0 %v2086
    %3711 = vmatprep.subr.bf16.mxu0 %v2085
    %3712 = vmatpush2.bf16.msra.mxu0 %v2084
    %3713 = vmatprep.subr.bf16.mxu0 %v2083
    %3714 = vmatpush2.bf16.msra.mxu0 %v2082
    %3715 = vmatprep.subr.bf16.mxu0 %v2081
    %3716 = vmatpush2.bf16.msra.mxu0 %v2080
    %3717 = vmatprep.subr.bf16.mxu0 %v2079
    %3718 = vmatpush2.bf16.msra.mxu0 %v2078
    %3719 = vmatprep.subr.bf16.mxu0 %v2077
    %3720 = vmatpush2.bf16.msra.mxu0 %v2076
    %3721 = vmatprep.subr.bf16.mxu0 %v2075
    %3722 = vmatpush2.bf16.msra.mxu0 %v2074
    %3723 = vmatprep.mubr.bf16.mxu0 %v3315
    %3724 = vmatmul.mubr.bf16.gmra.mxu0 %v3313
    %v3725 = vpop.f32.mrf.mxu0
    %v3726 = vadd.f32 %v3685, %v3725
    %v3727 = vpop.f32.mrf.mxu0
    %v3728 = vadd.f32 %v3687, %v3727
    %v3729 = vpop.f32.mrf.mxu0
    %v3730 = vpop.f32.mrf.mxu0
    %3731 = vdwg.mxu0
    %3732 = vmatprep.subr.bf16.mxu0 %v2105
    %3733 = vmatpush1.bf16.msra.mxu0 %v2104
    %3734 = vmatprep.subr.bf16.mxu0 %v2103
    %3735 = vmatpush1.bf16.msra.mxu0 %v2102
    %3736 = vmatprep.subr.bf16.mxu0 %v2101
    %3737 = vmatpush1.bf16.msra.mxu0 %v2100
    %3738 = vmatprep.subr.bf16.mxu0 %v2099
    %3739 = vmatpush1.bf16.msra.mxu0 %v2098
    %3740 = vmatprep.subr.bf16.mxu0 %v2097
    %3741 = vmatpush1.bf16.msra.mxu0 %v2096
    %3742 = vmatprep.subr.bf16.mxu0 %v2095
    %3743 = vmatpush1.bf16.msra.mxu0 %v2094
    %3744 = vmatprep.subr.bf16.mxu0 %v2093
    %3745 = vmatpush1.bf16.msra.mxu0 %v2092
    %3746 = vmatprep.subr.bf16.mxu0 %v2091
    %3747 = vmatpush1.bf16.msra.mxu0 %v2090
    %3748 = vmatprep.subr.bf16.mxu0 %v2121
    %3749 = vmatpush2.bf16.msra.mxu0 %v2120
    %3750 = vmatprep.subr.bf16.mxu0 %v2119
    %3751 = vmatpush2.bf16.msra.mxu0 %v2118
    %3752 = vmatprep.subr.bf16.mxu0 %v2117
    %3753 = vmatpush2.bf16.msra.mxu0 %v2116
    %3754 = vmatprep.subr.bf16.mxu0 %v2115
    %3755 = vmatpush2.bf16.msra.mxu0 %v2114
    %3756 = vmatprep.subr.bf16.mxu0 %v2113
    %3757 = vmatpush2.bf16.msra.mxu0 %v2112
    %3758 = vmatprep.subr.bf16.mxu0 %v2111
    %3759 = vmatpush2.bf16.msra.mxu0 %v2110
    %3760 = vmatprep.subr.bf16.mxu0 %v2109
    %3761 = vmatpush2.bf16.msra.mxu0 %v2108
    %3762 = vmatprep.subr.bf16.mxu0 %v2107
    %3763 = vmatpush2.bf16.msra.mxu0 %v2106
    %3764 = vmatprep.mubr.bf16.mxu0 %v3353
    %3765 = vmatmul.mubr.bf16.gmra.mxu0 %v3339
    %v3766 = vpop.f32.mrf.mxu0
    %v3767 = vadd.f32 %v3726, %v3766
    %v3768 = vpop.f32.mrf.mxu0
    %v3769 = vadd.f32 %v3728, %v3768
    %v3770 = vpop.f32.mrf.mxu0
    %v3771 = vpop.f32.mrf.mxu0
    %3772 = vdwg.mxu0
    %3773 = vmatprep.subr.bf16.mxu0 %v2137
    %3774 = vmatpush1.bf16.msra.mxu0 %v2136
    %3775 = vmatprep.subr.bf16.mxu0 %v2135
    %3776 = vmatpush1.bf16.msra.mxu0 %v2134
    %3777 = vmatprep.subr.bf16.mxu0 %v2133
    %3778 = vmatpush1.bf16.msra.mxu0 %v2132
    %3779 = vmatprep.subr.bf16.mxu0 %v2131
    %3780 = vmatpush1.bf16.msra.mxu0 %v2130
    %3781 = vmatprep.subr.bf16.mxu0 %v2129
    %3782 = vmatpush1.bf16.msra.mxu0 %v2128
    %3783 = vmatprep.subr.bf16.mxu0 %v2127
    %3784 = vmatpush1.bf16.msra.mxu0 %v2126
    %3785 = vmatprep.subr.bf16.mxu0 %v2125
    %3786 = vmatpush1.bf16.msra.mxu0 %v2124
    %3787 = vmatprep.subr.bf16.mxu0 %v2123
    %3788 = vmatpush1.bf16.msra.mxu0 %v2122
    %3789 = vmatprep.subr.bf16.mxu0 %v2153
    %3790 = vmatpush2.bf16.msra.mxu0 %v2152
    %3791 = vmatprep.subr.bf16.mxu0 %v2151
    %3792 = vmatpush2.bf16.msra.mxu0 %v2150
    %3793 = vmatprep.subr.bf16.mxu0 %v2149
    %3794 = vmatpush2.bf16.msra.mxu0 %v2148
    %3795 = vmatprep.subr.bf16.mxu0 %v2147
    %3796 = vmatpush2.bf16.msra.mxu0 %v2146
    %3797 = vmatprep.subr.bf16.mxu0 %v2145
    %3798 = vmatpush2.bf16.msra.mxu0 %v2144
    %3799 = vmatprep.subr.bf16.mxu0 %v2143
    %3800 = vmatpush2.bf16.msra.mxu0 %v2142
    %3801 = vmatprep.subr.bf16.mxu0 %v2141
    %3802 = vmatpush2.bf16.msra.mxu0 %v2140
    %3803 = vmatprep.subr.bf16.mxu0 %v2139
    %3804 = vmatpush2.bf16.msra.mxu0 %v2138
    %3805 = vmatprep.mubr.bf16.mxu0 %v3363
    %3806 = vmatmul.mubr.bf16.gmra.mxu0 %v3361
    %v3807 = vpop.f32.mrf.mxu0
    %v3808 = vadd.f32 %v3767, %v3807
    %v3809 = vpop.f32.mrf.mxu0
    %v3810 = vadd.f32 %v3769, %v3809
    %v3811 = vpop.f32.mrf.mxu0
    %v3812 = vpop.f32.mrf.mxu0
    %3813 = vdwg.mxu0
    %3814 = vmatprep.subr.bf16.mxu0 %v2169
    %3815 = vmatpush1.bf16.msra.mxu0 %v2168
    %3816 = vmatprep.subr.bf16.mxu0 %v2167
    %3817 = vmatpush1.bf16.msra.mxu0 %v2166
    %3818 = vmatprep.subr.bf16.mxu0 %v2165
    %3819 = vmatpush1.bf16.msra.mxu0 %v2164
    %3820 = vmatprep.subr.bf16.mxu0 %v2163
    %3821 = vmatpush1.bf16.msra.mxu0 %v2162
    %3822 = vmatprep.subr.bf16.mxu0 %v2161
    %3823 = vmatpush1.bf16.msra.mxu0 %v2160
    %3824 = vmatprep.subr.bf16.mxu0 %v2159
    %3825 = vmatpush1.bf16.msra.mxu0 %v2158
    %3826 = vmatprep.subr.bf16.mxu0 %v2157
    %3827 = vmatpush1.bf16.msra.mxu0 %v2156
    %3828 = vmatprep.subr.bf16.mxu0 %v2155
    %3829 = vmatpush1.bf16.msra.mxu0 %v2154
    %3830 = vmatprep.subr.bf16.mxu0 %v2185
    %3831 = vmatpush2.bf16.msra.mxu0 %v2184
    %3832 = vmatprep.subr.bf16.mxu0 %v2183
    %3833 = vmatpush2.bf16.msra.mxu0 %v2182
    %3834 = vmatprep.subr.bf16.mxu0 %v2181
    %3835 = vmatpush2.bf16.msra.mxu0 %v2180
    %3836 = vmatprep.subr.bf16.mxu0 %v2179
    %3837 = vmatpush2.bf16.msra.mxu0 %v2178
    %3838 = vmatprep.subr.bf16.mxu0 %v2177
    %3839 = vmatpush2.bf16.msra.mxu0 %v2176
    %3840 = vmatprep.subr.bf16.mxu0 %v2175
    %3841 = vmatpush2.bf16.msra.mxu0 %v2174
    %3842 = vmatprep.subr.bf16.mxu0 %v2173
    %3843 = vmatpush2.bf16.msra.mxu0 %v2172
    %3844 = vmatprep.subr.bf16.mxu0 %v2171
    %3845 = vmatpush2.bf16.msra.mxu0 %v2170
    %3846 = vmatprep.mubr.bf16.mxu0 %v3360
    %3847 = vmatmul.mubr.bf16.gmra.mxu0 %v3346
    %v3848 = vpop.f32.mrf.mxu0
    %v3849 = vadd.f32 %v3808, %v3848
    %v3850 = vpop.f32.mrf.mxu0
    %v3851 = vadd.f32 %v3810, %v3850
    %v3852 = vpop.f32.mrf.mxu0
    %v3853 = vpop.f32.mrf.mxu0
    %3854 = vdwg.mxu0
    %3855 = vmatprep.subr.bf16.mxu0 %v2201
    %3856 = vmatpush1.bf16.msra.mxu0 %v2200
    %3857 = vmatprep.subr.bf16.mxu0 %v2199
    %3858 = vmatpush1.bf16.msra.mxu0 %v2198
    %3859 = vmatprep.subr.bf16.mxu0 %v2197
    %3860 = vmatpush1.bf16.msra.mxu0 %v2196
    %3861 = vmatprep.subr.bf16.mxu0 %v2195
    %3862 = vmatpush1.bf16.msra.mxu0 %v2194
    %3863 = vmatprep.subr.bf16.mxu0 %v2193
    %3864 = vmatpush1.bf16.msra.mxu0 %v2192
    %3865 = vmatprep.subr.bf16.mxu0 %v2191
    %3866 = vmatpush1.bf16.msra.mxu0 %v2190
    %3867 = vmatprep.subr.bf16.mxu0 %v2189
    %3868 = vmatpush1.bf16.msra.mxu0 %v2188
    %3869 = vmatprep.subr.bf16.mxu0 %v2187
    %3870 = vmatpush1.bf16.msra.mxu0 %v2186
    %3871 = vmatprep.subr.bf16.mxu0 %v2217
    %3872 = vmatpush2.bf16.msra.mxu0 %v2216
    %3873 = vmatprep.subr.bf16.mxu0 %v2215
    %3874 = vmatpush2.bf16.msra.mxu0 %v2214
    %3875 = vmatprep.subr.bf16.mxu0 %v2213
    %3876 = vmatpush2.bf16.msra.mxu0 %v2212
    %3877 = vmatprep.subr.bf16.mxu0 %v2211
    %3878 = vmatpush2.bf16.msra.mxu0 %v2210
    %3879 = vmatprep.subr.bf16.mxu0 %v2209
    %3880 = vmatpush2.bf16.msra.mxu0 %v2208
    %3881 = vmatprep.subr.bf16.mxu0 %v2207
    %3882 = vmatpush2.bf16.msra.mxu0 %v2206
    %3883 = vmatprep.subr.bf16.mxu0 %v2205
    %3884 = vmatpush2.bf16.msra.mxu0 %v2204
    %3885 = vmatprep.subr.bf16.mxu0 %v2203
    %3886 = vmatpush2.bf16.msra.mxu0 %v2202
    %3887 = vmatprep.mubr.bf16.mxu0 %v3364
    %3888 = vmatmul.mubr.bf16.gmra.mxu0 %v3362
    %v3889 = vpop.f32.mrf.mxu0
    %v3890 = vadd.f32 %v3849, %v3889
    %v3891 = vpop.f32.mrf.mxu0
    %v3892 = vadd.f32 %v3851, %v3891
    %v3893 = vpop.f32.mrf.mxu0
    %v3894 = vpop.f32.mrf.mxu0
    %3895 = vdwg.mxu0
    %3896 = vmatprep.subr.bf16.mxu0 %v2233
    %3897 = vmatpush1.bf16.msra.mxu0 %v2232
    %3898 = vmatprep.subr.bf16.mxu0 %v2231
    %3899 = vmatpush1.bf16.msra.mxu0 %v2230
    %3900 = vmatprep.subr.bf16.mxu0 %v2229
    %3901 = vmatpush1.bf16.msra.mxu0 %v2228
    %3902 = vmatprep.subr.bf16.mxu0 %v2227
    %3903 = vmatpush1.bf16.msra.mxu0 %v2226
    %3904 = vmatprep.subr.bf16.mxu0 %v2225
    %3905 = vmatpush1.bf16.msra.mxu0 %v2224
    %3906 = vmatprep.subr.bf16.mxu0 %v2223
    %3907 = vmatpush1.bf16.msra.mxu0 %v2222
    %3908 = vmatprep.subr.bf16.mxu0 %v2221
    %3909 = vmatpush1.bf16.msra.mxu0 %v2220
    %3910 = vmatprep.subr.bf16.mxu0 %v2219
    %3911 = vmatpush1.bf16.msra.mxu0 %v2218
    %3912 = vmatprep.subr.bf16.mxu0 0
    %3913 = vmatpush2.bf16.msra.mxu0 0
    %3914 = vmatprep.subr.bf16.mxu0 0
    %3915 = vmatpush2.bf16.msra.mxu0 0
    %3916 = vmatprep.subr.bf16.mxu0 0
    %3917 = vmatpush2.bf16.msra.mxu0 0
    %3918 = vmatprep.subr.bf16.mxu0 0
    %3919 = vmatpush2.bf16.msra.mxu0 0
    %3920 = vmatprep.subr.bf16.mxu0 0
    %3921 = vmatpush2.bf16.msra.mxu0 0
    %3922 = vmatprep.subr.bf16.mxu0 0
    %3923 = vmatpush2.bf16.msra.mxu0 0
    %3924 = vmatprep.subr.bf16.mxu0 0
    %3925 = vmatpush2.bf16.msra.mxu0 0
    %3926 = vmatprep.subr.bf16.mxu0 0
    %3927 = vmatpush2.bf16.msra.mxu0 0
    %3928 = vmatprep.mubr.bf16.mxu0 0
    %3929 = vmatmul.mubr.bf16.gmra.mxu0 %v3378
    %v3930 = vpop.f32.mrf.mxu0
    %v3931 = vadd.f32 %v3890, %v3930
    %v3932 = vpop.f32.mrf.mxu0
    %v3933 = vadd.f32 %v3892, %v3932
    %v3934 = vpop.f32.mrf.mxu0
    %v3935 = vpop.f32.mrf.mxu0
    %3936 = vdwg.mxu0
    %v3937 = vmul.f32 %v3931, 0.1997
    %v3938 = vmul.f32 %v3933, 0.1997
    %v3939 = vadd.f32 %v3937, 0.5002
    %v3940 = vadd.f32 %v3938, 0.5002
    %v3941 = vmul.f32 %v3931, %v3939
    %v3942 = vmul.f32 %v3933, %v3940
    %v3943 = vadd.f32 %v3941, 0.1992
    %v3944 = vadd.f32 %v3942, 0.1992
    %v3945 = vpack.c.bf16 %v3943, %v3943
    %v3946 = vpack.c.bf16 %v3944, %v3944
    %s3947 = scalar_lea.vmem %s3, 128
    %v3948 = vld [vmem:[%s3947] sm:$0xf]
    %v3949 = vld [vmem:[%s3947 + $0x4] sm:$0xf]
    %v3950 = vld [vmem:[%s3947 + $0x8] sm:$0xf]
    %v3951 = vld [vmem:[%s3947 + $0xc] sm:$0xf]
    %v3952 = vld [vmem:[%s3947 + $0x10] sm:$0xf]
    %v3953 = vld [vmem:[%s3947 + $0x14] sm:$0xf]
    %v3954 = vld [vmem:[%s3947 + $0x18] sm:$0xf]
    %v3955 = vld [vmem:[%s3947 + $0x1c] sm:$0xf]
    %v3956 = vld [vmem:[%s3947 + $0x20] sm:$0xf]
    %v3957 = vld [vmem:[%s3947 + $0x24] sm:$0xf]
    %v3958 = vld [vmem:[%s3947 + $0x28] sm:$0xf]
    %v3959 = vld [vmem:[%s3947 + $0x2c] sm:$0xf]
    %v3960 = vld [vmem:[%s3947 + $0x30] sm:$0xf]
    %v3961 = vld [vmem:[%s3947 + $0x34] sm:$0xf]
    %v3962 = vld [vmem:[%s3947 + $0x38] sm:$0xf]
    %v3963 = vld [vmem:[%s3947 + $0x3c] sm:$0xf]
    %v3964 = vld [vmem:[%s3947 + $0x40] sm:$0xf]
    %v3965 = vld [vmem:[%s3947 + $0x44] sm:$0xf]
    %v3966 = vld [vmem:[%s3947 + $0x48] sm:$0xf]
    %v3967 = vld [vmem:[%s3947 + $0x4c] sm:$0xf]
    %v3968 = vld [vmem:[%s3947 + $0x50] sm:$0xf]
    %v3969 = vld [vmem:[%s3947 + $0x54] sm:$0xf]
    %v3970 = vld [vmem:[%s3947 + $0x58] sm:$0xf]
    %v3971 = vld [vmem:[%s3947 + $0x5c] sm:$0xf]
    %v3972 = vld [vmem:[%s3947 + $0x60] sm:$0xf]
    %v3973 = vld [vmem:[%s3947 + $0x64] sm:$0xf]
    %v3974 = vld [vmem:[%s3947 + $0x68] sm:$0xf]
    %v3975 = vld [vmem:[%s3947 + $0x6c] sm:$0xf]
    %v3976 = vld [vmem:[%s3947 + $0x70] sm:$0xf]
    %v3977 = vld [vmem:[%s3947 + $0x74] sm:$0xf]
    %v3978 = vld [vmem:[%s3947 + $0x78] sm:$0xf]
    %v3979 = vld [vmem:[%s3947 + $0x7c] sm:$0xf]
    %v4012 = vunpack.c.l.b16 %v3948
    %v4013 = vunpack.c.l.b16 %v3949
    %v4014 = vunpack.c.l.b16 %v3950
    %v4015 = vunpack.c.l.b16 %v3951
    %v4016 = vunpack.c.l.b16 %v3952
    %v4017 = vunpack.c.l.b16 %v3953
    %v4018 = vunpack.c.l.b16 %v3954
    %v4019 = vunpack.c.l.b16 %v3955
    %v4020 = vunpack.c.l.b16 %v3956
    %v4021 = vunpack.c.l.b16 %v3957
    %v4022 = vunpack.c.l.b16 %v3958
    %v4023 = vunpack.c.l.b16 %v3959
    %v4024 = vunpack.c.l.b16 %v3960
    %v4025 = vunpack.c.l.b16 %v3961
    %v4026 = vunpack.c.l.b16 %v3962
    %v4027 = vunpack.c.l.b16 %v3963
    %v4028 = vunpack.c.l.b16 %v3964
    %v4029 = vunpack.c.l.b16 %v3965
    %v4030 = vunpack.c.l.b16 %v3966
    %v4031 = vunpack.c.l.b16 %v3967
    %v4032 = vunpack.c.l.b16 %v3968
    %v4033 = vunpack.c.l.b16 %v3969
    %v4034 = vunpack.c.l.b16 %v3970
    %v4035 = vunpack.c.l.b16 %v3971
    %v4036 = vunpack.c.l.b16 %v3972
    %v4037 = vunpack.c.l.b16 %v3973
    %v4038 = vunpack.c.l.b16 %v3974
    %v4039 = vunpack.c.l.b16 %v3975
    %v4040 = vunpack.c.l.b16 %v3976
    %v4041 = vunpack.c.l.b16 %v3977
    %v4042 = vunpack.c.l.b16 %v3978
    %v4043 = vunpack.c.l.b16 %v3979
    %v4044 = vpack.c.b16 %v4013, %v4012
    %v4045 = vpack.c.b16 %v4015, %v4014
    %v4046 = vpack.c.b16 %v4017, %v4016
    %v4047 = vpack.c.b16 %v4019, %v4018
    %v4048 = vpack.c.b16 %v4021, %v4020
    %v4049 = vpack.c.b16 %v4023, %v4022
    %v4050 = vpack.c.b16 %v4025, %v4024
    %v4051 = vpack.c.b16 %v4027, %v4026
    %v4052 = vpack.c.b16 %v4029, %v4028
    %v4053 = vpack.c.b16 %v4031, %v4030
    %v4054 = vpack.c.b16 %v4033, %v4032
    %v4055 = vpack.c.b16 %v4035, %v4034
    %v4056 = vpack.c.b16 %v4037, %v4036
    %v4057 = vpack.c.b16 %v4039, %v4038
    %v4058 = vpack.c.b16 %v4041, %v4040
    %v4059 = vpack.c.b16 %v4043, %v4042
    %4076 = vmatprep.subr.bf16.mxu0 0
    %4077 = vmatpush1.bf16.msra.mxu0 %v4051
    %4078 = vmatprep.subr.bf16.mxu0 0
    %4079 = vmatpush1.bf16.msra.mxu0 %v4050
    %4080 = vmatprep.subr.bf16.mxu0 0
    %4081 = vmatpush1.bf16.msra.mxu0 %v4049
    %4082 = vmatprep.subr.bf16.mxu0 0
    %4083 = vmatpush1.bf16.msra.mxu0 %v4048
    %4084 = vmatprep.subr.bf16.mxu0 0
    %4085 = vmatpush1.bf16.msra.mxu0 %v4047
    %4086 = vmatprep.subr.bf16.mxu0 0
    %4087 = vmatpush1.bf16.msra.mxu0 %v4046
    %4088 = vmatprep.subr.bf16.mxu0 0
    %4089 = vmatpush1.bf16.msra.mxu0 %v4045
    %4090 = vmatprep.subr.bf16.mxu0 0
    %4091 = vmatpush1.bf16.msra.mxu0 %v4044
    %4092 = vmatprep.subr.bf16.mxu0 0
    %4093 = vmatpush2.bf16.msra.mxu0 %v4059
    %4094 = vmatprep.subr.bf16.mxu0 0
    %4095 = vmatpush2.bf16.msra.mxu0 %v4058
    %4096 = vmatprep.subr.bf16.mxu0 0
    %4097 = vmatpush2.bf16.msra.mxu0 %v4057
    %4098 = vmatprep.subr.bf16.mxu0 0
    %4099 = vmatpush2.bf16.msra.mxu0 %v4056
    %4100 = vmatprep.subr.bf16.mxu0 0
    %4101 = vmatpush2.bf16.msra.mxu0 %v4055
    %4102 = vmatprep.subr.bf16.mxu0 0
    %4103 = vmatpush2.bf16.msra.mxu0 %v4054
    %4104 = vmatprep.subr.bf16.mxu0 0
    %4105 = vmatpush2.bf16.msra.mxu0 %v4053
    %4106 = vmatprep.subr.bf16.mxu0 0
    %4107 = vmatpush2.bf16.msra.mxu0 %v4052
    %4108 = vmatprep.mubr.bf16.mxu0 %v3946
    %4109 = vmatmul.mubr.bf16.gmra.mxu0 %v3945
    %v4110 = vpop.f32.mrf.mxu0
    %v4111 = vadd.f32 0.0, %v4110
    %v4112 = vpop.f32.mrf.mxu0
    %v4113 = vpop.f32.mrf.mxu0
    %v4114 = vpop.f32.mrf.mxu0
    %4115 = vdwg.mxu0
    %v4148 = vunpack.c.l.b16 %v3177
    %v4149 = vunpack.c.l.b16 %v3178
    %v4150 = vunpack.c.l.b16 %v3179
    %v4151 = vunpack.c.l.b16 %v3180
    %v4152 = vunpack.c.l.b16 %v3181
    %v4153 = vunpack.c.l.b16 %v3182
    %v4154 = vunpack.c.l.b16 %v3183
    %v4155 = vunpack.c.l.b16 %v3184
    %v4156 = vunpack.c.l.b16 %v3185
    %v4157 = vunpack.c.l.b16 %v3186
    %v4158 = vunpack.c.l.b16 %v3187
    %v4159 = vunpack.c.l.b16 %v3188
    %v4160 = vunpack.c.l.b16 %v3189
    %v4161 = vunpack.c.l.b16 %v3190
    %v4162 = vunpack.c.l.b16 %v3191
    %v4163 = vunpack.c.l.b16 %v3192
    %v4164 = vunpack.c.l.b16 %v3193
    %v4165 = vunpack.c.l.b16 %v3194
    %v4166 = vunpack.c.l.b16 %v3195
    %v4167 = vunpack.c.l.b16 %v3196
    %v4168 = vunpack.c.l.b16 %v3197
    %v4169 = vunpack.c.l.b16 %v3198
    %v4170 = vunpack.c.l.b16 %v3199
    %v4171 = vunpack.c.l.b16 %v3200
    %v4172 = vunpack.c.l.b16 %v3201
    %v4173 = vunpack.c.l.b16 %v3202
    %v4174 = vunpack.c.l.b16 %v3203
    %v4175 = vunpack.c.l.b16 %v3204
    %v4176 = vunpack.c.l.b16 %v3205
    %v4177 = vunpack.c.l.b16 %v3206
    %v4178 = vunpack.c.l.b16 %v3207
    %v4179 = vunpack.c.l.b16 %v3208
    %v4180 = vpack.c.b16 %v4149, %v4148
    %v4181 = vpack.c.b16 %v4151, %v4150
    %v4182 = vpack.c.b16 %v4153, %v4152
    %v4183 = vpack.c.b16 %v4155, %v4154
    %v4184 = vpack.c.b16 %v4157, %v4156
    %v4185 = vpack.c.b16 %v4159, %v4158
    %v4186 = vpack.c.b16 %v4161, %v4160
    %v4187 = vpack.c.b16 %v4163, %v4162
    %v4188 = vpack.c.b16 %v4165, %v4164
    %v4189 = vpack.c.b16 %v4167, %v4166
    %v4190 = vpack.c.b16 %v4169, %v4168
    %v4191 = vpack.c.b16 %v4171, %v4170
    %v4192 = vpack.c.b16 %v4173, %v4172
    %v4193 = vpack.c.b16 %v4175, %v4174
    %v4194 = vpack.c.b16 %v4177, %v4176
    %v4195 = vpack.c.b16 %v4179, %v4178
    %4212 = vmatprep.subr.bf16.mxu0 0
    %4213 = vmatpush1.bf16.msra.mxu0 %v4187
    %4214 = vmatprep.subr.bf16.mxu0 0
    %4215 = vmatpush1.bf16.msra.mxu0 %v4186
    %4216 = vmatprep.subr.bf16.mxu0 0
    %4217 = vmatpush1.bf16.msra.mxu0 %v4185
    %4218 = vmatprep.subr.bf16.mxu0 0
    %4219 = vmatpush1.bf16.msra.mxu0 %v4184
    %4220 = vmatprep.subr.bf16.mxu0 0
    %4221 = vmatpush1.bf16.msra.mxu0 %v4183
    %4222 = vmatprep.subr.bf16.mxu0 0
    %4223 = vmatpush1.bf16.msra.mxu0 %v4182
    %4224 = vmatprep.subr.bf16.mxu0 0
    %4225 = vmatpush1.bf16.msra.mxu0 %v4181
    %4226 = vmatprep.subr.bf16.mxu0 0
    %4227 = vmatpush1.bf16.msra.mxu0 %v4180
    %4228 = vmatprep.subr.bf16.mxu0 0
    %4229 = vmatpush2.bf16.msra.mxu0 %v4195
    %4230 = vmatprep.subr.bf16.mxu0 0
    %4231 = vmatpush2.bf16.msra.mxu0 %v4194
    %4232 = vmatprep.subr.bf16.mxu0 0
    %4233 = vmatpush2.bf16.msra.mxu0 %v4193
    %4234 = vmatprep.subr.bf16.mxu0 0
    %4235 = vmatpush2.bf16.msra.mxu0 %v4192
    %4236 = vmatprep.subr.bf16.mxu0 0
    %4237 = vmatpush2.bf16.msra.mxu0 %v4191
    %4238 = vmatprep.subr.bf16.mxu0 0
    %4239 = vmatpush2.bf16.msra.mxu0 %v4190
    %4240 = vmatprep.subr.bf16.mxu0 0
    %4241 = vmatpush2.bf16.msra.mxu0 %v4189
    %4242 = vmatprep.subr.bf16.mxu0 0
    %4243 = vmatpush2.bf16.msra.mxu0 %v4188
    %4244 = vmatprep.mubr.bf16.mxu0 %v3176
    %4245 = vmatmul.mubr.bf16.gmra.mxu0 %v3175
    %v4246 = vpop.f32.mrf.mxu0
    %v4247 = vadd.f32 %v4111, %v4246
    %v4248 = vpop.f32.mrf.mxu0
    %v4249 = vpop.f32.mrf.mxu0
    %v4250 = vpop.f32.mrf.mxu0
    %4251 = vdwg.mxu0
    %s4252 = scalar_lea.vmem %s0, 50
    %v4253 = vld [vmem:[%s4252] sm:$0xff]
    %v4254 = vld [vmem:[%s4252 + $0x8] sm:$0xff]
    %v4255 = vld [vmem:[%s4252 + $0x10] sm:$0xff]
    %v4256 = vld [vmem:[%s4252 + $0x18] sm:$0x1]
    %v4261 = vcombine.high %v4253, %v4253
    %v4263 = vunpack.c.l.s4 1966171168
    %v4264 = vunpack.c.0.s8 %v4263
    %v4265 = vlaneseq
    %v4266 = vshrl.u32 %v4265, 7
    %v4267 = vsub.s32 %v4264, %v4266
    %v4268 = vrot.slane %v4253, %v4267
    %v4270 = vunpack.c.l.s4 1966171168
    %v4271 = vunpack.c.0.s8 %v4270
    %v4272 = vlaneseq
    %v4273 = vshrl.u32 %v4272, 7
    %v4274 = vsub.s32 %v4271, %v4273
    %v4275 = vrot.slane %v4261, %v4274
    %v4276 = vcombine.high %v4268, %v4268
    %v4277 = vcombine.high %v4275, %v4275
    %v4279 = vunpack.c.l.s4 1966171168
    %v4280 = vunpack.c.0.s8 %v4279
    %v4281 = vlaneseq
    %v4282 = vshrl.u32 %v4281, 7
    %v4283 = vsub.s32 %v4280, %v4282
    %v4284 = vrot.slane %v4268, %v4283
    %v4286 = vunpack.c.l.s4 1966171168
    %v4287 = vunpack.c.0.s8 %v4286
    %v4288 = vlaneseq
    %v4289 = vshrl.u32 %v4288, 7
    %v4290 = vsub.s32 %v4287, %v4289
    %v4291 = vrot.slane %v4275, %v4290
    %v4293 = vunpack.c.l.s4 1966171168
    %v4294 = vunpack.c.0.s8 %v4293
    %v4295 = vlaneseq
    %v4296 = vshrl.u32 %v4295, 7
    %v4297 = vsub.s32 %v4294, %v4296
    %v4298 = vrot.slane %v4276, %v4297
    %v4300 = vunpack.c.l.s4 1966171168
    %v4301 = vunpack.c.0.s8 %v4300
    %v4302 = vlaneseq
    %v4303 = vshrl.u32 %v4302, 7
    %v4304 = vsub.s32 %v4301, %v4303
    %v4305 = vrot.slane %v4277, %v4304
    %v4306 = vcombine.high %v4284, %v4284
    %v4307 = vcombine.high %v4291, %v4291
    %v4308 = vcombine.high %v4298, %v4298
    %v4309 = vcombine.high %v4305, %v4305
    %v4310 = vcombine.high %v4254, %v4254
    %v4312 = vunpack.c.l.s4 1966171168
    %v4313 = vunpack.c.0.s8 %v4312
    %v4314 = vlaneseq
    %v4315 = vshrl.u32 %v4314, 7
    %v4316 = vsub.s32 %v4313, %v4315
    %v4317 = vrot.slane %v4254, %v4316
    %v4319 = vunpack.c.l.s4 1966171168
    %v4320 = vunpack.c.0.s8 %v4319
    %v4321 = vlaneseq
    %v4322 = vshrl.u32 %v4321, 7
    %v4323 = vsub.s32 %v4320, %v4322
    %v4324 = vrot.slane %v4310, %v4323
    %v4325 = vcombine.high %v4317, %v4317
    %v4326 = vcombine.high %v4324, %v4324
    %v4328 = vunpack.c.l.s4 1966171168
    %v4329 = vunpack.c.0.s8 %v4328
    %v4330 = vlaneseq
    %v4331 = vshrl.u32 %v4330, 7
    %v4332 = vsub.s32 %v4329, %v4331
    %v4333 = vrot.slane %v4317, %v4332
    %v4335 = vunpack.c.l.s4 1966171168
    %v4336 = vunpack.c.0.s8 %v4335
    %v4337 = vlaneseq
    %v4338 = vshrl.u32 %v4337, 7
    %v4339 = vsub.s32 %v4336, %v4338
    %v4340 = vrot.slane %v4324, %v4339
    %v4342 = vunpack.c.l.s4 1966171168
    %v4343 = vunpack.c.0.s8 %v4342
    %v4344 = vlaneseq
    %v4345 = vshrl.u32 %v4344, 7
    %v4346 = vsub.s32 %v4343, %v4345
    %v4347 = vrot.slane %v4325, %v4346
    %v4349 = vunpack.c.l.s4 1966171168
    %v4350 = vunpack.c.0.s8 %v4349
    %v4351 = vlaneseq
    %v4352 = vshrl.u32 %v4351, 7
    %v4353 = vsub.s32 %v4350, %v4352
    %v4354 = vrot.slane %v4326, %v4353
    %v4355 = vcombine.high %v4333, %v4333
    %v4356 = vcombine.high %v4340, %v4340
    %v4357 = vcombine.high %v4347, %v4347
    %v4358 = vcombine.high %v4354, %v4354
    %v4359 = vcombine.high %v4255, %v4255
    %v4361 = vunpack.c.l.s4 1966171168
    %v4362 = vunpack.c.0.s8 %v4361
    %v4363 = vlaneseq
    %v4364 = vshrl.u32 %v4363, 7
    %v4365 = vsub.s32 %v4362, %v4364
    %v4366 = vrot.slane %v4255, %v4365
    %v4368 = vunpack.c.l.s4 1966171168
    %v4369 = vunpack.c.0.s8 %v4368
    %v4370 = vlaneseq
    %v4371 = vshrl.u32 %v4370, 7
    %v4372 = vsub.s32 %v4369, %v4371
    %v4373 = vrot.slane %v4359, %v4372
    %v4374 = vcombine.high %v4366, %v4366
    %v4375 = vcombine.high %v4373, %v4373
    %v4377 = vunpack.c.l.s4 1966171168
    %v4378 = vunpack.c.0.s8 %v4377
    %v4379 = vlaneseq
    %v4380 = vshrl.u32 %v4379, 7
    %v4381 = vsub.s32 %v4378, %v4380
    %v4382 = vrot.slane %v4366, %v4381
    %v4384 = vunpack.c.l.s4 1966171168
    %v4385 = vunpack.c.0.s8 %v4384
    %v4386 = vlaneseq
    %v4387 = vshrl.u32 %v4386, 7
    %v4388 = vsub.s32 %v4385, %v4387
    %v4389 = vrot.slane %v4373, %v4388
    %v4391 = vunpack.c.l.s4 1966171168
    %v4392 = vunpack.c.0.s8 %v4391
    %v4393 = vlaneseq
    %v4394 = vshrl.u32 %v4393, 7
    %v4395 = vsub.s32 %v4392, %v4394
    %v4396 = vrot.slane %v4374, %v4395
    %v4398 = vunpack.c.l.s4 1966171168
    %v4399 = vunpack.c.0.s8 %v4398
    %v4400 = vlaneseq
    %v4401 = vshrl.u32 %v4400, 7
    %v4402 = vsub.s32 %v4399, %v4401
    %v4403 = vrot.slane %v4375, %v4402
    %v4404 = vcombine.high %v4382, %v4382
    %v4405 = vcombine.high %v4389, %v4389
    %v4406 = vcombine.high %v4396, %v4396
    %v4407 = vcombine.high %v4403, %v4403
    %v4409 = vunpack.c.l.s4 1966171168
    %v4410 = vunpack.c.0.s8 %v4409
    %v4411 = vlaneseq
    %v4412 = vshrl.u32 %v4411, 7
    %v4413 = vsub.s32 %v4410, %v4412
    %v4414 = vrot.slane %v4256, %v4413
    %v4416 = vunpack.c.l.s4 1966171168
    %v4417 = vunpack.c.0.s8 %v4416
    %v4418 = vlaneseq
    %v4419 = vshrl.u32 %v4418, 7
    %v4420 = vsub.s32 %v4417, %v4419
    %v4421 = vrot.slane %v4414, %v4420
    %4447 = vmatprep.subr.bf16.mxu0 %v1849
    %4448 = vmatpush1.bf16.msra.mxu0 %v1848
    %4449 = vmatprep.subr.bf16.mxu0 %v1847
    %4450 = vmatpush1.bf16.msra.mxu0 %v1846
    %4451 = vmatprep.subr.bf16.mxu0 %v1845
    %4452 = vmatpush1.bf16.msra.mxu0 %v1844
    %4453 = vmatprep.subr.bf16.mxu0 %v1843
    %4454 = vmatpush1.bf16.msra.mxu0 %v1842
    %4455 = vmatprep.subr.bf16.mxu0 %v1841
    %4456 = vmatpush1.bf16.msra.mxu0 %v1840
    %4457 = vmatprep.subr.bf16.mxu0 %v1839
    %4458 = vmatpush1.bf16.msra.mxu0 %v1838
    %4459 = vmatprep.subr.bf16.mxu0 %v1837
    %4460 = vmatpush1.bf16.msra.mxu0 %v1836
    %4461 = vmatprep.subr.bf16.mxu0 %v1835
    %4462 = vmatpush1.bf16.msra.mxu0 %v1834
    %4463 = vmatprep.subr.bf16.mxu0 %v1865
    %4464 = vmatpush2.bf16.msra.mxu0 %v1864
    %4465 = vmatprep.subr.bf16.mxu0 %v1863
    %4466 = vmatpush2.bf16.msra.mxu0 %v1862
    %4467 = vmatprep.subr.bf16.mxu0 %v1861
    %4468 = vmatpush2.bf16.msra.mxu0 %v1860
    %4469 = vmatprep.subr.bf16.mxu0 %v1859
    %4470 = vmatpush2.bf16.msra.mxu0 %v1858
    %4471 = vmatprep.subr.bf16.mxu0 %v1857
    %4472 = vmatpush2.bf16.msra.mxu0 %v1856
    %4473 = vmatprep.subr.bf16.mxu0 %v1855
    %4474 = vmatpush2.bf16.msra.mxu0 %v1854
    %4475 = vmatprep.subr.bf16.mxu0 %v1853
    %4476 = vmatpush2.bf16.msra.mxu0 %v1852
    %4477 = vmatprep.subr.bf16.mxu0 %v1851
    %4478 = vmatpush2.bf16.msra.mxu0 %v1850
    %4479 = vmatprep.mubr.bf16.mxu0 %v4298
    %4480 = vmatmul.mubr.bf16.gmra.mxu0 %v4284
    %v4481 = vpop.f32.mrf.mxu0
    %v4482 = vadd.f32 %v437, %v4481
    %v4483 = vpop.f32.mrf.mxu0
    %v4484 = vadd.f32 %v441, %v4483
    %v4485 = vpop.f32.mrf.mxu0
    %v4486 = vpop.f32.mrf.mxu0
    %4487 = vdwg.mxu0
    %4488 = vmatprep.subr.bf16.mxu0 %v1881
    %4489 = vmatpush1.bf16.msra.mxu0 %v1880
    %4490 = vmatprep.subr.bf16.mxu0 %v1879
    %4491 = vmatpush1.bf16.msra.mxu0 %v1878
    %4492 = vmatprep.subr.bf16.mxu0 %v1877
    %4493 = vmatpush1.bf16.msra.mxu0 %v1876
    %4494 = vmatprep.subr.bf16.mxu0 %v1875
    %4495 = vmatpush1.bf16.msra.mxu0 %v1874
    %4496 = vmatprep.subr.bf16.mxu0 %v1873
    %4497 = vmatpush1.bf16.msra.mxu0 %v1872
    %4498 = vmatprep.subr.bf16.mxu0 %v1871
    %4499 = vmatpush1.bf16.msra.mxu0 %v1870
    %4500 = vmatprep.subr.bf16.mxu0 %v1869
    %4501 = vmatpush1.bf16.msra.mxu0 %v1868
    %4502 = vmatprep.subr.bf16.mxu0 %v1867
    %4503 = vmatpush1.bf16.msra.mxu0 %v1866
    %4504 = vmatprep.subr.bf16.mxu0 %v1897
    %4505 = vmatpush2.bf16.msra.mxu0 %v1896
    %4506 = vmatprep.subr.bf16.mxu0 %v1895
    %4507 = vmatpush2.bf16.msra.mxu0 %v1894
    %4508 = vmatprep.subr.bf16.mxu0 %v1893
    %4509 = vmatpush2.bf16.msra.mxu0 %v1892
    %4510 = vmatprep.subr.bf16.mxu0 %v1891
    %4511 = vmatpush2.bf16.msra.mxu0 %v1890
    %4512 = vmatprep.subr.bf16.mxu0 %v1889
    %4513 = vmatpush2.bf16.msra.mxu0 %v1888
    %4514 = vmatprep.subr.bf16.mxu0 %v1887
    %4515 = vmatpush2.bf16.msra.mxu0 %v1886
    %4516 = vmatprep.subr.bf16.mxu0 %v1885
    %4517 = vmatpush2.bf16.msra.mxu0 %v1884
    %4518 = vmatprep.subr.bf16.mxu0 %v1883
    %4519 = vmatpush2.bf16.msra.mxu0 %v1882
    %4520 = vmatprep.mubr.bf16.mxu0 %v4308
    %4521 = vmatmul.mubr.bf16.gmra.mxu0 %v4306
    %v4522 = vpop.f32.mrf.mxu0
    %v4523 = vadd.f32 %v4482, %v4522
    %v4524 = vpop.f32.mrf.mxu0
    %v4525 = vadd.f32 %v4484, %v4524
    %v4526 = vpop.f32.mrf.mxu0
    %v4527 = vpop.f32.mrf.mxu0
    %4528 = vdwg.mxu0
    %4529 = vmatprep.subr.bf16.mxu0 %v1913
    %4530 = vmatpush1.bf16.msra.mxu0 %v1912
    %4531 = vmatprep.subr.bf16.mxu0 %v1911
    %4532 = vmatpush1.bf16.msra.mxu0 %v1910
    %4533 = vmatprep.subr.bf16.mxu0 %v1909
    %4534 = vmatpush1.bf16.msra.mxu0 %v1908
    %4535 = vmatprep.subr.bf16.mxu0 %v1907
    %4536 = vmatpush1.bf16.msra.mxu0 %v1906
    %4537 = vmatprep.subr.bf16.mxu0 %v1905
    %4538 = vmatpush1.bf16.msra.mxu0 %v1904
    %4539 = vmatprep.subr.bf16.mxu0 %v1903
    %4540 = vmatpush1.bf16.msra.mxu0 %v1902
    %4541 = vmatprep.subr.bf16.mxu0 %v1901
    %4542 = vmatpush1.bf16.msra.mxu0 %v1900
    %4543 = vmatprep.subr.bf16.mxu0 %v1899
    %4544 = vmatpush1.bf16.msra.mxu0 %v1898
    %4545 = vmatprep.subr.bf16.mxu0 %v1929
    %4546 = vmatpush2.bf16.msra.mxu0 %v1928
    %4547 = vmatprep.subr.bf16.mxu0 %v1927
    %4548 = vmatpush2.bf16.msra.mxu0 %v1926
    %4549 = vmatprep.subr.bf16.mxu0 %v1925
    %4550 = vmatpush2.bf16.msra.mxu0 %v1924
    %4551 = vmatprep.subr.bf16.mxu0 %v1923
    %4552 = vmatpush2.bf16.msra.mxu0 %v1922
    %4553 = vmatprep.subr.bf16.mxu0 %v1921
    %4554 = vmatpush2.bf16.msra.mxu0 %v1920
    %4555 = vmatprep.subr.bf16.mxu0 %v1919
    %4556 = vmatpush2.bf16.msra.mxu0 %v1918
    %4557 = vmatprep.subr.bf16.mxu0 %v1917
    %4558 = vmatpush2.bf16.msra.mxu0 %v1916
    %4559 = vmatprep.subr.bf16.mxu0 %v1915
    %4560 = vmatpush2.bf16.msra.mxu0 %v1914
    %4561 = vmatprep.mubr.bf16.mxu0 %v4305
    %4562 = vmatmul.mubr.bf16.gmra.mxu0 %v4291
    %v4563 = vpop.f32.mrf.mxu0
    %v4564 = vadd.f32 %v4523, %v4563
    %v4565 = vpop.f32.mrf.mxu0
    %v4566 = vadd.f32 %v4525, %v4565
    %v4567 = vpop.f32.mrf.mxu0
    %v4568 = vpop.f32.mrf.mxu0
    %4569 = vdwg.mxu0
    %4570 = vmatprep.subr.bf16.mxu0 %v1945
    %4571 = vmatpush1.bf16.msra.mxu0 %v1944
    %4572 = vmatprep.subr.bf16.mxu0 %v1943
    %4573 = vmatpush1.bf16.msra.mxu0 %v1942
    %4574 = vmatprep.subr.bf16.mxu0 %v1941
    %4575 = vmatpush1.bf16.msra.mxu0 %v1940
    %4576 = vmatprep.subr.bf16.mxu0 %v1939
    %4577 = vmatpush1.bf16.msra.mxu0 %v1938
    %4578 = vmatprep.subr.bf16.mxu0 %v1937
    %4579 = vmatpush1.bf16.msra.mxu0 %v1936
    %4580 = vmatprep.subr.bf16.mxu0 %v1935
    %4581 = vmatpush1.bf16.msra.mxu0 %v1934
    %4582 = vmatprep.subr.bf16.mxu0 %v1933
    %4583 = vmatpush1.bf16.msra.mxu0 %v1932
    %4584 = vmatprep.subr.bf16.mxu0 %v1931
    %4585 = vmatpush1.bf16.msra.mxu0 %v1930
    %4586 = vmatprep.subr.bf16.mxu0 %v1961
    %4587 = vmatpush2.bf16.msra.mxu0 %v1960
    %4588 = vmatprep.subr.bf16.mxu0 %v1959
    %4589 = vmatpush2.bf16.msra.mxu0 %v1958
    %4590 = vmatprep.subr.bf16.mxu0 %v1957
    %4591 = vmatpush2.bf16.msra.mxu0 %v1956
    %4592 = vmatprep.subr.bf16.mxu0 %v1955
    %4593 = vmatpush2.bf16.msra.mxu0 %v1954
    %4594 = vmatprep.subr.bf16.mxu0 %v1953
    %4595 = vmatpush2.bf16.msra.mxu0 %v1952
    %4596 = vmatprep.subr.bf16.mxu0 %v1951
    %4597 = vmatpush2.bf16.msra.mxu0 %v1950
    %4598 = vmatprep.subr.bf16.mxu0 %v1949
    %4599 = vmatpush2.bf16.msra.mxu0 %v1948
    %4600 = vmatprep.subr.bf16.mxu0 %v1947
    %4601 = vmatpush2.bf16.msra.mxu0 %v1946
    %4602 = vmatprep.mubr.bf16.mxu0 %v4309
    %4603 = vmatmul.mubr.bf16.gmra.mxu0 %v4307
    %v4604 = vpop.f32.mrf.mxu0
    %v4605 = vadd.f32 %v4564, %v4604
    %v4606 = vpop.f32.mrf.mxu0
    %v4607 = vadd.f32 %v4566, %v4606
    %v4608 = vpop.f32.mrf.mxu0
    %v4609 = vpop.f32.mrf.mxu0
    %4610 = vdwg.mxu0
    %4611 = vmatprep.subr.bf16.mxu0 %v1977
    %4612 = vmatpush1.bf16.msra.mxu0 %v1976
    %4613 = vmatprep.subr.bf16.mxu0 %v1975
    %4614 = vmatpush1.bf16.msra.mxu0 %v1974
    %4615 = vmatprep.subr.bf16.mxu0 %v1973
    %4616 = vmatpush1.bf16.msra.mxu0 %v1972
    %4617 = vmatprep.subr.bf16.mxu0 %v1971
    %4618 = vmatpush1.bf16.msra.mxu0 %v1970
    %4619 = vmatprep.subr.bf16.mxu0 %v1969
    %4620 = vmatpush1.bf16.msra.mxu0 %v1968
    %4621 = vmatprep.subr.bf16.mxu0 %v1967
    %4622 = vmatpush1.bf16.msra.mxu0 %v1966
    %4623 = vmatprep.subr.bf16.mxu0 %v1965
    %4624 = vmatpush1.bf16.msra.mxu0 %v1964
    %4625 = vmatprep.subr.bf16.mxu0 %v1963
    %4626 = vmatpush1.bf16.msra.mxu0 %v1962
    %4627 = vmatprep.subr.bf16.mxu0 %v1993
    %4628 = vmatpush2.bf16.msra.mxu0 %v1992
    %4629 = vmatprep.subr.bf16.mxu0 %v1991
    %4630 = vmatpush2.bf16.msra.mxu0 %v1990
    %4631 = vmatprep.subr.bf16.mxu0 %v1989
    %4632 = vmatpush2.bf16.msra.mxu0 %v1988
    %4633 = vmatprep.subr.bf16.mxu0 %v1987
    %4634 = vmatpush2.bf16.msra.mxu0 %v1986
    %4635 = vmatprep.subr.bf16.mxu0 %v1985
    %4636 = vmatpush2.bf16.msra.mxu0 %v1984
    %4637 = vmatprep.subr.bf16.mxu0 %v1983
    %4638 = vmatpush2.bf16.msra.mxu0 %v1982
    %4639 = vmatprep.subr.bf16.mxu0 %v1981
    %4640 = vmatpush2.bf16.msra.mxu0 %v1980
    %4641 = vmatprep.subr.bf16.mxu0 %v1979
    %4642 = vmatpush2.bf16.msra.mxu0 %v1978
    %4643 = vmatprep.mubr.bf16.mxu0 %v4347
    %4644 = vmatmul.mubr.bf16.gmra.mxu0 %v4333
    %v4645 = vpop.f32.mrf.mxu0
    %v4646 = vadd.f32 %v4605, %v4645
    %v4647 = vpop.f32.mrf.mxu0
    %v4648 = vadd.f32 %v4607, %v4647
    %v4649 = vpop.f32.mrf.mxu0
    %v4650 = vpop.f32.mrf.mxu0
    %4651 = vdwg.mxu0
    %4652 = vmatprep.subr.bf16.mxu0 %v2009
    %4653 = vmatpush1.bf16.msra.mxu0 %v2008
    %4654 = vmatprep.subr.bf16.mxu0 %v2007
    %4655 = vmatpush1.bf16.msra.mxu0 %v2006
    %4656 = vmatprep.subr.bf16.mxu0 %v2005
    %4657 = vmatpush1.bf16.msra.mxu0 %v2004
    %4658 = vmatprep.subr.bf16.mxu0 %v2003
    %4659 = vmatpush1.bf16.msra.mxu0 %v2002
    %4660 = vmatprep.subr.bf16.mxu0 %v2001
    %4661 = vmatpush1.bf16.msra.mxu0 %v2000
    %4662 = vmatprep.subr.bf16.mxu0 %v1999
    %4663 = vmatpush1.bf16.msra.mxu0 %v1998
    %4664 = vmatprep.subr.bf16.mxu0 %v1997
    %4665 = vmatpush1.bf16.msra.mxu0 %v1996
    %4666 = vmatprep.subr.bf16.mxu0 %v1995
    %4667 = vmatpush1.bf16.msra.mxu0 %v1994
    %4668 = vmatprep.subr.bf16.mxu0 %v2025
    %4669 = vmatpush2.bf16.msra.mxu0 %v2024
    %4670 = vmatprep.subr.bf16.mxu0 %v2023
    %4671 = vmatpush2.bf16.msra.mxu0 %v2022
    %4672 = vmatprep.subr.bf16.mxu0 %v2021
    %4673 = vmatpush2.bf16.msra.mxu0 %v2020
    %4674 = vmatprep.subr.bf16.mxu0 %v2019
    %4675 = vmatpush2.bf16.msra.mxu0 %v2018
    %4676 = vmatprep.subr.bf16.mxu0 %v2017
    %4677 = vmatpush2.bf16.msra.mxu0 %v2016
    %4678 = vmatprep.subr.bf16.mxu0 %v2015
    %4679 = vmatpush2.bf16.msra.mxu0 %v2014
    %4680 = vmatprep.subr.bf16.mxu0 %v2013
    %4681 = vmatpush2.bf16.msra.mxu0 %v2012
    %4682 = vmatprep.subr.bf16.mxu0 %v2011
    %4683 = vmatpush2.bf16.msra.mxu0 %v2010
    %4684 = vmatprep.mubr.bf16.mxu0 %v4357
    %4685 = vmatmul.mubr.bf16.gmra.mxu0 %v4355
    %v4686 = vpop.f32.mrf.mxu0
    %v4687 = vadd.f32 %v4646, %v4686
    %v4688 = vpop.f32.mrf.mxu0
    %v4689 = vadd.f32 %v4648, %v4688
    %v4690 = vpop.f32.mrf.mxu0
    %v4691 = vpop.f32.mrf.mxu0
    %4692 = vdwg.mxu0
    %4693 = vmatprep.subr.bf16.mxu0 %v2041
    %4694 = vmatpush1.bf16.msra.mxu0 %v2040
    %4695 = vmatprep.subr.bf16.mxu0 %v2039
    %4696 = vmatpush1.bf16.msra.mxu0 %v2038
    %4697 = vmatprep.subr.bf16.mxu0 %v2037
    %4698 = vmatpush1.bf16.msra.mxu0 %v2036
    %4699 = vmatprep.subr.bf16.mxu0 %v2035
    %4700 = vmatpush1.bf16.msra.mxu0 %v2034
    %4701 = vmatprep.subr.bf16.mxu0 %v2033
    %4702 = vmatpush1.bf16.msra.mxu0 %v2032
    %4703 = vmatprep.subr.bf16.mxu0 %v2031
    %4704 = vmatpush1.bf16.msra.mxu0 %v2030
    %4705 = vmatprep.subr.bf16.mxu0 %v2029
    %4706 = vmatpush1.bf16.msra.mxu0 %v2028
    %4707 = vmatprep.subr.bf16.mxu0 %v2027
    %4708 = vmatpush1.bf16.msra.mxu0 %v2026
    %4709 = vmatprep.subr.bf16.mxu0 %v2057
    %4710 = vmatpush2.bf16.msra.mxu0 %v2056
    %4711 = vmatprep.subr.bf16.mxu0 %v2055
    %4712 = vmatpush2.bf16.msra.mxu0 %v2054
    %4713 = vmatprep.subr.bf16.mxu0 %v2053
    %4714 = vmatpush2.bf16.msra.mxu0 %v2052
    %4715 = vmatprep.subr.bf16.mxu0 %v2051
    %4716 = vmatpush2.bf16.msra.mxu0 %v2050
    %4717 = vmatprep.subr.bf16.mxu0 %v2049
    %4718 = vmatpush2.bf16.msra.mxu0 %v2048
    %4719 = vmatprep.subr.bf16.mxu0 %v2047
    %4720 = vmatpush2.bf16.msra.mxu0 %v2046
    %4721 = vmatprep.subr.bf16.mxu0 %v2045
    %4722 = vmatpush2.bf16.msra.mxu0 %v2044
    %4723 = vmatprep.subr.bf16.mxu0 %v2043
    %4724 = vmatpush2.bf16.msra.mxu0 %v2042
    %4725 = vmatprep.mubr.bf16.mxu0 %v4354
    %4726 = vmatmul.mubr.bf16.gmra.mxu0 %v4340
    %v4727 = vpop.f32.mrf.mxu0
    %v4728 = vadd.f32 %v4687, %v4727
    %v4729 = vpop.f32.mrf.mxu0
    %v4730 = vadd.f32 %v4689, %v4729
    %v4731 = vpop.f32.mrf.mxu0
    %v4732 = vpop.f32.mrf.mxu0
    %4733 = vdwg.mxu0
    %4734 = vmatprep.subr.bf16.mxu0 %v2073
    %4735 = vmatpush1.bf16.msra.mxu0 %v2072
    %4736 = vmatprep.subr.bf16.mxu0 %v2071
    %4737 = vmatpush1.bf16.msra.mxu0 %v2070
    %4738 = vmatprep.subr.bf16.mxu0 %v2069
    %4739 = vmatpush1.bf16.msra.mxu0 %v2068
    %4740 = vmatprep.subr.bf16.mxu0 %v2067
    %4741 = vmatpush1.bf16.msra.mxu0 %v2066
    %4742 = vmatprep.subr.bf16.mxu0 %v2065
    %4743 = vmatpush1.bf16.msra.mxu0 %v2064
    %4744 = vmatprep.subr.bf16.mxu0 %v2063
    %4745 = vmatpush1.bf16.msra.mxu0 %v2062
    %4746 = vmatprep.subr.bf16.mxu0 %v2061
    %4747 = vmatpush1.bf16.msra.mxu0 %v2060
    %4748 = vmatprep.subr.bf16.mxu0 %v2059
    %4749 = vmatpush1.bf16.msra.mxu0 %v2058
    %4750 = vmatprep.subr.bf16.mxu0 %v2089
    %4751 = vmatpush2.bf16.msra.mxu0 %v2088
    %4752 = vmatprep.subr.bf16.mxu0 %v2087
    %4753 = vmatpush2.bf16.msra.mxu0 %v2086
    %4754 = vmatprep.subr.bf16.mxu0 %v2085
    %4755 = vmatpush2.bf16.msra.mxu0 %v2084
    %4756 = vmatprep.subr.bf16.mxu0 %v2083
    %4757 = vmatpush2.bf16.msra.mxu0 %v2082
    %4758 = vmatprep.subr.bf16.mxu0 %v2081
    %4759 = vmatpush2.bf16.msra.mxu0 %v2080
    %4760 = vmatprep.subr.bf16.mxu0 %v2079
    %4761 = vmatpush2.bf16.msra.mxu0 %v2078
    %4762 = vmatprep.subr.bf16.mxu0 %v2077
    %4763 = vmatpush2.bf16.msra.mxu0 %v2076
    %4764 = vmatprep.subr.bf16.mxu0 %v2075
    %4765 = vmatpush2.bf16.msra.mxu0 %v2074
    %4766 = vmatprep.mubr.bf16.mxu0 %v4358
    %4767 = vmatmul.mubr.bf16.gmra.mxu0 %v4356
    %v4768 = vpop.f32.mrf.mxu0
    %v4769 = vadd.f32 %v4728, %v4768
    %v4770 = vpop.f32.mrf.mxu0
    %v4771 = vadd.f32 %v4730, %v4770
    %v4772 = vpop.f32.mrf.mxu0
    %v4773 = vpop.f32.mrf.mxu0
    %4774 = vdwg.mxu0
    %4775 = vmatprep.subr.bf16.mxu0 %v2105
    %4776 = vmatpush1.bf16.msra.mxu0 %v2104
    %4777 = vmatprep.subr.bf16.mxu0 %v2103
    %4778 = vmatpush1.bf16.msra.mxu0 %v2102
    %4779 = vmatprep.subr.bf16.mxu0 %v2101
    %4780 = vmatpush1.bf16.msra.mxu0 %v2100
    %4781 = vmatprep.subr.bf16.mxu0 %v2099
    %4782 = vmatpush1.bf16.msra.mxu0 %v2098
    %4783 = vmatprep.subr.bf16.mxu0 %v2097
    %4784 = vmatpush1.bf16.msra.mxu0 %v2096
    %4785 = vmatprep.subr.bf16.mxu0 %v2095
    %4786 = vmatpush1.bf16.msra.mxu0 %v2094
    %4787 = vmatprep.subr.bf16.mxu0 %v2093
    %4788 = vmatpush1.bf16.msra.mxu0 %v2092
    %4789 = vmatprep.subr.bf16.mxu0 %v2091
    %4790 = vmatpush1.bf16.msra.mxu0 %v2090
    %4791 = vmatprep.subr.bf16.mxu0 %v2121
    %4792 = vmatpush2.bf16.msra.mxu0 %v2120
    %4793 = vmatprep.subr.bf16.mxu0 %v2119
    %4794 = vmatpush2.bf16.msra.mxu0 %v2118
    %4795 = vmatprep.subr.bf16.mxu0 %v2117
    %4796 = vmatpush2.bf16.msra.mxu0 %v2116
    %4797 = vmatprep.subr.bf16.mxu0 %v2115
    %4798 = vmatpush2.bf16.msra.mxu0 %v2114
    %4799 = vmatprep.subr.bf16.mxu0 %v2113
    %4800 = vmatpush2.bf16.msra.mxu0 %v2112
    %4801 = vmatprep.subr.bf16.mxu0 %v2111
    %4802 = vmatpush2.bf16.msra.mxu0 %v2110
    %4803 = vmatprep.subr.bf16.mxu0 %v2109
    %4804 = vmatpush2.bf16.msra.mxu0 %v2108
    %4805 = vmatprep.subr.bf16.mxu0 %v2107
    %4806 = vmatpush2.bf16.msra.mxu0 %v2106
    %4807 = vmatprep.mubr.bf16.mxu0 %v4396
    %4808 = vmatmul.mubr.bf16.gmra.mxu0 %v4382
    %v4809 = vpop.f32.mrf.mxu0
    %v4810 = vadd.f32 %v4769, %v4809
    %v4811 = vpop.f32.mrf.mxu0
    %v4812 = vadd.f32 %v4771, %v4811
    %v4813 = vpop.f32.mrf.mxu0
    %v4814 = vpop.f32.mrf.mxu0
    %4815 = vdwg.mxu0
    %4816 = vmatprep.subr.bf16.mxu0 %v2137
    %4817 = vmatpush1.bf16.msra.mxu0 %v2136
    %4818 = vmatprep.subr.bf16.mxu0 %v2135
    %4819 = vmatpush1.bf16.msra.mxu0 %v2134
    %4820 = vmatprep.subr.bf16.mxu0 %v2133
    %4821 = vmatpush1.bf16.msra.mxu0 %v2132
    %4822 = vmatprep.subr.bf16.mxu0 %v2131
    %4823 = vmatpush1.bf16.msra.mxu0 %v2130
    %4824 = vmatprep.subr.bf16.mxu0 %v2129
    %4825 = vmatpush1.bf16.msra.mxu0 %v2128
    %4826 = vmatprep.subr.bf16.mxu0 %v2127
    %4827 = vmatpush1.bf16.msra.mxu0 %v2126
    %4828 = vmatprep.subr.bf16.mxu0 %v2125
    %4829 = vmatpush1.bf16.msra.mxu0 %v2124
    %4830 = vmatprep.subr.bf16.mxu0 %v2123
    %4831 = vmatpush1.bf16.msra.mxu0 %v2122
    %4832 = vmatprep.subr.bf16.mxu0 %v2153
    %4833 = vmatpush2.bf16.msra.mxu0 %v2152
    %4834 = vmatprep.subr.bf16.mxu0 %v2151
    %4835 = vmatpush2.bf16.msra.mxu0 %v2150
    %4836 = vmatprep.subr.bf16.mxu0 %v2149
    %4837 = vmatpush2.bf16.msra.mxu0 %v2148
    %4838 = vmatprep.subr.bf16.mxu0 %v2147
    %4839 = vmatpush2.bf16.msra.mxu0 %v2146
    %4840 = vmatprep.subr.bf16.mxu0 %v2145
    %4841 = vmatpush2.bf16.msra.mxu0 %v2144
    %4842 = vmatprep.subr.bf16.mxu0 %v2143
    %4843 = vmatpush2.bf16.msra.mxu0 %v2142
    %4844 = vmatprep.subr.bf16.mxu0 %v2141
    %4845 = vmatpush2.bf16.msra.mxu0 %v2140
    %4846 = vmatprep.subr.bf16.mxu0 %v2139
    %4847 = vmatpush2.bf16.msra.mxu0 %v2138
    %4848 = vmatprep.mubr.bf16.mxu0 %v4406
    %4849 = vmatmul.mubr.bf16.gmra.mxu0 %v4404
    %v4850 = vpop.f32.mrf.mxu0
    %v4851 = vadd.f32 %v4810, %v4850
    %v4852 = vpop.f32.mrf.mxu0
    %v4853 = vadd.f32 %v4812, %v4852
    %v4854 = vpop.f32.mrf.mxu0
    %v4855 = vpop.f32.mrf.mxu0
    %4856 = vdwg.mxu0
    %4857 = vmatprep.subr.bf16.mxu0 %v2169
    %4858 = vmatpush1.bf16.msra.mxu0 %v2168
    %4859 = vmatprep.subr.bf16.mxu0 %v2167
    %4860 = vmatpush1.bf16.msra.mxu0 %v2166
    %4861 = vmatprep.subr.bf16.mxu0 %v2165
    %4862 = vmatpush1.bf16.msra.mxu0 %v2164
    %4863 = vmatprep.subr.bf16.mxu0 %v2163
    %4864 = vmatpush1.bf16.msra.mxu0 %v2162
    %4865 = vmatprep.subr.bf16.mxu0 %v2161
    %4866 = vmatpush1.bf16.msra.mxu0 %v2160
    %4867 = vmatprep.subr.bf16.mxu0 %v2159
    %4868 = vmatpush1.bf16.msra.mxu0 %v2158
    %4869 = vmatprep.subr.bf16.mxu0 %v2157
    %4870 = vmatpush1.bf16.msra.mxu0 %v2156
    %4871 = vmatprep.subr.bf16.mxu0 %v2155
    %4872 = vmatpush1.bf16.msra.mxu0 %v2154
    %4873 = vmatprep.subr.bf16.mxu0 %v2185
    %4874 = vmatpush2.bf16.msra.mxu0 %v2184
    %4875 = vmatprep.subr.bf16.mxu0 %v2183
    %4876 = vmatpush2.bf16.msra.mxu0 %v2182
    %4877 = vmatprep.subr.bf16.mxu0 %v2181
    %4878 = vmatpush2.bf16.msra.mxu0 %v2180
    %4879 = vmatprep.subr.bf16.mxu0 %v2179
    %4880 = vmatpush2.bf16.msra.mxu0 %v2178
    %4881 = vmatprep.subr.bf16.mxu0 %v2177
    %4882 = vmatpush2.bf16.msra.mxu0 %v2176
    %4883 = vmatprep.subr.bf16.mxu0 %v2175
    %4884 = vmatpush2.bf16.msra.mxu0 %v2174
    %4885 = vmatprep.subr.bf16.mxu0 %v2173
    %4886 = vmatpush2.bf16.msra.mxu0 %v2172
    %4887 = vmatprep.subr.bf16.mxu0 %v2171
    %4888 = vmatpush2.bf16.msra.mxu0 %v2170
    %4889 = vmatprep.mubr.bf16.mxu0 %v4403
    %4890 = vmatmul.mubr.bf16.gmra.mxu0 %v4389
    %v4891 = vpop.f32.mrf.mxu0
    %v4892 = vadd.f32 %v4851, %v4891
    %v4893 = vpop.f32.mrf.mxu0
    %v4894 = vadd.f32 %v4853, %v4893
    %v4895 = vpop.f32.mrf.mxu0
    %v4896 = vpop.f32.mrf.mxu0
    %4897 = vdwg.mxu0
    %4898 = vmatprep.subr.bf16.mxu0 %v2201
    %4899 = vmatpush1.bf16.msra.mxu0 %v2200
    %4900 = vmatprep.subr.bf16.mxu0 %v2199
    %4901 = vmatpush1.bf16.msra.mxu0 %v2198
    %4902 = vmatprep.subr.bf16.mxu0 %v2197
    %4903 = vmatpush1.bf16.msra.mxu0 %v2196
    %4904 = vmatprep.subr.bf16.mxu0 %v2195
    %4905 = vmatpush1.bf16.msra.mxu0 %v2194
    %4906 = vmatprep.subr.bf16.mxu0 %v2193
    %4907 = vmatpush1.bf16.msra.mxu0 %v2192
    %4908 = vmatprep.subr.bf16.mxu0 %v2191
    %4909 = vmatpush1.bf16.msra.mxu0 %v2190
    %4910 = vmatprep.subr.bf16.mxu0 %v2189
    %4911 = vmatpush1.bf16.msra.mxu0 %v2188
    %4912 = vmatprep.subr.bf16.mxu0 %v2187
    %4913 = vmatpush1.bf16.msra.mxu0 %v2186
    %4914 = vmatprep.subr.bf16.mxu0 %v2217
    %4915 = vmatpush2.bf16.msra.mxu0 %v2216
    %4916 = vmatprep.subr.bf16.mxu0 %v2215
    %4917 = vmatpush2.bf16.msra.mxu0 %v2214
    %4918 = vmatprep.subr.bf16.mxu0 %v2213
    %4919 = vmatpush2.bf16.msra.mxu0 %v2212
    %4920 = vmatprep.subr.bf16.mxu0 %v2211
    %4921 = vmatpush2.bf16.msra.mxu0 %v2210
    %4922 = vmatprep.subr.bf16.mxu0 %v2209
    %4923 = vmatpush2.bf16.msra.mxu0 %v2208
    %4924 = vmatprep.subr.bf16.mxu0 %v2207
    %4925 = vmatpush2.bf16.msra.mxu0 %v2206
    %4926 = vmatprep.subr.bf16.mxu0 %v2205
    %4927 = vmatpush2.bf16.msra.mxu0 %v2204
    %4928 = vmatprep.subr.bf16.mxu0 %v2203
    %4929 = vmatpush2.bf16.msra.mxu0 %v2202
    %4930 = vmatprep.mubr.bf16.mxu0 %v4407
    %4931 = vmatmul.mubr.bf16.gmra.mxu0 %v4405
    %v4932 = vpop.f32.mrf.mxu0
    %v4933 = vadd.f32 %v4892, %v4932
    %v4934 = vpop.f32.mrf.mxu0
    %v4935 = vadd.f32 %v4894, %v4934
    %v4936 = vpop.f32.mrf.mxu0
    %v4937 = vpop.f32.mrf.mxu0
    %4938 = vdwg.mxu0
    %4939 = vmatprep.subr.bf16.mxu0 %v2233
    %4940 = vmatpush1.bf16.msra.mxu0 %v2232
    %4941 = vmatprep.subr.bf16.mxu0 %v2231
    %4942 = vmatpush1.bf16.msra.mxu0 %v2230
    %4943 = vmatprep.subr.bf16.mxu0 %v2229
    %4944 = vmatpush1.bf16.msra.mxu0 %v2228
    %4945 = vmatprep.subr.bf16.mxu0 %v2227
    %4946 = vmatpush1.bf16.msra.mxu0 %v2226
    %4947 = vmatprep.subr.bf16.mxu0 %v2225
    %4948 = vmatpush1.bf16.msra.mxu0 %v2224
    %4949 = vmatprep.subr.bf16.mxu0 %v2223
    %4950 = vmatpush1.bf16.msra.mxu0 %v2222
    %4951 = vmatprep.subr.bf16.mxu0 %v2221
    %4952 = vmatpush1.bf16.msra.mxu0 %v2220
    %4953 = vmatprep.subr.bf16.mxu0 %v2219
    %4954 = vmatpush1.bf16.msra.mxu0 %v2218
    %4955 = vmatprep.subr.bf16.mxu0 0
    %4956 = vmatpush2.bf16.msra.mxu0 0
    %4957 = vmatprep.subr.bf16.mxu0 0
    %4958 = vmatpush2.bf16.msra.mxu0 0
    %4959 = vmatprep.subr.bf16.mxu0 0
    %4960 = vmatpush2.bf16.msra.mxu0 0
    %4961 = vmatprep.subr.bf16.mxu0 0
    %4962 = vmatpush2.bf16.msra.mxu0 0
    %4963 = vmatprep.subr.bf16.mxu0 0
    %4964 = vmatpush2.bf16.msra.mxu0 0
    %4965 = vmatprep.subr.bf16.mxu0 0
    %4966 = vmatpush2.bf16.msra.mxu0 0
    %4967 = vmatprep.subr.bf16.mxu0 0
    %4968 = vmatpush2.bf16.msra.mxu0 0
    %4969 = vmatprep.subr.bf16.mxu0 0
    %4970 = vmatpush2.bf16.msra.mxu0 0
    %4971 = vmatprep.mubr.bf16.mxu0 0
    %4972 = vmatmul.mubr.bf16.gmra.mxu0 %v4421
    %v4973 = vpop.f32.mrf.mxu0
    %v4974 = vadd.f32 %v4933, %v4973
    %v4975 = vpop.f32.mrf.mxu0
    %v4976 = vadd.f32 %v4935, %v4975
    %v4977 = vpop.f32.mrf.mxu0
    %v4978 = vpop.f32.mrf.mxu0
    %4979 = vdwg.mxu0
    %v4980 = vmul.f32 %v4974, 0.1997
    %v4981 = vmul.f32 %v4976, 0.1997
    %v4982 = vadd.f32 %v4980, 0.5002
    %v4983 = vadd.f32 %v4981, 0.5002
    %v4984 = vmul.f32 %v4974, %v4982
    %v4985 = vmul.f32 %v4976, %v4983
    %v4986 = vadd.f32 %v4984, 0.1992
    %v4987 = vadd.f32 %v4985, 0.1992
    %v4988 = vpack.c.bf16 %v4986, %v4986
    %v4989 = vpack.c.bf16 %v4987, %v4987
    %s4990 = scalar_lea.vmem %s3, 256
    %v4991 = vld [vmem:[%s4990] sm:$0xf]
    %v4992 = vld [vmem:[%s4990 + $0x4] sm:$0xf]
    %v4993 = vld [vmem:[%s4990 + $0x8] sm:$0xf]
    %v4994 = vld [vmem:[%s4990 + $0xc] sm:$0xf]
    %v4995 = vld [vmem:[%s4990 + $0x10] sm:$0xf]
    %v4996 = vld [vmem:[%s4990 + $0x14] sm:$0xf]
    %v4997 = vld [vmem:[%s4990 + $0x18] sm:$0xf]
    %v4998 = vld [vmem:[%s4990 + $0x1c] sm:$0xf]
    %v4999 = vld [vmem:[%s4990 + $0x20] sm:$0xf]
    %v5000 = vld [vmem:[%s4990 + $0x24] sm:$0xf]
    %v5001 = vld [vmem:[%s4990 + $0x28] sm:$0xf]
    %v5002 = vld [vmem:[%s4990 + $0x2c] sm:$0xf]
    %v5003 = vld [vmem:[%s4990 + $0x30] sm:$0xf]
    %v5004 = vld [vmem:[%s4990 + $0x34] sm:$0xf]
    %v5005 = vld [vmem:[%s4990 + $0x38] sm:$0xf]
    %v5006 = vld [vmem:[%s4990 + $0x3c] sm:$0xf]
    %v5007 = vld [vmem:[%s4990 + $0x40] sm:$0xf]
    %v5008 = vld [vmem:[%s4990 + $0x44] sm:$0xf]
    %v5009 = vld [vmem:[%s4990 + $0x48] sm:$0xf]
    %v5010 = vld [vmem:[%s4990 + $0x4c] sm:$0xf]
    %v5011 = vld [vmem:[%s4990 + $0x50] sm:$0xf]
    %v5012 = vld [vmem:[%s4990 + $0x54] sm:$0xf]
    %v5013 = vld [vmem:[%s4990 + $0x58] sm:$0xf]
    %v5014 = vld [vmem:[%s4990 + $0x5c] sm:$0xf]
    %v5015 = vld [vmem:[%s4990 + $0x60] sm:$0xf]
    %v5016 = vld [vmem:[%s4990 + $0x64] sm:$0xf]
    %v5017 = vld [vmem:[%s4990 + $0x68] sm:$0xf]
    %v5018 = vld [vmem:[%s4990 + $0x6c] sm:$0xf]
    %v5019 = vld [vmem:[%s4990 + $0x70] sm:$0xf]
    %v5020 = vld [vmem:[%s4990 + $0x74] sm:$0xf]
    %v5021 = vld [vmem:[%s4990 + $0x78] sm:$0xf]
    %v5022 = vld [vmem:[%s4990 + $0x7c] sm:$0xf]
    %v5055 = vunpack.c.l.b16 %v4991
    %v5056 = vunpack.c.l.b16 %v4992
    %v5057 = vunpack.c.l.b16 %v4993
    %v5058 = vunpack.c.l.b16 %v4994
    %v5059 = vunpack.c.l.b16 %v4995
    %v5060 = vunpack.c.l.b16 %v4996
    %v5061 = vunpack.c.l.b16 %v4997
    %v5062 = vunpack.c.l.b16 %v4998
    %v5063 = vunpack.c.l.b16 %v4999
    %v5064 = vunpack.c.l.b16 %v5000
    %v5065 = vunpack.c.l.b16 %v5001
    %v5066 = vunpack.c.l.b16 %v5002
    %v5067 = vunpack.c.l.b16 %v5003
    %v5068 = vunpack.c.l.b16 %v5004
    %v5069 = vunpack.c.l.b16 %v5005
    %v5070 = vunpack.c.l.b16 %v5006
    %v5071 = vunpack.c.l.b16 %v5007
    %v5072 = vunpack.c.l.b16 %v5008
    %v5073 = vunpack.c.l.b16 %v5009
    %v5074 = vunpack.c.l.b16 %v5010
    %v5075 = vunpack.c.l.b16 %v5011
    %v5076 = vunpack.c.l.b16 %v5012
    %v5077 = vunpack.c.l.b16 %v5013
    %v5078 = vunpack.c.l.b16 %v5014
    %v5079 = vunpack.c.l.b16 %v5015
    %v5080 = vunpack.c.l.b16 %v5016
    %v5081 = vunpack.c.l.b16 %v5017
    %v5082 = vunpack.c.l.b16 %v5018
    %v5083 = vunpack.c.l.b16 %v5019
    %v5084 = vunpack.c.l.b16 %v5020
    %v5085 = vunpack.c.l.b16 %v5021
    %v5086 = vunpack.c.l.b16 %v5022
    %v5087 = vpack.c.b16 %v5056, %v5055
    %v5088 = vpack.c.b16 %v5058, %v5057
    %v5089 = vpack.c.b16 %v5060, %v5059
    %v5090 = vpack.c.b16 %v5062, %v5061
    %v5091 = vpack.c.b16 %v5064, %v5063
    %v5092 = vpack.c.b16 %v5066, %v5065
    %v5093 = vpack.c.b16 %v5068, %v5067
    %v5094 = vpack.c.b16 %v5070, %v5069
    %v5095 = vpack.c.b16 %v5072, %v5071
    %v5096 = vpack.c.b16 %v5074, %v5073
    %v5097 = vpack.c.b16 %v5076, %v5075
    %v5098 = vpack.c.b16 %v5078, %v5077
    %v5099 = vpack.c.b16 %v5080, %v5079
    %v5100 = vpack.c.b16 %v5082, %v5081
    %v5101 = vpack.c.b16 %v5084, %v5083
    %v5102 = vpack.c.b16 %v5086, %v5085
    %5119 = vmatprep.subr.bf16.mxu0 0
    %5120 = vmatpush1.bf16.msra.mxu0 %v5094
    %5121 = vmatprep.subr.bf16.mxu0 0
    %5122 = vmatpush1.bf16.msra.mxu0 %v5093
    %5123 = vmatprep.subr.bf16.mxu0 0
    %5124 = vmatpush1.bf16.msra.mxu0 %v5092
    %5125 = vmatprep.subr.bf16.mxu0 0
    %5126 = vmatpush1.bf16.msra.mxu0 %v5091
    %5127 = vmatprep.subr.bf16.mxu0 0
    %5128 = vmatpush1.bf16.msra.mxu0 %v5090
    %5129 = vmatprep.subr.bf16.mxu0 0
    %5130 = vmatpush1.bf16.msra.mxu0 %v5089
    %5131 = vmatprep.subr.bf16.mxu0 0
    %5132 = vmatpush1.bf16.msra.mxu0 %v5088
    %5133 = vmatprep.subr.bf16.mxu0 0
    %5134 = vmatpush1.bf16.msra.mxu0 %v5087
    %5135 = vmatprep.subr.bf16.mxu0 0
    %5136 = vmatpush2.bf16.msra.mxu0 %v5102
    %5137 = vmatprep.subr.bf16.mxu0 0
    %5138 = vmatpush2.bf16.msra.mxu0 %v5101
    %5139 = vmatprep.subr.bf16.mxu0 0
    %5140 = vmatpush2.bf16.msra.mxu0 %v5100
    %5141 = vmatprep.subr.bf16.mxu0 0
    %5142 = vmatpush2.bf16.msra.mxu0 %v5099
    %5143 = vmatprep.subr.bf16.mxu0 0
    %5144 = vmatpush2.bf16.msra.mxu0 %v5098
    %5145 = vmatprep.subr.bf16.mxu0 0
    %5146 = vmatpush2.bf16.msra.mxu0 %v5097
    %5147 = vmatprep.subr.bf16.mxu0 0
    %5148 = vmatpush2.bf16.msra.mxu0 %v5096
    %5149 = vmatprep.subr.bf16.mxu0 0
    %5150 = vmatpush2.bf16.msra.mxu0 %v5095
    %5151 = vmatprep.mubr.bf16.mxu0 %v4989
    %5152 = vmatmul.mubr.bf16.gmra.mxu0 %v4988
    %v5153 = vpop.f32.mrf.mxu0
    %v5154 = vadd.f32 0.0, %v5153
    %v5155 = vpop.f32.mrf.mxu0
    %v5156 = vpop.f32.mrf.mxu0
    %v5157 = vpop.f32.mrf.mxu0
    %5158 = vdwg.mxu0
    %v5159 = vadd.f32 %v4247, %v5154
    %s5160 = scalar_lea.vmem %s0, 75
    %v5161 = vld [vmem:[%s5160] sm:$0xff]
    %v5162 = vld [vmem:[%s5160 + $0x8] sm:$0xff]
    %v5163 = vld [vmem:[%s5160 + $0x10] sm:$0xff]
    %v5164 = vld [vmem:[%s5160 + $0x18] sm:$0x1]
    %v5169 = vcombine.high %v5161, %v5161
    %v5171 = vunpack.c.l.s4 1966171168
    %v5172 = vunpack.c.0.s8 %v5171
    %v5173 = vlaneseq
    %v5174 = vshrl.u32 %v5173, 7
    %v5175 = vsub.s32 %v5172, %v5174
    %v5176 = vrot.slane %v5161, %v5175
    %v5178 = vunpack.c.l.s4 1966171168
    %v5179 = vunpack.c.0.s8 %v5178
    %v5180 = vlaneseq
    %v5181 = vshrl.u32 %v5180, 7
    %v5182 = vsub.s32 %v5179, %v5181
    %v5183 = vrot.slane %v5169, %v5182
    %v5184 = vcombine.high %v5176, %v5176
    %v5185 = vcombine.high %v5183, %v5183
    %v5187 = vunpack.c.l.s4 1966171168
    %v5188 = vunpack.c.0.s8 %v5187
    %v5189 = vlaneseq
    %v5190 = vshrl.u32 %v5189, 7
    %v5191 = vsub.s32 %v5188, %v5190
    %v5192 = vrot.slane %v5176, %v5191
    %v5194 = vunpack.c.l.s4 1966171168
    %v5195 = vunpack.c.0.s8 %v5194
    %v5196 = vlaneseq
    %v5197 = vshrl.u32 %v5196, 7
    %v5198 = vsub.s32 %v5195, %v5197
    %v5199 = vrot.slane %v5183, %v5198
    %v5201 = vunpack.c.l.s4 1966171168
    %v5202 = vunpack.c.0.s8 %v5201
    %v5203 = vlaneseq
    %v5204 = vshrl.u32 %v5203, 7
    %v5205 = vsub.s32 %v5202, %v5204
    %v5206 = vrot.slane %v5184, %v5205
    %v5208 = vunpack.c.l.s4 1966171168
    %v5209 = vunpack.c.0.s8 %v5208
    %v5210 = vlaneseq
    %v5211 = vshrl.u32 %v5210, 7
    %v5212 = vsub.s32 %v5209, %v5211
    %v5213 = vrot.slane %v5185, %v5212
    %v5214 = vcombine.high %v5192, %v5192
    %v5215 = vcombine.high %v5199, %v5199
    %v5216 = vcombine.high %v5206, %v5206
    %v5217 = vcombine.high %v5213, %v5213
    %v5218 = vcombine.high %v5162, %v5162
    %v5220 = vunpack.c.l.s4 1966171168
    %v5221 = vunpack.c.0.s8 %v5220
    %v5222 = vlaneseq
    %v5223 = vshrl.u32 %v5222, 7
    %v5224 = vsub.s32 %v5221, %v5223
    %v5225 = vrot.slane %v5162, %v5224
    %v5227 = vunpack.c.l.s4 1966171168
    %v5228 = vunpack.c.0.s8 %v5227
    %v5229 = vlaneseq
    %v5230 = vshrl.u32 %v5229, 7
    %v5231 = vsub.s32 %v5228, %v5230
    %v5232 = vrot.slane %v5218, %v5231
    %v5233 = vcombine.high %v5225, %v5225
    %v5234 = vcombine.high %v5232, %v5232
    %v5236 = vunpack.c.l.s4 1966171168
    %v5237 = vunpack.c.0.s8 %v5236
    %v5238 = vlaneseq
    %v5239 = vshrl.u32 %v5238, 7
    %v5240 = vsub.s32 %v5237, %v5239
    %v5241 = vrot.slane %v5225, %v5240
    %v5243 = vunpack.c.l.s4 1966171168
    %v5244 = vunpack.c.0.s8 %v5243
    %v5245 = vlaneseq
    %v5246 = vshrl.u32 %v5245, 7
    %v5247 = vsub.s32 %v5244, %v5246
    %v5248 = vrot.slane %v5232, %v5247
    %v5250 = vunpack.c.l.s4 1966171168
    %v5251 = vunpack.c.0.s8 %v5250
    %v5252 = vlaneseq
    %v5253 = vshrl.u32 %v5252, 7
    %v5254 = vsub.s32 %v5251, %v5253
    %v5255 = vrot.slane %v5233, %v5254
    %v5257 = vunpack.c.l.s4 1966171168
    %v5258 = vunpack.c.0.s8 %v5257
    %v5259 = vlaneseq
    %v5260 = vshrl.u32 %v5259, 7
    %v5261 = vsub.s32 %v5258, %v5260
    %v5262 = vrot.slane %v5234, %v5261
    %v5263 = vcombine.high %v5241, %v5241
    %v5264 = vcombine.high %v5248, %v5248
    %v5265 = vcombine.high %v5255, %v5255
    %v5266 = vcombine.high %v5262, %v5262
    %v5267 = vcombine.high %v5163, %v5163
    %v5269 = vunpack.c.l.s4 1966171168
    %v5270 = vunpack.c.0.s8 %v5269
    %v5271 = vlaneseq
    %v5272 = vshrl.u32 %v5271, 7
    %v5273 = vsub.s32 %v5270, %v5272
    %v5274 = vrot.slane %v5163, %v5273
    %v5276 = vunpack.c.l.s4 1966171168
    %v5277 = vunpack.c.0.s8 %v5276
    %v5278 = vlaneseq
    %v5279 = vshrl.u32 %v5278, 7
    %v5280 = vsub.s32 %v5277, %v5279
    %v5281 = vrot.slane %v5267, %v5280
    %v5282 = vcombine.high %v5274, %v5274
    %v5283 = vcombine.high %v5281, %v5281
    %v5285 = vunpack.c.l.s4 1966171168
    %v5286 = vunpack.c.0.s8 %v5285
    %v5287 = vlaneseq
    %v5288 = vshrl.u32 %v5287, 7
    %v5289 = vsub.s32 %v5286, %v5288
    %v5290 = vrot.slane %v5274, %v5289
    %v5292 = vunpack.c.l.s4 1966171168
    %v5293 = vunpack.c.0.s8 %v5292
    %v5294 = vlaneseq
    %v5295 = vshrl.u32 %v5294, 7
    %v5296 = vsub.s32 %v5293, %v5295
    %v5297 = vrot.slane %v5281, %v5296
    %v5299 = vunpack.c.l.s4 1966171168
    %v5300 = vunpack.c.0.s8 %v5299
    %v5301 = vlaneseq
    %v5302 = vshrl.u32 %v5301, 7
    %v5303 = vsub.s32 %v5300, %v5302
    %v5304 = vrot.slane %v5282, %v5303
    %v5306 = vunpack.c.l.s4 1966171168
    %v5307 = vunpack.c.0.s8 %v5306
    %v5308 = vlaneseq
    %v5309 = vshrl.u32 %v5308, 7
    %v5310 = vsub.s32 %v5307, %v5309
    %v5311 = vrot.slane %v5283, %v5310
    %v5312 = vcombine.high %v5290, %v5290
    %v5313 = vcombine.high %v5297, %v5297
    %v5314 = vcombine.high %v5304, %v5304
    %v5315 = vcombine.high %v5311, %v5311
    %v5317 = vunpack.c.l.s4 1966171168
    %v5318 = vunpack.c.0.s8 %v5317
    %v5319 = vlaneseq
    %v5320 = vshrl.u32 %v5319, 7
    %v5321 = vsub.s32 %v5318, %v5320
    %v5322 = vrot.slane %v5164, %v5321
    %v5324 = vunpack.c.l.s4 1966171168
    %v5325 = vunpack.c.0.s8 %v5324
    %v5326 = vlaneseq
    %v5327 = vshrl.u32 %v5326, 7
    %v5328 = vsub.s32 %v5325, %v5327
    %v5329 = vrot.slane %v5322, %v5328
    %5355 = vmatprep.subr.bf16.mxu0 %v1849
    %5356 = vmatpush1.bf16.msra.mxu0 %v1848
    %5357 = vmatprep.subr.bf16.mxu0 %v1847
    %5358 = vmatpush1.bf16.msra.mxu0 %v1846
    %5359 = vmatprep.subr.bf16.mxu0 %v1845
    %5360 = vmatpush1.bf16.msra.mxu0 %v1844
    %5361 = vmatprep.subr.bf16.mxu0 %v1843
    %5362 = vmatpush1.bf16.msra.mxu0 %v1842
    %5363 = vmatprep.subr.bf16.mxu0 %v1841
    %5364 = vmatpush1.bf16.msra.mxu0 %v1840
    %5365 = vmatprep.subr.bf16.mxu0 %v1839
    %5366 = vmatpush1.bf16.msra.mxu0 %v1838
    %5367 = vmatprep.subr.bf16.mxu0 %v1837
    %5368 = vmatpush1.bf16.msra.mxu0 %v1836
    %5369 = vmatprep.subr.bf16.mxu0 %v1835
    %5370 = vmatpush1.bf16.msra.mxu0 %v1834
    %5371 = vmatprep.subr.bf16.mxu0 %v1865
    %5372 = vmatpush2.bf16.msra.mxu0 %v1864
    %5373 = vmatprep.subr.bf16.mxu0 %v1863
    %5374 = vmatpush2.bf16.msra.mxu0 %v1862
    %5375 = vmatprep.subr.bf16.mxu0 %v1861
    %5376 = vmatpush2.bf16.msra.mxu0 %v1860
    %5377 = vmatprep.subr.bf16.mxu0 %v1859
    %5378 = vmatpush2.bf16.msra.mxu0 %v1858
    %5379 = vmatprep.subr.bf16.mxu0 %v1857
    %5380 = vmatpush2.bf16.msra.mxu0 %v1856
    %5381 = vmatprep.subr.bf16.mxu0 %v1855
    %5382 = vmatpush2.bf16.msra.mxu0 %v1854
    %5383 = vmatprep.subr.bf16.mxu0 %v1853
    %5384 = vmatpush2.bf16.msra.mxu0 %v1852
    %5385 = vmatprep.subr.bf16.mxu0 %v1851
    %5386 = vmatpush2.bf16.msra.mxu0 %v1850
    %5387 = vmatprep.mubr.bf16.mxu0 %v5206
    %5388 = vmatmul.mubr.bf16.gmra.mxu0 %v5192
    %v5389 = vpop.f32.mrf.mxu0
    %v5390 = vadd.f32 %v437, %v5389
    %v5391 = vpop.f32.mrf.mxu0
    %v5392 = vadd.f32 %v441, %v5391
    %v5393 = vpop.f32.mrf.mxu0
    %v5394 = vpop.f32.mrf.mxu0
    %5395 = vdwg.mxu0
    %5396 = vmatprep.subr.bf16.mxu0 %v1881
    %5397 = vmatpush1.bf16.msra.mxu0 %v1880
    %5398 = vmatprep.subr.bf16.mxu0 %v1879
    %5399 = vmatpush1.bf16.msra.mxu0 %v1878
    %5400 = vmatprep.subr.bf16.mxu0 %v1877
    %5401 = vmatpush1.bf16.msra.mxu0 %v1876
    %5402 = vmatprep.subr.bf16.mxu0 %v1875
    %5403 = vmatpush1.bf16.msra.mxu0 %v1874
    %5404 = vmatprep.subr.bf16.mxu0 %v1873
    %5405 = vmatpush1.bf16.msra.mxu0 %v1872
    %5406 = vmatprep.subr.bf16.mxu0 %v1871
    %5407 = vmatpush1.bf16.msra.mxu0 %v1870
    %5408 = vmatprep.subr.bf16.mxu0 %v1869
    %5409 = vmatpush1.bf16.msra.mxu0 %v1868
    %5410 = vmatprep.subr.bf16.mxu0 %v1867
    %5411 = vmatpush1.bf16.msra.mxu0 %v1866
    %5412 = vmatprep.subr.bf16.mxu0 %v1897
    %5413 = vmatpush2.bf16.msra.mxu0 %v1896
    %5414 = vmatprep.subr.bf16.mxu0 %v1895
    %5415 = vmatpush2.bf16.msra.mxu0 %v1894
    %5416 = vmatprep.subr.bf16.mxu0 %v1893
    %5417 = vmatpush2.bf16.msra.mxu0 %v1892
    %5418 = vmatprep.subr.bf16.mxu0 %v1891
    %5419 = vmatpush2.bf16.msra.mxu0 %v1890
    %5420 = vmatprep.subr.bf16.mxu0 %v1889
    %5421 = vmatpush2.bf16.msra.mxu0 %v1888
    %5422 = vmatprep.subr.bf16.mxu0 %v1887
    %5423 = vmatpush2.bf16.msra.mxu0 %v1886
    %5424 = vmatprep.subr.bf16.mxu0 %v1885
    %5425 = vmatpush2.bf16.msra.mxu0 %v1884
    %5426 = vmatprep.subr.bf16.mxu0 %v1883
    %5427 = vmatpush2.bf16.msra.mxu0 %v1882
    %5428 = vmatprep.mubr.bf16.mxu0 %v5216
    %5429 = vmatmul.mubr.bf16.gmra.mxu0 %v5214
    %v5430 = vpop.f32.mrf.mxu0
    %v5431 = vadd.f32 %v5390, %v5430
    %v5432 = vpop.f32.mrf.mxu0
    %v5433 = vadd.f32 %v5392, %v5432
    %v5434 = vpop.f32.mrf.mxu0
    %v5435 = vpop.f32.mrf.mxu0
    %5436 = vdwg.mxu0
    %5437 = vmatprep.subr.bf16.mxu0 %v1913
    %5438 = vmatpush1.bf16.msra.mxu0 %v1912
    %5439 = vmatprep.subr.bf16.mxu0 %v1911
    %5440 = vmatpush1.bf16.msra.mxu0 %v1910
    %5441 = vmatprep.subr.bf16.mxu0 %v1909
    %5442 = vmatpush1.bf16.msra.mxu0 %v1908
    %5443 = vmatprep.subr.bf16.mxu0 %v1907
    %5444 = vmatpush1.bf16.msra.mxu0 %v1906
    %5445 = vmatprep.subr.bf16.mxu0 %v1905
    %5446 = vmatpush1.bf16.msra.mxu0 %v1904
    %5447 = vmatprep.subr.bf16.mxu0 %v1903
    %5448 = vmatpush1.bf16.msra.mxu0 %v1902
    %5449 = vmatprep.subr.bf16.mxu0 %v1901
    %5450 = vmatpush1.bf16.msra.mxu0 %v1900
    %5451 = vmatprep.subr.bf16.mxu0 %v1899
    %5452 = vmatpush1.bf16.msra.mxu0 %v1898
    %5453 = vmatprep.subr.bf16.mxu0 %v1929
    %5454 = vmatpush2.bf16.msra.mxu0 %v1928
    %5455 = vmatprep.subr.bf16.mxu0 %v1927
    %5456 = vmatpush2.bf16.msra.mxu0 %v1926
    %5457 = vmatprep.subr.bf16.mxu0 %v1925
    %5458 = vmatpush2.bf16.msra.mxu0 %v1924
    %5459 = vmatprep.subr.bf16.mxu0 %v1923
    %5460 = vmatpush2.bf16.msra.mxu0 %v1922
    %5461 = vmatprep.subr.bf16.mxu0 %v1921
    %5462 = vmatpush2.bf16.msra.mxu0 %v1920
    %5463 = vmatprep.subr.bf16.mxu0 %v1919
    %5464 = vmatpush2.bf16.msra.mxu0 %v1918
    %5465 = vmatprep.subr.bf16.mxu0 %v1917
    %5466 = vmatpush2.bf16.msra.mxu0 %v1916
    %5467 = vmatprep.subr.bf16.mxu0 %v1915
    %5468 = vmatpush2.bf16.msra.mxu0 %v1914
    %5469 = vmatprep.mubr.bf16.mxu0 %v5213
    %5470 = vmatmul.mubr.bf16.gmra.mxu0 %v5199
    %v5471 = vpop.f32.mrf.mxu0
    %v5472 = vadd.f32 %v5431, %v5471
    %v5473 = vpop.f32.mrf.mxu0
    %v5474 = vadd.f32 %v5433, %v5473
    %v5475 = vpop.f32.mrf.mxu0
    %v5476 = vpop.f32.mrf.mxu0
    %5477 = vdwg.mxu0
    %5478 = vmatprep.subr.bf16.mxu0 %v1945
    %5479 = vmatpush1.bf16.msra.mxu0 %v1944
    %5480 = vmatprep.subr.bf16.mxu0 %v1943
    %5481 = vmatpush1.bf16.msra.mxu0 %v1942
    %5482 = vmatprep.subr.bf16.mxu0 %v1941
    %5483 = vmatpush1.bf16.msra.mxu0 %v1940
    %5484 = vmatprep.subr.bf16.mxu0 %v1939
    %5485 = vmatpush1.bf16.msra.mxu0 %v1938
    %5486 = vmatprep.subr.bf16.mxu0 %v1937
    %5487 = vmatpush1.bf16.msra.mxu0 %v1936
    %5488 = vmatprep.subr.bf16.mxu0 %v1935
    %5489 = vmatpush1.bf16.msra.mxu0 %v1934
    %5490 = vmatprep.subr.bf16.mxu0 %v1933
    %5491 = vmatpush1.bf16.msra.mxu0 %v1932
    %5492 = vmatprep.subr.bf16.mxu0 %v1931
    %5493 = vmatpush1.bf16.msra.mxu0 %v1930
    %5494 = vmatprep.subr.bf16.mxu0 %v1961
    %5495 = vmatpush2.bf16.msra.mxu0 %v1960
    %5496 = vmatprep.subr.bf16.mxu0 %v1959
    %5497 = vmatpush2.bf16.msra.mxu0 %v1958
    %5498 = vmatprep.subr.bf16.mxu0 %v1957
    %5499 = vmatpush2.bf16.msra.mxu0 %v1956
    %5500 = vmatprep.subr.bf16.mxu0 %v1955
    %5501 = vmatpush2.bf16.msra.mxu0 %v1954
    %5502 = vmatprep.subr.bf16.mxu0 %v1953
    %5503 = vmatpush2.bf16.msra.mxu0 %v1952
    %5504 = vmatprep.subr.bf16.mxu0 %v1951
    %5505 = vmatpush2.bf16.msra.mxu0 %v1950
    %5506 = vmatprep.subr.bf16.mxu0 %v1949
    %5507 = vmatpush2.bf16.msra.mxu0 %v1948
    %5508 = vmatprep.subr.bf16.mxu0 %v1947
    %5509 = vmatpush2.bf16.msra.mxu0 %v1946
    %5510 = vmatprep.mubr.bf16.mxu0 %v5217
    %5511 = vmatmul.mubr.bf16.gmra.mxu0 %v5215
    %v5512 = vpop.f32.mrf.mxu0
    %v5513 = vadd.f32 %v5472, %v5512
    %v5514 = vpop.f32.mrf.mxu0
    %v5515 = vadd.f32 %v5474, %v5514
    %v5516 = vpop.f32.mrf.mxu0
    %v5517 = vpop.f32.mrf.mxu0
    %5518 = vdwg.mxu0
    %5519 = vmatprep.subr.bf16.mxu0 %v1977
    %5520 = vmatpush1.bf16.msra.mxu0 %v1976
    %5521 = vmatprep.subr.bf16.mxu0 %v1975
    %5522 = vmatpush1.bf16.msra.mxu0 %v1974
    %5523 = vmatprep.subr.bf16.mxu0 %v1973
    %5524 = vmatpush1.bf16.msra.mxu0 %v1972
    %5525 = vmatprep.subr.bf16.mxu0 %v1971
    %5526 = vmatpush1.bf16.msra.mxu0 %v1970
    %5527 = vmatprep.subr.bf16.mxu0 %v1969
    %5528 = vmatpush1.bf16.msra.mxu0 %v1968
    %5529 = vmatprep.subr.bf16.mxu0 %v1967
    %5530 = vmatpush1.bf16.msra.mxu0 %v1966
    %5531 = vmatprep.subr.bf16.mxu0 %v1965
    %5532 = vmatpush1.bf16.msra.mxu0 %v1964
    %5533 = vmatprep.subr.bf16.mxu0 %v1963
    %5534 = vmatpush1.bf16.msra.mxu0 %v1962
    %5535 = vmatprep.subr.bf16.mxu0 %v1993
    %5536 = vmatpush2.bf16.msra.mxu0 %v1992
    %5537 = vmatprep.subr.bf16.mxu0 %v1991
    %5538 = vmatpush2.bf16.msra.mxu0 %v1990
    %5539 = vmatprep.subr.bf16.mxu0 %v1989
    %5540 = vmatpush2.bf16.msra.mxu0 %v1988
    %5541 = vmatprep.subr.bf16.mxu0 %v1987
    %5542 = vmatpush2.bf16.msra.mxu0 %v1986
    %5543 = vmatprep.subr.bf16.mxu0 %v1985
    %5544 = vmatpush2.bf16.msra.mxu0 %v1984
    %5545 = vmatprep.subr.bf16.mxu0 %v1983
    %5546 = vmatpush2.bf16.msra.mxu0 %v1982
    %5547 = vmatprep.subr.bf16.mxu0 %v1981
    %5548 = vmatpush2.bf16.msra.mxu0 %v1980
    %5549 = vmatprep.subr.bf16.mxu0 %v1979
    %5550 = vmatpush2.bf16.msra.mxu0 %v1978
    %5551 = vmatprep.mubr.bf16.mxu0 %v5255
    %5552 = vmatmul.mubr.bf16.gmra.mxu0 %v5241
    %v5553 = vpop.f32.mrf.mxu0
    %v5554 = vadd.f32 %v5513, %v5553
    %v5555 = vpop.f32.mrf.mxu0
    %v5556 = vadd.f32 %v5515, %v5555
    %v5557 = vpop.f32.mrf.mxu0
    %v5558 = vpop.f32.mrf.mxu0
    %5559 = vdwg.mxu0
    %5560 = vmatprep.subr.bf16.mxu0 %v2009
    %5561 = vmatpush1.bf16.msra.mxu0 %v2008
    %5562 = vmatprep.subr.bf16.mxu0 %v2007
    %5563 = vmatpush1.bf16.msra.mxu0 %v2006
    %5564 = vmatprep.subr.bf16.mxu0 %v2005
    %5565 = vmatpush1.bf16.msra.mxu0 %v2004
    %5566 = vmatprep.subr.bf16.mxu0 %v2003
    %5567 = vmatpush1.bf16.msra.mxu0 %v2002
    %5568 = vmatprep.subr.bf16.mxu0 %v2001
    %5569 = vmatpush1.bf16.msra.mxu0 %v2000
    %5570 = vmatprep.subr.bf16.mxu0 %v1999
    %5571 = vmatpush1.bf16.msra.mxu0 %v1998
    %5572 = vmatprep.subr.bf16.mxu0 %v1997
    %5573 = vmatpush1.bf16.msra.mxu0 %v1996
    %5574 = vmatprep.subr.bf16.mxu0 %v1995
    %5575 = vmatpush1.bf16.msra.mxu0 %v1994
    %5576 = vmatprep.subr.bf16.mxu0 %v2025
    %5577 = vmatpush2.bf16.msra.mxu0 %v2024
    %5578 = vmatprep.subr.bf16.mxu0 %v2023
    %5579 = vmatpush2.bf16.msra.mxu0 %v2022
    %5580 = vmatprep.subr.bf16.mxu0 %v2021
    %5581 = vmatpush2.bf16.msra.mxu0 %v2020
    %5582 = vmatprep.subr.bf16.mxu0 %v2019
    %5583 = vmatpush2.bf16.msra.mxu0 %v2018
    %5584 = vmatprep.subr.bf16.mxu0 %v2017
    %5585 = vmatpush2.bf16.msra.mxu0 %v2016
    %5586 = vmatprep.subr.bf16.mxu0 %v2015
    %5587 = vmatpush2.bf16.msra.mxu0 %v2014
    %5588 = vmatprep.subr.bf16.mxu0 %v2013
    %5589 = vmatpush2.bf16.msra.mxu0 %v2012
    %5590 = vmatprep.subr.bf16.mxu0 %v2011
    %5591 = vmatpush2.bf16.msra.mxu0 %v2010
    %5592 = vmatprep.mubr.bf16.mxu0 %v5265
    %5593 = vmatmul.mubr.bf16.gmra.mxu0 %v5263
    %v5594 = vpop.f32.mrf.mxu0
    %v5595 = vadd.f32 %v5554, %v5594
    %v5596 = vpop.f32.mrf.mxu0
    %v5597 = vadd.f32 %v5556, %v5596
    %v5598 = vpop.f32.mrf.mxu0
    %v5599 = vpop.f32.mrf.mxu0
    %5600 = vdwg.mxu0
    %5601 = vmatprep.subr.bf16.mxu0 %v2041
    %5602 = vmatpush1.bf16.msra.mxu0 %v2040
    %5603 = vmatprep.subr.bf16.mxu0 %v2039
    %5604 = vmatpush1.bf16.msra.mxu0 %v2038
    %5605 = vmatprep.subr.bf16.mxu0 %v2037
    %5606 = vmatpush1.bf16.msra.mxu0 %v2036
    %5607 = vmatprep.subr.bf16.mxu0 %v2035
    %5608 = vmatpush1.bf16.msra.mxu0 %v2034
    %5609 = vmatprep.subr.bf16.mxu0 %v2033
    %5610 = vmatpush1.bf16.msra.mxu0 %v2032
    %5611 = vmatprep.subr.bf16.mxu0 %v2031
    %5612 = vmatpush1.bf16.msra.mxu0 %v2030
    %5613 = vmatprep.subr.bf16.mxu0 %v2029
    %5614 = vmatpush1.bf16.msra.mxu0 %v2028
    %5615 = vmatprep.subr.bf16.mxu0 %v2027
    %5616 = vmatpush1.bf16.msra.mxu0 %v2026
    %5617 = vmatprep.subr.bf16.mxu0 %v2057
    %5618 = vmatpush2.bf16.msra.mxu0 %v2056
    %5619 = vmatprep.subr.bf16.mxu0 %v2055
    %5620 = vmatpush2.bf16.msra.mxu0 %v2054
    %5621 = vmatprep.subr.bf16.mxu0 %v2053
    %5622 = vmatpush2.bf16.msra.mxu0 %v2052
    %5623 = vmatprep.subr.bf16.mxu0 %v2051
    %5624 = vmatpush2.bf16.msra.mxu0 %v2050
    %5625 = vmatprep.subr.bf16.mxu0 %v2049
    %5626 = vmatpush2.bf16.msra.mxu0 %v2048
    %5627 = vmatprep.subr.bf16.mxu0 %v2047
    %5628 = vmatpush2.bf16.msra.mxu0 %v2046
    %5629 = vmatprep.subr.bf16.mxu0 %v2045
    %5630 = vmatpush2.bf16.msra.mxu0 %v2044
    %5631 = vmatprep.subr.bf16.mxu0 %v2043
    %5632 = vmatpush2.bf16.msra.mxu0 %v2042
    %5633 = vmatprep.mubr.bf16.mxu0 %v5262
    %5634 = vmatmul.mubr.bf16.gmra.mxu0 %v5248
    %v5635 = vpop.f32.mrf.mxu0
    %v5636 = vadd.f32 %v5595, %v5635
    %v5637 = vpop.f32.mrf.mxu0
    %v5638 = vadd.f32 %v5597, %v5637
    %v5639 = vpop.f32.mrf.mxu0
    %v5640 = vpop.f32.mrf.mxu0
    %5641 = vdwg.mxu0
    %5642 = vmatprep.subr.bf16.mxu0 %v2073
    %5643 = vmatpush1.bf16.msra.mxu0 %v2072
    %5644 = vmatprep.subr.bf16.mxu0 %v2071
    %5645 = vmatpush1.bf16.msra.mxu0 %v2070
    %5646 = vmatprep.subr.bf16.mxu0 %v2069
    %5647 = vmatpush1.bf16.msra.mxu0 %v2068
    %5648 = vmatprep.subr.bf16.mxu0 %v2067
    %5649 = vmatpush1.bf16.msra.mxu0 %v2066
    %5650 = vmatprep.subr.bf16.mxu0 %v2065
    %5651 = vmatpush1.bf16.msra.mxu0 %v2064
    %5652 = vmatprep.subr.bf16.mxu0 %v2063
    %5653 = vmatpush1.bf16.msra.mxu0 %v2062
    %5654 = vmatprep.subr.bf16.mxu0 %v2061
    %5655 = vmatpush1.bf16.msra.mxu0 %v2060
    %5656 = vmatprep.subr.bf16.mxu0 %v2059
    %5657 = vmatpush1.bf16.msra.mxu0 %v2058
    %5658 = vmatprep.subr.bf16.mxu0 %v2089
    %5659 = vmatpush2.bf16.msra.mxu0 %v2088
    %5660 = vmatprep.subr.bf16.mxu0 %v2087
    %5661 = vmatpush2.bf16.msra.mxu0 %v2086
    %5662 = vmatprep.subr.bf16.mxu0 %v2085
    %5663 = vmatpush2.bf16.msra.mxu0 %v2084
    %5664 = vmatprep.subr.bf16.mxu0 %v2083
    %5665 = vmatpush2.bf16.msra.mxu0 %v2082
    %5666 = vmatprep.subr.bf16.mxu0 %v2081
    %5667 = vmatpush2.bf16.msra.mxu0 %v2080
    %5668 = vmatprep.subr.bf16.mxu0 %v2079
    %5669 = vmatpush2.bf16.msra.mxu0 %v2078
    %5670 = vmatprep.subr.bf16.mxu0 %v2077
    %5671 = vmatpush2.bf16.msra.mxu0 %v2076
    %5672 = vmatprep.subr.bf16.mxu0 %v2075
    %5673 = vmatpush2.bf16.msra.mxu0 %v2074
    %5674 = vmatprep.mubr.bf16.mxu0 %v5266
    %5675 = vmatmul.mubr.bf16.gmra.mxu0 %v5264
    %v5676 = vpop.f32.mrf.mxu0
    %v5677 = vadd.f32 %v5636, %v5676
    %v5678 = vpop.f32.mrf.mxu0
    %v5679 = vadd.f32 %v5638, %v5678
    %v5680 = vpop.f32.mrf.mxu0
    %v5681 = vpop.f32.mrf.mxu0
    %5682 = vdwg.mxu0
    %5683 = vmatprep.subr.bf16.mxu0 %v2105
    %5684 = vmatpush1.bf16.msra.mxu0 %v2104
    %5685 = vmatprep.subr.bf16.mxu0 %v2103
    %5686 = vmatpush1.bf16.msra.mxu0 %v2102
    %5687 = vmatprep.subr.bf16.mxu0 %v2101
    %5688 = vmatpush1.bf16.msra.mxu0 %v2100
    %5689 = vmatprep.subr.bf16.mxu0 %v2099
    %5690 = vmatpush1.bf16.msra.mxu0 %v2098
    %5691 = vmatprep.subr.bf16.mxu0 %v2097
    %5692 = vmatpush1.bf16.msra.mxu0 %v2096
    %5693 = vmatprep.subr.bf16.mxu0 %v2095
    %5694 = vmatpush1.bf16.msra.mxu0 %v2094
    %5695 = vmatprep.subr.bf16.mxu0 %v2093
    %5696 = vmatpush1.bf16.msra.mxu0 %v2092
    %5697 = vmatprep.subr.bf16.mxu0 %v2091
    %5698 = vmatpush1.bf16.msra.mxu0 %v2090
    %5699 = vmatprep.subr.bf16.mxu0 %v2121
    %5700 = vmatpush2.bf16.msra.mxu0 %v2120
    %5701 = vmatprep.subr.bf16.mxu0 %v2119
    %5702 = vmatpush2.bf16.msra.mxu0 %v2118
    %5703 = vmatprep.subr.bf16.mxu0 %v2117
    %5704 = vmatpush2.bf16.msra.mxu0 %v2116
    %5705 = vmatprep.subr.bf16.mxu0 %v2115
    %5706 = vmatpush2.bf16.msra.mxu0 %v2114
    %5707 = vmatprep.subr.bf16.mxu0 %v2113
    %5708 = vmatpush2.bf16.msra.mxu0 %v2112
    %5709 = vmatprep.subr.bf16.mxu0 %v2111
    %5710 = vmatpush2.bf16.msra.mxu0 %v2110
    %5711 = vmatprep.subr.bf16.mxu0 %v2109
    %5712 = vmatpush2.bf16.msra.mxu0 %v2108
    %5713 = vmatprep.subr.bf16.mxu0 %v2107
    %5714 = vmatpush2.bf16.msra.mxu0 %v2106
    %5715 = vmatprep.mubr.bf16.mxu0 %v5304
    %5716 = vmatmul.mubr.bf16.gmra.mxu0 %v5290
    %v5717 = vpop.f32.mrf.mxu0
    %v5718 = vadd.f32 %v5677, %v5717
    %v5719 = vpop.f32.mrf.mxu0
    %v5720 = vadd.f32 %v5679, %v5719
    %v5721 = vpop.f32.mrf.mxu0
    %v5722 = vpop.f32.mrf.mxu0
    %5723 = vdwg.mxu0
    %5724 = vmatprep.subr.bf16.mxu0 %v2137
    %5725 = vmatpush1.bf16.msra.mxu0 %v2136
    %5726 = vmatprep.subr.bf16.mxu0 %v2135
    %5727 = vmatpush1.bf16.msra.mxu0 %v2134
    %5728 = vmatprep.subr.bf16.mxu0 %v2133
    %5729 = vmatpush1.bf16.msra.mxu0 %v2132
    %5730 = vmatprep.subr.bf16.mxu0 %v2131
    %5731 = vmatpush1.bf16.msra.mxu0 %v2130
    %5732 = vmatprep.subr.bf16.mxu0 %v2129
    %5733 = vmatpush1.bf16.msra.mxu0 %v2128
    %5734 = vmatprep.subr.bf16.mxu0 %v2127
    %5735 = vmatpush1.bf16.msra.mxu0 %v2126
    %5736 = vmatprep.subr.bf16.mxu0 %v2125
    %5737 = vmatpush1.bf16.msra.mxu0 %v2124
    %5738 = vmatprep.subr.bf16.mxu0 %v2123
    %5739 = vmatpush1.bf16.msra.mxu0 %v2122
    %5740 = vmatprep.subr.bf16.mxu0 %v2153
    %5741 = vmatpush2.bf16.msra.mxu0 %v2152
    %5742 = vmatprep.subr.bf16.mxu0 %v2151
    %5743 = vmatpush2.bf16.msra.mxu0 %v2150
    %5744 = vmatprep.subr.bf16.mxu0 %v2149
    %5745 = vmatpush2.bf16.msra.mxu0 %v2148
    %5746 = vmatprep.subr.bf16.mxu0 %v2147
    %5747 = vmatpush2.bf16.msra.mxu0 %v2146
    %5748 = vmatprep.subr.bf16.mxu0 %v2145
    %5749 = vmatpush2.bf16.msra.mxu0 %v2144
    %5750 = vmatprep.subr.bf16.mxu0 %v2143
    %5751 = vmatpush2.bf16.msra.mxu0 %v2142
    %5752 = vmatprep.subr.bf16.mxu0 %v2141
    %5753 = vmatpush2.bf16.msra.mxu0 %v2140
    %5754 = vmatprep.subr.bf16.mxu0 %v2139
    %5755 = vmatpush2.bf16.msra.mxu0 %v2138
    %5756 = vmatprep.mubr.bf16.mxu0 %v5314
    %5757 = vmatmul.mubr.bf16.gmra.mxu0 %v5312
    %v5758 = vpop.f32.mrf.mxu0
    %v5759 = vadd.f32 %v5718, %v5758
    %v5760 = vpop.f32.mrf.mxu0
    %v5761 = vadd.f32 %v5720, %v5760
    %v5762 = vpop.f32.mrf.mxu0
    %v5763 = vpop.f32.mrf.mxu0
    %5764 = vdwg.mxu0
    %5765 = vmatprep.subr.bf16.mxu0 %v2169
    %5766 = vmatpush1.bf16.msra.mxu0 %v2168
    %5767 = vmatprep.subr.bf16.mxu0 %v2167
    %5768 = vmatpush1.bf16.msra.mxu0 %v2166
    %5769 = vmatprep.subr.bf16.mxu0 %v2165
    %5770 = vmatpush1.bf16.msra.mxu0 %v2164
    %5771 = vmatprep.subr.bf16.mxu0 %v2163
    %5772 = vmatpush1.bf16.msra.mxu0 %v2162
    %5773 = vmatprep.subr.bf16.mxu0 %v2161
    %5774 = vmatpush1.bf16.msra.mxu0 %v2160
    %5775 = vmatprep.subr.bf16.mxu0 %v2159
    %5776 = vmatpush1.bf16.msra.mxu0 %v2158
    %5777 = vmatprep.subr.bf16.mxu0 %v2157
    %5778 = vmatpush1.bf16.msra.mxu0 %v2156
    %5779 = vmatprep.subr.bf16.mxu0 %v2155
    %5780 = vmatpush1.bf16.msra.mxu0 %v2154
    %5781 = vmatprep.subr.bf16.mxu0 %v2185
    %5782 = vmatpush2.bf16.msra.mxu0 %v2184
    %5783 = vmatprep.subr.bf16.mxu0 %v2183
    %5784 = vmatpush2.bf16.msra.mxu0 %v2182
    %5785 = vmatprep.subr.bf16.mxu0 %v2181
    %5786 = vmatpush2.bf16.msra.mxu0 %v2180
    %5787 = vmatprep.subr.bf16.mxu0 %v2179
    %5788 = vmatpush2.bf16.msra.mxu0 %v2178
    %5789 = vmatprep.subr.bf16.mxu0 %v2177
    %5790 = vmatpush2.bf16.msra.mxu0 %v2176
    %5791 = vmatprep.subr.bf16.mxu0 %v2175
    %5792 = vmatpush2.bf16.msra.mxu0 %v2174
    %5793 = vmatprep.subr.bf16.mxu0 %v2173
    %5794 = vmatpush2.bf16.msra.mxu0 %v2172
    %5795 = vmatprep.subr.bf16.mxu0 %v2171
    %5796 = vmatpush2.bf16.msra.mxu0 %v2170
    %5797 = vmatprep.mubr.bf16.mxu0 %v5311
    %5798 = vmatmul.mubr.bf16.gmra.mxu0 %v5297
    %v5799 = vpop.f32.mrf.mxu0
    %v5800 = vadd.f32 %v5759, %v5799
    %v5801 = vpop.f32.mrf.mxu0
    %v5802 = vadd.f32 %v5761, %v5801
    %v5803 = vpop.f32.mrf.mxu0
    %v5804 = vpop.f32.mrf.mxu0
    %5805 = vdwg.mxu0
    %5806 = vmatprep.subr.bf16.mxu0 %v2201
    %5807 = vmatpush1.bf16.msra.mxu0 %v2200
    %5808 = vmatprep.subr.bf16.mxu0 %v2199
    %5809 = vmatpush1.bf16.msra.mxu0 %v2198
    %5810 = vmatprep.subr.bf16.mxu0 %v2197
    %5811 = vmatpush1.bf16.msra.mxu0 %v2196
    %5812 = vmatprep.subr.bf16.mxu0 %v2195
    %5813 = vmatpush1.bf16.msra.mxu0 %v2194
    %5814 = vmatprep.subr.bf16.mxu0 %v2193
    %5815 = vmatpush1.bf16.msra.mxu0 %v2192
    %5816 = vmatprep.subr.bf16.mxu0 %v2191
    %5817 = vmatpush1.bf16.msra.mxu0 %v2190
    %5818 = vmatprep.subr.bf16.mxu0 %v2189
    %5819 = vmatpush1.bf16.msra.mxu0 %v2188
    %5820 = vmatprep.subr.bf16.mxu0 %v2187
    %5821 = vmatpush1.bf16.msra.mxu0 %v2186
    %5822 = vmatprep.subr.bf16.mxu0 %v2217
    %5823 = vmatpush2.bf16.msra.mxu0 %v2216
    %5824 = vmatprep.subr.bf16.mxu0 %v2215
    %5825 = vmatpush2.bf16.msra.mxu0 %v2214
    %5826 = vmatprep.subr.bf16.mxu0 %v2213
    %5827 = vmatpush2.bf16.msra.mxu0 %v2212
    %5828 = vmatprep.subr.bf16.mxu0 %v2211
    %5829 = vmatpush2.bf16.msra.mxu0 %v2210
    %5830 = vmatprep.subr.bf16.mxu0 %v2209
    %5831 = vmatpush2.bf16.msra.mxu0 %v2208
    %5832 = vmatprep.subr.bf16.mxu0 %v2207
    %5833 = vmatpush2.bf16.msra.mxu0 %v2206
    %5834 = vmatprep.subr.bf16.mxu0 %v2205
    %5835 = vmatpush2.bf16.msra.mxu0 %v2204
    %5836 = vmatprep.subr.bf16.mxu0 %v2203
    %5837 = vmatpush2.bf16.msra.mxu0 %v2202
    %5838 = vmatprep.mubr.bf16.mxu0 %v5315
    %5839 = vmatmul.mubr.bf16.gmra.mxu0 %v5313
    %v5840 = vpop.f32.mrf.mxu0
    %v5841 = vadd.f32 %v5800, %v5840
    %v5842 = vpop.f32.mrf.mxu0
    %v5843 = vadd.f32 %v5802, %v5842
    %v5844 = vpop.f32.mrf.mxu0
    %v5845 = vpop.f32.mrf.mxu0
    %5846 = vdwg.mxu0
    %5847 = vmatprep.subr.bf16.mxu0 %v2233
    %5848 = vmatpush1.bf16.msra.mxu0 %v2232
    %5849 = vmatprep.subr.bf16.mxu0 %v2231
    %5850 = vmatpush1.bf16.msra.mxu0 %v2230
    %5851 = vmatprep.subr.bf16.mxu0 %v2229
    %5852 = vmatpush1.bf16.msra.mxu0 %v2228
    %5853 = vmatprep.subr.bf16.mxu0 %v2227
    %5854 = vmatpush1.bf16.msra.mxu0 %v2226
    %5855 = vmatprep.subr.bf16.mxu0 %v2225
    %5856 = vmatpush1.bf16.msra.mxu0 %v2224
    %5857 = vmatprep.subr.bf16.mxu0 %v2223
    %5858 = vmatpush1.bf16.msra.mxu0 %v2222
    %5859 = vmatprep.subr.bf16.mxu0 %v2221
    %5860 = vmatpush1.bf16.msra.mxu0 %v2220
    %5861 = vmatprep.subr.bf16.mxu0 %v2219
    %5862 = vmatpush1.bf16.msra.mxu0 %v2218
    %5863 = vmatprep.subr.bf16.mxu0 0
    %5864 = vmatpush2.bf16.msra.mxu0 0
    %5865 = vmatprep.subr.bf16.mxu0 0
    %5866 = vmatpush2.bf16.msra.mxu0 0
    %5867 = vmatprep.subr.bf16.mxu0 0
    %5868 = vmatpush2.bf16.msra.mxu0 0
    %5869 = vmatprep.subr.bf16.mxu0 0
    %5870 = vmatpush2.bf16.msra.mxu0 0
    %5871 = vmatprep.subr.bf16.mxu0 0
    %5872 = vmatpush2.bf16.msra.mxu0 0
    %5873 = vmatprep.subr.bf16.mxu0 0
    %5874 = vmatpush2.bf16.msra.mxu0 0
    %5875 = vmatprep.subr.bf16.mxu0 0
    %5876 = vmatpush2.bf16.msra.mxu0 0
    %5877 = vmatprep.subr.bf16.mxu0 0
    %5878 = vmatpush2.bf16.msra.mxu0 0
    %5879 = vmatprep.mubr.bf16.mxu0 0
    %5880 = vmatmul.mubr.bf16.gmra.mxu0 %v5329
    %v5881 = vpop.f32.mrf.mxu0
    %v5882 = vadd.f32 %v5841, %v5881
    %v5883 = vpop.f32.mrf.mxu0
    %v5884 = vadd.f32 %v5843, %v5883
    %v5885 = vpop.f32.mrf.mxu0
    %v5886 = vpop.f32.mrf.mxu0
    %5887 = vdwg.mxu0
    %v5888 = vmul.f32 %v5882, 0.1997
    %v5889 = vmul.f32 %v5884, 0.1997
    %v5890 = vadd.f32 %v5888, 0.5002
    %v5891 = vadd.f32 %v5889, 0.5002
    %v5892 = vmul.f32 %v5882, %v5890
    %v5893 = vmul.f32 %v5884, %v5891
    %v5894 = vadd.f32 %v5892, 0.1992
    %v5895 = vadd.f32 %v5893, 0.1992
    %v5896 = vpack.c.bf16 %v5894, %v5894
    %v5897 = vpack.c.bf16 %v5895, %v5895
    %s5898 = scalar_lea.vmem %s3, 384
    %v5899 = vld [vmem:[%s5898] sm:$0xf]
    %v5900 = vld [vmem:[%s5898 + $0x4] sm:$0xf]
    %v5901 = vld [vmem:[%s5898 + $0x8] sm:$0xf]
    %v5902 = vld [vmem:[%s5898 + $0xc] sm:$0xf]
    %v5903 = vld [vmem:[%s5898 + $0x10] sm:$0xf]
    %v5904 = vld [vmem:[%s5898 + $0x14] sm:$0xf]
    %v5905 = vld [vmem:[%s5898 + $0x18] sm:$0xf]
    %v5906 = vld [vmem:[%s5898 + $0x1c] sm:$0xf]
    %v5907 = vld [vmem:[%s5898 + $0x20] sm:$0xf]
    %v5908 = vld [vmem:[%s5898 + $0x24] sm:$0xf]
    %v5909 = vld [vmem:[%s5898 + $0x28] sm:$0xf]
    %v5910 = vld [vmem:[%s5898 + $0x2c] sm:$0xf]
    %v5911 = vld [vmem:[%s5898 + $0x30] sm:$0xf]
    %v5912 = vld [vmem:[%s5898 + $0x34] sm:$0xf]
    %v5913 = vld [vmem:[%s5898 + $0x38] sm:$0xf]
    %v5914 = vld [vmem:[%s5898 + $0x3c] sm:$0xf]
    %v5915 = vld [vmem:[%s5898 + $0x40] sm:$0xf]
    %v5916 = vld [vmem:[%s5898 + $0x44] sm:$0xf]
    %v5917 = vld [vmem:[%s5898 + $0x48] sm:$0xf]
    %v5918 = vld [vmem:[%s5898 + $0x4c] sm:$0xf]
    %v5919 = vld [vmem:[%s5898 + $0x50] sm:$0xf]
    %v5920 = vld [vmem:[%s5898 + $0x54] sm:$0xf]
    %v5921 = vld [vmem:[%s5898 + $0x58] sm:$0xf]
    %v5922 = vld [vmem:[%s5898 + $0x5c] sm:$0xf]
    %v5923 = vld [vmem:[%s5898 + $0x60] sm:$0xf]
    %v5924 = vld [vmem:[%s5898 + $0x64] sm:$0xf]
    %v5925 = vld [vmem:[%s5898 + $0x68] sm:$0xf]
    %v5926 = vld [vmem:[%s5898 + $0x6c] sm:$0xf]
    %v5927 = vld [vmem:[%s5898 + $0x70] sm:$0xf]
    %v5928 = vld [vmem:[%s5898 + $0x74] sm:$0xf]
    %v5929 = vld [vmem:[%s5898 + $0x78] sm:$0xf]
    %v5930 = vld [vmem:[%s5898 + $0x7c] sm:$0xf]
    %v5963 = vunpack.c.l.b16 %v5899
    %v5964 = vunpack.c.l.b16 %v5900
    %v5965 = vunpack.c.l.b16 %v5901
    %v5966 = vunpack.c.l.b16 %v5902
    %v5967 = vunpack.c.l.b16 %v5903
    %v5968 = vunpack.c.l.b16 %v5904
    %v5969 = vunpack.c.l.b16 %v5905
    %v5970 = vunpack.c.l.b16 %v5906
    %v5971 = vunpack.c.l.b16 %v5907
    %v5972 = vunpack.c.l.b16 %v5908
    %v5973 = vunpack.c.l.b16 %v5909
    %v5974 = vunpack.c.l.b16 %v5910
    %v5975 = vunpack.c.l.b16 %v5911
    %v5976 = vunpack.c.l.b16 %v5912
    %v5977 = vunpack.c.l.b16 %v5913
    %v5978 = vunpack.c.l.b16 %v5914
    %v5979 = vunpack.c.l.b16 %v5915
    %v5980 = vunpack.c.l.b16 %v5916
    %v5981 = vunpack.c.l.b16 %v5917
    %v5982 = vunpack.c.l.b16 %v5918
    %v5983 = vunpack.c.l.b16 %v5919
    %v5984 = vunpack.c.l.b16 %v5920
    %v5985 = vunpack.c.l.b16 %v5921
    %v5986 = vunpack.c.l.b16 %v5922
    %v5987 = vunpack.c.l.b16 %v5923
    %v5988 = vunpack.c.l.b16 %v5924
    %v5989 = vunpack.c.l.b16 %v5925
    %v5990 = vunpack.c.l.b16 %v5926
    %v5991 = vunpack.c.l.b16 %v5927
    %v5992 = vunpack.c.l.b16 %v5928
    %v5993 = vunpack.c.l.b16 %v5929
    %v5994 = vunpack.c.l.b16 %v5930
    %v5995 = vpack.c.b16 %v5964, %v5963
    %v5996 = vpack.c.b16 %v5966, %v5965
    %v5997 = vpack.c.b16 %v5968, %v5967
    %v5998 = vpack.c.b16 %v5970, %v5969
    %v5999 = vpack.c.b16 %v5972, %v5971
    %v6000 = vpack.c.b16 %v5974, %v5973
    %v6001 = vpack.c.b16 %v5976, %v5975
    %v6002 = vpack.c.b16 %v5978, %v5977
    %v6003 = vpack.c.b16 %v5980, %v5979
    %v6004 = vpack.c.b16 %v5982, %v5981
    %v6005 = vpack.c.b16 %v5984, %v5983
    %v6006 = vpack.c.b16 %v5986, %v5985
    %v6007 = vpack.c.b16 %v5988, %v5987
    %v6008 = vpack.c.b16 %v5990, %v5989
    %v6009 = vpack.c.b16 %v5992, %v5991
    %v6010 = vpack.c.b16 %v5994, %v5993
    %6027 = vmatprep.subr.bf16.mxu0 0
    %6028 = vmatpush1.bf16.msra.mxu0 %v6002
    %6029 = vmatprep.subr.bf16.mxu0 0
    %6030 = vmatpush1.bf16.msra.mxu0 %v6001
    %6031 = vmatprep.subr.bf16.mxu0 0
    %6032 = vmatpush1.bf16.msra.mxu0 %v6000
    %6033 = vmatprep.subr.bf16.mxu0 0
    %6034 = vmatpush1.bf16.msra.mxu0 %v5999
    %6035 = vmatprep.subr.bf16.mxu0 0
    %6036 = vmatpush1.bf16.msra.mxu0 %v5998
    %6037 = vmatprep.subr.bf16.mxu0 0
    %6038 = vmatpush1.bf16.msra.mxu0 %v5997
    %6039 = vmatprep.subr.bf16.mxu0 0
    %6040 = vmatpush1.bf16.msra.mxu0 %v5996
    %6041 = vmatprep.subr.bf16.mxu0 0
    %6042 = vmatpush1.bf16.msra.mxu0 %v5995
    %6043 = vmatprep.subr.bf16.mxu0 0
    %6044 = vmatpush2.bf16.msra.mxu0 %v6010
    %6045 = vmatprep.subr.bf16.mxu0 0
    %6046 = vmatpush2.bf16.msra.mxu0 %v6009
    %6047 = vmatprep.subr.bf16.mxu0 0
    %6048 = vmatpush2.bf16.msra.mxu0 %v6008
    %6049 = vmatprep.subr.bf16.mxu0 0
    %6050 = vmatpush2.bf16.msra.mxu0 %v6007
    %6051 = vmatprep.subr.bf16.mxu0 0
    %6052 = vmatpush2.bf16.msra.mxu0 %v6006
    %6053 = vmatprep.subr.bf16.mxu0 0
    %6054 = vmatpush2.bf16.msra.mxu0 %v6005
    %6055 = vmatprep.subr.bf16.mxu0 0
    %6056 = vmatpush2.bf16.msra.mxu0 %v6004
    %6057 = vmatprep.subr.bf16.mxu0 0
    %6058 = vmatpush2.bf16.msra.mxu0 %v6003
    %6059 = vmatprep.mubr.bf16.mxu0 %v5897
    %6060 = vmatmul.mubr.bf16.gmra.mxu0 %v5896
    %v6061 = vpop.f32.mrf.mxu0
    %v6062 = vadd.f32 0.0, %v6061
    %v6063 = vpop.f32.mrf.mxu0
    %v6064 = vpop.f32.mrf.mxu0
    %v6065 = vpop.f32.mrf.mxu0
    %6066 = vdwg.mxu0
    %v6067 = vadd.f32 %v5159, %v6062
    %v6068 = vld [vmem:[%s4] sm:$0x1]
    %v6070 = vlaneseq
    %v6071 = vshrl.u32 %v6070, 7
    %v6072 = vsub.s32 0, %v6071
    %v6073 = vrot.slane %v6068, %v6072
    %v6075 = vadd.f32 %v6067, %v6073
    %v6076 = vpack.c.bf16 %v6075, %v6075
    %v6077 = vld [vmem:[%s5] sm:$0xf]
    %v6078 = vld [vmem:[%s5 + $0x4] sm:$0xf]
    %v6079 = vld [vmem:[%s5 + $0x8] sm:$0xf]
    %v6080 = vld [vmem:[%s5 + $0xc] sm:$0xf]
    %v6081 = vld [vmem:[%s5 + $0x10] sm:$0xf]
    %v6082 = vld [vmem:[%s5 + $0x14] sm:$0xf]
    %v6083 = vld [vmem:[%s5 + $0x18] sm:$0xf]
    %v6084 = vld [vmem:[%s5 + $0x1c] sm:$0xf]
    %v6085 = vld [vmem:[%s5 + $0x20] sm:$0xf]
    %v6086 = vld [vmem:[%s5 + $0x24] sm:$0xf]
    %v6087 = vld [vmem:[%s5 + $0x28] sm:$0xf]
    %v6088 = vld [vmem:[%s5 + $0x2c] sm:$0xf]
    %v6089 = vld [vmem:[%s5 + $0x30] sm:$0xf]
    %v6090 = vld [vmem:[%s5 + $0x34] sm:$0xf]
    %v6091 = vld [vmem:[%s5 + $0x38] sm:$0xf]
    %v6092 = vld [vmem:[%s5 + $0x3c] sm:$0xf]
    %v6093 = vld [vmem:[%s6] sm:$0x1]
    %v6095 = vlaneseq
    %v6096 = vshrl.u32 %v6095, 7
    %v6097 = vsub.s32 0, %v6096
    %v6098 = vrot.slane %v6093, %v6097
    %v6116 = vunpack.c.l.b16 %v6077
    %v6117 = vunpack.c.l.b16 %v6078
    %v6118 = vunpack.c.l.b16 %v6079
    %v6119 = vunpack.c.l.b16 %v6080
    %v6120 = vunpack.c.l.b16 %v6081
    %v6121 = vunpack.c.l.b16 %v6082
    %v6122 = vunpack.c.l.b16 %v6083
    %v6123 = vunpack.c.l.b16 %v6084
    %v6124 = vunpack.c.l.b16 %v6085
    %v6125 = vunpack.c.l.b16 %v6086
    %v6126 = vunpack.c.l.b16 %v6087
    %v6127 = vunpack.c.l.b16 %v6088
    %v6128 = vunpack.c.l.b16 %v6089
    %v6129 = vunpack.c.l.b16 %v6090
    %v6130 = vunpack.c.l.b16 %v6091
    %v6131 = vunpack.c.l.b16 %v6092
    %v6132 = vpack.c.b16 %v6117, %v6116
    %v6133 = vpack.c.b16 %v6119, %v6118
    %v6134 = vpack.c.b16 %v6121, %v6120
    %v6135 = vpack.c.b16 %v6123, %v6122
    %v6136 = vpack.c.b16 %v6125, %v6124
    %v6137 = vpack.c.b16 %v6127, %v6126
    %v6138 = vpack.c.b16 %v6129, %v6128
    %v6139 = vpack.c.b16 %v6131, %v6130
    %6148 = vmatprep.subr.bf16.mxu0 0
    %6149 = vmatpush1.bf16.msra.mxu0 %v6139
    %6150 = vmatprep.subr.bf16.mxu0 0
    %6151 = vmatpush1.bf16.msra.mxu0 %v6138
    %6152 = vmatprep.subr.bf16.mxu0 0
    %6153 = vmatpush1.bf16.msra.mxu0 %v6137
    %6154 = vmatprep.subr.bf16.mxu0 0
    %6155 = vmatpush1.bf16.msra.mxu0 %v6136
    %6156 = vmatprep.subr.bf16.mxu0 0
    %6157 = vmatpush1.bf16.msra.mxu0 %v6135
    %6158 = vmatprep.subr.bf16.mxu0 0
    %6159 = vmatpush1.bf16.msra.mxu0 %v6134
    %6160 = vmatprep.subr.bf16.mxu0 0
    %6161 = vmatpush1.bf16.msra.mxu0 %v6133
    %6162 = vmatprep.subr.bf16.mxu0 0
    %6163 = vmatpush1.bf16.msra.mxu0 %v6132
    %6164 = vmatprep.subr.bf16.mxu0 0
    %6165 = vmatpush2.bf16.msra.mxu0 0
    %6166 = vmatprep.subr.bf16.mxu0 0
    %6167 = vmatpush2.bf16.msra.mxu0 0
    %6168 = vmatprep.subr.bf16.mxu0 0
    %6169 = vmatpush2.bf16.msra.mxu0 0
    %6170 = vmatprep.subr.bf16.mxu0 0
    %6171 = vmatpush2.bf16.msra.mxu0 0
    %6172 = vmatprep.subr.bf16.mxu0 0
    %6173 = vmatpush2.bf16.msra.mxu0 0
    %6174 = vmatprep.subr.bf16.mxu0 0
    %6175 = vmatpush2.bf16.msra.mxu0 0
    %6176 = vmatprep.subr.bf16.mxu0 0
    %6177 = vmatpush2.bf16.msra.mxu0 0
    %6178 = vmatprep.subr.bf16.mxu0 0
    %6179 = vmatpush2.bf16.msra.mxu0 0
    %6180 = vmatprep.mubr.bf16.mxu0 0
    %6181 = vmatmul.mubr.bf16.gmra.mxu0 %v6076
    %v6182 = vpop.f32.mrf.mxu0
    %v6183 = vadd.f32 %v6098, %v6182
    %v6184 = vpop.f32.mrf.mxu0
    %v6185 = vpop.f32.mrf.mxu0
    %v6186 = vpop.f32.mrf.mxu0
    %6187 = vdwg.mxu0
    %6188 = vst [vmem:[#allocation2] sm:$0x3] %v6183
    // Predicated region
    $region30: #{forward.5} parent=1 // pred_check
      _
    $region31: #{forward.5} parent=1 // pred_check_branch
      %6190 = sbr.rel (0) target = $region33
    $region32: #{forward.5} parent=1 // pred_region
      %s6192 = ssub.s32 32, 32
      %6193 = vsyncadd [#allocation3], %s6192
      %s6195 = sshll.u32 [#allocation2], 4
      %s6196 = int_to_ptr.vmem [resolvable:$true] %s6195
      %6198 = dma.vmem_to_hbm [thread:$0]  %s6196, 32, %s7, [#allocation3]
    $region33: #{forward.5} parent=1 // pred_fallthru
      _
    // Predicated region
    $region34: #{forward.5} parent=1 // pred_check
      _
    $region35: #{forward.5} parent=1 // pred_check_branch
      %6200 = sbr.rel (0) target = $region37
    $region36: #{forward.5} parent=1 // pred_region
      %6201 = dma.done [#allocation3], 32
    $region37: #{forward.5} parent=1 // pred_fallthru
      _
    %6202 = vsyncpa [#allocation3], 1

</llo_original>
